<compile_context>
chip_gen: v7x
topology: tpu7x:2x2x1
jax: 0.10.0
libtpu: 0.0.40
codegen_flags: <defaults>
</compile_context>

<pallas_src>
import jax
import jax.numpy as jnp
from jax import lax
from jax.experimental import pallas as pl
from jax.experimental.pallas import tpu as pltpu

NEG_SLOPE = 0.01  # F.leaky_relu default negative slope


def _eem_kernel(x_ref, mask_ref, lapw_ref, convw_ref, bias_ref, o_ref, pad_ref):
    # x_ref   : (C, H, LX)   VMEM; NT samples packed along lanes with per-sample stride S,
    #                        sample data at local cols [2, 2+W), zeros elsewhere.
    # mask_ref: (1, LP)      VMEM; 1.0 on per-sample Laplacian-interior columns, 0.0 on the
    #                        2-column zero borders / trailing slack.
    # lapw_ref / convw_ref : (C*C*9,) SMEM, flattened (co, ci, dy, dx) weights.
    # bias_ref: (C,)         SMEM.
    # o_ref   : (C, H, LO)   VMEM; per-sample output at local cols [0, W) of each S-slot.
    # pad_ref : (C, H+2, LP) VMEM scratch; zero-padded Laplacian (interior at rows [2, H)).
    C, H, _LX = x_ref.shape
    LP = pad_ref.shape[-1]
    LO = o_ref.shape[-1]
    Hl = H - 2                       # Laplacian ('valid' 3x3 conv) height

    mask = mask_ref[...]             # (1, LP); broadcasts over rows

    # Keep the 2-row top/bottom zero borders of the padded-lap scratch fresh.  The interior
    # rows are fully overwritten below and the column borders come from the mask, so the
    # scratch is never zeroed wholesale.
    zrows = jnp.zeros((2, LP), jnp.float32)
    for c in range(C):
        pad_ref[c, 0:2, :] = zrows
        pad_ref[c, H:H + 2, :] = zrows

    # ---- conv #1: fixed Laplacian filter (3x3, stride 1, no padding) -------------------
    # Shift-accumulate with the shifted slab hoisted out of the output-channel loop.
    lap_acc = [jnp.zeros((Hl, LP), jnp.float32) for _ in range(C)]
    for ci in range(C):
        for dy in range(3):
            for dx in range(3):
                shifted = x_ref[ci, dy:dy + Hl, dx:dx + LP]          # (Hl, LP)
                for co in range(C):
                    w = lapw_ref[(co * C + ci) * 9 + dy * 3 + dx]
                    lap_acc[co] = lap_acc[co] + w * shifted
    for co in range(C):
        # Full-lane-width store; the mask zeroes the per-sample 2-col padding and anything
        # that mixed neighbouring samples, realizing padding=2 of the learned conv.
        pad_ref[co, 2:H, :] = lap_acc[co] * mask

    # ---- conv #2: learned 3x3, stride 1, padding 2 (pre-padded scratch) + bias + lrelu --
    out_acc = [jnp.zeros((H, LO), jnp.float32) for _ in range(C)]
    for ci in range(C):
        for dy in range(3):
            for dx in range(3):
                shifted = pad_ref[ci, dy:dy + H, dx:dx + LO]         # (H, LO)
                for co in range(C):
                    w = convw_ref[(co * C + ci) * 9 + dy * 3 + dx]
                    out_acc[co] = out_acc[co] + w * shifted
    for co in range(C):
        v = out_acc[co] + bias_ref[co]
        o_ref[co, :, :] = jnp.where(v >= 0.0, v, NEG_SLOPE * v)


def _pick_batch_tile(n, stride, min_lanes=128):
    """Smallest divisor of n whose packed lane width reaches min_lanes (else n)."""
    for d in range(1, n + 1):
        if n % d == 0 and d * stride >= min_lanes:
            return d
    return n


def eem_forward(x, lap_filter, conv_w, conv_b, batch_tile=None):
    """x: (N, C, H, W) f32; lap_filter/conv_w: (C, C, 3, 3); conv_b: (C,)."""
    N, C, H, W = x.shape
    S = W + 2                                    # per-sample lane stride in all slabs
    NT = _pick_batch_tile(N, S) if batch_tile is None else batch_tile
    assert N % NT == 0, "batch must be divisible by the batch tile"
    NB = N // NT                                 # grid size (>=2 at the demo shape)
    LO = NT * S                                  # output / compute lane width (>=128)
    LP = LO + 2                                  # padded-lap scratch lane width
    LX = LP + 2                                  # packed-input lane width (read slack)

    x = x.astype(jnp.float32)
    # Pack NT samples along lanes: per-sample stride S, data at local cols [2, 2+W).
    xp = jnp.pad(x, ((0, 0), (0, 0), (0, 0), (2, S - W - 2)))            # (N, C, H, S)
    xp = xp.reshape(NB, NT, C, H, S).transpose(0, 2, 3, 1, 4).reshape(NB, C, H, LO)
    xp = jnp.pad(xp, ((0, 0), (0, 0), (0, 0), (0, LX - LO)))             # (NB, C, H, LX)

    # Interior-column mask of the padded-Laplacian slab.
    cols = jnp.arange(LP)
    mask = (((cols % S) >= 2) & ((cols % S) < W)).astype(jnp.float32).reshape(1, LP)

    lapw_flat = lap_filter.reshape(-1).astype(jnp.float32)   # (co, ci, dy, dx) order
    convw_flat = conv_w.reshape(-1).astype(jnp.float32)
    bias = conv_b.astype(jnp.float32)

    smem_spec = pl.BlockSpec(memory_space=pltpu.MemorySpace.SMEM)
    out_packed = pl.pallas_call(
        _eem_kernel,
        out_shape=jax.ShapeDtypeStruct((NB, C, H, LO), jnp.float32),
        grid_spec=pltpu.PrefetchScalarGridSpec(
            num_scalar_prefetch=0,
            grid=(NB,),
            in_specs=[
                pl.BlockSpec((None, C, H, LX), lambda b: (b, 0, 0, 0)),  # packed x
                pl.BlockSpec((1, LP), lambda b: (0, 0)),                 # column mask
                smem_spec,   # laplace weights
                smem_spec,   # learned conv weights
                smem_spec,   # bias
            ],
            out_specs=pl.BlockSpec((None, C, H, LO), lambda b: (b, 0, 0, 0)),
            scratch_shapes=[pltpu.VMEM((C, H + 2, LP), jnp.float32)],
        ),
        compiler_params=pltpu.CompilerParams(dimension_semantics=("parallel",)),
    )(xp, mask, lapw_flat, convw_flat, bias)

    # Unpack: (NB, C, H, NT*S) -> (N, C, H, W); drop the per-sample slack columns.
    out = out_packed.reshape(NB, C, H, NT, S)[..., :W]
    return out.transpose(0, 3, 1, 2, 4).reshape(N, C, H, W)


def eem_reference(x, lap_filter, conv_w, conv_b):
    """Pure-JAX reference mirroring the PyTorch forward (for correctness check)."""
    dn = ("NCHW", "OIHW", "NCHW")
    lap = lax.conv_general_dilated(x, lap_filter, (1, 1), "VALID", dimension_numbers=dn)
    y = lax.conv_general_dilated(lap, conv_w, (1, 1), [(2, 2), (2, 2)], dimension_numbers=dn)
    y = y + conv_b.reshape(1, -1, 1, 1)
    return jnp.where(y >= 0, y, NEG_SLOPE * y)


if __name__ == "__main__":
    import numpy as np

    # 16 samples -> 8 packed per grid step (144 lanes), grid=(2,) kept parallel.
    num_filters, N, H, W = 4, 16, 16, 16
    key = jax.random.PRNGKey(0)
    kx, kw = jax.random.split(key)

    x = jax.random.normal(kx, (N, num_filters, H, W), jnp.float32)

    # Fixed Laplacian filter, expand()ed over (Cout, Cin) exactly as in the torch module.
    lap_k = jnp.array([[1.0, 1.0, 1.0], [1.0, -8.0, 1.0], [1.0, 1.0, 1.0]], jnp.float32)
    lap_filter = jnp.broadcast_to(lap_k, (num_filters, num_filters, 3, 3))

    # Learned conv: deterministic xavier_uniform_(gain=1) weight, zero bias.
    fan_in = num_filters * 3 * 3
    fan_out = num_filters * 3 * 3
    bound = float(np.sqrt(6.0 / (fan_in + fan_out)))
    conv_w = jax.random.uniform(
        kw, (num_filters, num_filters, 3, 3), jnp.float32, minval=-bound, maxval=bound
    )
    conv_b = jnp.zeros((num_filters,), jnp.float32)

    out = eem_forward(x, lap_filter, conv_w, conv_b)
    out = jax.block_until_ready(out)

    ref = eem_reference(x, lap_filter, conv_w, conv_b)
    np.testing.assert_allclose(np.asarray(out), np.asarray(ref), rtol=1e-4, atol=1e-4)
    print("KERNEL_OK")
</pallas_src>

<mosaic_0001>
module attributes {stable_mosaic.version = 11 : i64} {
  func.func @_eem_kernel(%arg0: i32, %arg1: memref<1x4x16x148xf32, #tpu.memory_space<vmem>>, %arg2: memref<1x146xf32, #tpu.memory_space<vmem>>, %arg3: memref<144xf32, #tpu.memory_space<smem>>, %arg4: memref<144xf32, #tpu.memory_space<smem>>, %arg5: memref<4xf32, #tpu.memory_space<smem>>, %arg6: memref<1x4x16x144xf32, #tpu.memory_space<vmem>>, %arg7: memref<4x18x146xf32, #tpu.memory_space<vmem>>) attributes {dimension_semantics = [#tpu.dimension_semantics<parallel>], iteration_bounds = array<i64: 2>, scalar_prefetch = 0 : i64, scratch_operands = 1 : i64, tpu.core_type = #tpu.core_type<tc>, window_params = [{transform_indices = @transform_0, window_bounds = array<i64: 1, 4, 16, 148>}, {pipeline_mode = #tpu.pipeline_mode<synchronous>, transform_indices = @transform_1, window_bounds = array<i64: 1, 146>}, {transform_indices = @transform_2, window_bounds = array<i64: 144>}, {transform_indices = @transform_3, window_bounds = array<i64: 144>}, {transform_indices = @transform_4, window_bounds = array<i64: 4>}, {transform_indices = @transform_5, window_bounds = array<i64: 1, 4, 16, 144>}]} {
    %c0 = arith.constant 0 : index
    %c0_0 = arith.constant 0 : index
    %0 = vector.load %arg2[%c0, %c0_0] : memref<1x146xf32, #tpu.memory_space<vmem>>, vector<1x146xf32>
    %cst = arith.constant 0.000000e+00 : f32
    %1 = vector.broadcast %cst : f32 to vector<2x146xf32>
    %c0_1 = arith.constant 0 : index
    %c0_2 = arith.constant 0 : index
    %c0_3 = arith.constant 0 : index
    %2 = vector.load %arg7[%c0_1, %c0_2, %c0_3] : memref<4x18x146xf32, #tpu.memory_space<vmem>>, vector<1x2x146xf32>
    %3 = vector.shape_cast %2 : vector<1x2x146xf32> to vector<2x146xf32>
    %4 = vector.shape_cast %1 : vector<2x146xf32> to vector<1x2x146xf32>
    tpu.vector_store %arg7[%c0_1, %c0_2, %c0_3], %4 {strides = array<i32>} : memref<4x18x146xf32, #tpu.memory_space<vmem>>, vector<1x2x146xf32>,
    %c0_4 = arith.constant 0 : index
    %c16 = arith.constant 16 : index
    %c0_5 = arith.constant 0 : index
    %5 = vector.load %arg7[%c0_4, %c16, %c0_5] : memref<4x18x146xf32, #tpu.memory_space<vmem>>, vector<1x2x146xf32>
    %6 = vector.shape_cast %5 : vector<1x2x146xf32> to vector<2x146xf32>
    %7 = vector.shape_cast %1 : vector<2x146xf32> to vector<1x2x146xf32>
    tpu.vector_store %arg7[%c0_4, %c16, %c0_5], %7 {strides = array<i32>} : memref<4x18x146xf32, #tpu.memory_space<vmem>>, vector<1x2x146xf32>,
    %c1 = arith.constant 1 : index
    %c0_6 = arith.constant 0 : index
    %c0_7 = arith.constant 0 : index
    %8 = vector.load %arg7[%c1, %c0_6, %c0_7] : memref<4x18x146xf32, #tpu.memory_space<vmem>>, vector<1x2x146xf32>
    %9 = vector.shape_cast %8 : vector<1x2x146xf32> to vector<2x146xf32>
    %10 = vector.shape_cast %1 : vector<2x146xf32> to vector<1x2x146xf32>
    tpu.vector_store %arg7[%c1, %c0_6, %c0_7], %10 {strides = array<i32>} : memref<4x18x146xf32, #tpu.memory_space<vmem>>, vector<1x2x146xf32>,
    %c1_8 = arith.constant 1 : index
    %c16_9 = arith.constant 16 : index
    %c0_10 = arith.constant 0 : index
    %11 = vector.load %arg7[%c1_8, %c16_9, %c0_10] : memref<4x18x146xf32, #tpu.memory_space<vmem>>, vector<1x2x146xf32>
    %12 = vector.shape_cast %11 : vector<1x2x146xf32> to vector<2x146xf32>
    %13 = vector.shape_cast %1 : vector<2x146xf32> to vector<1x2x146xf32>
    tpu.vector_store %arg7[%c1_8, %c16_9, %c0_10], %13 {strides = array<i32>} : memref<4x18x146xf32, #tpu.memory_space<vmem>>, vector<1x2x146xf32>,
    %c2 = arith.constant 2 : index
    %c0_11 = arith.constant 0 : index
    %c0_12 = arith.constant 0 : index
    %14 = vector.load %arg7[%c2, %c0_11, %c0_12] : memref<4x18x146xf32, #tpu.memory_space<vmem>>, vector<1x2x146xf32>
    %15 = vector.shape_cast %14 : vector<1x2x146xf32> to vector<2x146xf32>
    %16 = vector.shape_cast %1 : vector<2x146xf32> to vector<1x2x146xf32>
    tpu.vector_store %arg7[%c2, %c0_11, %c0_12], %16 {strides = array<i32>} : memref<4x18x146xf32, #tpu.memory_space<vmem>>, vector<1x2x146xf32>,
    %c2_13 = arith.constant 2 : index
    %c16_14 = arith.constant 16 : index
    %c0_15 = arith.constant 0 : index
    %17 = vector.load %arg7[%c2_13, %c16_14, %c0_15] : memref<4x18x146xf32, #tpu.memory_space<vmem>>, vector<1x2x146xf32>
    %18 = vector.shape_cast %17 : vector<1x2x146xf32> to vector<2x146xf32>
    %19 = vector.shape_cast %1 : vector<2x146xf32> to vector<1x2x146xf32>
    tpu.vector_store %arg7[%c2_13, %c16_14, %c0_15], %19 {strides = array<i32>} : memref<4x18x146xf32, #tpu.memory_space<vmem>>, vector<1x2x146xf32>,
    %c3 = arith.constant 3 : index
    %c0_16 = arith.constant 0 : index
    %c0_17 = arith.constant 0 : index
    %20 = vector.load %arg7[%c3, %c0_16, %c0_17] : memref<4x18x146xf32, #tpu.memory_space<vmem>>, vector<1x2x146xf32>
    %21 = vector.shape_cast %20 : vector<1x2x146xf32> to vector<2x146xf32>
    %22 = vector.shape_cast %1 : vector<2x146xf32> to vector<1x2x146xf32>
    tpu.vector_store %arg7[%c3, %c0_16, %c0_17], %22 {strides = array<i32>} : memref<4x18x146xf32, #tpu.memory_space<vmem>>, vector<1x2x146xf32>,
    %c3_18 = arith.constant 3 : index
    %c16_19 = arith.constant 16 : index
    %c0_20 = arith.constant 0 : index
    %23 = vector.load %arg7[%c3_18, %c16_19, %c0_20] : memref<4x18x146xf32, #tpu.memory_space<vmem>>, vector<1x2x146xf32>
    %24 = vector.shape_cast %23 : vector<1x2x146xf32> to vector<2x146xf32>
    %25 = vector.shape_cast %1 : vector<2x146xf32> to vector<1x2x146xf32>
    tpu.vector_store %arg7[%c3_18, %c16_19, %c0_20], %25 {strides = array<i32>} : memref<4x18x146xf32, #tpu.memory_space<vmem>>, vector<1x2x146xf32>,
    %cst_21 = arith.constant 0.000000e+00 : f32
    %26 = vector.broadcast %cst_21 : f32 to vector<14x146xf32>
    %cst_22 = arith.constant 0.000000e+00 : f32
    %27 = vector.broadcast %cst_22 : f32 to vector<14x146xf32>
    %cst_23 = arith.constant 0.000000e+00 : f32
    %28 = vector.broadcast %cst_23 : f32 to vector<14x146xf32>
    %cst_24 = arith.constant 0.000000e+00 : f32
    %29 = vector.broadcast %cst_24 : f32 to vector<14x146xf32>
    %c0_25 = arith.constant 0 : index
    %c0_26 = arith.constant 0 : index
    %c0_27 = arith.constant 0 : index
    %c0_28 = arith.constant 0 : index
    %30 = vector.load %arg1[%c0_25, %c0_26, %c0_27, %c0_28] : memref<1x4x16x148xf32, #tpu.memory_space<vmem>>, vector<1x1x14x146xf32>
    %31 = vector.shape_cast %30 : vector<1x1x14x146xf32> to vector<14x146xf32>
    %c0_29 = arith.constant 0 : index
    %32 = memref.load %arg3[%c0_29] : memref<144xf32, #tpu.memory_space<smem>>
    %33 = vector.broadcast %32 : f32 to vector<14x146xf32>
    %34 = arith.mulf %33, %31 : vector<14x146xf32>
    %35 = arith.addf %26, %34 : vector<14x146xf32>
    %c36 = arith.constant 36 : index
    %36 = memref.load %arg3[%c36] : memref<144xf32, #tpu.memory_space<smem>>
    %37 = vector.broadcast %36 : f32 to vector<14x146xf32>
    %38 = arith.mulf %37, %31 : vector<14x146xf32>
    %39 = arith.addf %27, %38 : vector<14x146xf32>
    %c72 = arith.constant 72 : index
    %40 = memref.load %arg3[%c72] : memref<144xf32, #tpu.memory_space<smem>>
    %41 = vector.broadcast %40 : f32 to vector<14x146xf32>
    %42 = arith.mulf %41, %31 : vector<14x146xf32>
    %43 = arith.addf %28, %42 : vector<14x146xf32>
    %c108 = arith.constant 108 : index
    %44 = memref.load %arg3[%c108] : memref<144xf32, #tpu.memory_space<smem>>
    %45 = vector.broadcast %44 : f32 to vector<14x146xf32>
    %46 = arith.mulf %45, %31 : vector<14x146xf32>
    %47 = arith.addf %29, %46 : vector<14x146xf32>
    %c0_30 = arith.constant 0 : index
    %c0_31 = arith.constant 0 : index
    %c0_32 = arith.constant 0 : index
    %c1_33 = arith.constant 1 : index
    %48 = vector.load %arg1[%c0_30, %c0_31, %c0_32, %c1_33] : memref<1x4x16x148xf32, #tpu.memory_space<vmem>>, vector<1x1x14x146xf32>
    %49 = vector.shape_cast %48 : vector<1x1x14x146xf32> to vector<14x146xf32>
    %c1_34 = arith.constant 1 : index
    %50 = memref.load %arg3[%c1_34] : memref<144xf32, #tpu.memory_space<smem>>
    %51 = vector.broadcast %50 : f32 to vector<14x146xf32>
    %52 = arith.mulf %51, %49 : vector<14x146xf32>
    %53 = arith.addf %35, %52 : vector<14x146xf32>
    %c37 = arith.constant 37 : index
    %54 = memref.load %arg3[%c37] : memref<144xf32, #tpu.memory_space<smem>>
    %55 = vector.broadcast %54 : f32 to vector<14x146xf32>
    %56 = arith.mulf %55, %49 : vector<14x146xf32>
    %57 = arith.addf %39, %56 : vector<14x146xf32>
    %c73 = arith.constant 73 : index
    %58 = memref.load %arg3[%c73] : memref<144xf32, #tpu.memory_space<smem>>
    %59 = vector.broadcast %58 : f32 to vector<14x146xf32>
    %60 = arith.mulf %59, %49 : vector<14x146xf32>
    %61 = arith.addf %43, %60 : vector<14x146xf32>
    %c109 = arith.constant 109 : index
    %62 = memref.load %arg3[%c109] : memref<144xf32, #tpu.memory_space<smem>>
    %63 = vector.broadcast %62 : f32 to vector<14x146xf32>
    %64 = arith.mulf %63, %49 : vector<14x146xf32>
    %65 = arith.addf %47, %64 : vector<14x146xf32>
    %c0_35 = arith.constant 0 : index
    %c0_36 = arith.constant 0 : index
    %c0_37 = arith.constant 0 : index
    %c2_38 = arith.constant 2 : index
    %66 = vector.load %arg1[%c0_35, %c0_36, %c0_37, %c2_38] : memref<1x4x16x148xf32, #tpu.memory_space<vmem>>, vector<1x1x14x146xf32>
    %67 = vector.shape_cast %66 : vector<1x1x14x146xf32> to vector<14x146xf32>
    %c2_39 = arith.constant 2 : index
    %68 = memref.load %arg3[%c2_39] : memref<144xf32, #tpu.memory_space<smem>>
    %69 = vector.broadcast %68 : f32 to vector<14x146xf32>
    %70 = arith.mulf %69, %67 : vector<14x146xf32>
    %71 = arith.addf %53, %70 : vector<14x146xf32>
    %c38 = arith.constant 38 : index
    %72 = memref.load %arg3[%c38] : memref<144xf32, #tpu.memory_space<smem>>
    %73 = vector.broadcast %72 : f32 to vector<14x146xf32>
    %74 = arith.mulf %73, %67 : vector<14x146xf32>
    %75 = arith.addf %57, %74 : vector<14x146xf32>
    %c74 = arith.constant 74 : index
    %76 = memref.load %arg3[%c74] : memref<144xf32, #tpu.memory_space<smem>>
    %77 = vector.broadcast %76 : f32 to vector<14x146xf32>
    %78 = arith.mulf %77, %67 : vector<14x146xf32>
    %79 = arith.addf %61, %78 : vector<14x146xf32>
    %c110 = arith.constant 110 : index
    %80 = memref.load %arg3[%c110] : memref<144xf32, #tpu.memory_space<smem>>
    %81 = vector.broadcast %80 : f32 to vector<14x146xf32>
    %82 = arith.mulf %81, %67 : vector<14x146xf32>
    %83 = arith.addf %65, %82 : vector<14x146xf32>
    %c0_40 = arith.constant 0 : index
    %c0_41 = arith.constant 0 : index
    %c1_42 = arith.constant 1 : index
    %c0_43 = arith.constant 0 : index
    %84 = vector.load %arg1[%c0_40, %c0_41, %c1_42, %c0_43] : memref<1x4x16x148xf32, #tpu.memory_space<vmem>>, vector<1x1x14x146xf32>
    %85 = vector.shape_cast %84 : vector<1x1x14x146xf32> to vector<14x146xf32>
    %c3_44 = arith.constant 3 : index
    %86 = memref.load %arg3[%c3_44] : memref<144xf32, #tpu.memory_space<smem>>
    %87 = vector.broadcast %86 : f32 to vector<14x146xf32>
    %88 = arith.mulf %87, %85 : vector<14x146xf32>
    %89 = arith.addf %71, %88 : vector<14x146xf32>
    %c39 = arith.constant 39 : index
    %90 = memref.load %arg3[%c39] : memref<144xf32, #tpu.memory_space<smem>>
    %91 = vector.broadcast %90 : f32 to vector<14x146xf32>
    %92 = arith.mulf %91, %85 : vector<14x146xf32>
    %93 = arith.addf %75, %92 : vector<14x146xf32>
    %c75 = arith.constant 75 : index
    %94 = memref.load %arg3[%c75] : memref<144xf32, #tpu.memory_space<smem>>
    %95 = vector.broadcast %94 : f32 to vector<14x146xf32>
    %96 = arith.mulf %95, %85 : vector<14x146xf32>
    %97 = arith.addf %79, %96 : vector<14x146xf32>
    %c111 = arith.constant 111 : index
    %98 = memref.load %arg3[%c111] : memref<144xf32, #tpu.memory_space<smem>>
    %99 = vector.broadcast %98 : f32 to vector<14x146xf32>
    %100 = arith.mulf %99, %85 : vector<14x146xf32>
    %101 = arith.addf %83, %100 : vector<14x146xf32>
    %c0_45 = arith.constant 0 : index
    %c0_46 = arith.constant 0 : index
    %c1_47 = arith.constant 1 : index
    %c1_48 = arith.constant 1 : index
    %102 = vector.load %arg1[%c0_45, %c0_46, %c1_47, %c1_48] : memref<1x4x16x148xf32, #tpu.memory_space<vmem>>, vector<1x1x14x146xf32>
    %103 = vector.shape_cast %102 : vector<1x1x14x146xf32> to vector<14x146xf32>
    %c4 = arith.constant 4 : index
    %104 = memref.load %arg3[%c4] : memref<144xf32, #tpu.memory_space<smem>>
    %105 = vector.broadcast %104 : f32 to vector<14x146xf32>
    %106 = arith.mulf %105, %103 : vector<14x146xf32>
    %107 = arith.addf %89, %106 : vector<14x146xf32>
    %c40 = arith.constant 40 : index
    %108 = memref.load %arg3[%c40] : memref<144xf32, #tpu.memory_space<smem>>
    %109 = vector.broadcast %108 : f32 to vector<14x146xf32>
    %110 = arith.mulf %109, %103 : vector<14x146xf32>
    %111 = arith.addf %93, %110 : vector<14x146xf32>
    %c76 = arith.constant 76 : index
    %112 = memref.load %arg3[%c76] : memref<144xf32, #tpu.memory_space<smem>>
    %113 = vector.broadcast %112 : f32 to vector<14x146xf32>
    %114 = arith.mulf %113, %103 : vector<14x146xf32>
    %115 = arith.addf %97, %114 : vector<14x146xf32>
    %c112 = arith.constant 112 : index
    %116 = memref.load %arg3[%c112] : memref<144xf32, #tpu.memory_space<smem>>
    %117 = vector.broadcast %116 : f32 to vector<14x146xf32>
    %118 = arith.mulf %117, %103 : vector<14x146xf32>
    %119 = arith.addf %101, %118 : vector<14x146xf32>
    %c0_49 = arith.constant 0 : index
    %c0_50 = arith.constant 0 : index
    %c1_51 = arith.constant 1 : index
    %c2_52 = arith.constant 2 : index
    %120 = vector.load %arg1[%c0_49, %c0_50, %c1_51, %c2_52] : memref<1x4x16x148xf32, #tpu.memory_space<vmem>>, vector<1x1x14x146xf32>
    %121 = vector.shape_cast %120 : vector<1x1x14x146xf32> to vector<14x146xf32>
    %c5 = arith.constant 5 : index
    %122 = memref.load %arg3[%c5] : memref<144xf32, #tpu.memory_space<smem>>
    %123 = vector.broadcast %122 : f32 to vector<14x146xf32>
    %124 = arith.mulf %123, %121 : vector<14x146xf32>
    %125 = arith.addf %107, %124 : vector<14x146xf32>
    %c41 = arith.constant 41 : index
    %126 = memref.load %arg3[%c41] : memref<144xf32, #tpu.memory_space<smem>>
    %127 = vector.broadcast %126 : f32 to vector<14x146xf32>
    %128 = arith.mulf %127, %121 : vector<14x146xf32>
    %129 = arith.addf %111, %128 : vector<14x146xf32>
    %c77 = arith.constant 77 : index
    %130 = memref.load %arg3[%c77] : memref<144xf32, #tpu.memory_space<smem>>
    %131 = vector.broadcast %130 : f32 to vector<14x146xf32>
    %132 = arith.mulf %131, %121 : vector<14x146xf32>
    %133 = arith.addf %115, %132 : vector<14x146xf32>
    %c113 = arith.constant 113 : index
    %134 = memref.load %arg3[%c113] : memref<144xf32, #tpu.memory_space<smem>>
    %135 = vector.broadcast %134 : f32 to vector<14x146xf32>
    %136 = arith.mulf %135, %121 : vector<14x146xf32>
    %137 = arith.addf %119, %136 : vector<14x146xf32>
    %c0_53 = arith.constant 0 : index
    %c0_54 = arith.constant 0 : index
    %c2_55 = arith.constant 2 : index
    %c0_56 = arith.constant 0 : index
    %138 = vector.load %arg1[%c0_53, %c0_54, %c2_55, %c0_56] : memref<1x4x16x148xf32, #tpu.memory_space<vmem>>, vector<1x1x14x146xf32>
    %139 = vector.shape_cast %138 : vector<1x1x14x146xf32> to vector<14x146xf32>
    %c6 = arith.constant 6 : index
    %140 = memref.load %arg3[%c6] : memref<144xf32, #tpu.memory_space<smem>>
    %141 = vector.broadcast %140 : f32 to vector<14x146xf32>
    %142 = arith.mulf %141, %139 : vector<14x146xf32>
    %143 = arith.addf %125, %142 : vector<14x146xf32>
    %c42 = arith.constant 42 : index
    %144 = memref.load %arg3[%c42] : memref<144xf32, #tpu.memory_space<smem>>
    %145 = vector.broadcast %144 : f32 to vector<14x146xf32>
    %146 = arith.mulf %145, %139 : vector<14x146xf32>
    %147 = arith.addf %129, %146 : vector<14x146xf32>
    %c78 = arith.constant 78 : index
    %148 = memref.load %arg3[%c78] : memref<144xf32, #tpu.memory_space<smem>>
    %149 = vector.broadcast %148 : f32 to vector<14x146xf32>
    %150 = arith.mulf %149, %139 : vector<14x146xf32>
    %151 = arith.addf %133, %150 : vector<14x146xf32>
    %c114 = arith.constant 114 : index
    %152 = memref.load %arg3[%c114] : memref<144xf32, #tpu.memory_space<smem>>
    %153 = vector.broadcast %152 : f32 to vector<14x146xf32>
    %154 = arith.mulf %153, %139 : vector<14x146xf32>
    %155 = arith.addf %137, %154 : vector<14x146xf32>
    %c0_57 = arith.constant 0 : index
    %c0_58 = arith.constant 0 : index
    %c2_59 = arith.constant 2 : index
    %c1_60 = arith.constant 1 : index
    %156 = vector.load %arg1[%c0_57, %c0_58, %c2_59, %c1_60] : memref<1x4x16x148xf32, #tpu.memory_space<vmem>>, vector<1x1x14x146xf32>
    %157 = vector.shape_cast %156 : vector<1x1x14x146xf32> to vector<14x146xf32>
    %c7 = arith.constant 7 : index
    %158 = memref.load %arg3[%c7] : memref<144xf32, #tpu.memory_space<smem>>
    %159 = vector.broadcast %158 : f32 to vector<14x146xf32>
    %160 = arith.mulf %159, %157 : vector<14x146xf32>
    %161 = arith.addf %143, %160 : vector<14x146xf32>
    %c43 = arith.constant 43 : index
    %162 = memref.load %arg3[%c43] : memref<144xf32, #tpu.memory_space<smem>>
    %163 = vector.broadcast %162 : f32 to vector<14x146xf32>
    %164 = arith.mulf %163, %157 : vector<14x146xf32>
    %165 = arith.addf %147, %164 : vector<14x146xf32>
    %c79 = arith.constant 79 : index
    %166 = memref.load %arg3[%c79] : memref<144xf32, #tpu.memory_space<smem>>
    %167 = vector.broadcast %166 : f32 to vector<14x146xf32>
    %168 = arith.mulf %167, %157 : vector<14x146xf32>
    %169 = arith.addf %151, %168 : vector<14x146xf32>
    %c115 = arith.constant 115 : index
    %170 = memref.load %arg3[%c115] : memref<144xf32, #tpu.memory_space<smem>>
    %171 = vector.broadcast %170 : f32 to vector<14x146xf32>
    %172 = arith.mulf %171, %157 : vector<14x146xf32>
    %173 = arith.addf %155, %172 : vector<14x146xf32>
    %c0_61 = arith.constant 0 : index
    %c0_62 = arith.constant 0 : index
    %c2_63 = arith.constant 2 : index
    %c2_64 = arith.constant 2 : index
    %174 = vector.load %arg1[%c0_61, %c0_62, %c2_63, %c2_64] : memref<1x4x16x148xf32, #tpu.memory_space<vmem>>, vector<1x1x14x146xf32>
    %175 = vector.shape_cast %174 : vector<1x1x14x146xf32> to vector<14x146xf32>
    %c8 = arith.constant 8 : index
    %176 = memref.load %arg3[%c8] : memref<144xf32, #tpu.memory_space<smem>>
    %177 = vector.broadcast %176 : f32 to vector<14x146xf32>
    %178 = arith.mulf %177, %175 : vector<14x146xf32>
    %179 = arith.addf %161, %178 : vector<14x146xf32>
    %c44 = arith.constant 44 : index
    %180 = memref.load %arg3[%c44] : memref<144xf32, #tpu.memory_space<smem>>
    %181 = vector.broadcast %180 : f32 to vector<14x146xf32>
    %182 = arith.mulf %181, %175 : vector<14x146xf32>
    %183 = arith.addf %165, %182 : vector<14x146xf32>
    %c80 = arith.constant 80 : index
    %184 = memref.load %arg3[%c80] : memref<144xf32, #tpu.memory_space<smem>>
    %185 = vector.broadcast %184 : f32 to vector<14x146xf32>
    %186 = arith.mulf %185, %175 : vector<14x146xf32>
    %187 = arith.addf %169, %186 : vector<14x146xf32>
    %c116 = arith.constant 116 : index
    %188 = memref.load %arg3[%c116] : memref<144xf32, #tpu.memory_space<smem>>
    %189 = vector.broadcast %188 : f32 to vector<14x146xf32>
    %190 = arith.mulf %189, %175 : vector<14x146xf32>
    %191 = arith.addf %173, %190 : vector<14x146xf32>
    %c0_65 = arith.constant 0 : index
    %c1_66 = arith.constant 1 : index
    %c0_67 = arith.constant 0 : index
    %c0_68 = arith.constant 0 : index
    %192 = vector.load %arg1[%c0_65, %c1_66, %c0_67, %c0_68] : memref<1x4x16x148xf32, #tpu.memory_space<vmem>>, vector<1x1x14x146xf32>
    %193 = vector.shape_cast %192 : vector<1x1x14x146xf32> to vector<14x146xf32>
    %c9 = arith.constant 9 : index
    %194 = memref.load %arg3[%c9] : memref<144xf32, #tpu.memory_space<smem>>
    %195 = vector.broadcast %194 : f32 to vector<14x146xf32>
    %196 = arith.mulf %195, %193 : vector<14x146xf32>
    %197 = arith.addf %179, %196 : vector<14x146xf32>
    %c45 = arith.constant 45 : index
    %198 = memref.load %arg3[%c45] : memref<144xf32, #tpu.memory_space<smem>>
    %199 = vector.broadcast %198 : f32 to vector<14x146xf32>
    %200 = arith.mulf %199, %193 : vector<14x146xf32>
    %201 = arith.addf %183, %200 : vector<14x146xf32>
    %c81 = arith.constant 81 : index
    %202 = memref.load %arg3[%c81] : memref<144xf32, #tpu.memory_space<smem>>
    %203 = vector.broadcast %202 : f32 to vector<14x146xf32>
    %204 = arith.mulf %203, %193 : vector<14x146xf32>
    %205 = arith.addf %187, %204 : vector<14x146xf32>
    %c117 = arith.constant 117 : index
    %206 = memref.load %arg3[%c117] : memref<144xf32, #tpu.memory_space<smem>>
    %207 = vector.broadcast %206 : f32 to vector<14x146xf32>
    %208 = arith.mulf %207, %193 : vector<14x146xf32>
    %209 = arith.addf %191, %208 : vector<14x146xf32>
    %c0_69 = arith.constant 0 : index
    %c1_70 = arith.constant 1 : index
    %c0_71 = arith.constant 0 : index
    %c1_72 = arith.constant 1 : index
    %210 = vector.load %arg1[%c0_69, %c1_70, %c0_71, %c1_72] : memref<1x4x16x148xf32, #tpu.memory_space<vmem>>, vector<1x1x14x146xf32>
    %211 = vector.shape_cast %210 : vector<1x1x14x146xf32> to vector<14x146xf32>
    %c10 = arith.constant 10 : index
    %212 = memref.load %arg3[%c10] : memref<144xf32, #tpu.memory_space<smem>>
    %213 = vector.broadcast %212 : f32 to vector<14x146xf32>
    %214 = arith.mulf %213, %211 : vector<14x146xf32>
    %215 = arith.addf %197, %214 : vector<14x146xf32>
    %c46 = arith.constant 46 : index
    %216 = memref.load %arg3[%c46] : memref<144xf32, #tpu.memory_space<smem>>
    %217 = vector.broadcast %216 : f32 to vector<14x146xf32>
    %218 = arith.mulf %217, %211 : vector<14x146xf32>
    %219 = arith.addf %201, %218 : vector<14x146xf32>
    %c82 = arith.constant 82 : index
    %220 = memref.load %arg3[%c82] : memref<144xf32, #tpu.memory_space<smem>>
    %221 = vector.broadcast %220 : f32 to vector<14x146xf32>
    %222 = arith.mulf %221, %211 : vector<14x146xf32>
    %223 = arith.addf %205, %222 : vector<14x146xf32>
    %c118 = arith.constant 118 : index
    %224 = memref.load %arg3[%c118] : memref<144xf32, #tpu.memory_space<smem>>
    %225 = vector.broadcast %224 : f32 to vector<14x146xf32>
    %226 = arith.mulf %225, %211 : vector<14x146xf32>
    %227 = arith.addf %209, %226 : vector<14x146xf32>
    %c0_73 = arith.constant 0 : index
    %c1_74 = arith.constant 1 : index
    %c0_75 = arith.constant 0 : index
    %c2_76 = arith.constant 2 : index
    %228 = vector.load %arg1[%c0_73, %c1_74, %c0_75, %c2_76] : memref<1x4x16x148xf32, #tpu.memory_space<vmem>>, vector<1x1x14x146xf32>
    %229 = vector.shape_cast %228 : vector<1x1x14x146xf32> to vector<14x146xf32>
    %c11 = arith.constant 11 : index
    %230 = memref.load %arg3[%c11] : memref<144xf32, #tpu.memory_space<smem>>
    %231 = vector.broadcast %230 : f32 to vector<14x146xf32>
    %232 = arith.mulf %231, %229 : vector<14x146xf32>
    %233 = arith.addf %215, %232 : vector<14x146xf32>
    %c47 = arith.constant 47 : index
    %234 = memref.load %arg3[%c47] : memref<144xf32, #tpu.memory_space<smem>>
    %235 = vector.broadcast %234 : f32 to vector<14x146xf32>
    %236 = arith.mulf %235, %229 : vector<14x146xf32>
    %237 = arith.addf %219, %236 : vector<14x146xf32>
    %c83 = arith.constant 83 : index
    %238 = memref.load %arg3[%c83] : memref<144xf32, #tpu.memory_space<smem>>
    %239 = vector.broadcast %238 : f32 to vector<14x146xf32>
    %240 = arith.mulf %239, %229 : vector<14x146xf32>
    %241 = arith.addf %223, %240 : vector<14x146xf32>
    %c119 = arith.constant 119 : index
    %242 = memref.load %arg3[%c119] : memref<144xf32, #tpu.memory_space<smem>>
    %243 = vector.broadcast %242 : f32 to vector<14x146xf32>
    %244 = arith.mulf %243, %229 : vector<14x146xf32>
    %245 = arith.addf %227, %244 : vector<14x146xf32>
    %c0_77 = arith.constant 0 : index
    %c1_78 = arith.constant 1 : index
    %c1_79 = arith.constant 1 : index
    %c0_80 = arith.constant 0 : index
    %246 = vector.load %arg1[%c0_77, %c1_78, %c1_79, %c0_80] : memref<1x4x16x148xf32, #tpu.memory_space<vmem>>, vector<1x1x14x146xf32>
    %247 = vector.shape_cast %246 : vector<1x1x14x146xf32> to vector<14x146xf32>
    %c12 = arith.constant 12 : index
    %248 = memref.load %arg3[%c12] : memref<144xf32, #tpu.memory_space<smem>>
    %249 = vector.broadcast %248 : f32 to vector<14x146xf32>
    %250 = arith.mulf %249, %247 : vector<14x146xf32>
    %251 = arith.addf %233, %250 : vector<14x146xf32>
    %c48 = arith.constant 48 : index
    %252 = memref.load %arg3[%c48] : memref<144xf32, #tpu.memory_space<smem>>
    %253 = vector.broadcast %252 : f32 to vector<14x146xf32>
    %254 = arith.mulf %253, %247 : vector<14x146xf32>
    %255 = arith.addf %237, %254 : vector<14x146xf32>
    %c84 = arith.constant 84 : index
    %256 = memref.load %arg3[%c84] : memref<144xf32, #tpu.memory_space<smem>>
    %257 = vector.broadcast %256 : f32 to vector<14x146xf32>
    %258 = arith.mulf %257, %247 : vector<14x146xf32>
    %259 = arith.addf %241, %258 : vector<14x146xf32>
    %c120 = arith.constant 120 : index
    %260 = memref.load %arg3[%c120] : memref<144xf32, #tpu.memory_space<smem>>
    %261 = vector.broadcast %260 : f32 to vector<14x146xf32>
    %262 = arith.mulf %261, %247 : vector<14x146xf32>
    %263 = arith.addf %245, %262 : vector<14x146xf32>
    %c0_81 = arith.constant 0 : index
    %c1_82 = arith.constant 1 : index
    %c1_83 = arith.constant 1 : index
    %c1_84 = arith.constant 1 : index
    %264 = vector.load %arg1[%c0_81, %c1_82, %c1_83, %c1_84] : memref<1x4x16x148xf32, #tpu.memory_space<vmem>>, vector<1x1x14x146xf32>
    %265 = vector.shape_cast %264 : vector<1x1x14x146xf32> to vector<14x146xf32>
    %c13 = arith.constant 13 : index
    %266 = memref.load %arg3[%c13] : memref<144xf32, #tpu.memory_space<smem>>
    %267 = vector.broadcast %266 : f32 to vector<14x146xf32>
    %268 = arith.mulf %267, %265 : vector<14x146xf32>
    %269 = arith.addf %251, %268 : vector<14x146xf32>
    %c49 = arith.constant 49 : index
    %270 = memref.load %arg3[%c49] : memref<144xf32, #tpu.memory_space<smem>>
    %271 = vector.broadcast %270 : f32 to vector<14x146xf32>
    %272 = arith.mulf %271, %265 : vector<14x146xf32>
    %273 = arith.addf %255, %272 : vector<14x146xf32>
    %c85 = arith.constant 85 : index
    %274 = memref.load %arg3[%c85] : memref<144xf32, #tpu.memory_space<smem>>
    %275 = vector.broadcast %274 : f32 to vector<14x146xf32>
    %276 = arith.mulf %275, %265 : vector<14x146xf32>
    %277 = arith.addf %259, %276 : vector<14x146xf32>
    %c121 = arith.constant 121 : index
    %278 = memref.load %arg3[%c121] : memref<144xf32, #tpu.memory_space<smem>>
    %279 = vector.broadcast %278 : f32 to vector<14x146xf32>
    %280 = arith.mulf %279, %265 : vector<14x146xf32>
    %281 = arith.addf %263, %280 : vector<14x146xf32>
    %c0_85 = arith.constant 0 : index
    %c1_86 = arith.constant 1 : index
    %c1_87 = arith.constant 1 : index
    %c2_88 = arith.constant 2 : index
    %282 = vector.load %arg1[%c0_85, %c1_86, %c1_87, %c2_88] : memref<1x4x16x148xf32, #tpu.memory_space<vmem>>, vector<1x1x14x146xf32>
    %283 = vector.shape_cast %282 : vector<1x1x14x146xf32> to vector<14x146xf32>
    %c14 = arith.constant 14 : index
    %284 = memref.load %arg3[%c14] : memref<144xf32, #tpu.memory_space<smem>>
    %285 = vector.broadcast %284 : f32 to vector<14x146xf32>
    %286 = arith.mulf %285, %283 : vector<14x146xf32>
    %287 = arith.addf %269, %286 : vector<14x146xf32>
    %c50 = arith.constant 50 : index
    %288 = memref.load %arg3[%c50] : memref<144xf32, #tpu.memory_space<smem>>
    %289 = vector.broadcast %288 : f32 to vector<14x146xf32>
    %290 = arith.mulf %289, %283 : vector<14x146xf32>
    %291 = arith.addf %273, %290 : vector<14x146xf32>
    %c86 = arith.constant 86 : index
    %292 = memref.load %arg3[%c86] : memref<144xf32, #tpu.memory_space<smem>>
    %293 = vector.broadcast %292 : f32 to vector<14x146xf32>
    %294 = arith.mulf %293, %283 : vector<14x146xf32>
    %295 = arith.addf %277, %294 : vector<14x146xf32>
    %c122 = arith.constant 122 : index
    %296 = memref.load %arg3[%c122] : memref<144xf32, #tpu.memory_space<smem>>
    %297 = vector.broadcast %296 : f32 to vector<14x146xf32>
    %298 = arith.mulf %297, %283 : vector<14x146xf32>
    %299 = arith.addf %281, %298 : vector<14x146xf32>
    %c0_89 = arith.constant 0 : index
    %c1_90 = arith.constant 1 : index
    %c2_91 = arith.constant 2 : index
    %c0_92 = arith.constant 0 : index
    %300 = vector.load %arg1[%c0_89, %c1_90, %c2_91, %c0_92] : memref<1x4x16x148xf32, #tpu.memory_space<vmem>>, vector<1x1x14x146xf32>
    %301 = vector.shape_cast %300 : vector<1x1x14x146xf32> to vector<14x146xf32>
    %c15 = arith.constant 15 : index
    %302 = memref.load %arg3[%c15] : memref<144xf32, #tpu.memory_space<smem>>
    %303 = vector.broadcast %302 : f32 to vector<14x146xf32>
    %304 = arith.mulf %303, %301 : vector<14x146xf32>
    %305 = arith.addf %287, %304 : vector<14x146xf32>
    %c51 = arith.constant 51 : index
    %306 = memref.load %arg3[%c51] : memref<144xf32, #tpu.memory_space<smem>>
    %307 = vector.broadcast %306 : f32 to vector<14x146xf32>
    %308 = arith.mulf %307, %301 : vector<14x146xf32>
    %309 = arith.addf %291, %308 : vector<14x146xf32>
    %c87 = arith.constant 87 : index
    %310 = memref.load %arg3[%c87] : memref<144xf32, #tpu.memory_space<smem>>
    %311 = vector.broadcast %310 : f32 to vector<14x146xf32>
    %312 = arith.mulf %311, %301 : vector<14x146xf32>
    %313 = arith.addf %295, %312 : vector<14x146xf32>
    %c123 = arith.constant 123 : index
    %314 = memref.load %arg3[%c123] : memref<144xf32, #tpu.memory_space<smem>>
    %315 = vector.broadcast %314 : f32 to vector<14x146xf32>
    %316 = arith.mulf %315, %301 : vector<14x146xf32>
    %317 = arith.addf %299, %316 : vector<14x146xf32>
    %c0_93 = arith.constant 0 : index
    %c1_94 = arith.constant 1 : index
    %c2_95 = arith.constant 2 : index
    %c1_96 = arith.constant 1 : index
    %318 = vector.load %arg1[%c0_93, %c1_94, %c2_95, %c1_96] : memref<1x4x16x148xf32, #tpu.memory_space<vmem>>, vector<1x1x14x146xf32>
    %319 = vector.shape_cast %318 : vector<1x1x14x146xf32> to vector<14x146xf32>
    %c16_97 = arith.constant 16 : index
    %320 = memref.load %arg3[%c16_97] : memref<144xf32, #tpu.memory_space<smem>>
    %321 = vector.broadcast %320 : f32 to vector<14x146xf32>
    %322 = arith.mulf %321, %319 : vector<14x146xf32>
    %323 = arith.addf %305, %322 : vector<14x146xf32>
    %c52 = arith.constant 52 : index
    %324 = memref.load %arg3[%c52] : memref<144xf32, #tpu.memory_space<smem>>
    %325 = vector.broadcast %324 : f32 to vector<14x146xf32>
    %326 = arith.mulf %325, %319 : vector<14x146xf32>
    %327 = arith.addf %309, %326 : vector<14x146xf32>
    %c88 = arith.constant 88 : index
    %328 = memref.load %arg3[%c88] : memref<144xf32, #tpu.memory_space<smem>>
    %329 = vector.broadcast %328 : f32 to vector<14x146xf32>
    %330 = arith.mulf %329, %319 : vector<14x146xf32>
    %331 = arith.addf %313, %330 : vector<14x146xf32>
    %c124 = arith.constant 124 : index
    %332 = memref.load %arg3[%c124] : memref<144xf32, #tpu.memory_space<smem>>
    %333 = vector.broadcast %332 : f32 to vector<14x146xf32>
    %334 = arith.mulf %333, %319 : vector<14x146xf32>
    %335 = arith.addf %317, %334 : vector<14x146xf32>
    %c0_98 = arith.constant 0 : index
    %c1_99 = arith.constant 1 : index
    %c2_100 = arith.constant 2 : index
    %c2_101 = arith.constant 2 : index
    %336 = vector.load %arg1[%c0_98, %c1_99, %c2_100, %c2_101] : memref<1x4x16x148xf32, #tpu.memory_space<vmem>>, vector<1x1x14x146xf32>
    %337 = vector.shape_cast %336 : vector<1x1x14x146xf32> to vector<14x146xf32>
    %c17 = arith.constant 17 : index
    %338 = memref.load %arg3[%c17] : memref<144xf32, #tpu.memory_space<smem>>
    %339 = vector.broadcast %338 : f32 to vector<14x146xf32>
    %340 = arith.mulf %339, %337 : vector<14x146xf32>
    %341 = arith.addf %323, %340 : vector<14x146xf32>
    %c53 = arith.constant 53 : index
    %342 = memref.load %arg3[%c53] : memref<144xf32, #tpu.memory_space<smem>>
    %343 = vector.broadcast %342 : f32 to vector<14x146xf32>
    %344 = arith.mulf %343, %337 : vector<14x146xf32>
    %345 = arith.addf %327, %344 : vector<14x146xf32>
    %c89 = arith.constant 89 : index
    %346 = memref.load %arg3[%c89] : memref<144xf32, #tpu.memory_space<smem>>
    %347 = vector.broadcast %346 : f32 to vector<14x146xf32>
    %348 = arith.mulf %347, %337 : vector<14x146xf32>
    %349 = arith.addf %331, %348 : vector<14x146xf32>
    %c125 = arith.constant 125 : index
    %350 = memref.load %arg3[%c125] : memref<144xf32, #tpu.memory_space<smem>>
    %351 = vector.broadcast %350 : f32 to vector<14x146xf32>
    %352 = arith.mulf %351, %337 : vector<14x146xf32>
    %353 = arith.addf %335, %352 : vector<14x146xf32>
    %c0_102 = arith.constant 0 : index
    %c2_103 = arith.constant 2 : index
    %c0_104 = arith.constant 0 : index
    %c0_105 = arith.constant 0 : index
    %354 = vector.load %arg1[%c0_102, %c2_103, %c0_104, %c0_105] : memref<1x4x16x148xf32, #tpu.memory_space<vmem>>, vector<1x1x14x146xf32>
    %355 = vector.shape_cast %354 : vector<1x1x14x146xf32> to vector<14x146xf32>
    %c18 = arith.constant 18 : index
    %356 = memref.load %arg3[%c18] : memref<144xf32, #tpu.memory_space<smem>>
    %357 = vector.broadcast %356 : f32 to vector<14x146xf32>
    %358 = arith.mulf %357, %355 : vector<14x146xf32>
    %359 = arith.addf %341, %358 : vector<14x146xf32>
    %c54 = arith.constant 54 : index
    %360 = memref.load %arg3[%c54] : memref<144xf32, #tpu.memory_space<smem>>
    %361 = vector.broadcast %360 : f32 to vector<14x146xf32>
    %362 = arith.mulf %361, %355 : vector<14x146xf32>
    %363 = arith.addf %345, %362 : vector<14x146xf32>
    %c90 = arith.constant 90 : index
    %364 = memref.load %arg3[%c90] : memref<144xf32, #tpu.memory_space<smem>>
    %365 = vector.broadcast %364 : f32 to vector<14x146xf32>
    %366 = arith.mulf %365, %355 : vector<14x146xf32>
    %367 = arith.addf %349, %366 : vector<14x146xf32>
    %c126 = arith.constant 126 : index
    %368 = memref.load %arg3[%c126] : memref<144xf32, #tpu.memory_space<smem>>
    %369 = vector.broadcast %368 : f32 to vector<14x146xf32>
    %370 = arith.mulf %369, %355 : vector<14x146xf32>
    %371 = arith.addf %353, %370 : vector<14x146xf32>
    %c0_106 = arith.constant 0 : index
    %c2_107 = arith.constant 2 : index
    %c0_108 = arith.constant 0 : index
    %c1_109 = arith.constant 1 : index
    %372 = vector.load %arg1[%c0_106, %c2_107, %c0_108, %c1_109] : memref<1x4x16x148xf32, #tpu.memory_space<vmem>>, vector<1x1x14x146xf32>
    %373 = vector.shape_cast %372 : vector<1x1x14x146xf32> to vector<14x146xf32>
    %c19 = arith.constant 19 : index
    %374 = memref.load %arg3[%c19] : memref<144xf32, #tpu.memory_space<smem>>
    %375 = vector.broadcast %374 : f32 to vector<14x146xf32>
    %376 = arith.mulf %375, %373 : vector<14x146xf32>
    %377 = arith.addf %359, %376 : vector<14x146xf32>
    %c55 = arith.constant 55 : index
    %378 = memref.load %arg3[%c55] : memref<144xf32, #tpu.memory_space<smem>>
    %379 = vector.broadcast %378 : f32 to vector<14x146xf32>
    %380 = arith.mulf %379, %373 : vector<14x146xf32>
    %381 = arith.addf %363, %380 : vector<14x146xf32>
    %c91 = arith.constant 91 : index
    %382 = memref.load %arg3[%c91] : memref<144xf32, #tpu.memory_space<smem>>
    %383 = vector.broadcast %382 : f32 to vector<14x146xf32>
    %384 = arith.mulf %383, %373 : vector<14x146xf32>
    %385 = arith.addf %367, %384 : vector<14x146xf32>
    %c127 = arith.constant 127 : index
    %386 = memref.load %arg3[%c127] : memref<144xf32, #tpu.memory_space<smem>>
    %387 = vector.broadcast %386 : f32 to vector<14x146xf32>
    %388 = arith.mulf %387, %373 : vector<14x146xf32>
    %389 = arith.addf %371, %388 : vector<14x146xf32>
    %c0_110 = arith.constant 0 : index
    %c2_111 = arith.constant 2 : index
    %c0_112 = arith.constant 0 : index
    %c2_113 = arith.constant 2 : index
    %390 = vector.load %arg1[%c0_110, %c2_111, %c0_112, %c2_113] : memref<1x4x16x148xf32, #tpu.memory_space<vmem>>, vector<1x1x14x146xf32>
    %391 = vector.shape_cast %390 : vector<1x1x14x146xf32> to vector<14x146xf32>
    %c20 = arith.constant 20 : index
    %392 = memref.load %arg3[%c20] : memref<144xf32, #tpu.memory_space<smem>>
    %393 = vector.broadcast %392 : f32 to vector<14x146xf32>
    %394 = arith.mulf %393, %391 : vector<14x146xf32>
    %395 = arith.addf %377, %394 : vector<14x146xf32>
    %c56 = arith.constant 56 : index
    %396 = memref.load %arg3[%c56] : memref<144xf32, #tpu.memory_space<smem>>
    %397 = vector.broadcast %396 : f32 to vector<14x146xf32>
    %398 = arith.mulf %397, %391 : vector<14x146xf32>
    %399 = arith.addf %381, %398 : vector<14x146xf32>
    %c92 = arith.constant 92 : index
    %400 = memref.load %arg3[%c92] : memref<144xf32, #tpu.memory_space<smem>>
    %401 = vector.broadcast %400 : f32 to vector<14x146xf32>
    %402 = arith.mulf %401, %391 : vector<14x146xf32>
    %403 = arith.addf %385, %402 : vector<14x146xf32>
    %c128 = arith.constant 128 : index
    %404 = memref.load %arg3[%c128] : memref<144xf32, #tpu.memory_space<smem>>
    %405 = vector.broadcast %404 : f32 to vector<14x146xf32>
    %406 = arith.mulf %405, %391 : vector<14x146xf32>
    %407 = arith.addf %389, %406 : vector<14x146xf32>
    %c0_114 = arith.constant 0 : index
    %c2_115 = arith.constant 2 : index
    %c1_116 = arith.constant 1 : index
    %c0_117 = arith.constant 0 : index
    %408 = vector.load %arg1[%c0_114, %c2_115, %c1_116, %c0_117] : memref<1x4x16x148xf32, #tpu.memory_space<vmem>>, vector<1x1x14x146xf32>
    %409 = vector.shape_cast %408 : vector<1x1x14x146xf32> to vector<14x146xf32>
    %c21 = arith.constant 21 : index
    %410 = memref.load %arg3[%c21] : memref<144xf32, #tpu.memory_space<smem>>
    %411 = vector.broadcast %410 : f32 to vector<14x146xf32>
    %412 = arith.mulf %411, %409 : vector<14x146xf32>
    %413 = arith.addf %395, %412 : vector<14x146xf32>
    %c57 = arith.constant 57 : index
    %414 = memref.load %arg3[%c57] : memref<144xf32, #tpu.memory_space<smem>>
    %415 = vector.broadcast %414 : f32 to vector<14x146xf32>
    %416 = arith.mulf %415, %409 : vector<14x146xf32>
    %417 = arith.addf %399, %416 : vector<14x146xf32>
    %c93 = arith.constant 93 : index
    %418 = memref.load %arg3[%c93] : memref<144xf32, #tpu.memory_space<smem>>
    %419 = vector.broadcast %418 : f32 to vector<14x146xf32>
    %420 = arith.mulf %419, %409 : vector<14x146xf32>
    %421 = arith.addf %403, %420 : vector<14x146xf32>
    %c129 = arith.constant 129 : index
    %422 = memref.load %arg3[%c129] : memref<144xf32, #tpu.memory_space<smem>>
    %423 = vector.broadcast %422 : f32 to vector<14x146xf32>
    %424 = arith.mulf %423, %409 : vector<14x146xf32>
    %425 = arith.addf %407, %424 : vector<14x146xf32>
    %c0_118 = arith.constant 0 : index
    %c2_119 = arith.constant 2 : index
    %c1_120 = arith.constant 1 : index
    %c1_121 = arith.constant 1 : index
    %426 = vector.load %arg1[%c0_118, %c2_119, %c1_120, %c1_121] : memref<1x4x16x148xf32, #tpu.memory_space<vmem>>, vector<1x1x14x146xf32>
    %427 = vector.shape_cast %426 : vector<1x1x14x146xf32> to vector<14x146xf32>
    %c22 = arith.constant 22 : index
    %428 = memref.load %arg3[%c22] : memref<144xf32, #tpu.memory_space<smem>>
    %429 = vector.broadcast %428 : f32 to vector<14x146xf32>
    %430 = arith.mulf %429, %427 : vector<14x146xf32>
    %431 = arith.addf %413, %430 : vector<14x146xf32>
    %c58 = arith.constant 58 : index
    %432 = memref.load %arg3[%c58] : memref<144xf32, #tpu.memory_space<smem>>
    %433 = vector.broadcast %432 : f32 to vector<14x146xf32>
    %434 = arith.mulf %433, %427 : vector<14x146xf32>
    %435 = arith.addf %417, %434 : vector<14x146xf32>
    %c94 = arith.constant 94 : index
    %436 = memref.load %arg3[%c94] : memref<144xf32, #tpu.memory_space<smem>>
    %437 = vector.broadcast %436 : f32 to vector<14x146xf32>
    %438 = arith.mulf %437, %427 : vector<14x146xf32>
    %439 = arith.addf %421, %438 : vector<14x146xf32>
    %c130 = arith.constant 130 : index
    %440 = memref.load %arg3[%c130] : memref<144xf32, #tpu.memory_space<smem>>
    %441 = vector.broadcast %440 : f32 to vector<14x146xf32>
    %442 = arith.mulf %441, %427 : vector<14x146xf32>
    %443 = arith.addf %425, %442 : vector<14x146xf32>
    %c0_122 = arith.constant 0 : index
    %c2_123 = arith.constant 2 : index
    %c1_124 = arith.constant 1 : index
    %c2_125 = arith.constant 2 : index
    %444 = vector.load %arg1[%c0_122, %c2_123, %c1_124, %c2_125] : memref<1x4x16x148xf32, #tpu.memory_space<vmem>>, vector<1x1x14x146xf32>
    %445 = vector.shape_cast %444 : vector<1x1x14x146xf32> to vector<14x146xf32>
    %c23 = arith.constant 23 : index
    %446 = memref.load %arg3[%c23] : memref<144xf32, #tpu.memory_space<smem>>
    %447 = vector.broadcast %446 : f32 to vector<14x146xf32>
    %448 = arith.mulf %447, %445 : vector<14x146xf32>
    %449 = arith.addf %431, %448 : vector<14x146xf32>
    %c59 = arith.constant 59 : index
    %450 = memref.load %arg3[%c59] : memref<144xf32, #tpu.memory_space<smem>>
    %451 = vector.broadcast %450 : f32 to vector<14x146xf32>
    %452 = arith.mulf %451, %445 : vector<14x146xf32>
    %453 = arith.addf %435, %452 : vector<14x146xf32>
    %c95 = arith.constant 95 : index
    %454 = memref.load %arg3[%c95] : memref<144xf32, #tpu.memory_space<smem>>
    %455 = vector.broadcast %454 : f32 to vector<14x146xf32>
    %456 = arith.mulf %455, %445 : vector<14x146xf32>
    %457 = arith.addf %439, %456 : vector<14x146xf32>
    %c131 = arith.constant 131 : index
    %458 = memref.load %arg3[%c131] : memref<144xf32, #tpu.memory_space<smem>>
    %459 = vector.broadcast %458 : f32 to vector<14x146xf32>
    %460 = arith.mulf %459, %445 : vector<14x146xf32>
    %461 = arith.addf %443, %460 : vector<14x146xf32>
    %c0_126 = arith.constant 0 : index
    %c2_127 = arith.constant 2 : index
    %c2_128 = arith.constant 2 : index
    %c0_129 = arith.constant 0 : index
    %462 = vector.load %arg1[%c0_126, %c2_127, %c2_128, %c0_129] : memref<1x4x16x148xf32, #tpu.memory_space<vmem>>, vector<1x1x14x146xf32>
    %463 = vector.shape_cast %462 : vector<1x1x14x146xf32> to vector<14x146xf32>
    %c24 = arith.constant 24 : index
    %464 = memref.load %arg3[%c24] : memref<144xf32, #tpu.memory_space<smem>>
    %465 = vector.broadcast %464 : f32 to vector<14x146xf32>
    %466 = arith.mulf %465, %463 : vector<14x146xf32>
    %467 = arith.addf %449, %466 : vector<14x146xf32>
    %c60 = arith.constant 60 : index
    %468 = memref.load %arg3[%c60] : memref<144xf32, #tpu.memory_space<smem>>
    %469 = vector.broadcast %468 : f32 to vector<14x146xf32>
    %470 = arith.mulf %469, %463 : vector<14x146xf32>
    %471 = arith.addf %453, %470 : vector<14x146xf32>
    %c96 = arith.constant 96 : index
    %472 = memref.load %arg3[%c96] : memref<144xf32, #tpu.memory_space<smem>>
    %473 = vector.broadcast %472 : f32 to vector<14x146xf32>
    %474 = arith.mulf %473, %463 : vector<14x146xf32>
    %475 = arith.addf %457, %474 : vector<14x146xf32>
    %c132 = arith.constant 132 : index
    %476 = memref.load %arg3[%c132] : memref<144xf32, #tpu.memory_space<smem>>
    %477 = vector.broadcast %476 : f32 to vector<14x146xf32>
    %478 = arith.mulf %477, %463 : vector<14x146xf32>
    %479 = arith.addf %461, %478 : vector<14x146xf32>
    %c0_130 = arith.constant 0 : index
    %c2_131 = arith.constant 2 : index
    %c2_132 = arith.constant 2 : index
    %c1_133 = arith.constant 1 : index
    %480 = vector.load %arg1[%c0_130, %c2_131, %c2_132, %c1_133] : memref<1x4x16x148xf32, #tpu.memory_space<vmem>>, vector<1x1x14x146xf32>
    %481 = vector.shape_cast %480 : vector<1x1x14x146xf32> to vector<14x146xf32>
    %c25 = arith.constant 25 : index
    %482 = memref.load %arg3[%c25] : memref<144xf32, #tpu.memory_space<smem>>
    %483 = vector.broadcast %482 : f32 to vector<14x146xf32>
    %484 = arith.mulf %483, %481 : vector<14x146xf32>
    %485 = arith.addf %467, %484 : vector<14x146xf32>
    %c61 = arith.constant 61 : index
    %486 = memref.load %arg3[%c61] : memref<144xf32, #tpu.memory_space<smem>>
    %487 = vector.broadcast %486 : f32 to vector<14x146xf32>
    %488 = arith.mulf %487, %481 : vector<14x146xf32>
    %489 = arith.addf %471, %488 : vector<14x146xf32>
    %c97 = arith.constant 97 : index
    %490 = memref.load %arg3[%c97] : memref<144xf32, #tpu.memory_space<smem>>
    %491 = vector.broadcast %490 : f32 to vector<14x146xf32>
    %492 = arith.mulf %491, %481 : vector<14x146xf32>
    %493 = arith.addf %475, %492 : vector<14x146xf32>
    %c133 = arith.constant 133 : index
    %494 = memref.load %arg3[%c133] : memref<144xf32, #tpu.memory_space<smem>>
    %495 = vector.broadcast %494 : f32 to vector<14x146xf32>
    %496 = arith.mulf %495, %481 : vector<14x146xf32>
    %497 = arith.addf %479, %496 : vector<14x146xf32>
    %c0_134 = arith.constant 0 : index
    %c2_135 = arith.constant 2 : index
    %c2_136 = arith.constant 2 : index
    %c2_137 = arith.constant 2 : index
    %498 = vector.load %arg1[%c0_134, %c2_135, %c2_136, %c2_137] : memref<1x4x16x148xf32, #tpu.memory_space<vmem>>, vector<1x1x14x146xf32>
    %499 = vector.shape_cast %498 : vector<1x1x14x146xf32> to vector<14x146xf32>
    %c26 = arith.constant 26 : index
    %500 = memref.load %arg3[%c26] : memref<144xf32, #tpu.memory_space<smem>>
    %501 = vector.broadcast %500 : f32 to vector<14x146xf32>
    %502 = arith.mulf %501, %499 : vector<14x146xf32>
    %503 = arith.addf %485, %502 : vector<14x146xf32>
    %c62 = arith.constant 62 : index
    %504 = memref.load %arg3[%c62] : memref<144xf32, #tpu.memory_space<smem>>
    %505 = vector.broadcast %504 : f32 to vector<14x146xf32>
    %506 = arith.mulf %505, %499 : vector<14x146xf32>
    %507 = arith.addf %489, %506 : vector<14x146xf32>
    %c98 = arith.constant 98 : index
    %508 = memref.load %arg3[%c98] : memref<144xf32, #tpu.memory_space<smem>>
    %509 = vector.broadcast %508 : f32 to vector<14x146xf32>
    %510 = arith.mulf %509, %499 : vector<14x146xf32>
    %511 = arith.addf %493, %510 : vector<14x146xf32>
    %c134 = arith.constant 134 : index
    %512 = memref.load %arg3[%c134] : memref<144xf32, #tpu.memory_space<smem>>
    %513 = vector.broadcast %512 : f32 to vector<14x146xf32>
    %514 = arith.mulf %513, %499 : vector<14x146xf32>
    %515 = arith.addf %497, %514 : vector<14x146xf32>
    %c0_138 = arith.constant 0 : index
    %c3_139 = arith.constant 3 : index
    %c0_140 = arith.constant 0 : index
    %c0_141 = arith.constant 0 : index
    %516 = vector.load %arg1[%c0_138, %c3_139, %c0_140, %c0_141] : memref<1x4x16x148xf32, #tpu.memory_space<vmem>>, vector<1x1x14x146xf32>
    %517 = vector.shape_cast %516 : vector<1x1x14x146xf32> to vector<14x146xf32>
    %c27 = arith.constant 27 : index
    %518 = memref.load %arg3[%c27] : memref<144xf32, #tpu.memory_space<smem>>
    %519 = vector.broadcast %518 : f32 to vector<14x146xf32>
    %520 = arith.mulf %519, %517 : vector<14x146xf32>
    %521 = arith.addf %503, %520 : vector<14x146xf32>
    %c63 = arith.constant 63 : index
    %522 = memref.load %arg3[%c63] : memref<144xf32, #tpu.memory_space<smem>>
    %523 = vector.broadcast %522 : f32 to vector<14x146xf32>
    %524 = arith.mulf %523, %517 : vector<14x146xf32>
    %525 = arith.addf %507, %524 : vector<14x146xf32>
    %c99 = arith.constant 99 : index
    %526 = memref.load %arg3[%c99] : memref<144xf32, #tpu.memory_space<smem>>
    %527 = vector.broadcast %526 : f32 to vector<14x146xf32>
    %528 = arith.mulf %527, %517 : vector<14x146xf32>
    %529 = arith.addf %511, %528 : vector<14x146xf32>
    %c135 = arith.constant 135 : index
    %530 = memref.load %arg3[%c135] : memref<144xf32, #tpu.memory_space<smem>>
    %531 = vector.broadcast %530 : f32 to vector<14x146xf32>
    %532 = arith.mulf %531, %517 : vector<14x146xf32>
    %533 = arith.addf %515, %532 : vector<14x146xf32>
    %c0_142 = arith.constant 0 : index
    %c3_143 = arith.constant 3 : index
    %c0_144 = arith.constant 0 : index
    %c1_145 = arith.constant 1 : index
    %534 = vector.load %arg1[%c0_142, %c3_143, %c0_144, %c1_145] : memref<1x4x16x148xf32, #tpu.memory_space<vmem>>, vector<1x1x14x146xf32>
    %535 = vector.shape_cast %534 : vector<1x1x14x146xf32> to vector<14x146xf32>
    %c28 = arith.constant 28 : index
    %536 = memref.load %arg3[%c28] : memref<144xf32, #tpu.memory_space<smem>>
    %537 = vector.broadcast %536 : f32 to vector<14x146xf32>
    %538 = arith.mulf %537, %535 : vector<14x146xf32>
    %539 = arith.addf %521, %538 : vector<14x146xf32>
    %c64 = arith.constant 64 : index
    %540 = memref.load %arg3[%c64] : memref<144xf32, #tpu.memory_space<smem>>
    %541 = vector.broadcast %540 : f32 to vector<14x146xf32>
    %542 = arith.mulf %541, %535 : vector<14x146xf32>
    %543 = arith.addf %525, %542 : vector<14x146xf32>
    %c100 = arith.constant 100 : index
    %544 = memref.load %arg3[%c100] : memref<144xf32, #tpu.memory_space<smem>>
    %545 = vector.broadcast %544 : f32 to vector<14x146xf32>
    %546 = arith.mulf %545, %535 : vector<14x146xf32>
    %547 = arith.addf %529, %546 : vector<14x146xf32>
    %c136 = arith.constant 136 : index
    %548 = memref.load %arg3[%c136] : memref<144xf32, #tpu.memory_space<smem>>
    %549 = vector.broadcast %548 : f32 to vector<14x146xf32>
    %550 = arith.mulf %549, %535 : vector<14x146xf32>
    %551 = arith.addf %533, %550 : vector<14x146xf32>
    %c0_146 = arith.constant 0 : index
    %c3_147 = arith.constant 3 : index
    %c0_148 = arith.constant 0 : index
    %c2_149 = arith.constant 2 : index
    %552 = vector.load %arg1[%c0_146, %c3_147, %c0_148, %c2_149] : memref<1x4x16x148xf32, #tpu.memory_space<vmem>>, vector<1x1x14x146xf32>
    %553 = vector.shape_cast %552 : vector<1x1x14x146xf32> to vector<14x146xf32>
    %c29 = arith.constant 29 : index
    %554 = memref.load %arg3[%c29] : memref<144xf32, #tpu.memory_space<smem>>
    %555 = vector.broadcast %554 : f32 to vector<14x146xf32>
    %556 = arith.mulf %555, %553 : vector<14x146xf32>
    %557 = arith.addf %539, %556 : vector<14x146xf32>
    %c65 = arith.constant 65 : index
    %558 = memref.load %arg3[%c65] : memref<144xf32, #tpu.memory_space<smem>>
    %559 = vector.broadcast %558 : f32 to vector<14x146xf32>
    %560 = arith.mulf %559, %553 : vector<14x146xf32>
    %561 = arith.addf %543, %560 : vector<14x146xf32>
    %c101 = arith.constant 101 : index
    %562 = memref.load %arg3[%c101] : memref<144xf32, #tpu.memory_space<smem>>
    %563 = vector.broadcast %562 : f32 to vector<14x146xf32>
    %564 = arith.mulf %563, %553 : vector<14x146xf32>
    %565 = arith.addf %547, %564 : vector<14x146xf32>
    %c137 = arith.constant 137 : index
    %566 = memref.load %arg3[%c137] : memref<144xf32, #tpu.memory_space<smem>>
    %567 = vector.broadcast %566 : f32 to vector<14x146xf32>
    %568 = arith.mulf %567, %553 : vector<14x146xf32>
    %569 = arith.addf %551, %568 : vector<14x146xf32>
    %c0_150 = arith.constant 0 : index
    %c3_151 = arith.constant 3 : index
    %c1_152 = arith.constant 1 : index
    %c0_153 = arith.constant 0 : index
    %570 = vector.load %arg1[%c0_150, %c3_151, %c1_152, %c0_153] : memref<1x4x16x148xf32, #tpu.memory_space<vmem>>, vector<1x1x14x146xf32>
    %571 = vector.shape_cast %570 : vector<1x1x14x146xf32> to vector<14x146xf32>
    %c30 = arith.constant 30 : index
    %572 = memref.load %arg3[%c30] : memref<144xf32, #tpu.memory_space<smem>>
    %573 = vector.broadcast %572 : f32 to vector<14x146xf32>
    %574 = arith.mulf %573, %571 : vector<14x146xf32>
    %575 = arith.addf %557, %574 : vector<14x146xf32>
    %c66 = arith.constant 66 : index
    %576 = memref.load %arg3[%c66] : memref<144xf32, #tpu.memory_space<smem>>
    %577 = vector.broadcast %576 : f32 to vector<14x146xf32>
    %578 = arith.mulf %577, %571 : vector<14x146xf32>
    %579 = arith.addf %561, %578 : vector<14x146xf32>
    %c102 = arith.constant 102 : index
    %580 = memref.load %arg3[%c102] : memref<144xf32, #tpu.memory_space<smem>>
    %581 = vector.broadcast %580 : f32 to vector<14x146xf32>
    %582 = arith.mulf %581, %571 : vector<14x146xf32>
    %583 = arith.addf %565, %582 : vector<14x146xf32>
    %c138 = arith.constant 138 : index
    %584 = memref.load %arg3[%c138] : memref<144xf32, #tpu.memory_space<smem>>
    %585 = vector.broadcast %584 : f32 to vector<14x146xf32>
    %586 = arith.mulf %585, %571 : vector<14x146xf32>
    %587 = arith.addf %569, %586 : vector<14x146xf32>
    %c0_154 = arith.constant 0 : index
    %c3_155 = arith.constant 3 : index
    %c1_156 = arith.constant 1 : index
    %c1_157 = arith.constant 1 : index
    %588 = vector.load %arg1[%c0_154, %c3_155, %c1_156, %c1_157] : memref<1x4x16x148xf32, #tpu.memory_space<vmem>>, vector<1x1x14x146xf32>
    %589 = vector.shape_cast %588 : vector<1x1x14x146xf32> to vector<14x146xf32>
    %c31 = arith.constant 31 : index
    %590 = memref.load %arg3[%c31] : memref<144xf32, #tpu.memory_space<smem>>
    %591 = vector.broadcast %590 : f32 to vector<14x146xf32>
    %592 = arith.mulf %591, %589 : vector<14x146xf32>
    %593 = arith.addf %575, %592 : vector<14x146xf32>
    %c67 = arith.constant 67 : index
    %594 = memref.load %arg3[%c67] : memref<144xf32, #tpu.memory_space<smem>>
    %595 = vector.broadcast %594 : f32 to vector<14x146xf32>
    %596 = arith.mulf %595, %589 : vector<14x146xf32>
    %597 = arith.addf %579, %596 : vector<14x146xf32>
    %c103 = arith.constant 103 : index
    %598 = memref.load %arg3[%c103] : memref<144xf32, #tpu.memory_space<smem>>
    %599 = vector.broadcast %598 : f32 to vector<14x146xf32>
    %600 = arith.mulf %599, %589 : vector<14x146xf32>
    %601 = arith.addf %583, %600 : vector<14x146xf32>
    %c139 = arith.constant 139 : index
    %602 = memref.load %arg3[%c139] : memref<144xf32, #tpu.memory_space<smem>>
    %603 = vector.broadcast %602 : f32 to vector<14x146xf32>
    %604 = arith.mulf %603, %589 : vector<14x146xf32>
    %605 = arith.addf %587, %604 : vector<14x146xf32>
    %c0_158 = arith.constant 0 : index
    %c3_159 = arith.constant 3 : index
    %c1_160 = arith.constant 1 : index
    %c2_161 = arith.constant 2 : index
    %606 = vector.load %arg1[%c0_158, %c3_159, %c1_160, %c2_161] : memref<1x4x16x148xf32, #tpu.memory_space<vmem>>, vector<1x1x14x146xf32>
    %607 = vector.shape_cast %606 : vector<1x1x14x146xf32> to vector<14x146xf32>
    %c32 = arith.constant 32 : index
    %608 = memref.load %arg3[%c32] : memref<144xf32, #tpu.memory_space<smem>>
    %609 = vector.broadcast %608 : f32 to vector<14x146xf32>
    %610 = arith.mulf %609, %607 : vector<14x146xf32>
    %611 = arith.addf %593, %610 : vector<14x146xf32>
    %c68 = arith.constant 68 : index
    %612 = memref.load %arg3[%c68] : memref<144xf32, #tpu.memory_space<smem>>
    %613 = vector.broadcast %612 : f32 to vector<14x146xf32>
    %614 = arith.mulf %613, %607 : vector<14x146xf32>
    %615 = arith.addf %597, %614 : vector<14x146xf32>
    %c104 = arith.constant 104 : index
    %616 = memref.load %arg3[%c104] : memref<144xf32, #tpu.memory_space<smem>>
    %617 = vector.broadcast %616 : f32 to vector<14x146xf32>
    %618 = arith.mulf %617, %607 : vector<14x146xf32>
    %619 = arith.addf %601, %618 : vector<14x146xf32>
    %c140 = arith.constant 140 : index
    %620 = memref.load %arg3[%c140] : memref<144xf32, #tpu.memory_space<smem>>
    %621 = vector.broadcast %620 : f32 to vector<14x146xf32>
    %622 = arith.mulf %621, %607 : vector<14x146xf32>
    %623 = arith.addf %605, %622 : vector<14x146xf32>
    %c0_162 = arith.constant 0 : index
    %c3_163 = arith.constant 3 : index
    %c2_164 = arith.constant 2 : index
    %c0_165 = arith.constant 0 : index
    %624 = vector.load %arg1[%c0_162, %c3_163, %c2_164, %c0_165] : memref<1x4x16x148xf32, #tpu.memory_space<vmem>>, vector<1x1x14x146xf32>
    %625 = vector.shape_cast %624 : vector<1x1x14x146xf32> to vector<14x146xf32>
    %c33 = arith.constant 33 : index
    %626 = memref.load %arg3[%c33] : memref<144xf32, #tpu.memory_space<smem>>
    %627 = vector.broadcast %626 : f32 to vector<14x146xf32>
    %628 = arith.mulf %627, %625 : vector<14x146xf32>
    %629 = arith.addf %611, %628 : vector<14x146xf32>
    %c69 = arith.constant 69 : index
    %630 = memref.load %arg3[%c69] : memref<144xf32, #tpu.memory_space<smem>>
    %631 = vector.broadcast %630 : f32 to vector<14x146xf32>
    %632 = arith.mulf %631, %625 : vector<14x146xf32>
    %633 = arith.addf %615, %632 : vector<14x146xf32>
    %c105 = arith.constant 105 : index
    %634 = memref.load %arg3[%c105] : memref<144xf32, #tpu.memory_space<smem>>
    %635 = vector.broadcast %634 : f32 to vector<14x146xf32>
    %636 = arith.mulf %635, %625 : vector<14x146xf32>
    %637 = arith.addf %619, %636 : vector<14x146xf32>
    %c141 = arith.constant 141 : index
    %638 = memref.load %arg3[%c141] : memref<144xf32, #tpu.memory_space<smem>>
    %639 = vector.broadcast %638 : f32 to vector<14x146xf32>
    %640 = arith.mulf %639, %625 : vector<14x146xf32>
    %641 = arith.addf %623, %640 : vector<14x146xf32>
    %c0_166 = arith.constant 0 : index
    %c3_167 = arith.constant 3 : index
    %c2_168 = arith.constant 2 : index
    %c1_169 = arith.constant 1 : index
    %642 = vector.load %arg1[%c0_166, %c3_167, %c2_168, %c1_169] : memref<1x4x16x148xf32, #tpu.memory_space<vmem>>, vector<1x1x14x146xf32>
    %643 = vector.shape_cast %642 : vector<1x1x14x146xf32> to vector<14x146xf32>
    %c34 = arith.constant 34 : index
    %644 = memref.load %arg3[%c34] : memref<144xf32, #tpu.memory_space<smem>>
    %645 = vector.broadcast %644 : f32 to vector<14x146xf32>
    %646 = arith.mulf %645, %643 : vector<14x146xf32>
    %647 = arith.addf %629, %646 : vector<14x146xf32>
    %c70 = arith.constant 70 : index
    %648 = memref.load %arg3[%c70] : memref<144xf32, #tpu.memory_space<smem>>
    %649 = vector.broadcast %648 : f32 to vector<14x146xf32>
    %650 = arith.mulf %649, %643 : vector<14x146xf32>
    %651 = arith.addf %633, %650 : vector<14x146xf32>
    %c106 = arith.constant 106 : index
    %652 = memref.load %arg3[%c106] : memref<144xf32, #tpu.memory_space<smem>>
    %653 = vector.broadcast %652 : f32 to vector<14x146xf32>
    %654 = arith.mulf %653, %643 : vector<14x146xf32>
    %655 = arith.addf %637, %654 : vector<14x146xf32>
    %c142 = arith.constant 142 : index
    %656 = memref.load %arg3[%c142] : memref<144xf32, #tpu.memory_space<smem>>
    %657 = vector.broadcast %656 : f32 to vector<14x146xf32>
    %658 = arith.mulf %657, %643 : vector<14x146xf32>
    %659 = arith.addf %641, %658 : vector<14x146xf32>
    %c0_170 = arith.constant 0 : index
    %c3_171 = arith.constant 3 : index
    %c2_172 = arith.constant 2 : index
    %c2_173 = arith.constant 2 : index
    %660 = vector.load %arg1[%c0_170, %c3_171, %c2_172, %c2_173] : memref<1x4x16x148xf32, #tpu.memory_space<vmem>>, vector<1x1x14x146xf32>
    %661 = vector.shape_cast %660 : vector<1x1x14x146xf32> to vector<14x146xf32>
    %c35 = arith.constant 35 : index
    %662 = memref.load %arg3[%c35] : memref<144xf32, #tpu.memory_space<smem>>
    %663 = vector.broadcast %662 : f32 to vector<14x146xf32>
    %664 = arith.mulf %663, %661 : vector<14x146xf32>
    %665 = arith.addf %647, %664 : vector<14x146xf32>
    %c71 = arith.constant 71 : index
    %666 = memref.load %arg3[%c71] : memref<144xf32, #tpu.memory_space<smem>>
    %667 = vector.broadcast %666 : f32 to vector<14x146xf32>
    %668 = arith.mulf %667, %661 : vector<14x146xf32>
    %669 = arith.addf %651, %668 : vector<14x146xf32>
    %c107 = arith.constant 107 : index
    %670 = memref.load %arg3[%c107] : memref<144xf32, #tpu.memory_space<smem>>
    %671 = vector.broadcast %670 : f32 to vector<14x146xf32>
    %672 = arith.mulf %671, %661 : vector<14x146xf32>
    %673 = arith.addf %655, %672 : vector<14x146xf32>
    %c143 = arith.constant 143 : index
    %674 = memref.load %arg3[%c143] : memref<144xf32, #tpu.memory_space<smem>>
    %675 = vector.broadcast %674 : f32 to vector<14x146xf32>
    %676 = arith.mulf %675, %661 : vector<14x146xf32>
    %677 = arith.addf %659, %676 : vector<14x146xf32>
    %678 = vector.broadcast %0 : vector<1x146xf32> to vector<14x146xf32>
    %679 = arith.mulf %665, %678 : vector<14x146xf32>
    %c0_174 = arith.constant 0 : index
    %c2_175 = arith.constant 2 : index
    %c0_176 = arith.constant 0 : index
    %680 = vector.load %arg7[%c0_174, %c2_175, %c0_176] : memref<4x18x146xf32, #tpu.memory_space<vmem>>, vector<1x14x146xf32>
    %681 = vector.shape_cast %680 : vector<1x14x146xf32> to vector<14x146xf32>
    %682 = vector.shape_cast %679 : vector<14x146xf32> to vector<1x14x146xf32>
    tpu.vector_store %arg7[%c0_174, %c2_175, %c0_176], %682 {strides = array<i32>} : memref<4x18x146xf32, #tpu.memory_space<vmem>>, vector<1x14x146xf32>,
    %683 = vector.broadcast %0 : vector<1x146xf32> to vector<14x146xf32>
    %684 = arith.mulf %669, %683 : vector<14x146xf32>
    %c1_177 = arith.constant 1 : index
    %c2_178 = arith.constant 2 : index
    %c0_179 = arith.constant 0 : index
    %685 = vector.load %arg7[%c1_177, %c2_178, %c0_179] : memref<4x18x146xf32, #tpu.memory_space<vmem>>, vector<1x14x146xf32>
    %686 = vector.shape_cast %685 : vector<1x14x146xf32> to vector<14x146xf32>
    %687 = vector.shape_cast %684 : vector<14x146xf32> to vector<1x14x146xf32>
    tpu.vector_store %arg7[%c1_177, %c2_178, %c0_179], %687 {strides = array<i32>} : memref<4x18x146xf32, #tpu.memory_space<vmem>>, vector<1x14x146xf32>,
    %688 = vector.broadcast %0 : vector<1x146xf32> to vector<14x146xf32>
    %689 = arith.mulf %673, %688 : vector<14x146xf32>
    %c2_180 = arith.constant 2 : index
    %c2_181 = arith.constant 2 : index
    %c0_182 = arith.constant 0 : index
    %690 = vector.load %arg7[%c2_180, %c2_181, %c0_182] : memref<4x18x146xf32, #tpu.memory_space<vmem>>, vector<1x14x146xf32>
    %691 = vector.shape_cast %690 : vector<1x14x146xf32> to vector<14x146xf32>
    %692 = vector.shape_cast %689 : vector<14x146xf32> to vector<1x14x146xf32>
    tpu.vector_store %arg7[%c2_180, %c2_181, %c0_182], %692 {strides = array<i32>} : memref<4x18x146xf32, #tpu.memory_space<vmem>>, vector<1x14x146xf32>,
    %693 = vector.broadcast %0 : vector<1x146xf32> to vector<14x146xf32>
    %694 = arith.mulf %677, %693 : vector<14x146xf32>
    %c3_183 = arith.constant 3 : index
    %c2_184 = arith.constant 2 : index
    %c0_185 = arith.constant 0 : index
    %695 = vector.load %arg7[%c3_183, %c2_184, %c0_185] : memref<4x18x146xf32, #tpu.memory_space<vmem>>, vector<1x14x146xf32>
    %696 = vector.shape_cast %695 : vector<1x14x146xf32> to vector<14x146xf32>
    %697 = vector.shape_cast %694 : vector<14x146xf32> to vector<1x14x146xf32>
    tpu.vector_store %arg7[%c3_183, %c2_184, %c0_185], %697 {strides = array<i32>} : memref<4x18x146xf32, #tpu.memory_space<vmem>>, vector<1x14x146xf32>,
    %cst_186 = arith.constant 0.000000e+00 : f32
    %698 = vector.broadcast %cst_186 : f32 to vector<16x144xf32>
    %cst_187 = arith.constant 0.000000e+00 : f32
    %699 = vector.broadcast %cst_187 : f32 to vector<16x144xf32>
    %cst_188 = arith.constant 0.000000e+00 : f32
    %700 = vector.broadcast %cst_188 : f32 to vector<16x144xf32>
    %cst_189 = arith.constant 0.000000e+00 : f32
    %701 = vector.broadcast %cst_189 : f32 to vector<16x144xf32>
    %c0_190 = arith.constant 0 : index
    %c0_191 = arith.constant 0 : index
    %c0_192 = arith.constant 0 : index
    %702 = vector.load %arg7[%c0_190, %c0_191, %c0_192] : memref<4x18x146xf32, #tpu.memory_space<vmem>>, vector<1x16x144xf32>
    %703 = vector.shape_cast %702 : vector<1x16x144xf32> to vector<16x144xf32>
    %c0_193 = arith.constant 0 : index
    %704 = memref.load %arg4[%c0_193] : memref<144xf32, #tpu.memory_space<smem>>
    %705 = vector.broadcast %704 : f32 to vector<16x144xf32>
    %706 = arith.mulf %705, %703 : vector<16x144xf32>
    %707 = arith.addf %698, %706 : vector<16x144xf32>
    %c36_194 = arith.constant 36 : index
    %708 = memref.load %arg4[%c36_194] : memref<144xf32, #tpu.memory_space<smem>>
    %709 = vector.broadcast %708 : f32 to vector<16x144xf32>
    %710 = arith.mulf %709, %703 : vector<16x144xf32>
    %711 = arith.addf %699, %710 : vector<16x144xf32>
    %c72_195 = arith.constant 72 : index
    %712 = memref.load %arg4[%c72_195] : memref<144xf32, #tpu.memory_space<smem>>
    %713 = vector.broadcast %712 : f32 to vector<16x144xf32>
    %714 = arith.mulf %713, %703 : vector<16x144xf32>
    %715 = arith.addf %700, %714 : vector<16x144xf32>
    %c108_196 = arith.constant 108 : index
    %716 = memref.load %arg4[%c108_196] : memref<144xf32, #tpu.memory_space<smem>>
    %717 = vector.broadcast %716 : f32 to vector<16x144xf32>
    %718 = arith.mulf %717, %703 : vector<16x144xf32>
    %719 = arith.addf %701, %718 : vector<16x144xf32>
    %c0_197 = arith.constant 0 : index
    %c0_198 = arith.constant 0 : index
    %c1_199 = arith.constant 1 : index
    %720 = vector.load %arg7[%c0_197, %c0_198, %c1_199] : memref<4x18x146xf32, #tpu.memory_space<vmem>>, vector<1x16x144xf32>
    %721 = vector.shape_cast %720 : vector<1x16x144xf32> to vector<16x144xf32>
    %c1_200 = arith.constant 1 : index
    %722 = memref.load %arg4[%c1_200] : memref<144xf32, #tpu.memory_space<smem>>
    %723 = vector.broadcast %722 : f32 to vector<16x144xf32>
    %724 = arith.mulf %723, %721 : vector<16x144xf32>
    %725 = arith.addf %707, %724 : vector<16x144xf32>
    %c37_201 = arith.constant 37 : index
    %726 = memref.load %arg4[%c37_201] : memref<144xf32, #tpu.memory_space<smem>>
    %727 = vector.broadcast %726 : f32 to vector<16x144xf32>
    %728 = arith.mulf %727, %721 : vector<16x144xf32>
    %729 = arith.addf %711, %728 : vector<16x144xf32>
    %c73_202 = arith.constant 73 : index
    %730 = memref.load %arg4[%c73_202] : memref<144xf32, #tpu.memory_space<smem>>
    %731 = vector.broadcast %730 : f32 to vector<16x144xf32>
    %732 = arith.mulf %731, %721 : vector<16x144xf32>
    %733 = arith.addf %715, %732 : vector<16x144xf32>
    %c109_203 = arith.constant 109 : index
    %734 = memref.load %arg4[%c109_203] : memref<144xf32, #tpu.memory_space<smem>>
    %735 = vector.broadcast %734 : f32 to vector<16x144xf32>
    %736 = arith.mulf %735, %721 : vector<16x144xf32>
    %737 = arith.addf %719, %736 : vector<16x144xf32>
    %c0_204 = arith.constant 0 : index
    %c0_205 = arith.constant 0 : index
    %c2_206 = arith.constant 2 : index
    %738 = vector.load %arg7[%c0_204, %c0_205, %c2_206] : memref<4x18x146xf32, #tpu.memory_space<vmem>>, vector<1x16x144xf32>
    %739 = vector.shape_cast %738 : vector<1x16x144xf32> to vector<16x144xf32>
    %c2_207 = arith.constant 2 : index
    %740 = memref.load %arg4[%c2_207] : memref<144xf32, #tpu.memory_space<smem>>
    %741 = vector.broadcast %740 : f32 to vector<16x144xf32>
    %742 = arith.mulf %741, %739 : vector<16x144xf32>
    %743 = arith.addf %725, %742 : vector<16x144xf32>
    %c38_208 = arith.constant 38 : index
    %744 = memref.load %arg4[%c38_208] : memref<144xf32, #tpu.memory_space<smem>>
    %745 = vector.broadcast %744 : f32 to vector<16x144xf32>
    %746 = arith.mulf %745, %739 : vector<16x144xf32>
    %747 = arith.addf %729, %746 : vector<16x144xf32>
    %c74_209 = arith.constant 74 : index
    %748 = memref.load %arg4[%c74_209] : memref<144xf32, #tpu.memory_space<smem>>
    %749 = vector.broadcast %748 : f32 to vector<16x144xf32>
    %750 = arith.mulf %749, %739 : vector<16x144xf32>
    %751 = arith.addf %733, %750 : vector<16x144xf32>
    %c110_210 = arith.constant 110 : index
    %752 = memref.load %arg4[%c110_210] : memref<144xf32, #tpu.memory_space<smem>>
    %753 = vector.broadcast %752 : f32 to vector<16x144xf32>
    %754 = arith.mulf %753, %739 : vector<16x144xf32>
    %755 = arith.addf %737, %754 : vector<16x144xf32>
    %c0_211 = arith.constant 0 : index
    %c1_212 = arith.constant 1 : index
    %c0_213 = arith.constant 0 : index
    %756 = vector.load %arg7[%c0_211, %c1_212, %c0_213] : memref<4x18x146xf32, #tpu.memory_space<vmem>>, vector<1x16x144xf32>
    %757 = vector.shape_cast %756 : vector<1x16x144xf32> to vector<16x144xf32>
    %c3_214 = arith.constant 3 : index
    %758 = memref.load %arg4[%c3_214] : memref<144xf32, #tpu.memory_space<smem>>
    %759 = vector.broadcast %758 : f32 to vector<16x144xf32>
    %760 = arith.mulf %759, %757 : vector<16x144xf32>
    %761 = arith.addf %743, %760 : vector<16x144xf32>
    %c39_215 = arith.constant 39 : index
    %762 = memref.load %arg4[%c39_215] : memref<144xf32, #tpu.memory_space<smem>>
    %763 = vector.broadcast %762 : f32 to vector<16x144xf32>
    %764 = arith.mulf %763, %757 : vector<16x144xf32>
    %765 = arith.addf %747, %764 : vector<16x144xf32>
    %c75_216 = arith.constant 75 : index
    %766 = memref.load %arg4[%c75_216] : memref<144xf32, #tpu.memory_space<smem>>
    %767 = vector.broadcast %766 : f32 to vector<16x144xf32>
    %768 = arith.mulf %767, %757 : vector<16x144xf32>
    %769 = arith.addf %751, %768 : vector<16x144xf32>
    %c111_217 = arith.constant 111 : index
    %770 = memref.load %arg4[%c111_217] : memref<144xf32, #tpu.memory_space<smem>>
    %771 = vector.broadcast %770 : f32 to vector<16x144xf32>
    %772 = arith.mulf %771, %757 : vector<16x144xf32>
    %773 = arith.addf %755, %772 : vector<16x144xf32>
    %c0_218 = arith.constant 0 : index
    %c1_219 = arith.constant 1 : index
    %c1_220 = arith.constant 1 : index
    %774 = vector.load %arg7[%c0_218, %c1_219, %c1_220] : memref<4x18x146xf32, #tpu.memory_space<vmem>>, vector<1x16x144xf32>
    %775 = vector.shape_cast %774 : vector<1x16x144xf32> to vector<16x144xf32>
    %c4_221 = arith.constant 4 : index
    %776 = memref.load %arg4[%c4_221] : memref<144xf32, #tpu.memory_space<smem>>
    %777 = vector.broadcast %776 : f32 to vector<16x144xf32>
    %778 = arith.mulf %777, %775 : vector<16x144xf32>
    %779 = arith.addf %761, %778 : vector<16x144xf32>
    %c40_222 = arith.constant 40 : index
    %780 = memref.load %arg4[%c40_222] : memref<144xf32, #tpu.memory_space<smem>>
    %781 = vector.broadcast %780 : f32 to vector<16x144xf32>
    %782 = arith.mulf %781, %775 : vector<16x144xf32>
    %783 = arith.addf %765, %782 : vector<16x144xf32>
    %c76_223 = arith.constant 76 : index
    %784 = memref.load %arg4[%c76_223] : memref<144xf32, #tpu.memory_space<smem>>
    %785 = vector.broadcast %784 : f32 to vector<16x144xf32>
    %786 = arith.mulf %785, %775 : vector<16x144xf32>
    %787 = arith.addf %769, %786 : vector<16x144xf32>
    %c112_224 = arith.constant 112 : index
    %788 = memref.load %arg4[%c112_224] : memref<144xf32, #tpu.memory_space<smem>>
    %789 = vector.broadcast %788 : f32 to vector<16x144xf32>
    %790 = arith.mulf %789, %775 : vector<16x144xf32>
    %791 = arith.addf %773, %790 : vector<16x144xf32>
    %c0_225 = arith.constant 0 : index
    %c1_226 = arith.constant 1 : index
    %c2_227 = arith.constant 2 : index
    %792 = vector.load %arg7[%c0_225, %c1_226, %c2_227] : memref<4x18x146xf32, #tpu.memory_space<vmem>>, vector<1x16x144xf32>
    %793 = vector.shape_cast %792 : vector<1x16x144xf32> to vector<16x144xf32>
    %c5_228 = arith.constant 5 : index
    %794 = memref.load %arg4[%c5_228] : memref<144xf32, #tpu.memory_space<smem>>
    %795 = vector.broadcast %794 : f32 to vector<16x144xf32>
    %796 = arith.mulf %795, %793 : vector<16x144xf32>
    %797 = arith.addf %779, %796 : vector<16x144xf32>
    %c41_229 = arith.constant 41 : index
    %798 = memref.load %arg4[%c41_229] : memref<144xf32, #tpu.memory_space<smem>>
    %799 = vector.broadcast %798 : f32 to vector<16x144xf32>
    %800 = arith.mulf %799, %793 : vector<16x144xf32>
    %801 = arith.addf %783, %800 : vector<16x144xf32>
    %c77_230 = arith.constant 77 : index
    %802 = memref.load %arg4[%c77_230] : memref<144xf32, #tpu.memory_space<smem>>
    %803 = vector.broadcast %802 : f32 to vector<16x144xf32>
    %804 = arith.mulf %803, %793 : vector<16x144xf32>
    %805 = arith.addf %787, %804 : vector<16x144xf32>
    %c113_231 = arith.constant 113 : index
    %806 = memref.load %arg4[%c113_231] : memref<144xf32, #tpu.memory_space<smem>>
    %807 = vector.broadcast %806 : f32 to vector<16x144xf32>
    %808 = arith.mulf %807, %793 : vector<16x144xf32>
    %809 = arith.addf %791, %808 : vector<16x144xf32>
    %c0_232 = arith.constant 0 : index
    %c2_233 = arith.constant 2 : index
    %c0_234 = arith.constant 0 : index
    %810 = vector.load %arg7[%c0_232, %c2_233, %c0_234] : memref<4x18x146xf32, #tpu.memory_space<vmem>>, vector<1x16x144xf32>
    %811 = vector.shape_cast %810 : vector<1x16x144xf32> to vector<16x144xf32>
    %c6_235 = arith.constant 6 : index
    %812 = memref.load %arg4[%c6_235] : memref<144xf32, #tpu.memory_space<smem>>
    %813 = vector.broadcast %812 : f32 to vector<16x144xf32>
    %814 = arith.mulf %813, %811 : vector<16x144xf32>
    %815 = arith.addf %797, %814 : vector<16x144xf32>
    %c42_236 = arith.constant 42 : index
    %816 = memref.load %arg4[%c42_236] : memref<144xf32, #tpu.memory_space<smem>>
    %817 = vector.broadcast %816 : f32 to vector<16x144xf32>
    %818 = arith.mulf %817, %811 : vector<16x144xf32>
    %819 = arith.addf %801, %818 : vector<16x144xf32>
    %c78_237 = arith.constant 78 : index
    %820 = memref.load %arg4[%c78_237] : memref<144xf32, #tpu.memory_space<smem>>
    %821 = vector.broadcast %820 : f32 to vector<16x144xf32>
    %822 = arith.mulf %821, %811 : vector<16x144xf32>
    %823 = arith.addf %805, %822 : vector<16x144xf32>
    %c114_238 = arith.constant 114 : index
    %824 = memref.load %arg4[%c114_238] : memref<144xf32, #tpu.memory_space<smem>>
    %825 = vector.broadcast %824 : f32 to vector<16x144xf32>
    %826 = arith.mulf %825, %811 : vector<16x144xf32>
    %827 = arith.addf %809, %826 : vector<16x144xf32>
    %c0_239 = arith.constant 0 : index
    %c2_240 = arith.constant 2 : index
    %c1_241 = arith.constant 1 : index
    %828 = vector.load %arg7[%c0_239, %c2_240, %c1_241] : memref<4x18x146xf32, #tpu.memory_space<vmem>>, vector<1x16x144xf32>
    %829 = vector.shape_cast %828 : vector<1x16x144xf32> to vector<16x144xf32>
    %c7_242 = arith.constant 7 : index
    %830 = memref.load %arg4[%c7_242] : memref<144xf32, #tpu.memory_space<smem>>
    %831 = vector.broadcast %830 : f32 to vector<16x144xf32>
    %832 = arith.mulf %831, %829 : vector<16x144xf32>
    %833 = arith.addf %815, %832 : vector<16x144xf32>
    %c43_243 = arith.constant 43 : index
    %834 = memref.load %arg4[%c43_243] : memref<144xf32, #tpu.memory_space<smem>>
    %835 = vector.broadcast %834 : f32 to vector<16x144xf32>
    %836 = arith.mulf %835, %829 : vector<16x144xf32>
    %837 = arith.addf %819, %836 : vector<16x144xf32>
    %c79_244 = arith.constant 79 : index
    %838 = memref.load %arg4[%c79_244] : memref<144xf32, #tpu.memory_space<smem>>
    %839 = vector.broadcast %838 : f32 to vector<16x144xf32>
    %840 = arith.mulf %839, %829 : vector<16x144xf32>
    %841 = arith.addf %823, %840 : vector<16x144xf32>
    %c115_245 = arith.constant 115 : index
    %842 = memref.load %arg4[%c115_245] : memref<144xf32, #tpu.memory_space<smem>>
    %843 = vector.broadcast %842 : f32 to vector<16x144xf32>
    %844 = arith.mulf %843, %829 : vector<16x144xf32>
    %845 = arith.addf %827, %844 : vector<16x144xf32>
    %c0_246 = arith.constant 0 : index
    %c2_247 = arith.constant 2 : index
    %c2_248 = arith.constant 2 : index
    %846 = vector.load %arg7[%c0_246, %c2_247, %c2_248] : memref<4x18x146xf32, #tpu.memory_space<vmem>>, vector<1x16x144xf32>
    %847 = vector.shape_cast %846 : vector<1x16x144xf32> to vector<16x144xf32>
    %c8_249 = arith.constant 8 : index
    %848 = memref.load %arg4[%c8_249] : memref<144xf32, #tpu.memory_space<smem>>
    %849 = vector.broadcast %848 : f32 to vector<16x144xf32>
    %850 = arith.mulf %849, %847 : vector<16x144xf32>
    %851 = arith.addf %833, %850 : vector<16x144xf32>
    %c44_250 = arith.constant 44 : index
    %852 = memref.load %arg4[%c44_250] : memref<144xf32, #tpu.memory_space<smem>>
    %853 = vector.broadcast %852 : f32 to vector<16x144xf32>
    %854 = arith.mulf %853, %847 : vector<16x144xf32>
    %855 = arith.addf %837, %854 : vector<16x144xf32>
    %c80_251 = arith.constant 80 : index
    %856 = memref.load %arg4[%c80_251] : memref<144xf32, #tpu.memory_space<smem>>
    %857 = vector.broadcast %856 : f32 to vector<16x144xf32>
    %858 = arith.mulf %857, %847 : vector<16x144xf32>
    %859 = arith.addf %841, %858 : vector<16x144xf32>
    %c116_252 = arith.constant 116 : index
    %860 = memref.load %arg4[%c116_252] : memref<144xf32, #tpu.memory_space<smem>>
    %861 = vector.broadcast %860 : f32 to vector<16x144xf32>
    %862 = arith.mulf %861, %847 : vector<16x144xf32>
    %863 = arith.addf %845, %862 : vector<16x144xf32>
    %c1_253 = arith.constant 1 : index
    %c0_254 = arith.constant 0 : index
    %c0_255 = arith.constant 0 : index
    %864 = vector.load %arg7[%c1_253, %c0_254, %c0_255] : memref<4x18x146xf32, #tpu.memory_space<vmem>>, vector<1x16x144xf32>
    %865 = vector.shape_cast %864 : vector<1x16x144xf32> to vector<16x144xf32>
    %c9_256 = arith.constant 9 : index
    %866 = memref.load %arg4[%c9_256] : memref<144xf32, #tpu.memory_space<smem>>
    %867 = vector.broadcast %866 : f32 to vector<16x144xf32>
    %868 = arith.mulf %867, %865 : vector<16x144xf32>
    %869 = arith.addf %851, %868 : vector<16x144xf32>
    %c45_257 = arith.constant 45 : index
    %870 = memref.load %arg4[%c45_257] : memref<144xf32, #tpu.memory_space<smem>>
    %871 = vector.broadcast %870 : f32 to vector<16x144xf32>
    %872 = arith.mulf %871, %865 : vector<16x144xf32>
    %873 = arith.addf %855, %872 : vector<16x144xf32>
    %c81_258 = arith.constant 81 : index
    %874 = memref.load %arg4[%c81_258] : memref<144xf32, #tpu.memory_space<smem>>
    %875 = vector.broadcast %874 : f32 to vector<16x144xf32>
    %876 = arith.mulf %875, %865 : vector<16x144xf32>
    %877 = arith.addf %859, %876 : vector<16x144xf32>
    %c117_259 = arith.constant 117 : index
    %878 = memref.load %arg4[%c117_259] : memref<144xf32, #tpu.memory_space<smem>>
    %879 = vector.broadcast %878 : f32 to vector<16x144xf32>
    %880 = arith.mulf %879, %865 : vector<16x144xf32>
    %881 = arith.addf %863, %880 : vector<16x144xf32>
    %c1_260 = arith.constant 1 : index
    %c0_261 = arith.constant 0 : index
    %c1_262 = arith.constant 1 : index
    %882 = vector.load %arg7[%c1_260, %c0_261, %c1_262] : memref<4x18x146xf32, #tpu.memory_space<vmem>>, vector<1x16x144xf32>
    %883 = vector.shape_cast %882 : vector<1x16x144xf32> to vector<16x144xf32>
    %c10_263 = arith.constant 10 : index
    %884 = memref.load %arg4[%c10_263] : memref<144xf32, #tpu.memory_space<smem>>
    %885 = vector.broadcast %884 : f32 to vector<16x144xf32>
    %886 = arith.mulf %885, %883 : vector<16x144xf32>
    %887 = arith.addf %869, %886 : vector<16x144xf32>
    %c46_264 = arith.constant 46 : index
    %888 = memref.load %arg4[%c46_264] : memref<144xf32, #tpu.memory_space<smem>>
    %889 = vector.broadcast %888 : f32 to vector<16x144xf32>
    %890 = arith.mulf %889, %883 : vector<16x144xf32>
    %891 = arith.addf %873, %890 : vector<16x144xf32>
    %c82_265 = arith.constant 82 : index
    %892 = memref.load %arg4[%c82_265] : memref<144xf32, #tpu.memory_space<smem>>
    %893 = vector.broadcast %892 : f32 to vector<16x144xf32>
    %894 = arith.mulf %893, %883 : vector<16x144xf32>
    %895 = arith.addf %877, %894 : vector<16x144xf32>
    %c118_266 = arith.constant 118 : index
    %896 = memref.load %arg4[%c118_266] : memref<144xf32, #tpu.memory_space<smem>>
    %897 = vector.broadcast %896 : f32 to vector<16x144xf32>
    %898 = arith.mulf %897, %883 : vector<16x144xf32>
    %899 = arith.addf %881, %898 : vector<16x144xf32>
    %c1_267 = arith.constant 1 : index
    %c0_268 = arith.constant 0 : index
    %c2_269 = arith.constant 2 : index
    %900 = vector.load %arg7[%c1_267, %c0_268, %c2_269] : memref<4x18x146xf32, #tpu.memory_space<vmem>>, vector<1x16x144xf32>
    %901 = vector.shape_cast %900 : vector<1x16x144xf32> to vector<16x144xf32>
    %c11_270 = arith.constant 11 : index
    %902 = memref.load %arg4[%c11_270] : memref<144xf32, #tpu.memory_space<smem>>
    %903 = vector.broadcast %902 : f32 to vector<16x144xf32>
    %904 = arith.mulf %903, %901 : vector<16x144xf32>
    %905 = arith.addf %887, %904 : vector<16x144xf32>
    %c47_271 = arith.constant 47 : index
    %906 = memref.load %arg4[%c47_271] : memref<144xf32, #tpu.memory_space<smem>>
    %907 = vector.broadcast %906 : f32 to vector<16x144xf32>
    %908 = arith.mulf %907, %901 : vector<16x144xf32>
    %909 = arith.addf %891, %908 : vector<16x144xf32>
    %c83_272 = arith.constant 83 : index
    %910 = memref.load %arg4[%c83_272] : memref<144xf32, #tpu.memory_space<smem>>
    %911 = vector.broadcast %910 : f32 to vector<16x144xf32>
    %912 = arith.mulf %911, %901 : vector<16x144xf32>
    %913 = arith.addf %895, %912 : vector<16x144xf32>
    %c119_273 = arith.constant 119 : index
    %914 = memref.load %arg4[%c119_273] : memref<144xf32, #tpu.memory_space<smem>>
    %915 = vector.broadcast %914 : f32 to vector<16x144xf32>
    %916 = arith.mulf %915, %901 : vector<16x144xf32>
    %917 = arith.addf %899, %916 : vector<16x144xf32>
    %c1_274 = arith.constant 1 : index
    %c1_275 = arith.constant 1 : index
    %c0_276 = arith.constant 0 : index
    %918 = vector.load %arg7[%c1_274, %c1_275, %c0_276] : memref<4x18x146xf32, #tpu.memory_space<vmem>>, vector<1x16x144xf32>
    %919 = vector.shape_cast %918 : vector<1x16x144xf32> to vector<16x144xf32>
    %c12_277 = arith.constant 12 : index
    %920 = memref.load %arg4[%c12_277] : memref<144xf32, #tpu.memory_space<smem>>
    %921 = vector.broadcast %920 : f32 to vector<16x144xf32>
    %922 = arith.mulf %921, %919 : vector<16x144xf32>
    %923 = arith.addf %905, %922 : vector<16x144xf32>
    %c48_278 = arith.constant 48 : index
    %924 = memref.load %arg4[%c48_278] : memref<144xf32, #tpu.memory_space<smem>>
    %925 = vector.broadcast %924 : f32 to vector<16x144xf32>
    %926 = arith.mulf %925, %919 : vector<16x144xf32>
    %927 = arith.addf %909, %926 : vector<16x144xf32>
    %c84_279 = arith.constant 84 : index
    %928 = memref.load %arg4[%c84_279] : memref<144xf32, #tpu.memory_space<smem>>
    %929 = vector.broadcast %928 : f32 to vector<16x144xf32>
    %930 = arith.mulf %929, %919 : vector<16x144xf32>
    %931 = arith.addf %913, %930 : vector<16x144xf32>
    %c120_280 = arith.constant 120 : index
    %932 = memref.load %arg4[%c120_280] : memref<144xf32, #tpu.memory_space<smem>>
    %933 = vector.broadcast %932 : f32 to vector<16x144xf32>
    %934 = arith.mulf %933, %919 : vector<16x144xf32>
    %935 = arith.addf %917, %934 : vector<16x144xf32>
    %c1_281 = arith.constant 1 : index
    %c1_282 = arith.constant 1 : index
    %c1_283 = arith.constant 1 : index
    %936 = vector.load %arg7[%c1_281, %c1_282, %c1_283] : memref<4x18x146xf32, #tpu.memory_space<vmem>>, vector<1x16x144xf32>
    %937 = vector.shape_cast %936 : vector<1x16x144xf32> to vector<16x144xf32>
    %c13_284 = arith.constant 13 : index
    %938 = memref.load %arg4[%c13_284] : memref<144xf32, #tpu.memory_space<smem>>
    %939 = vector.broadcast %938 : f32 to vector<16x144xf32>
    %940 = arith.mulf %939, %937 : vector<16x144xf32>
    %941 = arith.addf %923, %940 : vector<16x144xf32>
    %c49_285 = arith.constant 49 : index
    %942 = memref.load %arg4[%c49_285] : memref<144xf32, #tpu.memory_space<smem>>
    %943 = vector.broadcast %942 : f32 to vector<16x144xf32>
    %944 = arith.mulf %943, %937 : vector<16x144xf32>
    %945 = arith.addf %927, %944 : vector<16x144xf32>
    %c85_286 = arith.constant 85 : index
    %946 = memref.load %arg4[%c85_286] : memref<144xf32, #tpu.memory_space<smem>>
    %947 = vector.broadcast %946 : f32 to vector<16x144xf32>
    %948 = arith.mulf %947, %937 : vector<16x144xf32>
    %949 = arith.addf %931, %948 : vector<16x144xf32>
    %c121_287 = arith.constant 121 : index
    %950 = memref.load %arg4[%c121_287] : memref<144xf32, #tpu.memory_space<smem>>
    %951 = vector.broadcast %950 : f32 to vector<16x144xf32>
    %952 = arith.mulf %951, %937 : vector<16x144xf32>
    %953 = arith.addf %935, %952 : vector<16x144xf32>
    %c1_288 = arith.constant 1 : index
    %c1_289 = arith.constant 1 : index
    %c2_290 = arith.constant 2 : index
    %954 = vector.load %arg7[%c1_288, %c1_289, %c2_290] : memref<4x18x146xf32, #tpu.memory_space<vmem>>, vector<1x16x144xf32>
    %955 = vector.shape_cast %954 : vector<1x16x144xf32> to vector<16x144xf32>
    %c14_291 = arith.constant 14 : index
    %956 = memref.load %arg4[%c14_291] : memref<144xf32, #tpu.memory_space<smem>>
    %957 = vector.broadcast %956 : f32 to vector<16x144xf32>
    %958 = arith.mulf %957, %955 : vector<16x144xf32>
    %959 = arith.addf %941, %958 : vector<16x144xf32>
    %c50_292 = arith.constant 50 : index
    %960 = memref.load %arg4[%c50_292] : memref<144xf32, #tpu.memory_space<smem>>
    %961 = vector.broadcast %960 : f32 to vector<16x144xf32>
    %962 = arith.mulf %961, %955 : vector<16x144xf32>
    %963 = arith.addf %945, %962 : vector<16x144xf32>
    %c86_293 = arith.constant 86 : index
    %964 = memref.load %arg4[%c86_293] : memref<144xf32, #tpu.memory_space<smem>>
    %965 = vector.broadcast %964 : f32 to vector<16x144xf32>
    %966 = arith.mulf %965, %955 : vector<16x144xf32>
    %967 = arith.addf %949, %966 : vector<16x144xf32>
    %c122_294 = arith.constant 122 : index
    %968 = memref.load %arg4[%c122_294] : memref<144xf32, #tpu.memory_space<smem>>
    %969 = vector.broadcast %968 : f32 to vector<16x144xf32>
    %970 = arith.mulf %969, %955 : vector<16x144xf32>
    %971 = arith.addf %953, %970 : vector<16x144xf32>
    %c1_295 = arith.constant 1 : index
    %c2_296 = arith.constant 2 : index
    %c0_297 = arith.constant 0 : index
    %972 = vector.load %arg7[%c1_295, %c2_296, %c0_297] : memref<4x18x146xf32, #tpu.memory_space<vmem>>, vector<1x16x144xf32>
    %973 = vector.shape_cast %972 : vector<1x16x144xf32> to vector<16x144xf32>
    %c15_298 = arith.constant 15 : index
    %974 = memref.load %arg4[%c15_298] : memref<144xf32, #tpu.memory_space<smem>>
    %975 = vector.broadcast %974 : f32 to vector<16x144xf32>
    %976 = arith.mulf %975, %973 : vector<16x144xf32>
    %977 = arith.addf %959, %976 : vector<16x144xf32>
    %c51_299 = arith.constant 51 : index
    %978 = memref.load %arg4[%c51_299] : memref<144xf32, #tpu.memory_space<smem>>
    %979 = vector.broadcast %978 : f32 to vector<16x144xf32>
    %980 = arith.mulf %979, %973 : vector<16x144xf32>
    %981 = arith.addf %963, %980 : vector<16x144xf32>
    %c87_300 = arith.constant 87 : index
    %982 = memref.load %arg4[%c87_300] : memref<144xf32, #tpu.memory_space<smem>>
    %983 = vector.broadcast %982 : f32 to vector<16x144xf32>
    %984 = arith.mulf %983, %973 : vector<16x144xf32>
    %985 = arith.addf %967, %984 : vector<16x144xf32>
    %c123_301 = arith.constant 123 : index
    %986 = memref.load %arg4[%c123_301] : memref<144xf32, #tpu.memory_space<smem>>
    %987 = vector.broadcast %986 : f32 to vector<16x144xf32>
    %988 = arith.mulf %987, %973 : vector<16x144xf32>
    %989 = arith.addf %971, %988 : vector<16x144xf32>
    %c1_302 = arith.constant 1 : index
    %c2_303 = arith.constant 2 : index
    %c1_304 = arith.constant 1 : index
    %990 = vector.load %arg7[%c1_302, %c2_303, %c1_304] : memref<4x18x146xf32, #tpu.memory_space<vmem>>, vector<1x16x144xf32>
    %991 = vector.shape_cast %990 : vector<1x16x144xf32> to vector<16x144xf32>
    %c16_305 = arith.constant 16 : index
    %992 = memref.load %arg4[%c16_305] : memref<144xf32, #tpu.memory_space<smem>>
    %993 = vector.broadcast %992 : f32 to vector<16x144xf32>
    %994 = arith.mulf %993, %991 : vector<16x144xf32>
    %995 = arith.addf %977, %994 : vector<16x144xf32>
    %c52_306 = arith.constant 52 : index
    %996 = memref.load %arg4[%c52_306] : memref<144xf32, #tpu.memory_space<smem>>
    %997 = vector.broadcast %996 : f32 to vector<16x144xf32>
    %998 = arith.mulf %997, %991 : vector<16x144xf32>
    %999 = arith.addf %981, %998 : vector<16x144xf32>
    %c88_307 = arith.constant 88 : index
    %1000 = memref.load %arg4[%c88_307] : memref<144xf32, #tpu.memory_space<smem>>
    %1001 = vector.broadcast %1000 : f32 to vector<16x144xf32>
    %1002 = arith.mulf %1001, %991 : vector<16x144xf32>
    %1003 = arith.addf %985, %1002 : vector<16x144xf32>
    %c124_308 = arith.constant 124 : index
    %1004 = memref.load %arg4[%c124_308] : memref<144xf32, #tpu.memory_space<smem>>
    %1005 = vector.broadcast %1004 : f32 to vector<16x144xf32>
    %1006 = arith.mulf %1005, %991 : vector<16x144xf32>
    %1007 = arith.addf %989, %1006 : vector<16x144xf32>
    %c1_309 = arith.constant 1 : index
    %c2_310 = arith.constant 2 : index
    %c2_311 = arith.constant 2 : index
    %1008 = vector.load %arg7[%c1_309, %c2_310, %c2_311] : memref<4x18x146xf32, #tpu.memory_space<vmem>>, vector<1x16x144xf32>
    %1009 = vector.shape_cast %1008 : vector<1x16x144xf32> to vector<16x144xf32>
    %c17_312 = arith.constant 17 : index
    %1010 = memref.load %arg4[%c17_312] : memref<144xf32, #tpu.memory_space<smem>>
    %1011 = vector.broadcast %1010 : f32 to vector<16x144xf32>
    %1012 = arith.mulf %1011, %1009 : vector<16x144xf32>
    %1013 = arith.addf %995, %1012 : vector<16x144xf32>
    %c53_313 = arith.constant 53 : index
    %1014 = memref.load %arg4[%c53_313] : memref<144xf32, #tpu.memory_space<smem>>
    %1015 = vector.broadcast %1014 : f32 to vector<16x144xf32>
    %1016 = arith.mulf %1015, %1009 : vector<16x144xf32>
    %1017 = arith.addf %999, %1016 : vector<16x144xf32>
    %c89_314 = arith.constant 89 : index
    %1018 = memref.load %arg4[%c89_314] : memref<144xf32, #tpu.memory_space<smem>>
    %1019 = vector.broadcast %1018 : f32 to vector<16x144xf32>
    %1020 = arith.mulf %1019, %1009 : vector<16x144xf32>
    %1021 = arith.addf %1003, %1020 : vector<16x144xf32>
    %c125_315 = arith.constant 125 : index
    %1022 = memref.load %arg4[%c125_315] : memref<144xf32, #tpu.memory_space<smem>>
    %1023 = vector.broadcast %1022 : f32 to vector<16x144xf32>
    %1024 = arith.mulf %1023, %1009 : vector<16x144xf32>
    %1025 = arith.addf %1007, %1024 : vector<16x144xf32>
    %c2_316 = arith.constant 2 : index
    %c0_317 = arith.constant 0 : index
    %c0_318 = arith.constant 0 : index
    %1026 = vector.load %arg7[%c2_316, %c0_317, %c0_318] : memref<4x18x146xf32, #tpu.memory_space<vmem>>, vector<1x16x144xf32>
    %1027 = vector.shape_cast %1026 : vector<1x16x144xf32> to vector<16x144xf32>
    %c18_319 = arith.constant 18 : index
    %1028 = memref.load %arg4[%c18_319] : memref<144xf32, #tpu.memory_space<smem>>
    %1029 = vector.broadcast %1028 : f32 to vector<16x144xf32>
    %1030 = arith.mulf %1029, %1027 : vector<16x144xf32>
    %1031 = arith.addf %1013, %1030 : vector<16x144xf32>
    %c54_320 = arith.constant 54 : index
    %1032 = memref.load %arg4[%c54_320] : memref<144xf32, #tpu.memory_space<smem>>
    %1033 = vector.broadcast %1032 : f32 to vector<16x144xf32>
    %1034 = arith.mulf %1033, %1027 : vector<16x144xf32>
    %1035 = arith.addf %1017, %1034 : vector<16x144xf32>
    %c90_321 = arith.constant 90 : index
    %1036 = memref.load %arg4[%c90_321] : memref<144xf32, #tpu.memory_space<smem>>
    %1037 = vector.broadcast %1036 : f32 to vector<16x144xf32>
    %1038 = arith.mulf %1037, %1027 : vector<16x144xf32>
    %1039 = arith.addf %1021, %1038 : vector<16x144xf32>
    %c126_322 = arith.constant 126 : index
    %1040 = memref.load %arg4[%c126_322] : memref<144xf32, #tpu.memory_space<smem>>
    %1041 = vector.broadcast %1040 : f32 to vector<16x144xf32>
    %1042 = arith.mulf %1041, %1027 : vector<16x144xf32>
    %1043 = arith.addf %1025, %1042 : vector<16x144xf32>
    %c2_323 = arith.constant 2 : index
    %c0_324 = arith.constant 0 : index
    %c1_325 = arith.constant 1 : index
    %1044 = vector.load %arg7[%c2_323, %c0_324, %c1_325] : memref<4x18x146xf32, #tpu.memory_space<vmem>>, vector<1x16x144xf32>
    %1045 = vector.shape_cast %1044 : vector<1x16x144xf32> to vector<16x144xf32>
    %c19_326 = arith.constant 19 : index
    %1046 = memref.load %arg4[%c19_326] : memref<144xf32, #tpu.memory_space<smem>>
    %1047 = vector.broadcast %1046 : f32 to vector<16x144xf32>
    %1048 = arith.mulf %1047, %1045 : vector<16x144xf32>
    %1049 = arith.addf %1031, %1048 : vector<16x144xf32>
    %c55_327 = arith.constant 55 : index
    %1050 = memref.load %arg4[%c55_327] : memref<144xf32, #tpu.memory_space<smem>>
    %1051 = vector.broadcast %1050 : f32 to vector<16x144xf32>
    %1052 = arith.mulf %1051, %1045 : vector<16x144xf32>
    %1053 = arith.addf %1035, %1052 : vector<16x144xf32>
    %c91_328 = arith.constant 91 : index
    %1054 = memref.load %arg4[%c91_328] : memref<144xf32, #tpu.memory_space<smem>>
    %1055 = vector.broadcast %1054 : f32 to vector<16x144xf32>
    %1056 = arith.mulf %1055, %1045 : vector<16x144xf32>
    %1057 = arith.addf %1039, %1056 : vector<16x144xf32>
    %c127_329 = arith.constant 127 : index
    %1058 = memref.load %arg4[%c127_329] : memref<144xf32, #tpu.memory_space<smem>>
    %1059 = vector.broadcast %1058 : f32 to vector<16x144xf32>
    %1060 = arith.mulf %1059, %1045 : vector<16x144xf32>
    %1061 = arith.addf %1043, %1060 : vector<16x144xf32>
    %c2_330 = arith.constant 2 : index
    %c0_331 = arith.constant 0 : index
    %c2_332 = arith.constant 2 : index
    %1062 = vector.load %arg7[%c2_330, %c0_331, %c2_332] : memref<4x18x146xf32, #tpu.memory_space<vmem>>, vector<1x16x144xf32>
    %1063 = vector.shape_cast %1062 : vector<1x16x144xf32> to vector<16x144xf32>
    %c20_333 = arith.constant 20 : index
    %1064 = memref.load %arg4[%c20_333] : memref<144xf32, #tpu.memory_space<smem>>
    %1065 = vector.broadcast %1064 : f32 to vector<16x144xf32>
    %1066 = arith.mulf %1065, %1063 : vector<16x144xf32>
    %1067 = arith.addf %1049, %1066 : vector<16x144xf32>
    %c56_334 = arith.constant 56 : index
    %1068 = memref.load %arg4[%c56_334] : memref<144xf32, #tpu.memory_space<smem>>
    %1069 = vector.broadcast %1068 : f32 to vector<16x144xf32>
    %1070 = arith.mulf %1069, %1063 : vector<16x144xf32>
    %1071 = arith.addf %1053, %1070 : vector<16x144xf32>
    %c92_335 = arith.constant 92 : index
    %1072 = memref.load %arg4[%c92_335] : memref<144xf32, #tpu.memory_space<smem>>
    %1073 = vector.broadcast %1072 : f32 to vector<16x144xf32>
    %1074 = arith.mulf %1073, %1063 : vector<16x144xf32>
    %1075 = arith.addf %1057, %1074 : vector<16x144xf32>
    %c128_336 = arith.constant 128 : index
    %1076 = memref.load %arg4[%c128_336] : memref<144xf32, #tpu.memory_space<smem>>
    %1077 = vector.broadcast %1076 : f32 to vector<16x144xf32>
    %1078 = arith.mulf %1077, %1063 : vector<16x144xf32>
    %1079 = arith.addf %1061, %1078 : vector<16x144xf32>
    %c2_337 = arith.constant 2 : index
    %c1_338 = arith.constant 1 : index
    %c0_339 = arith.constant 0 : index
    %1080 = vector.load %arg7[%c2_337, %c1_338, %c0_339] : memref<4x18x146xf32, #tpu.memory_space<vmem>>, vector<1x16x144xf32>
    %1081 = vector.shape_cast %1080 : vector<1x16x144xf32> to vector<16x144xf32>
    %c21_340 = arith.constant 21 : index
    %1082 = memref.load %arg4[%c21_340] : memref<144xf32, #tpu.memory_space<smem>>
    %1083 = vector.broadcast %1082 : f32 to vector<16x144xf32>
    %1084 = arith.mulf %1083, %1081 : vector<16x144xf32>
    %1085 = arith.addf %1067, %1084 : vector<16x144xf32>
    %c57_341 = arith.constant 57 : index
    %1086 = memref.load %arg4[%c57_341] : memref<144xf32, #tpu.memory_space<smem>>
    %1087 = vector.broadcast %1086 : f32 to vector<16x144xf32>
    %1088 = arith.mulf %1087, %1081 : vector<16x144xf32>
    %1089 = arith.addf %1071, %1088 : vector<16x144xf32>
    %c93_342 = arith.constant 93 : index
    %1090 = memref.load %arg4[%c93_342] : memref<144xf32, #tpu.memory_space<smem>>
    %1091 = vector.broadcast %1090 : f32 to vector<16x144xf32>
    %1092 = arith.mulf %1091, %1081 : vector<16x144xf32>
    %1093 = arith.addf %1075, %1092 : vector<16x144xf32>
    %c129_343 = arith.constant 129 : index
    %1094 = memref.load %arg4[%c129_343] : memref<144xf32, #tpu.memory_space<smem>>
    %1095 = vector.broadcast %1094 : f32 to vector<16x144xf32>
    %1096 = arith.mulf %1095, %1081 : vector<16x144xf32>
    %1097 = arith.addf %1079, %1096 : vector<16x144xf32>
    %c2_344 = arith.constant 2 : index
    %c1_345 = arith.constant 1 : index
    %c1_346 = arith.constant 1 : index
    %1098 = vector.load %arg7[%c2_344, %c1_345, %c1_346] : memref<4x18x146xf32, #tpu.memory_space<vmem>>, vector<1x16x144xf32>
    %1099 = vector.shape_cast %1098 : vector<1x16x144xf32> to vector<16x144xf32>
    %c22_347 = arith.constant 22 : index
    %1100 = memref.load %arg4[%c22_347] : memref<144xf32, #tpu.memory_space<smem>>
    %1101 = vector.broadcast %1100 : f32 to vector<16x144xf32>
    %1102 = arith.mulf %1101, %1099 : vector<16x144xf32>
    %1103 = arith.addf %1085, %1102 : vector<16x144xf32>
    %c58_348 = arith.constant 58 : index
    %1104 = memref.load %arg4[%c58_348] : memref<144xf32, #tpu.memory_space<smem>>
    %1105 = vector.broadcast %1104 : f32 to vector<16x144xf32>
    %1106 = arith.mulf %1105, %1099 : vector<16x144xf32>
    %1107 = arith.addf %1089, %1106 : vector<16x144xf32>
    %c94_349 = arith.constant 94 : index
    %1108 = memref.load %arg4[%c94_349] : memref<144xf32, #tpu.memory_space<smem>>
    %1109 = vector.broadcast %1108 : f32 to vector<16x144xf32>
    %1110 = arith.mulf %1109, %1099 : vector<16x144xf32>
    %1111 = arith.addf %1093, %1110 : vector<16x144xf32>
    %c130_350 = arith.constant 130 : index
    %1112 = memref.load %arg4[%c130_350] : memref<144xf32, #tpu.memory_space<smem>>
    %1113 = vector.broadcast %1112 : f32 to vector<16x144xf32>
    %1114 = arith.mulf %1113, %1099 : vector<16x144xf32>
    %1115 = arith.addf %1097, %1114 : vector<16x144xf32>
    %c2_351 = arith.constant 2 : index
    %c1_352 = arith.constant 1 : index
    %c2_353 = arith.constant 2 : index
    %1116 = vector.load %arg7[%c2_351, %c1_352, %c2_353] : memref<4x18x146xf32, #tpu.memory_space<vmem>>, vector<1x16x144xf32>
    %1117 = vector.shape_cast %1116 : vector<1x16x144xf32> to vector<16x144xf32>
    %c23_354 = arith.constant 23 : index
    %1118 = memref.load %arg4[%c23_354] : memref<144xf32, #tpu.memory_space<smem>>
    %1119 = vector.broadcast %1118 : f32 to vector<16x144xf32>
    %1120 = arith.mulf %1119, %1117 : vector<16x144xf32>
    %1121 = arith.addf %1103, %1120 : vector<16x144xf32>
    %c59_355 = arith.constant 59 : index
    %1122 = memref.load %arg4[%c59_355] : memref<144xf32, #tpu.memory_space<smem>>
    %1123 = vector.broadcast %1122 : f32 to vector<16x144xf32>
    %1124 = arith.mulf %1123, %1117 : vector<16x144xf32>
    %1125 = arith.addf %1107, %1124 : vector<16x144xf32>
    %c95_356 = arith.constant 95 : index
    %1126 = memref.load %arg4[%c95_356] : memref<144xf32, #tpu.memory_space<smem>>
    %1127 = vector.broadcast %1126 : f32 to vector<16x144xf32>
    %1128 = arith.mulf %1127, %1117 : vector<16x144xf32>
    %1129 = arith.addf %1111, %1128 : vector<16x144xf32>
    %c131_357 = arith.constant 131 : index
    %1130 = memref.load %arg4[%c131_357] : memref<144xf32, #tpu.memory_space<smem>>
    %1131 = vector.broadcast %1130 : f32 to vector<16x144xf32>
    %1132 = arith.mulf %1131, %1117 : vector<16x144xf32>
    %1133 = arith.addf %1115, %1132 : vector<16x144xf32>
    %c2_358 = arith.constant 2 : index
    %c2_359 = arith.constant 2 : index
    %c0_360 = arith.constant 0 : index
    %1134 = vector.load %arg7[%c2_358, %c2_359, %c0_360] : memref<4x18x146xf32, #tpu.memory_space<vmem>>, vector<1x16x144xf32>
    %1135 = vector.shape_cast %1134 : vector<1x16x144xf32> to vector<16x144xf32>
    %c24_361 = arith.constant 24 : index
    %1136 = memref.load %arg4[%c24_361] : memref<144xf32, #tpu.memory_space<smem>>
    %1137 = vector.broadcast %1136 : f32 to vector<16x144xf32>
    %1138 = arith.mulf %1137, %1135 : vector<16x144xf32>
    %1139 = arith.addf %1121, %1138 : vector<16x144xf32>
    %c60_362 = arith.constant 60 : index
    %1140 = memref.load %arg4[%c60_362] : memref<144xf32, #tpu.memory_space<smem>>
    %1141 = vector.broadcast %1140 : f32 to vector<16x144xf32>
    %1142 = arith.mulf %1141, %1135 : vector<16x144xf32>
    %1143 = arith.addf %1125, %1142 : vector<16x144xf32>
    %c96_363 = arith.constant 96 : index
    %1144 = memref.load %arg4[%c96_363] : memref<144xf32, #tpu.memory_space<smem>>
    %1145 = vector.broadcast %1144 : f32 to vector<16x144xf32>
    %1146 = arith.mulf %1145, %1135 : vector<16x144xf32>
    %1147 = arith.addf %1129, %1146 : vector<16x144xf32>
    %c132_364 = arith.constant 132 : index
    %1148 = memref.load %arg4[%c132_364] : memref<144xf32, #tpu.memory_space<smem>>
    %1149 = vector.broadcast %1148 : f32 to vector<16x144xf32>
    %1150 = arith.mulf %1149, %1135 : vector<16x144xf32>
    %1151 = arith.addf %1133, %1150 : vector<16x144xf32>
    %c2_365 = arith.constant 2 : index
    %c2_366 = arith.constant 2 : index
    %c1_367 = arith.constant 1 : index
    %1152 = vector.load %arg7[%c2_365, %c2_366, %c1_367] : memref<4x18x146xf32, #tpu.memory_space<vmem>>, vector<1x16x144xf32>
    %1153 = vector.shape_cast %1152 : vector<1x16x144xf32> to vector<16x144xf32>
    %c25_368 = arith.constant 25 : index
    %1154 = memref.load %arg4[%c25_368] : memref<144xf32, #tpu.memory_space<smem>>
    %1155 = vector.broadcast %1154 : f32 to vector<16x144xf32>
    %1156 = arith.mulf %1155, %1153 : vector<16x144xf32>
    %1157 = arith.addf %1139, %1156 : vector<16x144xf32>
    %c61_369 = arith.constant 61 : index
    %1158 = memref.load %arg4[%c61_369] : memref<144xf32, #tpu.memory_space<smem>>
    %1159 = vector.broadcast %1158 : f32 to vector<16x144xf32>
    %1160 = arith.mulf %1159, %1153 : vector<16x144xf32>
    %1161 = arith.addf %1143, %1160 : vector<16x144xf32>
    %c97_370 = arith.constant 97 : index
    %1162 = memref.load %arg4[%c97_370] : memref<144xf32, #tpu.memory_space<smem>>
    %1163 = vector.broadcast %1162 : f32 to vector<16x144xf32>
    %1164 = arith.mulf %1163, %1153 : vector<16x144xf32>
    %1165 = arith.addf %1147, %1164 : vector<16x144xf32>
    %c133_371 = arith.constant 133 : index
    %1166 = memref.load %arg4[%c133_371] : memref<144xf32, #tpu.memory_space<smem>>
    %1167 = vector.broadcast %1166 : f32 to vector<16x144xf32>
    %1168 = arith.mulf %1167, %1153 : vector<16x144xf32>
    %1169 = arith.addf %1151, %1168 : vector<16x144xf32>
    %c2_372 = arith.constant 2 : index
    %c2_373 = arith.constant 2 : index
    %c2_374 = arith.constant 2 : index
    %1170 = vector.load %arg7[%c2_372, %c2_373, %c2_374] : memref<4x18x146xf32, #tpu.memory_space<vmem>>, vector<1x16x144xf32>
    %1171 = vector.shape_cast %1170 : vector<1x16x144xf32> to vector<16x144xf32>
    %c26_375 = arith.constant 26 : index
    %1172 = memref.load %arg4[%c26_375] : memref<144xf32, #tpu.memory_space<smem>>
    %1173 = vector.broadcast %1172 : f32 to vector<16x144xf32>
    %1174 = arith.mulf %1173, %1171 : vector<16x144xf32>
    %1175 = arith.addf %1157, %1174 : vector<16x144xf32>
    %c62_376 = arith.constant 62 : index
    %1176 = memref.load %arg4[%c62_376] : memref<144xf32, #tpu.memory_space<smem>>
    %1177 = vector.broadcast %1176 : f32 to vector<16x144xf32>
    %1178 = arith.mulf %1177, %1171 : vector<16x144xf32>
    %1179 = arith.addf %1161, %1178 : vector<16x144xf32>
    %c98_377 = arith.constant 98 : index
    %1180 = memref.load %arg4[%c98_377] : memref<144xf32, #tpu.memory_space<smem>>
    %1181 = vector.broadcast %1180 : f32 to vector<16x144xf32>
    %1182 = arith.mulf %1181, %1171 : vector<16x144xf32>
    %1183 = arith.addf %1165, %1182 : vector<16x144xf32>
    %c134_378 = arith.constant 134 : index
    %1184 = memref.load %arg4[%c134_378] : memref<144xf32, #tpu.memory_space<smem>>
    %1185 = vector.broadcast %1184 : f32 to vector<16x144xf32>
    %1186 = arith.mulf %1185, %1171 : vector<16x144xf32>
    %1187 = arith.addf %1169, %1186 : vector<16x144xf32>
    %c3_379 = arith.constant 3 : index
    %c0_380 = arith.constant 0 : index
    %c0_381 = arith.constant 0 : index
    %1188 = vector.load %arg7[%c3_379, %c0_380, %c0_381] : memref<4x18x146xf32, #tpu.memory_space<vmem>>, vector<1x16x144xf32>
    %1189 = vector.shape_cast %1188 : vector<1x16x144xf32> to vector<16x144xf32>
    %c27_382 = arith.constant 27 : index
    %1190 = memref.load %arg4[%c27_382] : memref<144xf32, #tpu.memory_space<smem>>
    %1191 = vector.broadcast %1190 : f32 to vector<16x144xf32>
    %1192 = arith.mulf %1191, %1189 : vector<16x144xf32>
    %1193 = arith.addf %1175, %1192 : vector<16x144xf32>
    %c63_383 = arith.constant 63 : index
    %1194 = memref.load %arg4[%c63_383] : memref<144xf32, #tpu.memory_space<smem>>
    %1195 = vector.broadcast %1194 : f32 to vector<16x144xf32>
    %1196 = arith.mulf %1195, %1189 : vector<16x144xf32>
    %1197 = arith.addf %1179, %1196 : vector<16x144xf32>
    %c99_384 = arith.constant 99 : index
    %1198 = memref.load %arg4[%c99_384] : memref<144xf32, #tpu.memory_space<smem>>
    %1199 = vector.broadcast %1198 : f32 to vector<16x144xf32>
    %1200 = arith.mulf %1199, %1189 : vector<16x144xf32>
    %1201 = arith.addf %1183, %1200 : vector<16x144xf32>
    %c135_385 = arith.constant 135 : index
    %1202 = memref.load %arg4[%c135_385] : memref<144xf32, #tpu.memory_space<smem>>
    %1203 = vector.broadcast %1202 : f32 to vector<16x144xf32>
    %1204 = arith.mulf %1203, %1189 : vector<16x144xf32>
    %1205 = arith.addf %1187, %1204 : vector<16x144xf32>
    %c3_386 = arith.constant 3 : index
    %c0_387 = arith.constant 0 : index
    %c1_388 = arith.constant 1 : index
    %1206 = vector.load %arg7[%c3_386, %c0_387, %c1_388] : memref<4x18x146xf32, #tpu.memory_space<vmem>>, vector<1x16x144xf32>
    %1207 = vector.shape_cast %1206 : vector<1x16x144xf32> to vector<16x144xf32>
    %c28_389 = arith.constant 28 : index
    %1208 = memref.load %arg4[%c28_389] : memref<144xf32, #tpu.memory_space<smem>>
    %1209 = vector.broadcast %1208 : f32 to vector<16x144xf32>
    %1210 = arith.mulf %1209, %1207 : vector<16x144xf32>
    %1211 = arith.addf %1193, %1210 : vector<16x144xf32>
    %c64_390 = arith.constant 64 : index
    %1212 = memref.load %arg4[%c64_390] : memref<144xf32, #tpu.memory_space<smem>>
    %1213 = vector.broadcast %1212 : f32 to vector<16x144xf32>
    %1214 = arith.mulf %1213, %1207 : vector<16x144xf32>
    %1215 = arith.addf %1197, %1214 : vector<16x144xf32>
    %c100_391 = arith.constant 100 : index
    %1216 = memref.load %arg4[%c100_391] : memref<144xf32, #tpu.memory_space<smem>>
    %1217 = vector.broadcast %1216 : f32 to vector<16x144xf32>
    %1218 = arith.mulf %1217, %1207 : vector<16x144xf32>
    %1219 = arith.addf %1201, %1218 : vector<16x144xf32>
    %c136_392 = arith.constant 136 : index
    %1220 = memref.load %arg4[%c136_392] : memref<144xf32, #tpu.memory_space<smem>>
    %1221 = vector.broadcast %1220 : f32 to vector<16x144xf32>
    %1222 = arith.mulf %1221, %1207 : vector<16x144xf32>
    %1223 = arith.addf %1205, %1222 : vector<16x144xf32>
    %c3_393 = arith.constant 3 : index
    %c0_394 = arith.constant 0 : index
    %c2_395 = arith.constant 2 : index
    %1224 = vector.load %arg7[%c3_393, %c0_394, %c2_395] : memref<4x18x146xf32, #tpu.memory_space<vmem>>, vector<1x16x144xf32>
    %1225 = vector.shape_cast %1224 : vector<1x16x144xf32> to vector<16x144xf32>
    %c29_396 = arith.constant 29 : index
    %1226 = memref.load %arg4[%c29_396] : memref<144xf32, #tpu.memory_space<smem>>
    %1227 = vector.broadcast %1226 : f32 to vector<16x144xf32>
    %1228 = arith.mulf %1227, %1225 : vector<16x144xf32>
    %1229 = arith.addf %1211, %1228 : vector<16x144xf32>
    %c65_397 = arith.constant 65 : index
    %1230 = memref.load %arg4[%c65_397] : memref<144xf32, #tpu.memory_space<smem>>
    %1231 = vector.broadcast %1230 : f32 to vector<16x144xf32>
    %1232 = arith.mulf %1231, %1225 : vector<16x144xf32>
    %1233 = arith.addf %1215, %1232 : vector<16x144xf32>
    %c101_398 = arith.constant 101 : index
    %1234 = memref.load %arg4[%c101_398] : memref<144xf32, #tpu.memory_space<smem>>
    %1235 = vector.broadcast %1234 : f32 to vector<16x144xf32>
    %1236 = arith.mulf %1235, %1225 : vector<16x144xf32>
    %1237 = arith.addf %1219, %1236 : vector<16x144xf32>
    %c137_399 = arith.constant 137 : index
    %1238 = memref.load %arg4[%c137_399] : memref<144xf32, #tpu.memory_space<smem>>
    %1239 = vector.broadcast %1238 : f32 to vector<16x144xf32>
    %1240 = arith.mulf %1239, %1225 : vector<16x144xf32>
    %1241 = arith.addf %1223, %1240 : vector<16x144xf32>
    %c3_400 = arith.constant 3 : index
    %c1_401 = arith.constant 1 : index
    %c0_402 = arith.constant 0 : index
    %1242 = vector.load %arg7[%c3_400, %c1_401, %c0_402] : memref<4x18x146xf32, #tpu.memory_space<vmem>>, vector<1x16x144xf32>
    %1243 = vector.shape_cast %1242 : vector<1x16x144xf32> to vector<16x144xf32>
    %c30_403 = arith.constant 30 : index
    %1244 = memref.load %arg4[%c30_403] : memref<144xf32, #tpu.memory_space<smem>>
    %1245 = vector.broadcast %1244 : f32 to vector<16x144xf32>
    %1246 = arith.mulf %1245, %1243 : vector<16x144xf32>
    %1247 = arith.addf %1229, %1246 : vector<16x144xf32>
    %c66_404 = arith.constant 66 : index
    %1248 = memref.load %arg4[%c66_404] : memref<144xf32, #tpu.memory_space<smem>>
    %1249 = vector.broadcast %1248 : f32 to vector<16x144xf32>
    %1250 = arith.mulf %1249, %1243 : vector<16x144xf32>
    %1251 = arith.addf %1233, %1250 : vector<16x144xf32>
    %c102_405 = arith.constant 102 : index
    %1252 = memref.load %arg4[%c102_405] : memref<144xf32, #tpu.memory_space<smem>>
    %1253 = vector.broadcast %1252 : f32 to vector<16x144xf32>
    %1254 = arith.mulf %1253, %1243 : vector<16x144xf32>
    %1255 = arith.addf %1237, %1254 : vector<16x144xf32>
    %c138_406 = arith.constant 138 : index
    %1256 = memref.load %arg4[%c138_406] : memref<144xf32, #tpu.memory_space<smem>>
    %1257 = vector.broadcast %1256 : f32 to vector<16x144xf32>
    %1258 = arith.mulf %1257, %1243 : vector<16x144xf32>
    %1259 = arith.addf %1241, %1258 : vector<16x144xf32>
    %c3_407 = arith.constant 3 : index
    %c1_408 = arith.constant 1 : index
    %c1_409 = arith.constant 1 : index
    %1260 = vector.load %arg7[%c3_407, %c1_408, %c1_409] : memref<4x18x146xf32, #tpu.memory_space<vmem>>, vector<1x16x144xf32>
    %1261 = vector.shape_cast %1260 : vector<1x16x144xf32> to vector<16x144xf32>
    %c31_410 = arith.constant 31 : index
    %1262 = memref.load %arg4[%c31_410] : memref<144xf32, #tpu.memory_space<smem>>
    %1263 = vector.broadcast %1262 : f32 to vector<16x144xf32>
    %1264 = arith.mulf %1263, %1261 : vector<16x144xf32>
    %1265 = arith.addf %1247, %1264 : vector<16x144xf32>
    %c67_411 = arith.constant 67 : index
    %1266 = memref.load %arg4[%c67_411] : memref<144xf32, #tpu.memory_space<smem>>
    %1267 = vector.broadcast %1266 : f32 to vector<16x144xf32>
    %1268 = arith.mulf %1267, %1261 : vector<16x144xf32>
    %1269 = arith.addf %1251, %1268 : vector<16x144xf32>
    %c103_412 = arith.constant 103 : index
    %1270 = memref.load %arg4[%c103_412] : memref<144xf32, #tpu.memory_space<smem>>
    %1271 = vector.broadcast %1270 : f32 to vector<16x144xf32>
    %1272 = arith.mulf %1271, %1261 : vector<16x144xf32>
    %1273 = arith.addf %1255, %1272 : vector<16x144xf32>
    %c139_413 = arith.constant 139 : index
    %1274 = memref.load %arg4[%c139_413] : memref<144xf32, #tpu.memory_space<smem>>
    %1275 = vector.broadcast %1274 : f32 to vector<16x144xf32>
    %1276 = arith.mulf %1275, %1261 : vector<16x144xf32>
    %1277 = arith.addf %1259, %1276 : vector<16x144xf32>
    %c3_414 = arith.constant 3 : index
    %c1_415 = arith.constant 1 : index
    %c2_416 = arith.constant 2 : index
    %1278 = vector.load %arg7[%c3_414, %c1_415, %c2_416] : memref<4x18x146xf32, #tpu.memory_space<vmem>>, vector<1x16x144xf32>
    %1279 = vector.shape_cast %1278 : vector<1x16x144xf32> to vector<16x144xf32>
    %c32_417 = arith.constant 32 : index
    %1280 = memref.load %arg4[%c32_417] : memref<144xf32, #tpu.memory_space<smem>>
    %1281 = vector.broadcast %1280 : f32 to vector<16x144xf32>
    %1282 = arith.mulf %1281, %1279 : vector<16x144xf32>
    %1283 = arith.addf %1265, %1282 : vector<16x144xf32>
    %c68_418 = arith.constant 68 : index
    %1284 = memref.load %arg4[%c68_418] : memref<144xf32, #tpu.memory_space<smem>>
    %1285 = vector.broadcast %1284 : f32 to vector<16x144xf32>
    %1286 = arith.mulf %1285, %1279 : vector<16x144xf32>
    %1287 = arith.addf %1269, %1286 : vector<16x144xf32>
    %c104_419 = arith.constant 104 : index
    %1288 = memref.load %arg4[%c104_419] : memref<144xf32, #tpu.memory_space<smem>>
    %1289 = vector.broadcast %1288 : f32 to vector<16x144xf32>
    %1290 = arith.mulf %1289, %1279 : vector<16x144xf32>
    %1291 = arith.addf %1273, %1290 : vector<16x144xf32>
    %c140_420 = arith.constant 140 : index
    %1292 = memref.load %arg4[%c140_420] : memref<144xf32, #tpu.memory_space<smem>>
    %1293 = vector.broadcast %1292 : f32 to vector<16x144xf32>
    %1294 = arith.mulf %1293, %1279 : vector<16x144xf32>
    %1295 = arith.addf %1277, %1294 : vector<16x144xf32>
    %c3_421 = arith.constant 3 : index
    %c2_422 = arith.constant 2 : index
    %c0_423 = arith.constant 0 : index
    %1296 = vector.load %arg7[%c3_421, %c2_422, %c0_423] : memref<4x18x146xf32, #tpu.memory_space<vmem>>, vector<1x16x144xf32>
    %1297 = vector.shape_cast %1296 : vector<1x16x144xf32> to vector<16x144xf32>
    %c33_424 = arith.constant 33 : index
    %1298 = memref.load %arg4[%c33_424] : memref<144xf32, #tpu.memory_space<smem>>
    %1299 = vector.broadcast %1298 : f32 to vector<16x144xf32>
    %1300 = arith.mulf %1299, %1297 : vector<16x144xf32>
    %1301 = arith.addf %1283, %1300 : vector<16x144xf32>
    %c69_425 = arith.constant 69 : index
    %1302 = memref.load %arg4[%c69_425] : memref<144xf32, #tpu.memory_space<smem>>
    %1303 = vector.broadcast %1302 : f32 to vector<16x144xf32>
    %1304 = arith.mulf %1303, %1297 : vector<16x144xf32>
    %1305 = arith.addf %1287, %1304 : vector<16x144xf32>
    %c105_426 = arith.constant 105 : index
    %1306 = memref.load %arg4[%c105_426] : memref<144xf32, #tpu.memory_space<smem>>
    %1307 = vector.broadcast %1306 : f32 to vector<16x144xf32>
    %1308 = arith.mulf %1307, %1297 : vector<16x144xf32>
    %1309 = arith.addf %1291, %1308 : vector<16x144xf32>
    %c141_427 = arith.constant 141 : index
    %1310 = memref.load %arg4[%c141_427] : memref<144xf32, #tpu.memory_space<smem>>
    %1311 = vector.broadcast %1310 : f32 to vector<16x144xf32>
    %1312 = arith.mulf %1311, %1297 : vector<16x144xf32>
    %1313 = arith.addf %1295, %1312 : vector<16x144xf32>
    %c3_428 = arith.constant 3 : index
    %c2_429 = arith.constant 2 : index
    %c1_430 = arith.constant 1 : index
    %1314 = vector.load %arg7[%c3_428, %c2_429, %c1_430] : memref<4x18x146xf32, #tpu.memory_space<vmem>>, vector<1x16x144xf32>
    %1315 = vector.shape_cast %1314 : vector<1x16x144xf32> to vector<16x144xf32>
    %c34_431 = arith.constant 34 : index
    %1316 = memref.load %arg4[%c34_431] : memref<144xf32, #tpu.memory_space<smem>>
    %1317 = vector.broadcast %1316 : f32 to vector<16x144xf32>
    %1318 = arith.mulf %1317, %1315 : vector<16x144xf32>
    %1319 = arith.addf %1301, %1318 : vector<16x144xf32>
    %c70_432 = arith.constant 70 : index
    %1320 = memref.load %arg4[%c70_432] : memref<144xf32, #tpu.memory_space<smem>>
    %1321 = vector.broadcast %1320 : f32 to vector<16x144xf32>
    %1322 = arith.mulf %1321, %1315 : vector<16x144xf32>
    %1323 = arith.addf %1305, %1322 : vector<16x144xf32>
    %c106_433 = arith.constant 106 : index
    %1324 = memref.load %arg4[%c106_433] : memref<144xf32, #tpu.memory_space<smem>>
    %1325 = vector.broadcast %1324 : f32 to vector<16x144xf32>
    %1326 = arith.mulf %1325, %1315 : vector<16x144xf32>
    %1327 = arith.addf %1309, %1326 : vector<16x144xf32>
    %c142_434 = arith.constant 142 : index
    %1328 = memref.load %arg4[%c142_434] : memref<144xf32, #tpu.memory_space<smem>>
    %1329 = vector.broadcast %1328 : f32 to vector<16x144xf32>
    %1330 = arith.mulf %1329, %1315 : vector<16x144xf32>
    %1331 = arith.addf %1313, %1330 : vector<16x144xf32>
    %c3_435 = arith.constant 3 : index
    %c2_436 = arith.constant 2 : index
    %c2_437 = arith.constant 2 : index
    %1332 = vector.load %arg7[%c3_435, %c2_436, %c2_437] : memref<4x18x146xf32, #tpu.memory_space<vmem>>, vector<1x16x144xf32>
    %1333 = vector.shape_cast %1332 : vector<1x16x144xf32> to vector<16x144xf32>
    %c35_438 = arith.constant 35 : index
    %1334 = memref.load %arg4[%c35_438] : memref<144xf32, #tpu.memory_space<smem>>
    %1335 = vector.broadcast %1334 : f32 to vector<16x144xf32>
    %1336 = arith.mulf %1335, %1333 : vector<16x144xf32>
    %1337 = arith.addf %1319, %1336 : vector<16x144xf32>
    %c71_439 = arith.constant 71 : index
    %1338 = memref.load %arg4[%c71_439] : memref<144xf32, #tpu.memory_space<smem>>
    %1339 = vector.broadcast %1338 : f32 to vector<16x144xf32>
    %1340 = arith.mulf %1339, %1333 : vector<16x144xf32>
    %1341 = arith.addf %1323, %1340 : vector<16x144xf32>
    %c107_440 = arith.constant 107 : index
    %1342 = memref.load %arg4[%c107_440] : memref<144xf32, #tpu.memory_space<smem>>
    %1343 = vector.broadcast %1342 : f32 to vector<16x144xf32>
    %1344 = arith.mulf %1343, %1333 : vector<16x144xf32>
    %1345 = arith.addf %1327, %1344 : vector<16x144xf32>
    %c143_441 = arith.constant 143 : index
    %1346 = memref.load %arg4[%c143_441] : memref<144xf32, #tpu.memory_space<smem>>
    %1347 = vector.broadcast %1346 : f32 to vector<16x144xf32>
    %1348 = arith.mulf %1347, %1333 : vector<16x144xf32>
    %1349 = arith.addf %1331, %1348 : vector<16x144xf32>
    %c0_442 = arith.constant 0 : index
    %1350 = memref.load %arg5[%c0_442] : memref<4xf32, #tpu.memory_space<smem>>
    %1351 = vector.broadcast %1350 : f32 to vector<16x144xf32>
    %1352 = arith.addf %1337, %1351 : vector<16x144xf32>
    %cst_443 = arith.constant 0.000000e+00 : f32
    %1353 = vector.broadcast %cst_443 : f32 to vector<16x144xf32>
    %1354 = arith.cmpf oge, %1352, %1353 : vector<16x144xf32>
    %cst_444 = arith.constant 0.00999999977 : f32
    %1355 = vector.broadcast %cst_444 : f32 to vector<16x144xf32>
    %1356 = arith.mulf %1355, %1352 : vector<16x144xf32>
    %1357 = arith.select %1354, %1352, %1356 : vector<16x144xi1>, vector<16x144xf32>
    %c0_445 = arith.constant 0 : index
    %c0_446 = arith.constant 0 : index
    %c0_447 = arith.constant 0 : index
    %c0_448 = arith.constant 0 : index
    %1358 = vector.load %arg6[%c0_445, %c0_446, %c0_447, %c0_448] : memref<1x4x16x144xf32, #tpu.memory_space<vmem>>, vector<1x1x16x144xf32>
    %1359 = vector.shape_cast %1358 : vector<1x1x16x144xf32> to vector<16x144xf32>
    %1360 = vector.shape_cast %1357 : vector<16x144xf32> to vector<1x1x16x144xf32>
    tpu.vector_store %arg6[%c0_445, %c0_446, %c0_447, %c0_448], %1360 {strides = array<i32>} : memref<1x4x16x144xf32, #tpu.memory_space<vmem>>, vector<1x1x16x144xf32>,
    %c1_449 = arith.constant 1 : index
    %1361 = memref.load %arg5[%c1_449] : memref<4xf32, #tpu.memory_space<smem>>
    %1362 = vector.broadcast %1361 : f32 to vector<16x144xf32>
    %1363 = arith.addf %1341, %1362 : vector<16x144xf32>
    %cst_450 = arith.constant 0.000000e+00 : f32
    %1364 = vector.broadcast %cst_450 : f32 to vector<16x144xf32>
    %1365 = arith.cmpf oge, %1363, %1364 : vector<16x144xf32>
    %cst_451 = arith.constant 0.00999999977 : f32
    %1366 = vector.broadcast %cst_451 : f32 to vector<16x144xf32>
    %1367 = arith.mulf %1366, %1363 : vector<16x144xf32>
    %1368 = arith.select %1365, %1363, %1367 : vector<16x144xi1>, vector<16x144xf32>
    %c0_452 = arith.constant 0 : index
    %c1_453 = arith.constant 1 : index
    %c0_454 = arith.constant 0 : index
    %c0_455 = arith.constant 0 : index
    %1369 = vector.load %arg6[%c0_452, %c1_453, %c0_454, %c0_455] : memref<1x4x16x144xf32, #tpu.memory_space<vmem>>, vector<1x1x16x144xf32>
    %1370 = vector.shape_cast %1369 : vector<1x1x16x144xf32> to vector<16x144xf32>
    %1371 = vector.shape_cast %1368 : vector<16x144xf32> to vector<1x1x16x144xf32>
    tpu.vector_store %arg6[%c0_452, %c1_453, %c0_454, %c0_455], %1371 {strides = array<i32>} : memref<1x4x16x144xf32, #tpu.memory_space<vmem>>, vector<1x1x16x144xf32>,
    %c2_456 = arith.constant 2 : index
    %1372 = memref.load %arg5[%c2_456] : memref<4xf32, #tpu.memory_space<smem>>
    %1373 = vector.broadcast %1372 : f32 to vector<16x144xf32>
    %1374 = arith.addf %1345, %1373 : vector<16x144xf32>
    %cst_457 = arith.constant 0.000000e+00 : f32
    %1375 = vector.broadcast %cst_457 : f32 to vector<16x144xf32>
    %1376 = arith.cmpf oge, %1374, %1375 : vector<16x144xf32>
    %cst_458 = arith.constant 0.00999999977 : f32
    %1377 = vector.broadcast %cst_458 : f32 to vector<16x144xf32>
    %1378 = arith.mulf %1377, %1374 : vector<16x144xf32>
    %1379 = arith.select %1376, %1374, %1378 : vector<16x144xi1>, vector<16x144xf32>
    %c0_459 = arith.constant 0 : index
    %c2_460 = arith.constant 2 : index
    %c0_461 = arith.constant 0 : index
    %c0_462 = arith.constant 0 : index
    %1380 = vector.load %arg6[%c0_459, %c2_460, %c0_461, %c0_462] : memref<1x4x16x144xf32, #tpu.memory_space<vmem>>, vector<1x1x16x144xf32>
    %1381 = vector.shape_cast %1380 : vector<1x1x16x144xf32> to vector<16x144xf32>
    %1382 = vector.shape_cast %1379 : vector<16x144xf32> to vector<1x1x16x144xf32>
    tpu.vector_store %arg6[%c0_459, %c2_460, %c0_461, %c0_462], %1382 {strides = array<i32>} : memref<1x4x16x144xf32, #tpu.memory_space<vmem>>, vector<1x1x16x144xf32>,
    %c3_463 = arith.constant 3 : index
    %1383 = memref.load %arg5[%c3_463] : memref<4xf32, #tpu.memory_space<smem>>
    %1384 = vector.broadcast %1383 : f32 to vector<16x144xf32>
    %1385 = arith.addf %1349, %1384 : vector<16x144xf32>
    %cst_464 = arith.constant 0.000000e+00 : f32
    %1386 = vector.broadcast %cst_464 : f32 to vector<16x144xf32>
    %1387 = arith.cmpf oge, %1385, %1386 : vector<16x144xf32>
    %cst_465 = arith.constant 0.00999999977 : f32
    %1388 = vector.broadcast %cst_465 : f32 to vector<16x144xf32>
    %1389 = arith.mulf %1388, %1385 : vector<16x144xf32>
    %1390 = arith.select %1387, %1385, %1389 : vector<16x144xi1>, vector<16x144xf32>
    %c0_466 = arith.constant 0 : index
    %c3_467 = arith.constant 3 : index
    %c0_468 = arith.constant 0 : index
    %c0_469 = arith.constant 0 : index
    %1391 = vector.load %arg6[%c0_466, %c3_467, %c0_468, %c0_469] : memref<1x4x16x144xf32, #tpu.memory_space<vmem>>, vector<1x1x16x144xf32>
    %1392 = vector.shape_cast %1391 : vector<1x1x16x144xf32> to vector<16x144xf32>
    %1393 = vector.shape_cast %1390 : vector<16x144xf32> to vector<1x1x16x144xf32>
    tpu.vector_store %arg6[%c0_466, %c3_467, %c0_468, %c0_469], %1393 {strides = array<i32>} : memref<1x4x16x144xf32, #tpu.memory_space<vmem>>, vector<1x1x16x144xf32>,
    return
  }
  func.func @transform_0(%arg0: i32) -> (i32, i32, i32, i32) {
    %c0_i32 = arith.constant 0 : i32
    %c0_i32_0 = arith.constant 0 : i32
    %c0_i32_1 = arith.constant 0 : i32
    %c0_i32_2 = arith.constant 0 : i32
    return %arg0, %c0_i32, %c0_i32_0, %c0_i32_1 : i32, i32, i32, i32
  }
  func.func @transform_1(%arg0: i32) -> (i32, i32) {
    %c0_i32 = arith.constant 0 : i32
    %c0_i32_0 = arith.constant 0 : i32
    %c0_i32_1 = arith.constant 0 : i32
    return %c0_i32, %c0_i32_0 : i32, i32
  }
  func.func @transform_2(%arg0: i32) -> i32 {
    %c0_i32 = arith.constant 0 : i32
    %c0_i32_0 = arith.constant 0 : i32
    return %c0_i32 : i32
  }
  func.func @transform_3(%arg0: i32) -> i32 {
    %c0_i32 = arith.constant 0 : i32
    %c0_i32_0 = arith.constant 0 : i32
    return %c0_i32 : i32
  }
  func.func @transform_4(%arg0: i32) -> i32 {
    %c0_i32 = arith.constant 0 : i32
    %c0_i32_0 = arith.constant 0 : i32
    return %c0_i32 : i32
  }
  func.func @transform_5(%arg0: i32) -> (i32, i32, i32, i32) {
    %c0_i32 = arith.constant 0 : i32
    %c0_i32_0 = arith.constant 0 : i32
    %c0_i32_1 = arith.constant 0 : i32
    %c0_i32_2 = arith.constant 0 : i32
    return %arg0, %c0_i32, %c0_i32_0, %c0_i32_1 : i32, i32, i32, i32
  }
}

</mosaic_0001>

<llo_original>
// kernel: tpu_custom_call.1
$region0: #{tpu_custom_call.1}
  #allocation0 [shape = 'u32[]', space=smem, size = 0x4, offset = 0x4, fixed_abs, tag = 'smem constant byte address 0x4 - core index']
  #allocation1 [shape = 'u32[144,128]{1,0:T(1,128)}', space=vmem, size = 0x12000, scoped, tag = 'internal scratch']
  #allocation2 [shape = 'f32[4,18,146]{2,1,0:T(8,128)}', space=vmem, size = 0x18000, scoped, tag = 'scratch operand']
  %s0 = inlined_call_operand.hbm [shape: f32[2,4,16,148], index: 0, kind: input, shape index: {}]
  %s1 = inlined_call_operand.vmem [shape: f32[1,146], index: 1, kind: input, shape index: {}]
  %s2 = inlined_call_operand.vmem [shape: f32[144], index: 2, kind: input, shape index: {}]
  %s3 = inlined_call_operand.vmem [shape: f32[144], index: 3, kind: input, shape index: {}]
  %s4 = inlined_call_operand.vmem [shape: f32[4], index: 4, kind: input, shape index: {}]
  %s5 = inlined_call_operand.hbm [shape: f32[2,4,16,144], index: 5, kind: output, shape index: {}]
  %s6 = sld [smem:[#allocation0]]
  $region69: #{tpu_custom_call.1} parent=0
    _
  %s8 = ssub.s32 1, %s6
  %s9 = scalar_select 0, %s8, %s6
  $region1: #{tpu_custom_call.1} parent=0
    #allocation3 [shape = 'u8[131072]{0}', space=vmem, size = 0x20000, scoped, tag = 'input window, operand 0']
    #allocation4 [shape = 's32[2]{0}', space=sflag, size = 0x8, scoped, tag = 'scoped memory for tpu_custom_call.1']
    #allocation5 [shape = 's32[2]{0}', space=sflag, size = 0x8, scoped, tag = 'scoped memory for tpu_custom_call.1']
    #allocation6 [shape = 's32[2]{0}', space=sflag, size = 0x8, scoped, tag = 'scoped memory for tpu_custom_call.1']
    #allocation7 [shape = 'u8[1024]{0}', space=smem, size = 0x400, scoped, tag = 'input window, operand 2, single buffered']
    #allocation8 [shape = 'u8[1024]{0}', space=smem, size = 0x400, scoped, tag = 'input window, operand 3, single buffered']
    #allocation9 [shape = 's32[1]{0}', space=sflag, size = 0x4, scoped, tag = 'scoped memory for tpu_custom_call.1']
    #allocation10 [shape = 'u8[512]{0}', space=smem, size = 0x200, scoped, tag = 'input window, operand 4, single buffered']
    #allocation11 [shape = 'u8[131072]{0}', space=vmem, size = 0x20000, scoped, tag = 'output window, operand 0']
    %10 = vsyncpa [#allocation4], 0
    %s11 = scalar_lea.sflag [#allocation4], 1
    %12 = vsyncpa %s11, 0
    %13 = vsyncpa [#allocation6], 0
    %14 = vsyncpa [#allocation9], 0
    %15 = vsyncpa [#allocation5], 0
    %s16 = scalar_lea.sflag [#allocation5], 1
    %17 = vsyncpa %s16, 0
    loop: start=0, step=1, limit=4
    $region2: #{tpu_custom_call.1} parent=1 // loop_pre_header
      _
    $region3: #{tpu_custom_call.1} parent=1 // loop_header
      %s19 = sphi 0, %s23
      %p20 = scmp.ge.s32.totalorder %s19, 4
      %s29 = sphi 0, %s31
      %s32 = sphi 0, %s29
      %s33 = sphi 0, %s32
      %s49 = sphi 0, %s33
      %s53 = sphi 0, %s53
      %s55 = sphi 0, %s53
      %s56 = sphi 0, %s55
      %s70 = sphi 0, %s56
      %s74 = sphi 0, %s74
      %s76 = sphi 0, %s74
      %s77 = sphi 0, %s76
      %s91 = sphi 0, %s77
      %s95 = sphi 0, %s95
      %s97 = sphi 0, %s95
      %s98 = sphi 0, %s97
      %s112 = sphi 0, %s98
      %s116 = sphi 0, %s116
      %s118 = sphi 0, %s116
      %s119 = sphi 0, %s118
      %s133 = sphi 0, %s119
      %s139 = sphi 0, %s141
      %s142 = sphi 0, %s139
      %s143 = sphi 0, %s142
      %s159 = sphi 0, %s143
    $region4: #{tpu_custom_call.1} parent=1 // loop_header_branch
      %22 = sbr.rel (%p20) target = $region8
    $region5: #{tpu_custom_call.1} parent=1 // loop_body
      %s24 = ssub.s32 %s19, 1
      %s25 = ssub.s32 %s19, 2
      %s26 = sadd.s32 %s19, 1
      %s27 = ssub.s32 %s19, %s26
      %p28 = scmp.eq.s32.totalorder %s27, 0
      %s30 = sadd.s32 %s29, 1
      %s31 = scalar_select %p28, %s29, %s30
      %p34 = pneg %p28
      %p35 = scmp.eq.s32.totalorder %s19, 1
      %p36 = por %p34, %p35
      %p37 = scmp.ne.s32.totalorder %s29, %s32
      %p38 = scmp.eq.s32.totalorder %s19, 0
      %p39 = por %p37, %p38
      %p40 = scmp.ne.s32.totalorder %s29, %s32
      %p41 = scmp.eq.s32.totalorder %s24, 1
      %p42 = por %p40, %p41
      %p43 = scmp.ne.s32.totalorder %s32, %s33
      %p44 = scmp.eq.s32.totalorder %s24, 0
      %p45 = por %p43, %p44
      %p46 = scmp.ne.s32.totalorder %s32, %s33
      %p47 = scmp.eq.s32.totalorder %s25, 1
      %p48 = por %p46, %p47
      %p50 = scmp.ne.s32.totalorder %s33, %s49
      %p51 = scmp.eq.s32.totalorder %s25, 0
      %p52 = por %p50, %p51
      %s54 = sadd.s32 %s53, 1
      %p57 = scmp.eq.s32.totalorder %s19, 1
      %p58 = scmp.ne.s32.totalorder %s53, %s55
      %p59 = scmp.eq.s32.totalorder %s19, 0
      %p60 = por %p58, %p59
      %p61 = scmp.ne.s32.totalorder %s53, %s55
      %p62 = scmp.eq.s32.totalorder %s24, 1
      %p63 = por %p61, %p62
      %p64 = scmp.ne.s32.totalorder %s55, %s56
      %p65 = scmp.eq.s32.totalorder %s24, 0
      %p66 = por %p64, %p65
      %p67 = scmp.ne.s32.totalorder %s55, %s56
      %p68 = scmp.eq.s32.totalorder %s25, 1
      %p69 = por %p67, %p68
      %p71 = scmp.ne.s32.totalorder %s56, %s70
      %p72 = scmp.eq.s32.totalorder %s25, 0
      %p73 = por %p71, %p72
      %s75 = sadd.s32 %s74, 1
      %p78 = scmp.eq.s32.totalorder %s19, 1
      %p79 = scmp.ne.s32.totalorder %s74, %s76
      %p80 = scmp.eq.s32.totalorder %s19, 0
      %p81 = por %p79, %p80
      %p82 = scmp.ne.s32.totalorder %s74, %s76
      %p83 = scmp.eq.s32.totalorder %s24, 1
      %p84 = por %p82, %p83
      %p85 = scmp.ne.s32.totalorder %s76, %s77
      %p86 = scmp.eq.s32.totalorder %s24, 0
      %p87 = por %p85, %p86
      %p88 = scmp.ne.s32.totalorder %s76, %s77
      %p89 = scmp.eq.s32.totalorder %s25, 1
      %p90 = por %p88, %p89
      %p92 = scmp.ne.s32.totalorder %s77, %s91
      %p93 = scmp.eq.s32.totalorder %s25, 0
      %p94 = por %p92, %p93
      %s96 = sadd.s32 %s95, 1
      %p99 = scmp.eq.s32.totalorder %s19, 1
      %p100 = scmp.ne.s32.totalorder %s95, %s97
      %p101 = scmp.eq.s32.totalorder %s19, 0
      %p102 = por %p100, %p101
      %p103 = scmp.ne.s32.totalorder %s95, %s97
      %p104 = scmp.eq.s32.totalorder %s24, 1
      %p105 = por %p103, %p104
      %p106 = scmp.ne.s32.totalorder %s97, %s98
      %p107 = scmp.eq.s32.totalorder %s24, 0
      %p108 = por %p106, %p107
      %p109 = scmp.ne.s32.totalorder %s97, %s98
      %p110 = scmp.eq.s32.totalorder %s25, 1
      %p111 = por %p109, %p110
      %p113 = scmp.ne.s32.totalorder %s98, %s112
      %p114 = scmp.eq.s32.totalorder %s25, 0
      %p115 = por %p113, %p114
      %s117 = sadd.s32 %s116, 1
      %p120 = scmp.eq.s32.totalorder %s19, 1
      %p121 = scmp.ne.s32.totalorder %s116, %s118
      %p122 = scmp.eq.s32.totalorder %s19, 0
      %p123 = por %p121, %p122
      %p124 = scmp.ne.s32.totalorder %s116, %s118
      %p125 = scmp.eq.s32.totalorder %s24, 1
      %p126 = por %p124, %p125
      %p127 = scmp.ne.s32.totalorder %s118, %s119
      %p128 = scmp.eq.s32.totalorder %s24, 0
      %p129 = por %p127, %p128
      %p130 = scmp.ne.s32.totalorder %s118, %s119
      %p131 = scmp.eq.s32.totalorder %s25, 1
      %p132 = por %p130, %p131
      %p134 = scmp.ne.s32.totalorder %s119, %s133
      %p135 = scmp.eq.s32.totalorder %s25, 0
      %p136 = por %p134, %p135
      %s137 = ssub.s32 %s19, %s26
      %p138 = scmp.eq.s32.totalorder %s137, 0
      %s140 = sadd.s32 %s139, 1
      %s141 = scalar_select %p138, %s139, %s140
      %p144 = pneg %p138
      %p145 = scmp.eq.s32.totalorder %s19, 1
      %p146 = por %p144, %p145
      %p147 = scmp.ne.s32.totalorder %s139, %s142
      %p148 = scmp.eq.s32.totalorder %s19, 0
      %p149 = por %p147, %p148
      %p150 = scmp.ne.s32.totalorder %s139, %s142
      %p151 = scmp.eq.s32.totalorder %s24, 1
      %p152 = por %p150, %p151
      %p153 = scmp.ne.s32.totalorder %s142, %s143
      %p154 = scmp.eq.s32.totalorder %s24, 0
      %p155 = por %p153, %p154
      %p156 = scmp.ne.s32.totalorder %s142, %s143
      %p157 = scmp.eq.s32.totalorder %s25, 1
      %p158 = por %p156, %p157
      %p160 = scmp.ne.s32.totalorder %s143, %s159
      %p161 = scmp.eq.s32.totalorder %s25, 0
      %p162 = por %p160, %p161
      %p163 = scmp.le.s32.totalorder 1, %s19
      %p164 = scmp.lt.s32.totalorder %s19, 3
      %p165 = pnand %p163, %p164
      %p166 = pneg %p165
      // Predicated region
      $region9: #{tpu_custom_call.1} parent=5 // pred_check
        _
      $region10: #{tpu_custom_call.1} parent=5 // pred_check_branch
        %168 = sbr.rel (%p165) target = $region12
      $region11: #{tpu_custom_call.1} parent=5 // pred_region
        %s169 = ssub.s32 %s19, 1
        // Predicated region
        $region13: #{tpu_custom_call.1} parent=11 // pred_check
          %p170 = pneg %p66
        $region14: #{tpu_custom_call.1} parent=11 // pred_check_branch
          %172 = sbr.rel (%p170) target = $region16
        $region15: #{tpu_custom_call.1} parent=11 // pred_region
          _
        $region16: #{tpu_custom_call.1} parent=11 // pred_fallthru
          _
        // Predicated region
        $region17: #{tpu_custom_call.1} parent=11 // pred_check
          %p173 = pneg %p87
        $region18: #{tpu_custom_call.1} parent=11 // pred_check_branch
          %175 = sbr.rel (%p173) target = $region20
        $region19: #{tpu_custom_call.1} parent=11 // pred_region
          %s177 = ssub.s32 32, 32
          %178 = vsyncadd [#allocation6], %s177
          %s180 = sshll.u32 %s2, 4
          %s181 = int_to_ptr.vmem [resolvable:$true] %s180
          %183 = dma.vmem_to_smem %s181, 32, [#allocation7], [#allocation6]
        $region20: #{tpu_custom_call.1} parent=11 // pred_fallthru
          _
        // Predicated region
        $region21: #{tpu_custom_call.1} parent=11 // pred_check
          %p184 = pneg %p108
        $region22: #{tpu_custom_call.1} parent=11 // pred_check_branch
          %186 = sbr.rel (%p184) target = $region24
        $region23: #{tpu_custom_call.1} parent=11 // pred_region
          %s188 = ssub.s32 32, 32
          %189 = vsyncadd [#allocation9], %s188
          %s191 = sshll.u32 %s3, 4
          %s192 = int_to_ptr.vmem [resolvable:$true] %s191
          %194 = dma.vmem_to_smem %s192, 32, [#allocation8], [#allocation9]
        $region24: #{tpu_custom_call.1} parent=11 // pred_fallthru
          _
        // Predicated region
        $region25: #{tpu_custom_call.1} parent=11 // pred_check
          %p195 = pneg %p129
        $region26: #{tpu_custom_call.1} parent=11 // pred_check_branch
          %197 = sbr.rel (%p195) target = $region28
        $region27: #{tpu_custom_call.1} parent=11 // pred_region
          %s199 = ssub.s32 16, 16
          %200 = vsyncadd [#allocation9], %s199
          %s202 = sshll.u32 %s4, 4
          %s203 = int_to_ptr.vmem [resolvable:$true] %s202
          %205 = dma.vmem_to_smem %s203, 16, [#allocation10], [#allocation9]
        $region28: #{tpu_custom_call.1} parent=11 // pred_fallthru
          _
      $region12: #{tpu_custom_call.1} parent=5 // pred_fallthru
        _
      %p206 = scmp.lt.s32.totalorder %s19, 2
      // Predicated region
      $region29: #{tpu_custom_call.1} parent=5 // pred_check
        %p207 = pneg %p206
      $region30: #{tpu_custom_call.1} parent=5 // pred_check_branch
        %209 = sbr.rel (%p207) target = $region32
      $region31: #{tpu_custom_call.1} parent=5 // pred_region
        // Predicated region
        $region33: #{tpu_custom_call.1} parent=31 // pred_check
          %p210 = pneg %p39
        $region34: #{tpu_custom_call.1} parent=31 // pred_check_branch
          %212 = sbr.rel (%p210) target = $region36
        $region35: #{tpu_custom_call.1} parent=31 // pred_region
          %s213 = sand.u32 %s29, 1
          %s214 = scalar_lea.sflag [#allocation4], %s213
          %s215 = sand.u32 %s29, 1
          %s216 = smul.addr %s215, 128
          %s217 = scalar_lea.vmem [#allocation3], %s216
          %s219 = ssub.s32 2048, 2048
          %220 = vsyncadd %s214, %s219
          %s221 = smul.addr %s19, 16
          %s222 = smul.addr %s221, 128
          %s223 = scalar_lea.hbm %s0, %s222
          %s224 = sshll.u32 %s217, 4
          %s225 = int_to_ptr.vmem [resolvable:$true] %s224
          %230 = dma.hbm_to_vmem [thread:$0]  %s223, 2048, %s225, %s214, 256, 256, 16
        $region36: #{tpu_custom_call.1} parent=31 // pred_fallthru
          _
      $region32: #{tpu_custom_call.1} parent=5 // pred_fallthru
        _
      %p231 = scmp.le.s32.totalorder 1, %s19
      %p232 = scmp.lt.s32.totalorder %s19, 3
      %p233 = pnand %p231, %p232
      %p234 = pneg %p233
      // Predicated region
      $region37: #{tpu_custom_call.1} parent=5 // pred_check
        _
      $region38: #{tpu_custom_call.1} parent=5 // pred_check_branch
        %236 = sbr.rel (%p233) target = $region40
      $region39: #{tpu_custom_call.1} parent=5 // pred_region
        %s237 = ssub.s32 %s19, 1
        %s238 = sand.u32 %s32, 1
        %s239 = scalar_lea.sflag [#allocation4], %s238
        %s240 = sand.u32 %s32, 1
        %s241 = smul.addr %s240, 128
        %s242 = scalar_lea.vmem [#allocation3], %s241
        // Predicated region
        $region41: #{tpu_custom_call.1} parent=39 // pred_check
          %p243 = pneg %p45
        $region42: #{tpu_custom_call.1} parent=39 // pred_check_branch
          %245 = sbr.rel (%p243) target = $region44
        $region43: #{tpu_custom_call.1} parent=39 // pred_region
          %246 = dma.done %s239, 2048
        $region44: #{tpu_custom_call.1} parent=39 // pred_fallthru
          _
        // Predicated region
        $region45: #{tpu_custom_call.1} parent=39 // pred_check
          %p247 = pneg %p87
        $region46: #{tpu_custom_call.1} parent=39 // pred_check_branch
          %249 = sbr.rel (%p247) target = $region48
        $region47: #{tpu_custom_call.1} parent=39 // pred_region
          %250 = dma.done [#allocation6], 32
        $region48: #{tpu_custom_call.1} parent=39 // pred_fallthru
          _
        // Predicated region
        $region49: #{tpu_custom_call.1} parent=39 // pred_check
          %p251 = pneg %p108
        $region50: #{tpu_custom_call.1} parent=39 // pred_check_branch
          %253 = sbr.rel (%p251) target = $region52
        $region51: #{tpu_custom_call.1} parent=39 // pred_region
          %254 = dma.done [#allocation9], 32
        $region52: #{tpu_custom_call.1} parent=39 // pred_fallthru
          _
        // Predicated region
        $region53: #{tpu_custom_call.1} parent=39 // pred_check
          %p255 = pneg %p129
        $region54: #{tpu_custom_call.1} parent=39 // pred_check_branch
          %257 = sbr.rel (%p255) target = $region56
        $region55: #{tpu_custom_call.1} parent=39 // pred_region
          %258 = dma.done [#allocation9], 16
        $region56: #{tpu_custom_call.1} parent=39 // pred_fallthru
          _
        %259 = sfence
        %s260 = sand.u32 %s32, 1
        %s261 = scalar_lea.sflag [#allocation4], %s260
        %s262 = sand.u32 %s32, 1
        %s263 = smul.addr %s262, 128
        %s264 = scalar_lea.vmem [#allocation3], %s263
        %p265 = pneg %p45
        %p266 = pneg %p42
        %p267 = pneg %p66
        %p268 = pneg %p63
        %p269 = pneg %p87
        %p270 = pneg %p84
        %p271 = pneg %p108
        %p272 = pneg %p105
        %p273 = pneg %p129
        %p274 = pneg %p126
        %p275 = pneg %p155
        %p276 = pneg %p152
        %s277 = sand.u32 %s142, 1
        %s278 = scalar_lea.sflag [#allocation5], %s277
        %s279 = sand.u32 %s142, 1
        %s280 = smul.addr %s279, 128
        %s281 = scalar_lea.vmem [#allocation11], %s280
        %v282 = vld [vmem:[%s1] sm:$0x3]
        %283 = vst [vmem:[#allocation2] sm:$0x3] 0.0
        %vm284 = vcmask 140288
        %285 = vst.msk [vmem:[#allocation2 + $0x8] sm:$0x3] %vm284, 0.0
        %286 = vst [vmem:[#allocation2 + $0x20] sm:$0x3] 0.0
        %287 = vst.msk [vmem:[#allocation2 + $0x28] sm:$0x3] %vm284, 0.0
        %s288 = scalar_lea.vmem [#allocation2], 48
        %289 = vst [vmem:[%s288] sm:$0x3] 0.0
        %290 = vst.msk [vmem:[%s288 + $0x8] sm:$0x3] %vm284, 0.0
        %291 = vst [vmem:[%s288 + $0x20] sm:$0x3] 0.0
        %292 = vst.msk [vmem:[%s288 + $0x28] sm:$0x3] %vm284, 0.0
        %s293 = scalar_lea.vmem [#allocation2], 96
        %294 = vst [vmem:[%s293] sm:$0x3] 0.0
        %295 = vst.msk [vmem:[%s293 + $0x8] sm:$0x3] %vm284, 0.0
        %296 = vst [vmem:[%s293 + $0x20] sm:$0x3] 0.0
        %297 = vst.msk [vmem:[%s293 + $0x28] sm:$0x3] %vm284, 0.0
        %s298 = scalar_lea.vmem [#allocation2], 144
        %299 = vst [vmem:[%s298] sm:$0x3] 0.0
        %300 = vst.msk [vmem:[%s298 + $0x8] sm:$0x3] %vm284, 0.0
        %301 = vst [vmem:[%s298 + $0x20] sm:$0x3] 0.0
        %302 = vst.msk [vmem:[%s298 + $0x28] sm:$0x3] %vm284, 0.0
        %v303 = vld [vmem:[%s242] sm:$0xff]
        %v304 = vld [vmem:[%s242 + $0x8] sm:$0xff]
        %v305 = vld [vmem:[%s242 + $0x10] sm:$0x3f]
        %v306 = vld [vmem:[%s242 + $0x18] sm:$0x3f]
        %s307 = sld [smem:[#allocation7]]
        %v308 = vstv %s307
        %v309 = vmul.f32 %v308, %v303
        %v310 = vmul.f32 %v308, %v304
        %v311 = vmul.f32 %v308, %v305
        %v312 = vmul.f32 %v308, %v306
        %v313 = vadd.f32 %v309, 0.0
        %v314 = vadd.f32 %v310, 0.0
        %v315 = vadd.f32 %v311, 0.0
        %v316 = vadd.f32 %v312, 0.0
        %s317 = sld [smem:[#allocation7 + $0x24]]
        %v318 = vstv %s317
        %v319 = vmul.f32 %v318, %v303
        %v320 = vmul.f32 %v318, %v304
        %v321 = vmul.f32 %v318, %v305
        %v322 = vmul.f32 %v318, %v306
        %v323 = vadd.f32 %v319, 0.0
        %v324 = vadd.f32 %v320, 0.0
        %v325 = vadd.f32 %v321, 0.0
        %v326 = vadd.f32 %v322, 0.0
        %s327 = sld [smem:[#allocation7 + $0x48]]
        %v328 = vstv %s327
        %v329 = vmul.f32 %v328, %v303
        %v330 = vmul.f32 %v328, %v304
        %v331 = vmul.f32 %v328, %v305
        %v332 = vmul.f32 %v328, %v306
        %v333 = vadd.f32 %v329, 0.0
        %v334 = vadd.f32 %v330, 0.0
        %v335 = vadd.f32 %v331, 0.0
        %v336 = vadd.f32 %v332, 0.0
        %s337 = sld [smem:[#allocation7 + $0x6c]]
        %v338 = vstv %s337
        %v339 = vmul.f32 %v338, %v303
        %v340 = vmul.f32 %v338, %v304
        %v341 = vmul.f32 %v338, %v305
        %v342 = vmul.f32 %v338, %v306
        %v343 = vadd.f32 %v339, 0.0
        %v344 = vadd.f32 %v340, 0.0
        %v345 = vadd.f32 %v341, 0.0
        %v346 = vadd.f32 %v342, 0.0
        %s347 = sld [smem:[#allocation7 + $0x1]]
        %v348 = vstv %s347
        %v349 = vmul.f32 %v348, %v303
        %v350 = vmul.f32 %v348, %v304
        %v351 = vmul.f32 %v348, %v305
        %v352 = vmul.f32 %v348, %v306
        %357 = vrot.lane.b32.xlu0 %v349, 127
        %v358 = vpop.permute.xlu0 %357
        %359 = vrot.lane.b32.xlu0 %v350, 127
        %v360 = vpop.permute.xlu0 %359
        %361 = vrot.lane.b32.xlu0 %v351, 127
        %v362 = vpop.permute.xlu0 %361
        %363 = vrot.lane.b32.xlu0 %v352, 127
        %v364 = vpop.permute.xlu0 %363
        %vm365 = vcmask 1039360
        %v366 = vsel %vm365, %v358, %v360
        %v367 = vsel %vm365, %v362, %v364
        %v372 = vadd.f32 %v313, %v366
        %v373 = vadd.f32 %v314, %v360
        %v374 = vadd.f32 %v315, %v367
        %v375 = vadd.f32 %v316, %v364
        %s376 = sld [smem:[#allocation7 + $0x25]]
        %v377 = vstv %s376
        %v378 = vmul.f32 %v377, %v303
        %v379 = vmul.f32 %v377, %v304
        %v380 = vmul.f32 %v377, %v305
        %v381 = vmul.f32 %v377, %v306
        %386 = vrot.lane.b32.xlu0 %v378, 127
        %v387 = vpop.permute.xlu0 %386
        %388 = vrot.lane.b32.xlu0 %v379, 127
        %v389 = vpop.permute.xlu0 %388
        %390 = vrot.lane.b32.xlu0 %v380, 127
        %v391 = vpop.permute.xlu0 %390
        %392 = vrot.lane.b32.xlu0 %v381, 127
        %v393 = vpop.permute.xlu0 %392
        %v394 = vsel %vm365, %v387, %v389
        %v395 = vsel %vm365, %v391, %v393
        %v400 = vadd.f32 %v323, %v394
        %v401 = vadd.f32 %v324, %v389
        %v402 = vadd.f32 %v325, %v395
        %v403 = vadd.f32 %v326, %v393
        %s404 = sld [smem:[#allocation7 + $0x49]]
        %v405 = vstv %s404
        %v406 = vmul.f32 %v405, %v303
        %v407 = vmul.f32 %v405, %v304
        %v408 = vmul.f32 %v405, %v305
        %v409 = vmul.f32 %v405, %v306
        %414 = vrot.lane.b32.xlu0 %v406, 127
        %v415 = vpop.permute.xlu0 %414
        %416 = vrot.lane.b32.xlu0 %v407, 127
        %v417 = vpop.permute.xlu0 %416
        %418 = vrot.lane.b32.xlu0 %v408, 127
        %v419 = vpop.permute.xlu0 %418
        %420 = vrot.lane.b32.xlu0 %v409, 127
        %v421 = vpop.permute.xlu0 %420
        %v422 = vsel %vm365, %v415, %v417
        %v423 = vsel %vm365, %v419, %v421
        %v428 = vadd.f32 %v333, %v422
        %v429 = vadd.f32 %v334, %v417
        %v430 = vadd.f32 %v335, %v423
        %v431 = vadd.f32 %v336, %v421
        %s432 = sld [smem:[#allocation7 + $0x6d]]
        %v433 = vstv %s432
        %v434 = vmul.f32 %v433, %v303
        %v435 = vmul.f32 %v433, %v304
        %v436 = vmul.f32 %v433, %v305
        %v437 = vmul.f32 %v433, %v306
        %442 = vrot.lane.b32.xlu0 %v434, 127
        %v443 = vpop.permute.xlu0 %442
        %444 = vrot.lane.b32.xlu0 %v435, 127
        %v445 = vpop.permute.xlu0 %444
        %446 = vrot.lane.b32.xlu0 %v436, 127
        %v447 = vpop.permute.xlu0 %446
        %448 = vrot.lane.b32.xlu0 %v437, 127
        %v449 = vpop.permute.xlu0 %448
        %v450 = vsel %vm365, %v443, %v445
        %v451 = vsel %vm365, %v447, %v449
        %v456 = vadd.f32 %v343, %v450
        %v457 = vadd.f32 %v344, %v445
        %v458 = vadd.f32 %v345, %v451
        %v459 = vadd.f32 %v346, %v449
        %s460 = sld [smem:[#allocation7 + $0x2]]
        %v461 = vstv %s460
        %v462 = vmul.f32 %v461, %v303
        %v463 = vmul.f32 %v461, %v304
        %v464 = vmul.f32 %v461, %v305
        %v465 = vmul.f32 %v461, %v306
        %470 = vrot.lane.b32.xlu0 %v462, 126
        %v471 = vpop.permute.xlu0 %470
        %472 = vrot.lane.b32.xlu0 %v463, 126
        %v473 = vpop.permute.xlu0 %472
        %474 = vrot.lane.b32.xlu0 %v464, 126
        %v475 = vpop.permute.xlu0 %474
        %476 = vrot.lane.b32.xlu0 %v465, 126
        %v477 = vpop.permute.xlu0 %476
        %vm478 = vcmask 1031168
        %v479 = vsel %vm478, %v471, %v473
        %v480 = vsel %vm478, %v475, %v477
        %v485 = vadd.f32 %v372, %v479
        %v486 = vadd.f32 %v373, %v473
        %v487 = vadd.f32 %v374, %v480
        %v488 = vadd.f32 %v375, %v477
        %s489 = sld [smem:[#allocation7 + $0x26]]
        %v490 = vstv %s489
        %v491 = vmul.f32 %v490, %v303
        %v492 = vmul.f32 %v490, %v304
        %v493 = vmul.f32 %v490, %v305
        %v494 = vmul.f32 %v490, %v306
        %499 = vrot.lane.b32.xlu0 %v491, 126
        %v500 = vpop.permute.xlu0 %499
        %501 = vrot.lane.b32.xlu0 %v492, 126
        %v502 = vpop.permute.xlu0 %501
        %503 = vrot.lane.b32.xlu0 %v493, 126
        %v504 = vpop.permute.xlu0 %503
        %505 = vrot.lane.b32.xlu0 %v494, 126
        %v506 = vpop.permute.xlu0 %505
        %v507 = vsel %vm478, %v500, %v502
        %v508 = vsel %vm478, %v504, %v506
        %v513 = vadd.f32 %v400, %v507
        %v514 = vadd.f32 %v401, %v502
        %v515 = vadd.f32 %v402, %v508
        %v516 = vadd.f32 %v403, %v506
        %s517 = sld [smem:[#allocation7 + $0x4a]]
        %v518 = vstv %s517
        %v519 = vmul.f32 %v518, %v303
        %v520 = vmul.f32 %v518, %v304
        %v521 = vmul.f32 %v518, %v305
        %v522 = vmul.f32 %v518, %v306
        %527 = vrot.lane.b32.xlu0 %v519, 126
        %v528 = vpop.permute.xlu0 %527
        %529 = vrot.lane.b32.xlu0 %v520, 126
        %v530 = vpop.permute.xlu0 %529
        %531 = vrot.lane.b32.xlu0 %v521, 126
        %v532 = vpop.permute.xlu0 %531
        %533 = vrot.lane.b32.xlu0 %v522, 126
        %v534 = vpop.permute.xlu0 %533
        %v535 = vsel %vm478, %v528, %v530
        %v536 = vsel %vm478, %v532, %v534
        %v541 = vadd.f32 %v428, %v535
        %v542 = vadd.f32 %v429, %v530
        %v543 = vadd.f32 %v430, %v536
        %v544 = vadd.f32 %v431, %v534
        %s545 = sld [smem:[#allocation7 + $0x6e]]
        %v546 = vstv %s545
        %v547 = vmul.f32 %v546, %v303
        %v548 = vmul.f32 %v546, %v304
        %v549 = vmul.f32 %v546, %v305
        %v550 = vmul.f32 %v546, %v306
        %555 = vrot.lane.b32.xlu0 %v547, 126
        %v556 = vpop.permute.xlu0 %555
        %557 = vrot.lane.b32.xlu0 %v548, 126
        %v558 = vpop.permute.xlu0 %557
        %559 = vrot.lane.b32.xlu0 %v549, 126
        %v560 = vpop.permute.xlu0 %559
        %561 = vrot.lane.b32.xlu0 %v550, 126
        %v562 = vpop.permute.xlu0 %561
        %v563 = vsel %vm478, %v556, %v558
        %v564 = vsel %vm478, %v560, %v562
        %v569 = vadd.f32 %v456, %v563
        %v570 = vadd.f32 %v457, %v558
        %v571 = vadd.f32 %v458, %v564
        %v572 = vadd.f32 %v459, %v562
        %v573 = vld [vmem:[%s242] sm:$0xfe]
        %v574 = vld [vmem:[%s242 + $0x8] sm:$0xfe]
        %v575 = vld [vmem:[%s242 + $0x10] sm:$0x7f]
        %v576 = vld [vmem:[%s242 + $0x18] sm:$0x7f]
        %s577 = sld [smem:[#allocation7 + $0x3]]
        %v578 = vstv %s577
        %v579 = vmul.f32 %v578, %v573
        %v580 = vmul.f32 %v578, %v574
        %v581 = vmul.f32 %v578, %v575
        %v582 = vmul.f32 %v578, %v576
        %vm587 = vcmask 1046528
        %v588 = vrot.slane %v579, 1
        %v589 = vrot.slane %v581, 1
        %v590 = vsel %vm587, %v588, %v589
        %v591 = vrot.slane %v580, 1
        %v592 = vrot.slane %v582, 1
        %v593 = vsel %vm587, %v591, %v592
        %v598 = vadd.f32 %v485, %v590
        %v599 = vadd.f32 %v486, %v593
        %v600 = vadd.f32 %v487, %v589
        %v601 = vadd.f32 %v488, %v592
        %s602 = sld [smem:[#allocation7 + $0x27]]
        %v603 = vstv %s602
        %v604 = vmul.f32 %v603, %v573
        %v605 = vmul.f32 %v603, %v574
        %v606 = vmul.f32 %v603, %v575
        %v607 = vmul.f32 %v603, %v576
        %v612 = vrot.slane %v604, 1
        %v613 = vrot.slane %v606, 1
        %v614 = vsel %vm587, %v612, %v613
        %v615 = vrot.slane %v605, 1
        %v616 = vrot.slane %v607, 1
        %v617 = vsel %vm587, %v615, %v616
        %v622 = vadd.f32 %v513, %v614
        %v623 = vadd.f32 %v514, %v617
        %v624 = vadd.f32 %v515, %v613
        %v625 = vadd.f32 %v516, %v616
        %s626 = sld [smem:[#allocation7 + $0x4b]]
        %v627 = vstv %s626
        %v628 = vmul.f32 %v627, %v573
        %v629 = vmul.f32 %v627, %v574
        %v630 = vmul.f32 %v627, %v575
        %v631 = vmul.f32 %v627, %v576
        %v636 = vrot.slane %v628, 1
        %v637 = vrot.slane %v630, 1
        %v638 = vsel %vm587, %v636, %v637
        %v639 = vrot.slane %v629, 1
        %v640 = vrot.slane %v631, 1
        %v641 = vsel %vm587, %v639, %v640
        %v646 = vadd.f32 %v541, %v638
        %v647 = vadd.f32 %v542, %v641
        %v648 = vadd.f32 %v543, %v637
        %v649 = vadd.f32 %v544, %v640
        %s650 = sld [smem:[#allocation7 + $0x6f]]
        %v651 = vstv %s650
        %v652 = vmul.f32 %v651, %v573
        %v653 = vmul.f32 %v651, %v574
        %v654 = vmul.f32 %v651, %v575
        %v655 = vmul.f32 %v651, %v576
        %v660 = vrot.slane %v652, 1
        %v661 = vrot.slane %v654, 1
        %v662 = vsel %vm587, %v660, %v661
        %v663 = vrot.slane %v653, 1
        %v664 = vrot.slane %v655, 1
        %v665 = vsel %vm587, %v663, %v664
        %v670 = vadd.f32 %v569, %v662
        %v671 = vadd.f32 %v570, %v665
        %v672 = vadd.f32 %v571, %v661
        %v673 = vadd.f32 %v572, %v664
        %s674 = sld [smem:[#allocation7 + $0x4]]
        %v675 = vstv %s674
        %v676 = vmul.f32 %v675, %v573
        %v677 = vmul.f32 %v675, %v574
        %v678 = vmul.f32 %v675, %v575
        %v679 = vmul.f32 %v675, %v576
        %v684 = vrot.slane %v676, 1
        %v685 = vrot.slane %v678, 1
        %v686 = vsel %vm587, %v684, %v685
        %v687 = vrot.slane %v677, 1
        %v688 = vrot.slane %v679, 1
        %v689 = vsel %vm587, %v687, %v688
        %690 = vrot.lane.b32.xlu0 %v686, 127
        %v691 = vpop.permute.xlu0 %690
        %692 = vrot.lane.b32.xlu0 %v689, 127
        %v693 = vpop.permute.xlu0 %692
        %694 = vrot.lane.b32.xlu0 %v685, 127
        %v695 = vpop.permute.xlu0 %694
        %696 = vrot.lane.b32.xlu0 %v688, 127
        %v697 = vpop.permute.xlu0 %696
        %v698 = vsel %vm365, %v691, %v693
        %v699 = vsel %vm365, %v695, %v697
        %v704 = vadd.f32 %v598, %v698
        %v705 = vadd.f32 %v599, %v693
        %v706 = vadd.f32 %v600, %v699
        %v707 = vadd.f32 %v601, %v697
        %s708 = sld [smem:[#allocation7 + $0x28]]
        %v709 = vstv %s708
        %v710 = vmul.f32 %v709, %v573
        %v711 = vmul.f32 %v709, %v574
        %v712 = vmul.f32 %v709, %v575
        %v713 = vmul.f32 %v709, %v576
        %v718 = vrot.slane %v710, 1
        %v719 = vrot.slane %v712, 1
        %v720 = vsel %vm587, %v718, %v719
        %v721 = vrot.slane %v711, 1
        %v722 = vrot.slane %v713, 1
        %v723 = vsel %vm587, %v721, %v722
        %724 = vrot.lane.b32.xlu0 %v720, 127
        %v725 = vpop.permute.xlu0 %724
        %726 = vrot.lane.b32.xlu0 %v723, 127
        %v727 = vpop.permute.xlu0 %726
        %728 = vrot.lane.b32.xlu0 %v719, 127
        %v729 = vpop.permute.xlu0 %728
        %730 = vrot.lane.b32.xlu0 %v722, 127
        %v731 = vpop.permute.xlu0 %730
        %v732 = vsel %vm365, %v725, %v727
        %v733 = vsel %vm365, %v729, %v731
        %v738 = vadd.f32 %v622, %v732
        %v739 = vadd.f32 %v623, %v727
        %v740 = vadd.f32 %v624, %v733
        %v741 = vadd.f32 %v625, %v731
        %s742 = sld [smem:[#allocation7 + $0x4c]]
        %v743 = vstv %s742
        %v744 = vmul.f32 %v743, %v573
        %v745 = vmul.f32 %v743, %v574
        %v746 = vmul.f32 %v743, %v575
        %v747 = vmul.f32 %v743, %v576
        %v752 = vrot.slane %v744, 1
        %v753 = vrot.slane %v746, 1
        %v754 = vsel %vm587, %v752, %v753
        %v755 = vrot.slane %v745, 1
        %v756 = vrot.slane %v747, 1
        %v757 = vsel %vm587, %v755, %v756
        %758 = vrot.lane.b32.xlu0 %v754, 127
        %v759 = vpop.permute.xlu0 %758
        %760 = vrot.lane.b32.xlu0 %v757, 127
        %v761 = vpop.permute.xlu0 %760
        %762 = vrot.lane.b32.xlu0 %v753, 127
        %v763 = vpop.permute.xlu0 %762
        %764 = vrot.lane.b32.xlu0 %v756, 127
        %v765 = vpop.permute.xlu0 %764
        %v766 = vsel %vm365, %v759, %v761
        %v767 = vsel %vm365, %v763, %v765
        %v772 = vadd.f32 %v646, %v766
        %v773 = vadd.f32 %v647, %v761
        %v774 = vadd.f32 %v648, %v767
        %v775 = vadd.f32 %v649, %v765
        %s776 = sld [smem:[#allocation7 + $0x70]]
        %v777 = vstv %s776
        %v778 = vmul.f32 %v777, %v573
        %v779 = vmul.f32 %v777, %v574
        %v780 = vmul.f32 %v777, %v575
        %v781 = vmul.f32 %v777, %v576
        %v786 = vrot.slane %v778, 1
        %v787 = vrot.slane %v780, 1
        %v788 = vsel %vm587, %v786, %v787
        %v789 = vrot.slane %v779, 1
        %v790 = vrot.slane %v781, 1
        %v791 = vsel %vm587, %v789, %v790
        %792 = vrot.lane.b32.xlu0 %v788, 127
        %v793 = vpop.permute.xlu0 %792
        %794 = vrot.lane.b32.xlu0 %v791, 127
        %v795 = vpop.permute.xlu0 %794
        %796 = vrot.lane.b32.xlu0 %v787, 127
        %v797 = vpop.permute.xlu0 %796
        %798 = vrot.lane.b32.xlu0 %v790, 127
        %v799 = vpop.permute.xlu0 %798
        %v800 = vsel %vm365, %v793, %v795
        %v801 = vsel %vm365, %v797, %v799
        %v806 = vadd.f32 %v670, %v800
        %v807 = vadd.f32 %v671, %v795
        %v808 = vadd.f32 %v672, %v801
        %v809 = vadd.f32 %v673, %v799
        %s810 = sld [smem:[#allocation7 + $0x5]]
        %v811 = vstv %s810
        %v812 = vmul.f32 %v811, %v573
        %v813 = vmul.f32 %v811, %v574
        %v814 = vmul.f32 %v811, %v575
        %v815 = vmul.f32 %v811, %v576
        %v820 = vrot.slane %v812, 1
        %v821 = vrot.slane %v814, 1
        %v822 = vsel %vm587, %v820, %v821
        %v823 = vrot.slane %v813, 1
        %v824 = vrot.slane %v815, 1
        %v825 = vsel %vm587, %v823, %v824
        %826 = vrot.lane.b32.xlu0 %v822, 126
        %v827 = vpop.permute.xlu0 %826
        %828 = vrot.lane.b32.xlu0 %v825, 126
        %v829 = vpop.permute.xlu0 %828
        %830 = vrot.lane.b32.xlu0 %v821, 126
        %v831 = vpop.permute.xlu0 %830
        %832 = vrot.lane.b32.xlu0 %v824, 126
        %v833 = vpop.permute.xlu0 %832
        %v834 = vsel %vm478, %v827, %v829
        %v835 = vsel %vm478, %v831, %v833
        %v840 = vadd.f32 %v704, %v834
        %v841 = vadd.f32 %v705, %v829
        %v842 = vadd.f32 %v706, %v835
        %v843 = vadd.f32 %v707, %v833
        %s844 = sld [smem:[#allocation7 + $0x29]]
        %v845 = vstv %s844
        %v846 = vmul.f32 %v845, %v573
        %v847 = vmul.f32 %v845, %v574
        %v848 = vmul.f32 %v845, %v575
        %v849 = vmul.f32 %v845, %v576
        %v854 = vrot.slane %v846, 1
        %v855 = vrot.slane %v848, 1
        %v856 = vsel %vm587, %v854, %v855
        %v857 = vrot.slane %v847, 1
        %v858 = vrot.slane %v849, 1
        %v859 = vsel %vm587, %v857, %v858
        %860 = vrot.lane.b32.xlu0 %v856, 126
        %v861 = vpop.permute.xlu0 %860
        %862 = vrot.lane.b32.xlu0 %v859, 126
        %v863 = vpop.permute.xlu0 %862
        %864 = vrot.lane.b32.xlu0 %v855, 126
        %v865 = vpop.permute.xlu0 %864
        %866 = vrot.lane.b32.xlu0 %v858, 126
        %v867 = vpop.permute.xlu0 %866
        %v868 = vsel %vm478, %v861, %v863
        %v869 = vsel %vm478, %v865, %v867
        %v874 = vadd.f32 %v738, %v868
        %v875 = vadd.f32 %v739, %v863
        %v876 = vadd.f32 %v740, %v869
        %v877 = vadd.f32 %v741, %v867
        %s878 = sld [smem:[#allocation7 + $0x4d]]
        %v879 = vstv %s878
        %v880 = vmul.f32 %v879, %v573
        %v881 = vmul.f32 %v879, %v574
        %v882 = vmul.f32 %v879, %v575
        %v883 = vmul.f32 %v879, %v576
        %v888 = vrot.slane %v880, 1
        %v889 = vrot.slane %v882, 1
        %v890 = vsel %vm587, %v888, %v889
        %v891 = vrot.slane %v881, 1
        %v892 = vrot.slane %v883, 1
        %v893 = vsel %vm587, %v891, %v892
        %894 = vrot.lane.b32.xlu0 %v890, 126
        %v895 = vpop.permute.xlu0 %894
        %896 = vrot.lane.b32.xlu0 %v893, 126
        %v897 = vpop.permute.xlu0 %896
        %898 = vrot.lane.b32.xlu0 %v889, 126
        %v899 = vpop.permute.xlu0 %898
        %900 = vrot.lane.b32.xlu0 %v892, 126
        %v901 = vpop.permute.xlu0 %900
        %v902 = vsel %vm478, %v895, %v897
        %v903 = vsel %vm478, %v899, %v901
        %v908 = vadd.f32 %v772, %v902
        %v909 = vadd.f32 %v773, %v897
        %v910 = vadd.f32 %v774, %v903
        %v911 = vadd.f32 %v775, %v901
        %s912 = sld [smem:[#allocation7 + $0x71]]
        %v913 = vstv %s912
        %v914 = vmul.f32 %v913, %v573
        %v915 = vmul.f32 %v913, %v574
        %v916 = vmul.f32 %v913, %v575
        %v917 = vmul.f32 %v913, %v576
        %v922 = vrot.slane %v914, 1
        %v923 = vrot.slane %v916, 1
        %v924 = vsel %vm587, %v922, %v923
        %v925 = vrot.slane %v915, 1
        %v926 = vrot.slane %v917, 1
        %v927 = vsel %vm587, %v925, %v926
        %928 = vrot.lane.b32.xlu0 %v924, 126
        %v929 = vpop.permute.xlu0 %928
        %930 = vrot.lane.b32.xlu0 %v927, 126
        %v931 = vpop.permute.xlu0 %930
        %932 = vrot.lane.b32.xlu0 %v923, 126
        %v933 = vpop.permute.xlu0 %932
        %934 = vrot.lane.b32.xlu0 %v926, 126
        %v935 = vpop.permute.xlu0 %934
        %v936 = vsel %vm478, %v929, %v931
        %v937 = vsel %vm478, %v933, %v935
        %v942 = vadd.f32 %v806, %v936
        %v943 = vadd.f32 %v807, %v931
        %v944 = vadd.f32 %v808, %v937
        %v945 = vadd.f32 %v809, %v935
        %v946 = vld [vmem:[%s242] sm:$0xfc]
        %v947 = vld [vmem:[%s242 + $0x8] sm:$0xfc]
        %v948 = vld [vmem:[%s242 + $0x10] sm:$0xff]
        %v949 = vld [vmem:[%s242 + $0x18] sm:$0xff]
        %s950 = sld [smem:[#allocation7 + $0x6]]
        %v951 = vstv %s950
        %v952 = vmul.f32 %v951, %v946
        %v953 = vmul.f32 %v951, %v947
        %v954 = vmul.f32 %v951, %v948
        %v955 = vmul.f32 %v951, %v949
        %vm960 = vcmask 1045504
        %v961 = vrot.slane %v952, 2
        %v962 = vrot.slane %v954, 2
        %v963 = vsel %vm960, %v961, %v962
        %v964 = vrot.slane %v953, 2
        %v965 = vrot.slane %v955, 2
        %v966 = vsel %vm960, %v964, %v965
        %v971 = vadd.f32 %v840, %v963
        %v972 = vadd.f32 %v841, %v966
        %v973 = vadd.f32 %v842, %v962
        %v974 = vadd.f32 %v843, %v965
        %s975 = sld [smem:[#allocation7 + $0x2a]]
        %v976 = vstv %s975
        %v977 = vmul.f32 %v976, %v946
        %v978 = vmul.f32 %v976, %v947
        %v979 = vmul.f32 %v976, %v948
        %v980 = vmul.f32 %v976, %v949
        %v985 = vrot.slane %v977, 2
        %v986 = vrot.slane %v979, 2
        %v987 = vsel %vm960, %v985, %v986
        %v988 = vrot.slane %v978, 2
        %v989 = vrot.slane %v980, 2
        %v990 = vsel %vm960, %v988, %v989
        %v995 = vadd.f32 %v874, %v987
        %v996 = vadd.f32 %v875, %v990
        %v997 = vadd.f32 %v876, %v986
        %v998 = vadd.f32 %v877, %v989
        %s999 = sld [smem:[#allocation7 + $0x4e]]
        %v1000 = vstv %s999
        %v1001 = vmul.f32 %v1000, %v946
        %v1002 = vmul.f32 %v1000, %v947
        %v1003 = vmul.f32 %v1000, %v948
        %v1004 = vmul.f32 %v1000, %v949
        %v1009 = vrot.slane %v1001, 2
        %v1010 = vrot.slane %v1003, 2
        %v1011 = vsel %vm960, %v1009, %v1010
        %v1012 = vrot.slane %v1002, 2
        %v1013 = vrot.slane %v1004, 2
        %v1014 = vsel %vm960, %v1012, %v1013
        %v1019 = vadd.f32 %v908, %v1011
        %v1020 = vadd.f32 %v909, %v1014
        %v1021 = vadd.f32 %v910, %v1010
        %v1022 = vadd.f32 %v911, %v1013
        %s1023 = sld [smem:[#allocation7 + $0x72]]
        %v1024 = vstv %s1023
        %v1025 = vmul.f32 %v1024, %v946
        %v1026 = vmul.f32 %v1024, %v947
        %v1027 = vmul.f32 %v1024, %v948
        %v1028 = vmul.f32 %v1024, %v949
        %v1033 = vrot.slane %v1025, 2
        %v1034 = vrot.slane %v1027, 2
        %v1035 = vsel %vm960, %v1033, %v1034
        %v1036 = vrot.slane %v1026, 2
        %v1037 = vrot.slane %v1028, 2
        %v1038 = vsel %vm960, %v1036, %v1037
        %v1043 = vadd.f32 %v942, %v1035
        %v1044 = vadd.f32 %v943, %v1038
        %v1045 = vadd.f32 %v944, %v1034
        %v1046 = vadd.f32 %v945, %v1037
        %s1047 = sld [smem:[#allocation7 + $0x7]]
        %v1048 = vstv %s1047
        %v1049 = vmul.f32 %v1048, %v946
        %v1050 = vmul.f32 %v1048, %v947
        %v1051 = vmul.f32 %v1048, %v948
        %v1052 = vmul.f32 %v1048, %v949
        %v1057 = vrot.slane %v1049, 2
        %v1058 = vrot.slane %v1051, 2
        %v1059 = vsel %vm960, %v1057, %v1058
        %v1060 = vrot.slane %v1050, 2
        %v1061 = vrot.slane %v1052, 2
        %v1062 = vsel %vm960, %v1060, %v1061
        %1063 = vrot.lane.b32.xlu0 %v1059, 127
        %v1064 = vpop.permute.xlu0 %1063
        %1065 = vrot.lane.b32.xlu0 %v1062, 127
        %v1066 = vpop.permute.xlu0 %1065
        %1067 = vrot.lane.b32.xlu0 %v1058, 127
        %v1068 = vpop.permute.xlu0 %1067
        %1069 = vrot.lane.b32.xlu0 %v1061, 127
        %v1070 = vpop.permute.xlu0 %1069
        %v1071 = vsel %vm365, %v1064, %v1066
        %v1072 = vsel %vm365, %v1068, %v1070
        %v1077 = vadd.f32 %v971, %v1071
        %v1078 = vadd.f32 %v972, %v1066
        %v1079 = vadd.f32 %v973, %v1072
        %v1080 = vadd.f32 %v974, %v1070
        %s1081 = sld [smem:[#allocation7 + $0x2b]]
        %v1082 = vstv %s1081
        %v1083 = vmul.f32 %v1082, %v946
        %v1084 = vmul.f32 %v1082, %v947
        %v1085 = vmul.f32 %v1082, %v948
        %v1086 = vmul.f32 %v1082, %v949
        %v1091 = vrot.slane %v1083, 2
        %v1092 = vrot.slane %v1085, 2
        %v1093 = vsel %vm960, %v1091, %v1092
        %v1094 = vrot.slane %v1084, 2
        %v1095 = vrot.slane %v1086, 2
        %v1096 = vsel %vm960, %v1094, %v1095
        %1097 = vrot.lane.b32.xlu0 %v1093, 127
        %v1098 = vpop.permute.xlu0 %1097
        %1099 = vrot.lane.b32.xlu0 %v1096, 127
        %v1100 = vpop.permute.xlu0 %1099
        %1101 = vrot.lane.b32.xlu0 %v1092, 127
        %v1102 = vpop.permute.xlu0 %1101
        %1103 = vrot.lane.b32.xlu0 %v1095, 127
        %v1104 = vpop.permute.xlu0 %1103
        %v1105 = vsel %vm365, %v1098, %v1100
        %v1106 = vsel %vm365, %v1102, %v1104
        %v1111 = vadd.f32 %v995, %v1105
        %v1112 = vadd.f32 %v996, %v1100
        %v1113 = vadd.f32 %v997, %v1106
        %v1114 = vadd.f32 %v998, %v1104
        %s1115 = sld [smem:[#allocation7 + $0x4f]]
        %v1116 = vstv %s1115
        %v1117 = vmul.f32 %v1116, %v946
        %v1118 = vmul.f32 %v1116, %v947
        %v1119 = vmul.f32 %v1116, %v948
        %v1120 = vmul.f32 %v1116, %v949
        %v1125 = vrot.slane %v1117, 2
        %v1126 = vrot.slane %v1119, 2
        %v1127 = vsel %vm960, %v1125, %v1126
        %v1128 = vrot.slane %v1118, 2
        %v1129 = vrot.slane %v1120, 2
        %v1130 = vsel %vm960, %v1128, %v1129
        %1131 = vrot.lane.b32.xlu0 %v1127, 127
        %v1132 = vpop.permute.xlu0 %1131
        %1133 = vrot.lane.b32.xlu0 %v1130, 127
        %v1134 = vpop.permute.xlu0 %1133
        %1135 = vrot.lane.b32.xlu0 %v1126, 127
        %v1136 = vpop.permute.xlu0 %1135
        %1137 = vrot.lane.b32.xlu0 %v1129, 127
        %v1138 = vpop.permute.xlu0 %1137
        %v1139 = vsel %vm365, %v1132, %v1134
        %v1140 = vsel %vm365, %v1136, %v1138
        %v1145 = vadd.f32 %v1019, %v1139
        %v1146 = vadd.f32 %v1020, %v1134
        %v1147 = vadd.f32 %v1021, %v1140
        %v1148 = vadd.f32 %v1022, %v1138
        %s1149 = sld [smem:[#allocation7 + $0x73]]
        %v1150 = vstv %s1149
        %v1151 = vmul.f32 %v1150, %v946
        %v1152 = vmul.f32 %v1150, %v947
        %v1153 = vmul.f32 %v1150, %v948
        %v1154 = vmul.f32 %v1150, %v949
        %v1159 = vrot.slane %v1151, 2
        %v1160 = vrot.slane %v1153, 2
        %v1161 = vsel %vm960, %v1159, %v1160
        %v1162 = vrot.slane %v1152, 2
        %v1163 = vrot.slane %v1154, 2
        %v1164 = vsel %vm960, %v1162, %v1163
        %1165 = vrot.lane.b32.xlu0 %v1161, 127
        %v1166 = vpop.permute.xlu0 %1165
        %1167 = vrot.lane.b32.xlu0 %v1164, 127
        %v1168 = vpop.permute.xlu0 %1167
        %1169 = vrot.lane.b32.xlu0 %v1160, 127
        %v1170 = vpop.permute.xlu0 %1169
        %1171 = vrot.lane.b32.xlu0 %v1163, 127
        %v1172 = vpop.permute.xlu0 %1171
        %v1173 = vsel %vm365, %v1166, %v1168
        %v1174 = vsel %vm365, %v1170, %v1172
        %v1179 = vadd.f32 %v1043, %v1173
        %v1180 = vadd.f32 %v1044, %v1168
        %v1181 = vadd.f32 %v1045, %v1174
        %v1182 = vadd.f32 %v1046, %v1172
        %s1183 = sld [smem:[#allocation7 + $0x8]]
        %v1184 = vstv %s1183
        %v1185 = vmul.f32 %v1184, %v946
        %v1186 = vmul.f32 %v1184, %v947
        %v1187 = vmul.f32 %v1184, %v948
        %v1188 = vmul.f32 %v1184, %v949
        %v1193 = vrot.slane %v1185, 2
        %v1194 = vrot.slane %v1187, 2
        %v1195 = vsel %vm960, %v1193, %v1194
        %v1196 = vrot.slane %v1186, 2
        %v1197 = vrot.slane %v1188, 2
        %v1198 = vsel %vm960, %v1196, %v1197
        %1199 = vrot.lane.b32.xlu0 %v1195, 126
        %v1200 = vpop.permute.xlu0 %1199
        %1201 = vrot.lane.b32.xlu0 %v1198, 126
        %v1202 = vpop.permute.xlu0 %1201
        %1203 = vrot.lane.b32.xlu0 %v1194, 126
        %v1204 = vpop.permute.xlu0 %1203
        %1205 = vrot.lane.b32.xlu0 %v1197, 126
        %v1206 = vpop.permute.xlu0 %1205
        %v1207 = vsel %vm478, %v1200, %v1202
        %v1208 = vsel %vm478, %v1204, %v1206
        %v1213 = vadd.f32 %v1077, %v1207
        %v1214 = vadd.f32 %v1078, %v1202
        %v1215 = vadd.f32 %v1079, %v1208
        %v1216 = vadd.f32 %v1080, %v1206
        %s1217 = sld [smem:[#allocation7 + $0x2c]]
        %v1218 = vstv %s1217
        %v1219 = vmul.f32 %v1218, %v946
        %v1220 = vmul.f32 %v1218, %v947
        %v1221 = vmul.f32 %v1218, %v948
        %v1222 = vmul.f32 %v1218, %v949
        %v1227 = vrot.slane %v1219, 2
        %v1228 = vrot.slane %v1221, 2
        %v1229 = vsel %vm960, %v1227, %v1228
        %v1230 = vrot.slane %v1220, 2
        %v1231 = vrot.slane %v1222, 2
        %v1232 = vsel %vm960, %v1230, %v1231
        %1233 = vrot.lane.b32.xlu0 %v1229, 126
        %v1234 = vpop.permute.xlu0 %1233
        %1235 = vrot.lane.b32.xlu0 %v1232, 126
        %v1236 = vpop.permute.xlu0 %1235
        %1237 = vrot.lane.b32.xlu0 %v1228, 126
        %v1238 = vpop.permute.xlu0 %1237
        %1239 = vrot.lane.b32.xlu0 %v1231, 126
        %v1240 = vpop.permute.xlu0 %1239
        %v1241 = vsel %vm478, %v1234, %v1236
        %v1242 = vsel %vm478, %v1238, %v1240
        %v1247 = vadd.f32 %v1111, %v1241
        %v1248 = vadd.f32 %v1112, %v1236
        %v1249 = vadd.f32 %v1113, %v1242
        %v1250 = vadd.f32 %v1114, %v1240
        %s1251 = sld [smem:[#allocation7 + $0x50]]
        %v1252 = vstv %s1251
        %v1253 = vmul.f32 %v1252, %v946
        %v1254 = vmul.f32 %v1252, %v947
        %v1255 = vmul.f32 %v1252, %v948
        %v1256 = vmul.f32 %v1252, %v949
        %v1261 = vrot.slane %v1253, 2
        %v1262 = vrot.slane %v1255, 2
        %v1263 = vsel %vm960, %v1261, %v1262
        %v1264 = vrot.slane %v1254, 2
        %v1265 = vrot.slane %v1256, 2
        %v1266 = vsel %vm960, %v1264, %v1265
        %1267 = vrot.lane.b32.xlu0 %v1263, 126
        %v1268 = vpop.permute.xlu0 %1267
        %1269 = vrot.lane.b32.xlu0 %v1266, 126
        %v1270 = vpop.permute.xlu0 %1269
        %1271 = vrot.lane.b32.xlu0 %v1262, 126
        %v1272 = vpop.permute.xlu0 %1271
        %1273 = vrot.lane.b32.xlu0 %v1265, 126
        %v1274 = vpop.permute.xlu0 %1273
        %v1275 = vsel %vm478, %v1268, %v1270
        %v1276 = vsel %vm478, %v1272, %v1274
        %v1281 = vadd.f32 %v1145, %v1275
        %v1282 = vadd.f32 %v1146, %v1270
        %v1283 = vadd.f32 %v1147, %v1276
        %v1284 = vadd.f32 %v1148, %v1274
        %s1285 = sld [smem:[#allocation7 + $0x74]]
        %v1286 = vstv %s1285
        %v1287 = vmul.f32 %v1286, %v946
        %v1288 = vmul.f32 %v1286, %v947
        %v1289 = vmul.f32 %v1286, %v948
        %v1290 = vmul.f32 %v1286, %v949
        %v1295 = vrot.slane %v1287, 2
        %v1296 = vrot.slane %v1289, 2
        %v1297 = vsel %vm960, %v1295, %v1296
        %v1298 = vrot.slane %v1288, 2
        %v1299 = vrot.slane %v1290, 2
        %v1300 = vsel %vm960, %v1298, %v1299
        %1301 = vrot.lane.b32.xlu0 %v1297, 126
        %v1302 = vpop.permute.xlu0 %1301
        %1303 = vrot.lane.b32.xlu0 %v1300, 126
        %v1304 = vpop.permute.xlu0 %1303
        %1305 = vrot.lane.b32.xlu0 %v1296, 126
        %v1306 = vpop.permute.xlu0 %1305
        %1307 = vrot.lane.b32.xlu0 %v1299, 126
        %v1308 = vpop.permute.xlu0 %1307
        %v1309 = vsel %vm478, %v1302, %v1304
        %v1310 = vsel %vm478, %v1306, %v1308
        %v1315 = vadd.f32 %v1179, %v1309
        %v1316 = vadd.f32 %v1180, %v1304
        %v1317 = vadd.f32 %v1181, %v1310
        %v1318 = vadd.f32 %v1182, %v1308
        %s1319 = scalar_lea.vmem %s242, 32 [#allocation3]
        %v1320 = vld [vmem:[%s1319] sm:$0xff]
        %v1321 = vld [vmem:[%s1319 + $0x8] sm:$0xff]
        %v1322 = vld [vmem:[%s1319 + $0x10] sm:$0x3f]
        %v1323 = vld [vmem:[%s1319 + $0x18] sm:$0x3f]
        %s1324 = sld [smem:[#allocation7 + $0x9]]
        %v1325 = vstv %s1324
        %v1326 = vmul.f32 %v1325, %v1320
        %v1327 = vmul.f32 %v1325, %v1321
        %v1328 = vmul.f32 %v1325, %v1322
        %v1329 = vmul.f32 %v1325, %v1323
        %v1330 = vadd.f32 %v1213, %v1326
        %v1331 = vadd.f32 %v1214, %v1327
        %v1332 = vadd.f32 %v1215, %v1328
        %v1333 = vadd.f32 %v1216, %v1329
        %s1334 = sld [smem:[#allocation7 + $0x2d]]
        %v1335 = vstv %s1334
        %v1336 = vmul.f32 %v1335, %v1320
        %v1337 = vmul.f32 %v1335, %v1321
        %v1338 = vmul.f32 %v1335, %v1322
        %v1339 = vmul.f32 %v1335, %v1323
        %v1340 = vadd.f32 %v1247, %v1336
        %v1341 = vadd.f32 %v1248, %v1337
        %v1342 = vadd.f32 %v1249, %v1338
        %v1343 = vadd.f32 %v1250, %v1339
        %s1344 = sld [smem:[#allocation7 + $0x51]]
        %v1345 = vstv %s1344
        %v1346 = vmul.f32 %v1345, %v1320
        %v1347 = vmul.f32 %v1345, %v1321
        %v1348 = vmul.f32 %v1345, %v1322
        %v1349 = vmul.f32 %v1345, %v1323
        %v1350 = vadd.f32 %v1281, %v1346
        %v1351 = vadd.f32 %v1282, %v1347
        %v1352 = vadd.f32 %v1283, %v1348
        %v1353 = vadd.f32 %v1284, %v1349
        %s1354 = sld [smem:[#allocation7 + $0x75]]
        %v1355 = vstv %s1354
        %v1356 = vmul.f32 %v1355, %v1320
        %v1357 = vmul.f32 %v1355, %v1321
        %v1358 = vmul.f32 %v1355, %v1322
        %v1359 = vmul.f32 %v1355, %v1323
        %v1360 = vadd.f32 %v1315, %v1356
        %v1361 = vadd.f32 %v1316, %v1357
        %v1362 = vadd.f32 %v1317, %v1358
        %v1363 = vadd.f32 %v1318, %v1359
        %s1364 = sld [smem:[#allocation7 + $0xa]]
        %v1365 = vstv %s1364
        %v1366 = vmul.f32 %v1365, %v1320
        %v1367 = vmul.f32 %v1365, %v1321
        %v1368 = vmul.f32 %v1365, %v1322
        %v1369 = vmul.f32 %v1365, %v1323
        %1374 = vrot.lane.b32.xlu0 %v1366, 127
        %v1375 = vpop.permute.xlu0 %1374
        %1376 = vrot.lane.b32.xlu0 %v1367, 127
        %v1377 = vpop.permute.xlu0 %1376
        %1378 = vrot.lane.b32.xlu0 %v1368, 127
        %v1379 = vpop.permute.xlu0 %1378
        %1380 = vrot.lane.b32.xlu0 %v1369, 127
        %v1381 = vpop.permute.xlu0 %1380
        %v1382 = vsel %vm365, %v1375, %v1377
        %v1383 = vsel %vm365, %v1379, %v1381
        %v1388 = vadd.f32 %v1330, %v1382
        %v1389 = vadd.f32 %v1331, %v1377
        %v1390 = vadd.f32 %v1332, %v1383
        %v1391 = vadd.f32 %v1333, %v1381
        %s1392 = sld [smem:[#allocation7 + $0x2e]]
        %v1393 = vstv %s1392
        %v1394 = vmul.f32 %v1393, %v1320
        %v1395 = vmul.f32 %v1393, %v1321
        %v1396 = vmul.f32 %v1393, %v1322
        %v1397 = vmul.f32 %v1393, %v1323
        %1402 = vrot.lane.b32.xlu0 %v1394, 127
        %v1403 = vpop.permute.xlu0 %1402
        %1404 = vrot.lane.b32.xlu0 %v1395, 127
        %v1405 = vpop.permute.xlu0 %1404
        %1406 = vrot.lane.b32.xlu0 %v1396, 127
        %v1407 = vpop.permute.xlu0 %1406
        %1408 = vrot.lane.b32.xlu0 %v1397, 127
        %v1409 = vpop.permute.xlu0 %1408
        %v1410 = vsel %vm365, %v1403, %v1405
        %v1411 = vsel %vm365, %v1407, %v1409
        %v1416 = vadd.f32 %v1340, %v1410
        %v1417 = vadd.f32 %v1341, %v1405
        %v1418 = vadd.f32 %v1342, %v1411
        %v1419 = vadd.f32 %v1343, %v1409
        %s1420 = sld [smem:[#allocation7 + $0x52]]
        %v1421 = vstv %s1420
        %v1422 = vmul.f32 %v1421, %v1320
        %v1423 = vmul.f32 %v1421, %v1321
        %v1424 = vmul.f32 %v1421, %v1322
        %v1425 = vmul.f32 %v1421, %v1323
        %1430 = vrot.lane.b32.xlu0 %v1422, 127
        %v1431 = vpop.permute.xlu0 %1430
        %1432 = vrot.lane.b32.xlu0 %v1423, 127
        %v1433 = vpop.permute.xlu0 %1432
        %1434 = vrot.lane.b32.xlu0 %v1424, 127
        %v1435 = vpop.permute.xlu0 %1434
        %1436 = vrot.lane.b32.xlu0 %v1425, 127
        %v1437 = vpop.permute.xlu0 %1436
        %v1438 = vsel %vm365, %v1431, %v1433
        %v1439 = vsel %vm365, %v1435, %v1437
        %v1444 = vadd.f32 %v1350, %v1438
        %v1445 = vadd.f32 %v1351, %v1433
        %v1446 = vadd.f32 %v1352, %v1439
        %v1447 = vadd.f32 %v1353, %v1437
        %s1448 = sld [smem:[#allocation7 + $0x76]]
        %v1449 = vstv %s1448
        %v1450 = vmul.f32 %v1449, %v1320
        %v1451 = vmul.f32 %v1449, %v1321
        %v1452 = vmul.f32 %v1449, %v1322
        %v1453 = vmul.f32 %v1449, %v1323
        %1458 = vrot.lane.b32.xlu0 %v1450, 127
        %v1459 = vpop.permute.xlu0 %1458
        %1460 = vrot.lane.b32.xlu0 %v1451, 127
        %v1461 = vpop.permute.xlu0 %1460
        %1462 = vrot.lane.b32.xlu0 %v1452, 127
        %v1463 = vpop.permute.xlu0 %1462
        %1464 = vrot.lane.b32.xlu0 %v1453, 127
        %v1465 = vpop.permute.xlu0 %1464
        %v1466 = vsel %vm365, %v1459, %v1461
        %v1467 = vsel %vm365, %v1463, %v1465
        %v1472 = vadd.f32 %v1360, %v1466
        %v1473 = vadd.f32 %v1361, %v1461
        %v1474 = vadd.f32 %v1362, %v1467
        %v1475 = vadd.f32 %v1363, %v1465
        %s1476 = sld [smem:[#allocation7 + $0xb]]
        %v1477 = vstv %s1476
        %v1478 = vmul.f32 %v1477, %v1320
        %v1479 = vmul.f32 %v1477, %v1321
        %v1480 = vmul.f32 %v1477, %v1322
        %v1481 = vmul.f32 %v1477, %v1323
        %1486 = vrot.lane.b32.xlu0 %v1478, 126
        %v1487 = vpop.permute.xlu0 %1486
        %1488 = vrot.lane.b32.xlu0 %v1479, 126
        %v1489 = vpop.permute.xlu0 %1488
        %1490 = vrot.lane.b32.xlu0 %v1480, 126
        %v1491 = vpop.permute.xlu0 %1490
        %1492 = vrot.lane.b32.xlu0 %v1481, 126
        %v1493 = vpop.permute.xlu0 %1492
        %v1494 = vsel %vm478, %v1487, %v1489
        %v1495 = vsel %vm478, %v1491, %v1493
        %v1500 = vadd.f32 %v1388, %v1494
        %v1501 = vadd.f32 %v1389, %v1489
        %v1502 = vadd.f32 %v1390, %v1495
        %v1503 = vadd.f32 %v1391, %v1493
        %s1504 = sld [smem:[#allocation7 + $0x2f]]
        %v1505 = vstv %s1504
        %v1506 = vmul.f32 %v1505, %v1320
        %v1507 = vmul.f32 %v1505, %v1321
        %v1508 = vmul.f32 %v1505, %v1322
        %v1509 = vmul.f32 %v1505, %v1323
        %1514 = vrot.lane.b32.xlu0 %v1506, 126
        %v1515 = vpop.permute.xlu0 %1514
        %1516 = vrot.lane.b32.xlu0 %v1507, 126
        %v1517 = vpop.permute.xlu0 %1516
        %1518 = vrot.lane.b32.xlu0 %v1508, 126
        %v1519 = vpop.permute.xlu0 %1518
        %1520 = vrot.lane.b32.xlu0 %v1509, 126
        %v1521 = vpop.permute.xlu0 %1520
        %v1522 = vsel %vm478, %v1515, %v1517
        %v1523 = vsel %vm478, %v1519, %v1521
        %v1528 = vadd.f32 %v1416, %v1522
        %v1529 = vadd.f32 %v1417, %v1517
        %v1530 = vadd.f32 %v1418, %v1523
        %v1531 = vadd.f32 %v1419, %v1521
        %s1532 = sld [smem:[#allocation7 + $0x53]]
        %v1533 = vstv %s1532
        %v1534 = vmul.f32 %v1533, %v1320
        %v1535 = vmul.f32 %v1533, %v1321
        %v1536 = vmul.f32 %v1533, %v1322
        %v1537 = vmul.f32 %v1533, %v1323
        %1542 = vrot.lane.b32.xlu0 %v1534, 126
        %v1543 = vpop.permute.xlu0 %1542
        %1544 = vrot.lane.b32.xlu0 %v1535, 126
        %v1545 = vpop.permute.xlu0 %1544
        %1546 = vrot.lane.b32.xlu0 %v1536, 126
        %v1547 = vpop.permute.xlu0 %1546
        %1548 = vrot.lane.b32.xlu0 %v1537, 126
        %v1549 = vpop.permute.xlu0 %1548
        %v1550 = vsel %vm478, %v1543, %v1545
        %v1551 = vsel %vm478, %v1547, %v1549
        %v1556 = vadd.f32 %v1444, %v1550
        %v1557 = vadd.f32 %v1445, %v1545
        %v1558 = vadd.f32 %v1446, %v1551
        %v1559 = vadd.f32 %v1447, %v1549
        %s1560 = sld [smem:[#allocation7 + $0x77]]
        %v1561 = vstv %s1560
        %v1562 = vmul.f32 %v1561, %v1320
        %v1563 = vmul.f32 %v1561, %v1321
        %v1564 = vmul.f32 %v1561, %v1322
        %v1565 = vmul.f32 %v1561, %v1323
        %1570 = vrot.lane.b32.xlu0 %v1562, 126
        %v1571 = vpop.permute.xlu0 %1570
        %1572 = vrot.lane.b32.xlu0 %v1563, 126
        %v1573 = vpop.permute.xlu0 %1572
        %1574 = vrot.lane.b32.xlu0 %v1564, 126
        %v1575 = vpop.permute.xlu0 %1574
        %1576 = vrot.lane.b32.xlu0 %v1565, 126
        %v1577 = vpop.permute.xlu0 %1576
        %v1578 = vsel %vm478, %v1571, %v1573
        %v1579 = vsel %vm478, %v1575, %v1577
        %v1584 = vadd.f32 %v1472, %v1578
        %v1585 = vadd.f32 %v1473, %v1573
        %v1586 = vadd.f32 %v1474, %v1579
        %v1587 = vadd.f32 %v1475, %v1577
        %v1588 = vld [vmem:[%s1319] sm:$0xfe]
        %v1589 = vld [vmem:[%s1319 + $0x8] sm:$0xfe]
        %v1590 = vld [vmem:[%s1319 + $0x10] sm:$0x7f]
        %v1591 = vld [vmem:[%s1319 + $0x18] sm:$0x7f]
        %s1592 = sld [smem:[#allocation7 + $0xc]]
        %v1593 = vstv %s1592
        %v1594 = vmul.f32 %v1593, %v1588
        %v1595 = vmul.f32 %v1593, %v1589
        %v1596 = vmul.f32 %v1593, %v1590
        %v1597 = vmul.f32 %v1593, %v1591
        %v1602 = vrot.slane %v1594, 1
        %v1603 = vrot.slane %v1596, 1
        %v1604 = vsel %vm587, %v1602, %v1603
        %v1605 = vrot.slane %v1595, 1
        %v1606 = vrot.slane %v1597, 1
        %v1607 = vsel %vm587, %v1605, %v1606
        %v1612 = vadd.f32 %v1500, %v1604
        %v1613 = vadd.f32 %v1501, %v1607
        %v1614 = vadd.f32 %v1502, %v1603
        %v1615 = vadd.f32 %v1503, %v1606
        %s1616 = sld [smem:[#allocation7 + $0x30]]
        %v1617 = vstv %s1616
        %v1618 = vmul.f32 %v1617, %v1588
        %v1619 = vmul.f32 %v1617, %v1589
        %v1620 = vmul.f32 %v1617, %v1590
        %v1621 = vmul.f32 %v1617, %v1591
        %v1626 = vrot.slane %v1618, 1
        %v1627 = vrot.slane %v1620, 1
        %v1628 = vsel %vm587, %v1626, %v1627
        %v1629 = vrot.slane %v1619, 1
        %v1630 = vrot.slane %v1621, 1
        %v1631 = vsel %vm587, %v1629, %v1630
        %v1636 = vadd.f32 %v1528, %v1628
        %v1637 = vadd.f32 %v1529, %v1631
        %v1638 = vadd.f32 %v1530, %v1627
        %v1639 = vadd.f32 %v1531, %v1630
        %s1640 = sld [smem:[#allocation7 + $0x54]]
        %v1641 = vstv %s1640
        %v1642 = vmul.f32 %v1641, %v1588
        %v1643 = vmul.f32 %v1641, %v1589
        %v1644 = vmul.f32 %v1641, %v1590
        %v1645 = vmul.f32 %v1641, %v1591
        %v1650 = vrot.slane %v1642, 1
        %v1651 = vrot.slane %v1644, 1
        %v1652 = vsel %vm587, %v1650, %v1651
        %v1653 = vrot.slane %v1643, 1
        %v1654 = vrot.slane %v1645, 1
        %v1655 = vsel %vm587, %v1653, %v1654
        %v1660 = vadd.f32 %v1556, %v1652
        %v1661 = vadd.f32 %v1557, %v1655
        %v1662 = vadd.f32 %v1558, %v1651
        %v1663 = vadd.f32 %v1559, %v1654
        %s1664 = sld [smem:[#allocation7 + $0x78]]
        %v1665 = vstv %s1664
        %v1666 = vmul.f32 %v1665, %v1588
        %v1667 = vmul.f32 %v1665, %v1589
        %v1668 = vmul.f32 %v1665, %v1590
        %v1669 = vmul.f32 %v1665, %v1591
        %v1674 = vrot.slane %v1666, 1
        %v1675 = vrot.slane %v1668, 1
        %v1676 = vsel %vm587, %v1674, %v1675
        %v1677 = vrot.slane %v1667, 1
        %v1678 = vrot.slane %v1669, 1
        %v1679 = vsel %vm587, %v1677, %v1678
        %v1684 = vadd.f32 %v1584, %v1676
        %v1685 = vadd.f32 %v1585, %v1679
        %v1686 = vadd.f32 %v1586, %v1675
        %v1687 = vadd.f32 %v1587, %v1678
        %s1688 = sld [smem:[#allocation7 + $0xd]]
        %v1689 = vstv %s1688
        %v1690 = vmul.f32 %v1689, %v1588
        %v1691 = vmul.f32 %v1689, %v1589
        %v1692 = vmul.f32 %v1689, %v1590
        %v1693 = vmul.f32 %v1689, %v1591
        %v1698 = vrot.slane %v1690, 1
        %v1699 = vrot.slane %v1692, 1
        %v1700 = vsel %vm587, %v1698, %v1699
        %v1701 = vrot.slane %v1691, 1
        %v1702 = vrot.slane %v1693, 1
        %v1703 = vsel %vm587, %v1701, %v1702
        %1704 = vrot.lane.b32.xlu0 %v1700, 127
        %v1705 = vpop.permute.xlu0 %1704
        %1706 = vrot.lane.b32.xlu0 %v1703, 127
        %v1707 = vpop.permute.xlu0 %1706
        %1708 = vrot.lane.b32.xlu0 %v1699, 127
        %v1709 = vpop.permute.xlu0 %1708
        %1710 = vrot.lane.b32.xlu0 %v1702, 127
        %v1711 = vpop.permute.xlu0 %1710
        %v1712 = vsel %vm365, %v1705, %v1707
        %v1713 = vsel %vm365, %v1709, %v1711
        %v1718 = vadd.f32 %v1612, %v1712
        %v1719 = vadd.f32 %v1613, %v1707
        %v1720 = vadd.f32 %v1614, %v1713
        %v1721 = vadd.f32 %v1615, %v1711
        %s1722 = sld [smem:[#allocation7 + $0x31]]
        %v1723 = vstv %s1722
        %v1724 = vmul.f32 %v1723, %v1588
        %v1725 = vmul.f32 %v1723, %v1589
        %v1726 = vmul.f32 %v1723, %v1590
        %v1727 = vmul.f32 %v1723, %v1591
        %v1732 = vrot.slane %v1724, 1
        %v1733 = vrot.slane %v1726, 1
        %v1734 = vsel %vm587, %v1732, %v1733
        %v1735 = vrot.slane %v1725, 1
        %v1736 = vrot.slane %v1727, 1
        %v1737 = vsel %vm587, %v1735, %v1736
        %1738 = vrot.lane.b32.xlu0 %v1734, 127
        %v1739 = vpop.permute.xlu0 %1738
        %1740 = vrot.lane.b32.xlu0 %v1737, 127
        %v1741 = vpop.permute.xlu0 %1740
        %1742 = vrot.lane.b32.xlu0 %v1733, 127
        %v1743 = vpop.permute.xlu0 %1742
        %1744 = vrot.lane.b32.xlu0 %v1736, 127
        %v1745 = vpop.permute.xlu0 %1744
        %v1746 = vsel %vm365, %v1739, %v1741
        %v1747 = vsel %vm365, %v1743, %v1745
        %v1752 = vadd.f32 %v1636, %v1746
        %v1753 = vadd.f32 %v1637, %v1741
        %v1754 = vadd.f32 %v1638, %v1747
        %v1755 = vadd.f32 %v1639, %v1745
        %s1756 = sld [smem:[#allocation7 + $0x55]]
        %v1757 = vstv %s1756
        %v1758 = vmul.f32 %v1757, %v1588
        %v1759 = vmul.f32 %v1757, %v1589
        %v1760 = vmul.f32 %v1757, %v1590
        %v1761 = vmul.f32 %v1757, %v1591
        %v1766 = vrot.slane %v1758, 1
        %v1767 = vrot.slane %v1760, 1
        %v1768 = vsel %vm587, %v1766, %v1767
        %v1769 = vrot.slane %v1759, 1
        %v1770 = vrot.slane %v1761, 1
        %v1771 = vsel %vm587, %v1769, %v1770
        %1772 = vrot.lane.b32.xlu0 %v1768, 127
        %v1773 = vpop.permute.xlu0 %1772
        %1774 = vrot.lane.b32.xlu0 %v1771, 127
        %v1775 = vpop.permute.xlu0 %1774
        %1776 = vrot.lane.b32.xlu0 %v1767, 127
        %v1777 = vpop.permute.xlu0 %1776
        %1778 = vrot.lane.b32.xlu0 %v1770, 127
        %v1779 = vpop.permute.xlu0 %1778
        %v1780 = vsel %vm365, %v1773, %v1775
        %v1781 = vsel %vm365, %v1777, %v1779
        %v1786 = vadd.f32 %v1660, %v1780
        %v1787 = vadd.f32 %v1661, %v1775
        %v1788 = vadd.f32 %v1662, %v1781
        %v1789 = vadd.f32 %v1663, %v1779
        %s1790 = sld [smem:[#allocation7 + $0x79]]
        %v1791 = vstv %s1790
        %v1792 = vmul.f32 %v1791, %v1588
        %v1793 = vmul.f32 %v1791, %v1589
        %v1794 = vmul.f32 %v1791, %v1590
        %v1795 = vmul.f32 %v1791, %v1591
        %v1800 = vrot.slane %v1792, 1
        %v1801 = vrot.slane %v1794, 1
        %v1802 = vsel %vm587, %v1800, %v1801
        %v1803 = vrot.slane %v1793, 1
        %v1804 = vrot.slane %v1795, 1
        %v1805 = vsel %vm587, %v1803, %v1804
        %1806 = vrot.lane.b32.xlu0 %v1802, 127
        %v1807 = vpop.permute.xlu0 %1806
        %1808 = vrot.lane.b32.xlu0 %v1805, 127
        %v1809 = vpop.permute.xlu0 %1808
        %1810 = vrot.lane.b32.xlu0 %v1801, 127
        %v1811 = vpop.permute.xlu0 %1810
        %1812 = vrot.lane.b32.xlu0 %v1804, 127
        %v1813 = vpop.permute.xlu0 %1812
        %v1814 = vsel %vm365, %v1807, %v1809
        %v1815 = vsel %vm365, %v1811, %v1813
        %v1820 = vadd.f32 %v1684, %v1814
        %v1821 = vadd.f32 %v1685, %v1809
        %v1822 = vadd.f32 %v1686, %v1815
        %v1823 = vadd.f32 %v1687, %v1813
        %s1824 = sld [smem:[#allocation7 + $0xe]]
        %v1825 = vstv %s1824
        %v1826 = vmul.f32 %v1825, %v1588
        %v1827 = vmul.f32 %v1825, %v1589
        %v1828 = vmul.f32 %v1825, %v1590
        %v1829 = vmul.f32 %v1825, %v1591
        %v1834 = vrot.slane %v1826, 1
        %v1835 = vrot.slane %v1828, 1
        %v1836 = vsel %vm587, %v1834, %v1835
        %v1837 = vrot.slane %v1827, 1
        %v1838 = vrot.slane %v1829, 1
        %v1839 = vsel %vm587, %v1837, %v1838
        %1840 = vrot.lane.b32.xlu0 %v1836, 126
        %v1841 = vpop.permute.xlu0 %1840
        %1842 = vrot.lane.b32.xlu0 %v1839, 126
        %v1843 = vpop.permute.xlu0 %1842
        %1844 = vrot.lane.b32.xlu0 %v1835, 126
        %v1845 = vpop.permute.xlu0 %1844
        %1846 = vrot.lane.b32.xlu0 %v1838, 126
        %v1847 = vpop.permute.xlu0 %1846
        %v1848 = vsel %vm478, %v1841, %v1843
        %v1849 = vsel %vm478, %v1845, %v1847
        %v1854 = vadd.f32 %v1718, %v1848
        %v1855 = vadd.f32 %v1719, %v1843
        %v1856 = vadd.f32 %v1720, %v1849
        %v1857 = vadd.f32 %v1721, %v1847
        %s1858 = sld [smem:[#allocation7 + $0x32]]
        %v1859 = vstv %s1858
        %v1860 = vmul.f32 %v1859, %v1588
        %v1861 = vmul.f32 %v1859, %v1589
        %v1862 = vmul.f32 %v1859, %v1590
        %v1863 = vmul.f32 %v1859, %v1591
        %v1868 = vrot.slane %v1860, 1
        %v1869 = vrot.slane %v1862, 1
        %v1870 = vsel %vm587, %v1868, %v1869
        %v1871 = vrot.slane %v1861, 1
        %v1872 = vrot.slane %v1863, 1
        %v1873 = vsel %vm587, %v1871, %v1872
        %1874 = vrot.lane.b32.xlu0 %v1870, 126
        %v1875 = vpop.permute.xlu0 %1874
        %1876 = vrot.lane.b32.xlu0 %v1873, 126
        %v1877 = vpop.permute.xlu0 %1876
        %1878 = vrot.lane.b32.xlu0 %v1869, 126
        %v1879 = vpop.permute.xlu0 %1878
        %1880 = vrot.lane.b32.xlu0 %v1872, 126
        %v1881 = vpop.permute.xlu0 %1880
        %v1882 = vsel %vm478, %v1875, %v1877
        %v1883 = vsel %vm478, %v1879, %v1881
        %v1888 = vadd.f32 %v1752, %v1882
        %v1889 = vadd.f32 %v1753, %v1877
        %v1890 = vadd.f32 %v1754, %v1883
        %v1891 = vadd.f32 %v1755, %v1881
        %s1892 = sld [smem:[#allocation7 + $0x56]]
        %v1893 = vstv %s1892
        %v1894 = vmul.f32 %v1893, %v1588
        %v1895 = vmul.f32 %v1893, %v1589
        %v1896 = vmul.f32 %v1893, %v1590
        %v1897 = vmul.f32 %v1893, %v1591
        %v1902 = vrot.slane %v1894, 1
        %v1903 = vrot.slane %v1896, 1
        %v1904 = vsel %vm587, %v1902, %v1903
        %v1905 = vrot.slane %v1895, 1
        %v1906 = vrot.slane %v1897, 1
        %v1907 = vsel %vm587, %v1905, %v1906
        %1908 = vrot.lane.b32.xlu0 %v1904, 126
        %v1909 = vpop.permute.xlu0 %1908
        %1910 = vrot.lane.b32.xlu0 %v1907, 126
        %v1911 = vpop.permute.xlu0 %1910
        %1912 = vrot.lane.b32.xlu0 %v1903, 126
        %v1913 = vpop.permute.xlu0 %1912
        %1914 = vrot.lane.b32.xlu0 %v1906, 126
        %v1915 = vpop.permute.xlu0 %1914
        %v1916 = vsel %vm478, %v1909, %v1911
        %v1917 = vsel %vm478, %v1913, %v1915
        %v1922 = vadd.f32 %v1786, %v1916
        %v1923 = vadd.f32 %v1787, %v1911
        %v1924 = vadd.f32 %v1788, %v1917
        %v1925 = vadd.f32 %v1789, %v1915
        %s1926 = sld [smem:[#allocation7 + $0x7a]]
        %v1927 = vstv %s1926
        %v1928 = vmul.f32 %v1927, %v1588
        %v1929 = vmul.f32 %v1927, %v1589
        %v1930 = vmul.f32 %v1927, %v1590
        %v1931 = vmul.f32 %v1927, %v1591
        %v1936 = vrot.slane %v1928, 1
        %v1937 = vrot.slane %v1930, 1
        %v1938 = vsel %vm587, %v1936, %v1937
        %v1939 = vrot.slane %v1929, 1
        %v1940 = vrot.slane %v1931, 1
        %v1941 = vsel %vm587, %v1939, %v1940
        %1942 = vrot.lane.b32.xlu0 %v1938, 126
        %v1943 = vpop.permute.xlu0 %1942
        %1944 = vrot.lane.b32.xlu0 %v1941, 126
        %v1945 = vpop.permute.xlu0 %1944
        %1946 = vrot.lane.b32.xlu0 %v1937, 126
        %v1947 = vpop.permute.xlu0 %1946
        %1948 = vrot.lane.b32.xlu0 %v1940, 126
        %v1949 = vpop.permute.xlu0 %1948
        %v1950 = vsel %vm478, %v1943, %v1945
        %v1951 = vsel %vm478, %v1947, %v1949
        %v1956 = vadd.f32 %v1820, %v1950
        %v1957 = vadd.f32 %v1821, %v1945
        %v1958 = vadd.f32 %v1822, %v1951
        %v1959 = vadd.f32 %v1823, %v1949
        %v1960 = vld [vmem:[%s1319] sm:$0xfc]
        %v1961 = vld [vmem:[%s1319 + $0x8] sm:$0xfc]
        %v1962 = vld [vmem:[%s1319 + $0x10] sm:$0xff]
        %v1963 = vld [vmem:[%s1319 + $0x18] sm:$0xff]
        %s1964 = sld [smem:[#allocation7 + $0xf]]
        %v1965 = vstv %s1964
        %v1966 = vmul.f32 %v1965, %v1960
        %v1967 = vmul.f32 %v1965, %v1961
        %v1968 = vmul.f32 %v1965, %v1962
        %v1969 = vmul.f32 %v1965, %v1963
        %v1974 = vrot.slane %v1966, 2
        %v1975 = vrot.slane %v1968, 2
        %v1976 = vsel %vm960, %v1974, %v1975
        %v1977 = vrot.slane %v1967, 2
        %v1978 = vrot.slane %v1969, 2
        %v1979 = vsel %vm960, %v1977, %v1978
        %v1984 = vadd.f32 %v1854, %v1976
        %v1985 = vadd.f32 %v1855, %v1979
        %v1986 = vadd.f32 %v1856, %v1975
        %v1987 = vadd.f32 %v1857, %v1978
        %s1988 = sld [smem:[#allocation7 + $0x33]]
        %v1989 = vstv %s1988
        %v1990 = vmul.f32 %v1989, %v1960
        %v1991 = vmul.f32 %v1989, %v1961
        %v1992 = vmul.f32 %v1989, %v1962
        %v1993 = vmul.f32 %v1989, %v1963
        %v1998 = vrot.slane %v1990, 2
        %v1999 = vrot.slane %v1992, 2
        %v2000 = vsel %vm960, %v1998, %v1999
        %v2001 = vrot.slane %v1991, 2
        %v2002 = vrot.slane %v1993, 2
        %v2003 = vsel %vm960, %v2001, %v2002
        %v2008 = vadd.f32 %v1888, %v2000
        %v2009 = vadd.f32 %v1889, %v2003
        %v2010 = vadd.f32 %v1890, %v1999
        %v2011 = vadd.f32 %v1891, %v2002
        %s2012 = sld [smem:[#allocation7 + $0x57]]
        %v2013 = vstv %s2012
        %v2014 = vmul.f32 %v2013, %v1960
        %v2015 = vmul.f32 %v2013, %v1961
        %v2016 = vmul.f32 %v2013, %v1962
        %v2017 = vmul.f32 %v2013, %v1963
        %v2022 = vrot.slane %v2014, 2
        %v2023 = vrot.slane %v2016, 2
        %v2024 = vsel %vm960, %v2022, %v2023
        %v2025 = vrot.slane %v2015, 2
        %v2026 = vrot.slane %v2017, 2
        %v2027 = vsel %vm960, %v2025, %v2026
        %v2032 = vadd.f32 %v1922, %v2024
        %v2033 = vadd.f32 %v1923, %v2027
        %v2034 = vadd.f32 %v1924, %v2023
        %v2035 = vadd.f32 %v1925, %v2026
        %s2036 = sld [smem:[#allocation7 + $0x7b]]
        %v2037 = vstv %s2036
        %v2038 = vmul.f32 %v2037, %v1960
        %v2039 = vmul.f32 %v2037, %v1961
        %v2040 = vmul.f32 %v2037, %v1962
        %v2041 = vmul.f32 %v2037, %v1963
        %v2046 = vrot.slane %v2038, 2
        %v2047 = vrot.slane %v2040, 2
        %v2048 = vsel %vm960, %v2046, %v2047
        %v2049 = vrot.slane %v2039, 2
        %v2050 = vrot.slane %v2041, 2
        %v2051 = vsel %vm960, %v2049, %v2050
        %v2056 = vadd.f32 %v1956, %v2048
        %v2057 = vadd.f32 %v1957, %v2051
        %v2058 = vadd.f32 %v1958, %v2047
        %v2059 = vadd.f32 %v1959, %v2050
        %s2060 = sld [smem:[#allocation7 + $0x10]]
        %v2061 = vstv %s2060
        %v2062 = vmul.f32 %v2061, %v1960
        %v2063 = vmul.f32 %v2061, %v1961
        %v2064 = vmul.f32 %v2061, %v1962
        %v2065 = vmul.f32 %v2061, %v1963
        %v2070 = vrot.slane %v2062, 2
        %v2071 = vrot.slane %v2064, 2
        %v2072 = vsel %vm960, %v2070, %v2071
        %v2073 = vrot.slane %v2063, 2
        %v2074 = vrot.slane %v2065, 2
        %v2075 = vsel %vm960, %v2073, %v2074
        %2076 = vrot.lane.b32.xlu0 %v2072, 127
        %v2077 = vpop.permute.xlu0 %2076
        %2078 = vrot.lane.b32.xlu0 %v2075, 127
        %v2079 = vpop.permute.xlu0 %2078
        %2080 = vrot.lane.b32.xlu0 %v2071, 127
        %v2081 = vpop.permute.xlu0 %2080
        %2082 = vrot.lane.b32.xlu0 %v2074, 127
        %v2083 = vpop.permute.xlu0 %2082
        %v2084 = vsel %vm365, %v2077, %v2079
        %v2085 = vsel %vm365, %v2081, %v2083
        %v2090 = vadd.f32 %v1984, %v2084
        %v2091 = vadd.f32 %v1985, %v2079
        %v2092 = vadd.f32 %v1986, %v2085
        %v2093 = vadd.f32 %v1987, %v2083
        %s2094 = sld [smem:[#allocation7 + $0x34]]
        %v2095 = vstv %s2094
        %v2096 = vmul.f32 %v2095, %v1960
        %v2097 = vmul.f32 %v2095, %v1961
        %v2098 = vmul.f32 %v2095, %v1962
        %v2099 = vmul.f32 %v2095, %v1963
        %v2104 = vrot.slane %v2096, 2
        %v2105 = vrot.slane %v2098, 2
        %v2106 = vsel %vm960, %v2104, %v2105
        %v2107 = vrot.slane %v2097, 2
        %v2108 = vrot.slane %v2099, 2
        %v2109 = vsel %vm960, %v2107, %v2108
        %2110 = vrot.lane.b32.xlu0 %v2106, 127
        %v2111 = vpop.permute.xlu0 %2110
        %2112 = vrot.lane.b32.xlu0 %v2109, 127
        %v2113 = vpop.permute.xlu0 %2112
        %2114 = vrot.lane.b32.xlu0 %v2105, 127
        %v2115 = vpop.permute.xlu0 %2114
        %2116 = vrot.lane.b32.xlu0 %v2108, 127
        %v2117 = vpop.permute.xlu0 %2116
        %v2118 = vsel %vm365, %v2111, %v2113
        %v2119 = vsel %vm365, %v2115, %v2117
        %v2124 = vadd.f32 %v2008, %v2118
        %v2125 = vadd.f32 %v2009, %v2113
        %v2126 = vadd.f32 %v2010, %v2119
        %v2127 = vadd.f32 %v2011, %v2117
        %s2128 = sld [smem:[#allocation7 + $0x58]]
        %v2129 = vstv %s2128
        %v2130 = vmul.f32 %v2129, %v1960
        %v2131 = vmul.f32 %v2129, %v1961
        %v2132 = vmul.f32 %v2129, %v1962
        %v2133 = vmul.f32 %v2129, %v1963
        %v2138 = vrot.slane %v2130, 2
        %v2139 = vrot.slane %v2132, 2
        %v2140 = vsel %vm960, %v2138, %v2139
        %v2141 = vrot.slane %v2131, 2
        %v2142 = vrot.slane %v2133, 2
        %v2143 = vsel %vm960, %v2141, %v2142
        %2144 = vrot.lane.b32.xlu0 %v2140, 127
        %v2145 = vpop.permute.xlu0 %2144
        %2146 = vrot.lane.b32.xlu0 %v2143, 127
        %v2147 = vpop.permute.xlu0 %2146
        %2148 = vrot.lane.b32.xlu0 %v2139, 127
        %v2149 = vpop.permute.xlu0 %2148
        %2150 = vrot.lane.b32.xlu0 %v2142, 127
        %v2151 = vpop.permute.xlu0 %2150
        %v2152 = vsel %vm365, %v2145, %v2147
        %v2153 = vsel %vm365, %v2149, %v2151
        %v2158 = vadd.f32 %v2032, %v2152
        %v2159 = vadd.f32 %v2033, %v2147
        %v2160 = vadd.f32 %v2034, %v2153
        %v2161 = vadd.f32 %v2035, %v2151
        %s2162 = sld [smem:[#allocation7 + $0x7c]]
        %v2163 = vstv %s2162
        %v2164 = vmul.f32 %v2163, %v1960
        %v2165 = vmul.f32 %v2163, %v1961
        %v2166 = vmul.f32 %v2163, %v1962
        %v2167 = vmul.f32 %v2163, %v1963
        %v2172 = vrot.slane %v2164, 2
        %v2173 = vrot.slane %v2166, 2
        %v2174 = vsel %vm960, %v2172, %v2173
        %v2175 = vrot.slane %v2165, 2
        %v2176 = vrot.slane %v2167, 2
        %v2177 = vsel %vm960, %v2175, %v2176
        %2178 = vrot.lane.b32.xlu0 %v2174, 127
        %v2179 = vpop.permute.xlu0 %2178
        %2180 = vrot.lane.b32.xlu0 %v2177, 127
        %v2181 = vpop.permute.xlu0 %2180
        %2182 = vrot.lane.b32.xlu0 %v2173, 127
        %v2183 = vpop.permute.xlu0 %2182
        %2184 = vrot.lane.b32.xlu0 %v2176, 127
        %v2185 = vpop.permute.xlu0 %2184
        %v2186 = vsel %vm365, %v2179, %v2181
        %v2187 = vsel %vm365, %v2183, %v2185
        %v2192 = vadd.f32 %v2056, %v2186
        %v2193 = vadd.f32 %v2057, %v2181
        %v2194 = vadd.f32 %v2058, %v2187
        %v2195 = vadd.f32 %v2059, %v2185
        %s2196 = sld [smem:[#allocation7 + $0x11]]
        %v2197 = vstv %s2196
        %v2198 = vmul.f32 %v2197, %v1960
        %v2199 = vmul.f32 %v2197, %v1961
        %v2200 = vmul.f32 %v2197, %v1962
        %v2201 = vmul.f32 %v2197, %v1963
        %v2206 = vrot.slane %v2198, 2
        %v2207 = vrot.slane %v2200, 2
        %v2208 = vsel %vm960, %v2206, %v2207
        %v2209 = vrot.slane %v2199, 2
        %v2210 = vrot.slane %v2201, 2
        %v2211 = vsel %vm960, %v2209, %v2210
        %2212 = vrot.lane.b32.xlu0 %v2208, 126
        %v2213 = vpop.permute.xlu0 %2212
        %2214 = vrot.lane.b32.xlu0 %v2211, 126
        %v2215 = vpop.permute.xlu0 %2214
        %2216 = vrot.lane.b32.xlu0 %v2207, 126
        %v2217 = vpop.permute.xlu0 %2216
        %2218 = vrot.lane.b32.xlu0 %v2210, 126
        %v2219 = vpop.permute.xlu0 %2218
        %v2220 = vsel %vm478, %v2213, %v2215
        %v2221 = vsel %vm478, %v2217, %v2219
        %v2226 = vadd.f32 %v2090, %v2220
        %v2227 = vadd.f32 %v2091, %v2215
        %v2228 = vadd.f32 %v2092, %v2221
        %v2229 = vadd.f32 %v2093, %v2219
        %s2230 = sld [smem:[#allocation7 + $0x35]]
        %v2231 = vstv %s2230
        %v2232 = vmul.f32 %v2231, %v1960
        %v2233 = vmul.f32 %v2231, %v1961
        %v2234 = vmul.f32 %v2231, %v1962
        %v2235 = vmul.f32 %v2231, %v1963
        %v2240 = vrot.slane %v2232, 2
        %v2241 = vrot.slane %v2234, 2
        %v2242 = vsel %vm960, %v2240, %v2241
        %v2243 = vrot.slane %v2233, 2
        %v2244 = vrot.slane %v2235, 2
        %v2245 = vsel %vm960, %v2243, %v2244
        %2246 = vrot.lane.b32.xlu0 %v2242, 126
        %v2247 = vpop.permute.xlu0 %2246
        %2248 = vrot.lane.b32.xlu0 %v2245, 126
        %v2249 = vpop.permute.xlu0 %2248
        %2250 = vrot.lane.b32.xlu0 %v2241, 126
        %v2251 = vpop.permute.xlu0 %2250
        %2252 = vrot.lane.b32.xlu0 %v2244, 126
        %v2253 = vpop.permute.xlu0 %2252
        %v2254 = vsel %vm478, %v2247, %v2249
        %v2255 = vsel %vm478, %v2251, %v2253
        %v2260 = vadd.f32 %v2124, %v2254
        %v2261 = vadd.f32 %v2125, %v2249
        %v2262 = vadd.f32 %v2126, %v2255
        %v2263 = vadd.f32 %v2127, %v2253
        %s2264 = sld [smem:[#allocation7 + $0x59]]
        %v2265 = vstv %s2264
        %v2266 = vmul.f32 %v2265, %v1960
        %v2267 = vmul.f32 %v2265, %v1961
        %v2268 = vmul.f32 %v2265, %v1962
        %v2269 = vmul.f32 %v2265, %v1963
        %v2274 = vrot.slane %v2266, 2
        %v2275 = vrot.slane %v2268, 2
        %v2276 = vsel %vm960, %v2274, %v2275
        %v2277 = vrot.slane %v2267, 2
        %v2278 = vrot.slane %v2269, 2
        %v2279 = vsel %vm960, %v2277, %v2278
        %2280 = vrot.lane.b32.xlu0 %v2276, 126
        %v2281 = vpop.permute.xlu0 %2280
        %2282 = vrot.lane.b32.xlu0 %v2279, 126
        %v2283 = vpop.permute.xlu0 %2282
        %2284 = vrot.lane.b32.xlu0 %v2275, 126
        %v2285 = vpop.permute.xlu0 %2284
        %2286 = vrot.lane.b32.xlu0 %v2278, 126
        %v2287 = vpop.permute.xlu0 %2286
        %v2288 = vsel %vm478, %v2281, %v2283
        %v2289 = vsel %vm478, %v2285, %v2287
        %v2294 = vadd.f32 %v2158, %v2288
        %v2295 = vadd.f32 %v2159, %v2283
        %v2296 = vadd.f32 %v2160, %v2289
        %v2297 = vadd.f32 %v2161, %v2287
        %s2298 = sld [smem:[#allocation7 + $0x7d]]
        %v2299 = vstv %s2298
        %v2300 = vmul.f32 %v2299, %v1960
        %v2301 = vmul.f32 %v2299, %v1961
        %v2302 = vmul.f32 %v2299, %v1962
        %v2303 = vmul.f32 %v2299, %v1963
        %v2308 = vrot.slane %v2300, 2
        %v2309 = vrot.slane %v2302, 2
        %v2310 = vsel %vm960, %v2308, %v2309
        %v2311 = vrot.slane %v2301, 2
        %v2312 = vrot.slane %v2303, 2
        %v2313 = vsel %vm960, %v2311, %v2312
        %2314 = vrot.lane.b32.xlu0 %v2310, 126
        %v2315 = vpop.permute.xlu0 %2314
        %2316 = vrot.lane.b32.xlu0 %v2313, 126
        %v2317 = vpop.permute.xlu0 %2316
        %2318 = vrot.lane.b32.xlu0 %v2309, 126
        %v2319 = vpop.permute.xlu0 %2318
        %2320 = vrot.lane.b32.xlu0 %v2312, 126
        %v2321 = vpop.permute.xlu0 %2320
        %v2322 = vsel %vm478, %v2315, %v2317
        %v2323 = vsel %vm478, %v2319, %v2321
        %v2328 = vadd.f32 %v2192, %v2322
        %v2329 = vadd.f32 %v2193, %v2317
        %v2330 = vadd.f32 %v2194, %v2323
        %v2331 = vadd.f32 %v2195, %v2321
        %s2332 = scalar_lea.vmem %s242, 64 [#allocation3]
        %v2333 = vld [vmem:[%s2332] sm:$0xff]
        %v2334 = vld [vmem:[%s2332 + $0x8] sm:$0xff]
        %v2335 = vld [vmem:[%s2332 + $0x10] sm:$0x3f]
        %v2336 = vld [vmem:[%s2332 + $0x18] sm:$0x3f]
        %s2337 = sld [smem:[#allocation7 + $0x12]]
        %v2338 = vstv %s2337
        %v2339 = vmul.f32 %v2338, %v2333
        %v2340 = vmul.f32 %v2338, %v2334
        %v2341 = vmul.f32 %v2338, %v2335
        %v2342 = vmul.f32 %v2338, %v2336
        %v2343 = vadd.f32 %v2226, %v2339
        %v2344 = vadd.f32 %v2227, %v2340
        %v2345 = vadd.f32 %v2228, %v2341
        %v2346 = vadd.f32 %v2229, %v2342
        %s2347 = sld [smem:[#allocation7 + $0x36]]
        %v2348 = vstv %s2347
        %v2349 = vmul.f32 %v2348, %v2333
        %v2350 = vmul.f32 %v2348, %v2334
        %v2351 = vmul.f32 %v2348, %v2335
        %v2352 = vmul.f32 %v2348, %v2336
        %v2353 = vadd.f32 %v2260, %v2349
        %v2354 = vadd.f32 %v2261, %v2350
        %v2355 = vadd.f32 %v2262, %v2351
        %v2356 = vadd.f32 %v2263, %v2352
        %s2357 = sld [smem:[#allocation7 + $0x5a]]
        %v2358 = vstv %s2357
        %v2359 = vmul.f32 %v2358, %v2333
        %v2360 = vmul.f32 %v2358, %v2334
        %v2361 = vmul.f32 %v2358, %v2335
        %v2362 = vmul.f32 %v2358, %v2336
        %v2363 = vadd.f32 %v2294, %v2359
        %v2364 = vadd.f32 %v2295, %v2360
        %v2365 = vadd.f32 %v2296, %v2361
        %v2366 = vadd.f32 %v2297, %v2362
        %s2367 = sld [smem:[#allocation7 + $0x7e]]
        %v2368 = vstv %s2367
        %v2369 = vmul.f32 %v2368, %v2333
        %v2370 = vmul.f32 %v2368, %v2334
        %v2371 = vmul.f32 %v2368, %v2335
        %v2372 = vmul.f32 %v2368, %v2336
        %v2373 = vadd.f32 %v2328, %v2369
        %v2374 = vadd.f32 %v2329, %v2370
        %v2375 = vadd.f32 %v2330, %v2371
        %v2376 = vadd.f32 %v2331, %v2372
        %s2377 = sld [smem:[#allocation7 + $0x13]]
        %v2378 = vstv %s2377
        %v2379 = vmul.f32 %v2378, %v2333
        %v2380 = vmul.f32 %v2378, %v2334
        %v2381 = vmul.f32 %v2378, %v2335
        %v2382 = vmul.f32 %v2378, %v2336
        %2387 = vrot.lane.b32.xlu0 %v2379, 127
        %v2388 = vpop.permute.xlu0 %2387
        %2389 = vrot.lane.b32.xlu0 %v2380, 127
        %v2390 = vpop.permute.xlu0 %2389
        %2391 = vrot.lane.b32.xlu0 %v2381, 127
        %v2392 = vpop.permute.xlu0 %2391
        %2393 = vrot.lane.b32.xlu0 %v2382, 127
        %v2394 = vpop.permute.xlu0 %2393
        %v2395 = vsel %vm365, %v2388, %v2390
        %v2396 = vsel %vm365, %v2392, %v2394
        %v2401 = vadd.f32 %v2343, %v2395
        %v2402 = vadd.f32 %v2344, %v2390
        %v2403 = vadd.f32 %v2345, %v2396
        %v2404 = vadd.f32 %v2346, %v2394
        %s2405 = sld [smem:[#allocation7 + $0x37]]
        %v2406 = vstv %s2405
        %v2407 = vmul.f32 %v2406, %v2333
        %v2408 = vmul.f32 %v2406, %v2334
        %v2409 = vmul.f32 %v2406, %v2335
        %v2410 = vmul.f32 %v2406, %v2336
        %2415 = vrot.lane.b32.xlu0 %v2407, 127
        %v2416 = vpop.permute.xlu0 %2415
        %2417 = vrot.lane.b32.xlu0 %v2408, 127
        %v2418 = vpop.permute.xlu0 %2417
        %2419 = vrot.lane.b32.xlu0 %v2409, 127
        %v2420 = vpop.permute.xlu0 %2419
        %2421 = vrot.lane.b32.xlu0 %v2410, 127
        %v2422 = vpop.permute.xlu0 %2421
        %v2423 = vsel %vm365, %v2416, %v2418
        %v2424 = vsel %vm365, %v2420, %v2422
        %v2429 = vadd.f32 %v2353, %v2423
        %v2430 = vadd.f32 %v2354, %v2418
        %v2431 = vadd.f32 %v2355, %v2424
        %v2432 = vadd.f32 %v2356, %v2422
        %s2433 = sld [smem:[#allocation7 + $0x5b]]
        %v2434 = vstv %s2433
        %v2435 = vmul.f32 %v2434, %v2333
        %v2436 = vmul.f32 %v2434, %v2334
        %v2437 = vmul.f32 %v2434, %v2335
        %v2438 = vmul.f32 %v2434, %v2336
        %2443 = vrot.lane.b32.xlu0 %v2435, 127
        %v2444 = vpop.permute.xlu0 %2443
        %2445 = vrot.lane.b32.xlu0 %v2436, 127
        %v2446 = vpop.permute.xlu0 %2445
        %2447 = vrot.lane.b32.xlu0 %v2437, 127
        %v2448 = vpop.permute.xlu0 %2447
        %2449 = vrot.lane.b32.xlu0 %v2438, 127
        %v2450 = vpop.permute.xlu0 %2449
        %v2451 = vsel %vm365, %v2444, %v2446
        %v2452 = vsel %vm365, %v2448, %v2450
        %v2457 = vadd.f32 %v2363, %v2451
        %v2458 = vadd.f32 %v2364, %v2446
        %v2459 = vadd.f32 %v2365, %v2452
        %v2460 = vadd.f32 %v2366, %v2450
        %s2461 = sld [smem:[#allocation7 + $0x7f]]
        %v2462 = vstv %s2461
        %v2463 = vmul.f32 %v2462, %v2333
        %v2464 = vmul.f32 %v2462, %v2334
        %v2465 = vmul.f32 %v2462, %v2335
        %v2466 = vmul.f32 %v2462, %v2336
        %2471 = vrot.lane.b32.xlu0 %v2463, 127
        %v2472 = vpop.permute.xlu0 %2471
        %2473 = vrot.lane.b32.xlu0 %v2464, 127
        %v2474 = vpop.permute.xlu0 %2473
        %2475 = vrot.lane.b32.xlu0 %v2465, 127
        %v2476 = vpop.permute.xlu0 %2475
        %2477 = vrot.lane.b32.xlu0 %v2466, 127
        %v2478 = vpop.permute.xlu0 %2477
        %v2479 = vsel %vm365, %v2472, %v2474
        %v2480 = vsel %vm365, %v2476, %v2478
        %v2485 = vadd.f32 %v2373, %v2479
        %v2486 = vadd.f32 %v2374, %v2474
        %v2487 = vadd.f32 %v2375, %v2480
        %v2488 = vadd.f32 %v2376, %v2478
        %s2489 = sld [smem:[#allocation7 + $0x14]]
        %v2490 = vstv %s2489
        %v2491 = vmul.f32 %v2490, %v2333
        %v2492 = vmul.f32 %v2490, %v2334
        %v2493 = vmul.f32 %v2490, %v2335
        %v2494 = vmul.f32 %v2490, %v2336
        %2499 = vrot.lane.b32.xlu0 %v2491, 126
        %v2500 = vpop.permute.xlu0 %2499
        %2501 = vrot.lane.b32.xlu0 %v2492, 126
        %v2502 = vpop.permute.xlu0 %2501
        %2503 = vrot.lane.b32.xlu0 %v2493, 126
        %v2504 = vpop.permute.xlu0 %2503
        %2505 = vrot.lane.b32.xlu0 %v2494, 126
        %v2506 = vpop.permute.xlu0 %2505
        %v2507 = vsel %vm478, %v2500, %v2502
        %v2508 = vsel %vm478, %v2504, %v2506
        %v2513 = vadd.f32 %v2401, %v2507
        %v2514 = vadd.f32 %v2402, %v2502
        %v2515 = vadd.f32 %v2403, %v2508
        %v2516 = vadd.f32 %v2404, %v2506
        %s2517 = sld [smem:[#allocation7 + $0x38]]
        %v2518 = vstv %s2517
        %v2519 = vmul.f32 %v2518, %v2333
        %v2520 = vmul.f32 %v2518, %v2334
        %v2521 = vmul.f32 %v2518, %v2335
        %v2522 = vmul.f32 %v2518, %v2336
        %2527 = vrot.lane.b32.xlu0 %v2519, 126
        %v2528 = vpop.permute.xlu0 %2527
        %2529 = vrot.lane.b32.xlu0 %v2520, 126
        %v2530 = vpop.permute.xlu0 %2529
        %2531 = vrot.lane.b32.xlu0 %v2521, 126
        %v2532 = vpop.permute.xlu0 %2531
        %2533 = vrot.lane.b32.xlu0 %v2522, 126
        %v2534 = vpop.permute.xlu0 %2533
        %v2535 = vsel %vm478, %v2528, %v2530
        %v2536 = vsel %vm478, %v2532, %v2534
        %v2541 = vadd.f32 %v2429, %v2535
        %v2542 = vadd.f32 %v2430, %v2530
        %v2543 = vadd.f32 %v2431, %v2536
        %v2544 = vadd.f32 %v2432, %v2534
        %s2545 = sld [smem:[#allocation7 + $0x5c]]
        %v2546 = vstv %s2545
        %v2547 = vmul.f32 %v2546, %v2333
        %v2548 = vmul.f32 %v2546, %v2334
        %v2549 = vmul.f32 %v2546, %v2335
        %v2550 = vmul.f32 %v2546, %v2336
        %2555 = vrot.lane.b32.xlu0 %v2547, 126
        %v2556 = vpop.permute.xlu0 %2555
        %2557 = vrot.lane.b32.xlu0 %v2548, 126
        %v2558 = vpop.permute.xlu0 %2557
        %2559 = vrot.lane.b32.xlu0 %v2549, 126
        %v2560 = vpop.permute.xlu0 %2559
        %2561 = vrot.lane.b32.xlu0 %v2550, 126
        %v2562 = vpop.permute.xlu0 %2561
        %v2563 = vsel %vm478, %v2556, %v2558
        %v2564 = vsel %vm478, %v2560, %v2562
        %v2569 = vadd.f32 %v2457, %v2563
        %v2570 = vadd.f32 %v2458, %v2558
        %v2571 = vadd.f32 %v2459, %v2564
        %v2572 = vadd.f32 %v2460, %v2562
        %s2573 = sld [smem:[#allocation7 + $0x80]]
        %v2574 = vstv %s2573
        %v2575 = vmul.f32 %v2574, %v2333
        %v2576 = vmul.f32 %v2574, %v2334
        %v2577 = vmul.f32 %v2574, %v2335
        %v2578 = vmul.f32 %v2574, %v2336
        %2583 = vrot.lane.b32.xlu0 %v2575, 126
        %v2584 = vpop.permute.xlu0 %2583
        %2585 = vrot.lane.b32.xlu0 %v2576, 126
        %v2586 = vpop.permute.xlu0 %2585
        %2587 = vrot.lane.b32.xlu0 %v2577, 126
        %v2588 = vpop.permute.xlu0 %2587
        %2589 = vrot.lane.b32.xlu0 %v2578, 126
        %v2590 = vpop.permute.xlu0 %2589
        %v2591 = vsel %vm478, %v2584, %v2586
        %v2592 = vsel %vm478, %v2588, %v2590
        %v2597 = vadd.f32 %v2485, %v2591
        %v2598 = vadd.f32 %v2486, %v2586
        %v2599 = vadd.f32 %v2487, %v2592
        %v2600 = vadd.f32 %v2488, %v2590
        %v2601 = vld [vmem:[%s2332] sm:$0xfe]
        %v2602 = vld [vmem:[%s2332 + $0x8] sm:$0xfe]
        %v2603 = vld [vmem:[%s2332 + $0x10] sm:$0x7f]
        %v2604 = vld [vmem:[%s2332 + $0x18] sm:$0x7f]
        %s2605 = sld [smem:[#allocation7 + $0x15]]
        %v2606 = vstv %s2605
        %v2607 = vmul.f32 %v2606, %v2601
        %v2608 = vmul.f32 %v2606, %v2602
        %v2609 = vmul.f32 %v2606, %v2603
        %v2610 = vmul.f32 %v2606, %v2604
        %v2615 = vrot.slane %v2607, 1
        %v2616 = vrot.slane %v2609, 1
        %v2617 = vsel %vm587, %v2615, %v2616
        %v2618 = vrot.slane %v2608, 1
        %v2619 = vrot.slane %v2610, 1
        %v2620 = vsel %vm587, %v2618, %v2619
        %v2625 = vadd.f32 %v2513, %v2617
        %v2626 = vadd.f32 %v2514, %v2620
        %v2627 = vadd.f32 %v2515, %v2616
        %v2628 = vadd.f32 %v2516, %v2619
        %s2629 = sld [smem:[#allocation7 + $0x39]]
        %v2630 = vstv %s2629
        %v2631 = vmul.f32 %v2630, %v2601
        %v2632 = vmul.f32 %v2630, %v2602
        %v2633 = vmul.f32 %v2630, %v2603
        %v2634 = vmul.f32 %v2630, %v2604
        %v2639 = vrot.slane %v2631, 1
        %v2640 = vrot.slane %v2633, 1
        %v2641 = vsel %vm587, %v2639, %v2640
        %v2642 = vrot.slane %v2632, 1
        %v2643 = vrot.slane %v2634, 1
        %v2644 = vsel %vm587, %v2642, %v2643
        %v2649 = vadd.f32 %v2541, %v2641
        %v2650 = vadd.f32 %v2542, %v2644
        %v2651 = vadd.f32 %v2543, %v2640
        %v2652 = vadd.f32 %v2544, %v2643
        %s2653 = sld [smem:[#allocation7 + $0x5d]]
        %v2654 = vstv %s2653
        %v2655 = vmul.f32 %v2654, %v2601
        %v2656 = vmul.f32 %v2654, %v2602
        %v2657 = vmul.f32 %v2654, %v2603
        %v2658 = vmul.f32 %v2654, %v2604
        %v2663 = vrot.slane %v2655, 1
        %v2664 = vrot.slane %v2657, 1
        %v2665 = vsel %vm587, %v2663, %v2664
        %v2666 = vrot.slane %v2656, 1
        %v2667 = vrot.slane %v2658, 1
        %v2668 = vsel %vm587, %v2666, %v2667
        %v2673 = vadd.f32 %v2569, %v2665
        %v2674 = vadd.f32 %v2570, %v2668
        %v2675 = vadd.f32 %v2571, %v2664
        %v2676 = vadd.f32 %v2572, %v2667
        %s2677 = sld [smem:[#allocation7 + $0x81]]
        %v2678 = vstv %s2677
        %v2679 = vmul.f32 %v2678, %v2601
        %v2680 = vmul.f32 %v2678, %v2602
        %v2681 = vmul.f32 %v2678, %v2603
        %v2682 = vmul.f32 %v2678, %v2604
        %v2687 = vrot.slane %v2679, 1
        %v2688 = vrot.slane %v2681, 1
        %v2689 = vsel %vm587, %v2687, %v2688
        %v2690 = vrot.slane %v2680, 1
        %v2691 = vrot.slane %v2682, 1
        %v2692 = vsel %vm587, %v2690, %v2691
        %v2697 = vadd.f32 %v2597, %v2689
        %v2698 = vadd.f32 %v2598, %v2692
        %v2699 = vadd.f32 %v2599, %v2688
        %v2700 = vadd.f32 %v2600, %v2691
        %s2701 = sld [smem:[#allocation7 + $0x16]]
        %v2702 = vstv %s2701
        %v2703 = vmul.f32 %v2702, %v2601
        %v2704 = vmul.f32 %v2702, %v2602
        %v2705 = vmul.f32 %v2702, %v2603
        %v2706 = vmul.f32 %v2702, %v2604
        %v2711 = vrot.slane %v2703, 1
        %v2712 = vrot.slane %v2705, 1
        %v2713 = vsel %vm587, %v2711, %v2712
        %v2714 = vrot.slane %v2704, 1
        %v2715 = vrot.slane %v2706, 1
        %v2716 = vsel %vm587, %v2714, %v2715
        %2717 = vrot.lane.b32.xlu0 %v2713, 127
        %v2718 = vpop.permute.xlu0 %2717
        %2719 = vrot.lane.b32.xlu0 %v2716, 127
        %v2720 = vpop.permute.xlu0 %2719
        %2721 = vrot.lane.b32.xlu0 %v2712, 127
        %v2722 = vpop.permute.xlu0 %2721
        %2723 = vrot.lane.b32.xlu0 %v2715, 127
        %v2724 = vpop.permute.xlu0 %2723
        %v2725 = vsel %vm365, %v2718, %v2720
        %v2726 = vsel %vm365, %v2722, %v2724
        %v2731 = vadd.f32 %v2625, %v2725
        %v2732 = vadd.f32 %v2626, %v2720
        %v2733 = vadd.f32 %v2627, %v2726
        %v2734 = vadd.f32 %v2628, %v2724
        %s2735 = sld [smem:[#allocation7 + $0x3a]]
        %v2736 = vstv %s2735
        %v2737 = vmul.f32 %v2736, %v2601
        %v2738 = vmul.f32 %v2736, %v2602
        %v2739 = vmul.f32 %v2736, %v2603
        %v2740 = vmul.f32 %v2736, %v2604
        %v2745 = vrot.slane %v2737, 1
        %v2746 = vrot.slane %v2739, 1
        %v2747 = vsel %vm587, %v2745, %v2746
        %v2748 = vrot.slane %v2738, 1
        %v2749 = vrot.slane %v2740, 1
        %v2750 = vsel %vm587, %v2748, %v2749
        %2751 = vrot.lane.b32.xlu0 %v2747, 127
        %v2752 = vpop.permute.xlu0 %2751
        %2753 = vrot.lane.b32.xlu0 %v2750, 127
        %v2754 = vpop.permute.xlu0 %2753
        %2755 = vrot.lane.b32.xlu0 %v2746, 127
        %v2756 = vpop.permute.xlu0 %2755
        %2757 = vrot.lane.b32.xlu0 %v2749, 127
        %v2758 = vpop.permute.xlu0 %2757
        %v2759 = vsel %vm365, %v2752, %v2754
        %v2760 = vsel %vm365, %v2756, %v2758
        %v2765 = vadd.f32 %v2649, %v2759
        %v2766 = vadd.f32 %v2650, %v2754
        %v2767 = vadd.f32 %v2651, %v2760
        %v2768 = vadd.f32 %v2652, %v2758
        %s2769 = sld [smem:[#allocation7 + $0x5e]]
        %v2770 = vstv %s2769
        %v2771 = vmul.f32 %v2770, %v2601
        %v2772 = vmul.f32 %v2770, %v2602
        %v2773 = vmul.f32 %v2770, %v2603
        %v2774 = vmul.f32 %v2770, %v2604
        %v2779 = vrot.slane %v2771, 1
        %v2780 = vrot.slane %v2773, 1
        %v2781 = vsel %vm587, %v2779, %v2780
        %v2782 = vrot.slane %v2772, 1
        %v2783 = vrot.slane %v2774, 1
        %v2784 = vsel %vm587, %v2782, %v2783
        %2785 = vrot.lane.b32.xlu0 %v2781, 127
        %v2786 = vpop.permute.xlu0 %2785
        %2787 = vrot.lane.b32.xlu0 %v2784, 127
        %v2788 = vpop.permute.xlu0 %2787
        %2789 = vrot.lane.b32.xlu0 %v2780, 127
        %v2790 = vpop.permute.xlu0 %2789
        %2791 = vrot.lane.b32.xlu0 %v2783, 127
        %v2792 = vpop.permute.xlu0 %2791
        %v2793 = vsel %vm365, %v2786, %v2788
        %v2794 = vsel %vm365, %v2790, %v2792
        %v2799 = vadd.f32 %v2673, %v2793
        %v2800 = vadd.f32 %v2674, %v2788
        %v2801 = vadd.f32 %v2675, %v2794
        %v2802 = vadd.f32 %v2676, %v2792
        %s2803 = sld [smem:[#allocation7 + $0x82]]
        %v2804 = vstv %s2803
        %v2805 = vmul.f32 %v2804, %v2601
        %v2806 = vmul.f32 %v2804, %v2602
        %v2807 = vmul.f32 %v2804, %v2603
        %v2808 = vmul.f32 %v2804, %v2604
        %v2813 = vrot.slane %v2805, 1
        %v2814 = vrot.slane %v2807, 1
        %v2815 = vsel %vm587, %v2813, %v2814
        %v2816 = vrot.slane %v2806, 1
        %v2817 = vrot.slane %v2808, 1
        %v2818 = vsel %vm587, %v2816, %v2817
        %2819 = vrot.lane.b32.xlu0 %v2815, 127
        %v2820 = vpop.permute.xlu0 %2819
        %2821 = vrot.lane.b32.xlu0 %v2818, 127
        %v2822 = vpop.permute.xlu0 %2821
        %2823 = vrot.lane.b32.xlu0 %v2814, 127
        %v2824 = vpop.permute.xlu0 %2823
        %2825 = vrot.lane.b32.xlu0 %v2817, 127
        %v2826 = vpop.permute.xlu0 %2825
        %v2827 = vsel %vm365, %v2820, %v2822
        %v2828 = vsel %vm365, %v2824, %v2826
        %v2833 = vadd.f32 %v2697, %v2827
        %v2834 = vadd.f32 %v2698, %v2822
        %v2835 = vadd.f32 %v2699, %v2828
        %v2836 = vadd.f32 %v2700, %v2826
        %s2837 = sld [smem:[#allocation7 + $0x17]]
        %v2838 = vstv %s2837
        %v2839 = vmul.f32 %v2838, %v2601
        %v2840 = vmul.f32 %v2838, %v2602
        %v2841 = vmul.f32 %v2838, %v2603
        %v2842 = vmul.f32 %v2838, %v2604
        %v2847 = vrot.slane %v2839, 1
        %v2848 = vrot.slane %v2841, 1
        %v2849 = vsel %vm587, %v2847, %v2848
        %v2850 = vrot.slane %v2840, 1
        %v2851 = vrot.slane %v2842, 1
        %v2852 = vsel %vm587, %v2850, %v2851
        %2853 = vrot.lane.b32.xlu0 %v2849, 126
        %v2854 = vpop.permute.xlu0 %2853
        %2855 = vrot.lane.b32.xlu0 %v2852, 126
        %v2856 = vpop.permute.xlu0 %2855
        %2857 = vrot.lane.b32.xlu0 %v2848, 126
        %v2858 = vpop.permute.xlu0 %2857
        %2859 = vrot.lane.b32.xlu0 %v2851, 126
        %v2860 = vpop.permute.xlu0 %2859
        %v2861 = vsel %vm478, %v2854, %v2856
        %v2862 = vsel %vm478, %v2858, %v2860
        %v2867 = vadd.f32 %v2731, %v2861
        %v2868 = vadd.f32 %v2732, %v2856
        %v2869 = vadd.f32 %v2733, %v2862
        %v2870 = vadd.f32 %v2734, %v2860
        %s2871 = sld [smem:[#allocation7 + $0x3b]]
        %v2872 = vstv %s2871
        %v2873 = vmul.f32 %v2872, %v2601
        %v2874 = vmul.f32 %v2872, %v2602
        %v2875 = vmul.f32 %v2872, %v2603
        %v2876 = vmul.f32 %v2872, %v2604
        %v2881 = vrot.slane %v2873, 1
        %v2882 = vrot.slane %v2875, 1
        %v2883 = vsel %vm587, %v2881, %v2882
        %v2884 = vrot.slane %v2874, 1
        %v2885 = vrot.slane %v2876, 1
        %v2886 = vsel %vm587, %v2884, %v2885
        %2887 = vrot.lane.b32.xlu0 %v2883, 126
        %v2888 = vpop.permute.xlu0 %2887
        %2889 = vrot.lane.b32.xlu0 %v2886, 126
        %v2890 = vpop.permute.xlu0 %2889
        %2891 = vrot.lane.b32.xlu0 %v2882, 126
        %v2892 = vpop.permute.xlu0 %2891
        %2893 = vrot.lane.b32.xlu0 %v2885, 126
        %v2894 = vpop.permute.xlu0 %2893
        %v2895 = vsel %vm478, %v2888, %v2890
        %v2896 = vsel %vm478, %v2892, %v2894
        %v2901 = vadd.f32 %v2765, %v2895
        %v2902 = vadd.f32 %v2766, %v2890
        %v2903 = vadd.f32 %v2767, %v2896
        %v2904 = vadd.f32 %v2768, %v2894
        %s2905 = sld [smem:[#allocation7 + $0x5f]]
        %v2906 = vstv %s2905
        %v2907 = vmul.f32 %v2906, %v2601
        %v2908 = vmul.f32 %v2906, %v2602
        %v2909 = vmul.f32 %v2906, %v2603
        %v2910 = vmul.f32 %v2906, %v2604
        %v2915 = vrot.slane %v2907, 1
        %v2916 = vrot.slane %v2909, 1
        %v2917 = vsel %vm587, %v2915, %v2916
        %v2918 = vrot.slane %v2908, 1
        %v2919 = vrot.slane %v2910, 1
        %v2920 = vsel %vm587, %v2918, %v2919
        %2921 = vrot.lane.b32.xlu0 %v2917, 126
        %v2922 = vpop.permute.xlu0 %2921
        %2923 = vrot.lane.b32.xlu0 %v2920, 126
        %v2924 = vpop.permute.xlu0 %2923
        %2925 = vrot.lane.b32.xlu0 %v2916, 126
        %v2926 = vpop.permute.xlu0 %2925
        %2927 = vrot.lane.b32.xlu0 %v2919, 126
        %v2928 = vpop.permute.xlu0 %2927
        %v2929 = vsel %vm478, %v2922, %v2924
        %v2930 = vsel %vm478, %v2926, %v2928
        %v2935 = vadd.f32 %v2799, %v2929
        %v2936 = vadd.f32 %v2800, %v2924
        %v2937 = vadd.f32 %v2801, %v2930
        %v2938 = vadd.f32 %v2802, %v2928
        %s2939 = sld [smem:[#allocation7 + $0x83]]
        %v2940 = vstv %s2939
        %v2941 = vmul.f32 %v2940, %v2601
        %v2942 = vmul.f32 %v2940, %v2602
        %v2943 = vmul.f32 %v2940, %v2603
        %v2944 = vmul.f32 %v2940, %v2604
        %v2949 = vrot.slane %v2941, 1
        %v2950 = vrot.slane %v2943, 1
        %v2951 = vsel %vm587, %v2949, %v2950
        %v2952 = vrot.slane %v2942, 1
        %v2953 = vrot.slane %v2944, 1
        %v2954 = vsel %vm587, %v2952, %v2953
        %2955 = vrot.lane.b32.xlu0 %v2951, 126
        %v2956 = vpop.permute.xlu0 %2955
        %2957 = vrot.lane.b32.xlu0 %v2954, 126
        %v2958 = vpop.permute.xlu0 %2957
        %2959 = vrot.lane.b32.xlu0 %v2950, 126
        %v2960 = vpop.permute.xlu0 %2959
        %2961 = vrot.lane.b32.xlu0 %v2953, 126
        %v2962 = vpop.permute.xlu0 %2961
        %v2963 = vsel %vm478, %v2956, %v2958
        %v2964 = vsel %vm478, %v2960, %v2962
        %v2969 = vadd.f32 %v2833, %v2963
        %v2970 = vadd.f32 %v2834, %v2958
        %v2971 = vadd.f32 %v2835, %v2964
        %v2972 = vadd.f32 %v2836, %v2962
        %v2973 = vld [vmem:[%s2332] sm:$0xfc]
        %v2974 = vld [vmem:[%s2332 + $0x8] sm:$0xfc]
        %v2975 = vld [vmem:[%s2332 + $0x10] sm:$0xff]
        %v2976 = vld [vmem:[%s2332 + $0x18] sm:$0xff]
        %s2977 = sld [smem:[#allocation7 + $0x18]]
        %v2978 = vstv %s2977
        %v2979 = vmul.f32 %v2978, %v2973
        %v2980 = vmul.f32 %v2978, %v2974
        %v2981 = vmul.f32 %v2978, %v2975
        %v2982 = vmul.f32 %v2978, %v2976
        %v2987 = vrot.slane %v2979, 2
        %v2988 = vrot.slane %v2981, 2
        %v2989 = vsel %vm960, %v2987, %v2988
        %v2990 = vrot.slane %v2980, 2
        %v2991 = vrot.slane %v2982, 2
        %v2992 = vsel %vm960, %v2990, %v2991
        %v2997 = vadd.f32 %v2867, %v2989
        %v2998 = vadd.f32 %v2868, %v2992
        %v2999 = vadd.f32 %v2869, %v2988
        %v3000 = vadd.f32 %v2870, %v2991
        %s3001 = sld [smem:[#allocation7 + $0x3c]]
        %v3002 = vstv %s3001
        %v3003 = vmul.f32 %v3002, %v2973
        %v3004 = vmul.f32 %v3002, %v2974
        %v3005 = vmul.f32 %v3002, %v2975
        %v3006 = vmul.f32 %v3002, %v2976
        %v3011 = vrot.slane %v3003, 2
        %v3012 = vrot.slane %v3005, 2
        %v3013 = vsel %vm960, %v3011, %v3012
        %v3014 = vrot.slane %v3004, 2
        %v3015 = vrot.slane %v3006, 2
        %v3016 = vsel %vm960, %v3014, %v3015
        %v3021 = vadd.f32 %v2901, %v3013
        %v3022 = vadd.f32 %v2902, %v3016
        %v3023 = vadd.f32 %v2903, %v3012
        %v3024 = vadd.f32 %v2904, %v3015
        %s3025 = sld [smem:[#allocation7 + $0x60]]
        %v3026 = vstv %s3025
        %v3027 = vmul.f32 %v3026, %v2973
        %v3028 = vmul.f32 %v3026, %v2974
        %v3029 = vmul.f32 %v3026, %v2975
        %v3030 = vmul.f32 %v3026, %v2976
        %v3035 = vrot.slane %v3027, 2
        %v3036 = vrot.slane %v3029, 2
        %v3037 = vsel %vm960, %v3035, %v3036
        %v3038 = vrot.slane %v3028, 2
        %v3039 = vrot.slane %v3030, 2
        %v3040 = vsel %vm960, %v3038, %v3039
        %v3045 = vadd.f32 %v2935, %v3037
        %v3046 = vadd.f32 %v2936, %v3040
        %v3047 = vadd.f32 %v2937, %v3036
        %v3048 = vadd.f32 %v2938, %v3039
        %s3049 = sld [smem:[#allocation7 + $0x84]]
        %v3050 = vstv %s3049
        %v3051 = vmul.f32 %v3050, %v2973
        %v3052 = vmul.f32 %v3050, %v2974
        %v3053 = vmul.f32 %v3050, %v2975
        %v3054 = vmul.f32 %v3050, %v2976
        %v3059 = vrot.slane %v3051, 2
        %v3060 = vrot.slane %v3053, 2
        %v3061 = vsel %vm960, %v3059, %v3060
        %v3062 = vrot.slane %v3052, 2
        %v3063 = vrot.slane %v3054, 2
        %v3064 = vsel %vm960, %v3062, %v3063
        %v3069 = vadd.f32 %v2969, %v3061
        %v3070 = vadd.f32 %v2970, %v3064
        %v3071 = vadd.f32 %v2971, %v3060
        %v3072 = vadd.f32 %v2972, %v3063
        %s3073 = sld [smem:[#allocation7 + $0x19]]
        %v3074 = vstv %s3073
        %v3075 = vmul.f32 %v3074, %v2973
        %v3076 = vmul.f32 %v3074, %v2974
        %v3077 = vmul.f32 %v3074, %v2975
        %v3078 = vmul.f32 %v3074, %v2976
        %v3083 = vrot.slane %v3075, 2
        %v3084 = vrot.slane %v3077, 2
        %v3085 = vsel %vm960, %v3083, %v3084
        %v3086 = vrot.slane %v3076, 2
        %v3087 = vrot.slane %v3078, 2
        %v3088 = vsel %vm960, %v3086, %v3087
        %3089 = vrot.lane.b32.xlu0 %v3085, 127
        %v3090 = vpop.permute.xlu0 %3089
        %3091 = vrot.lane.b32.xlu0 %v3088, 127
        %v3092 = vpop.permute.xlu0 %3091
        %3093 = vrot.lane.b32.xlu0 %v3084, 127
        %v3094 = vpop.permute.xlu0 %3093
        %3095 = vrot.lane.b32.xlu0 %v3087, 127
        %v3096 = vpop.permute.xlu0 %3095
        %v3097 = vsel %vm365, %v3090, %v3092
        %v3098 = vsel %vm365, %v3094, %v3096
        %v3103 = vadd.f32 %v2997, %v3097
        %v3104 = vadd.f32 %v2998, %v3092
        %v3105 = vadd.f32 %v2999, %v3098
        %v3106 = vadd.f32 %v3000, %v3096
        %s3107 = sld [smem:[#allocation7 + $0x3d]]
        %v3108 = vstv %s3107
        %v3109 = vmul.f32 %v3108, %v2973
        %v3110 = vmul.f32 %v3108, %v2974
        %v3111 = vmul.f32 %v3108, %v2975
        %v3112 = vmul.f32 %v3108, %v2976
        %v3117 = vrot.slane %v3109, 2
        %v3118 = vrot.slane %v3111, 2
        %v3119 = vsel %vm960, %v3117, %v3118
        %v3120 = vrot.slane %v3110, 2
        %v3121 = vrot.slane %v3112, 2
        %v3122 = vsel %vm960, %v3120, %v3121
        %3123 = vrot.lane.b32.xlu0 %v3119, 127
        %v3124 = vpop.permute.xlu0 %3123
        %3125 = vrot.lane.b32.xlu0 %v3122, 127
        %v3126 = vpop.permute.xlu0 %3125
        %3127 = vrot.lane.b32.xlu0 %v3118, 127
        %v3128 = vpop.permute.xlu0 %3127
        %3129 = vrot.lane.b32.xlu0 %v3121, 127
        %v3130 = vpop.permute.xlu0 %3129
        %v3131 = vsel %vm365, %v3124, %v3126
        %v3132 = vsel %vm365, %v3128, %v3130
        %v3137 = vadd.f32 %v3021, %v3131
        %v3138 = vadd.f32 %v3022, %v3126
        %v3139 = vadd.f32 %v3023, %v3132
        %v3140 = vadd.f32 %v3024, %v3130
        %s3141 = sld [smem:[#allocation7 + $0x61]]
        %v3142 = vstv %s3141
        %v3143 = vmul.f32 %v3142, %v2973
        %v3144 = vmul.f32 %v3142, %v2974
        %v3145 = vmul.f32 %v3142, %v2975
        %v3146 = vmul.f32 %v3142, %v2976
        %v3151 = vrot.slane %v3143, 2
        %v3152 = vrot.slane %v3145, 2
        %v3153 = vsel %vm960, %v3151, %v3152
        %v3154 = vrot.slane %v3144, 2
        %v3155 = vrot.slane %v3146, 2
        %v3156 = vsel %vm960, %v3154, %v3155
        %3157 = vrot.lane.b32.xlu0 %v3153, 127
        %v3158 = vpop.permute.xlu0 %3157
        %3159 = vrot.lane.b32.xlu0 %v3156, 127
        %v3160 = vpop.permute.xlu0 %3159
        %3161 = vrot.lane.b32.xlu0 %v3152, 127
        %v3162 = vpop.permute.xlu0 %3161
        %3163 = vrot.lane.b32.xlu0 %v3155, 127
        %v3164 = vpop.permute.xlu0 %3163
        %v3165 = vsel %vm365, %v3158, %v3160
        %v3166 = vsel %vm365, %v3162, %v3164
        %v3171 = vadd.f32 %v3045, %v3165
        %v3172 = vadd.f32 %v3046, %v3160
        %v3173 = vadd.f32 %v3047, %v3166
        %v3174 = vadd.f32 %v3048, %v3164
        %s3175 = sld [smem:[#allocation7 + $0x85]]
        %v3176 = vstv %s3175
        %v3177 = vmul.f32 %v3176, %v2973
        %v3178 = vmul.f32 %v3176, %v2974
        %v3179 = vmul.f32 %v3176, %v2975
        %v3180 = vmul.f32 %v3176, %v2976
        %v3185 = vrot.slane %v3177, 2
        %v3186 = vrot.slane %v3179, 2
        %v3187 = vsel %vm960, %v3185, %v3186
        %v3188 = vrot.slane %v3178, 2
        %v3189 = vrot.slane %v3180, 2
        %v3190 = vsel %vm960, %v3188, %v3189
        %3191 = vrot.lane.b32.xlu0 %v3187, 127
        %v3192 = vpop.permute.xlu0 %3191
        %3193 = vrot.lane.b32.xlu0 %v3190, 127
        %v3194 = vpop.permute.xlu0 %3193
        %3195 = vrot.lane.b32.xlu0 %v3186, 127
        %v3196 = vpop.permute.xlu0 %3195
        %3197 = vrot.lane.b32.xlu0 %v3189, 127
        %v3198 = vpop.permute.xlu0 %3197
        %v3199 = vsel %vm365, %v3192, %v3194
        %v3200 = vsel %vm365, %v3196, %v3198
        %v3205 = vadd.f32 %v3069, %v3199
        %v3206 = vadd.f32 %v3070, %v3194
        %v3207 = vadd.f32 %v3071, %v3200
        %v3208 = vadd.f32 %v3072, %v3198
        %s3209 = sld [smem:[#allocation7 + $0x1a]]
        %v3210 = vstv %s3209
        %v3211 = vmul.f32 %v3210, %v2973
        %v3212 = vmul.f32 %v3210, %v2974
        %v3213 = vmul.f32 %v3210, %v2975
        %v3214 = vmul.f32 %v3210, %v2976
        %v3219 = vrot.slane %v3211, 2
        %v3220 = vrot.slane %v3213, 2
        %v3221 = vsel %vm960, %v3219, %v3220
        %v3222 = vrot.slane %v3212, 2
        %v3223 = vrot.slane %v3214, 2
        %v3224 = vsel %vm960, %v3222, %v3223
        %3225 = vrot.lane.b32.xlu0 %v3221, 126
        %v3226 = vpop.permute.xlu0 %3225
        %3227 = vrot.lane.b32.xlu0 %v3224, 126
        %v3228 = vpop.permute.xlu0 %3227
        %3229 = vrot.lane.b32.xlu0 %v3220, 126
        %v3230 = vpop.permute.xlu0 %3229
        %3231 = vrot.lane.b32.xlu0 %v3223, 126
        %v3232 = vpop.permute.xlu0 %3231
        %v3233 = vsel %vm478, %v3226, %v3228
        %v3234 = vsel %vm478, %v3230, %v3232
        %v3239 = vadd.f32 %v3103, %v3233
        %v3240 = vadd.f32 %v3104, %v3228
        %v3241 = vadd.f32 %v3105, %v3234
        %v3242 = vadd.f32 %v3106, %v3232
        %s3243 = sld [smem:[#allocation7 + $0x3e]]
        %v3244 = vstv %s3243
        %v3245 = vmul.f32 %v3244, %v2973
        %v3246 = vmul.f32 %v3244, %v2974
        %v3247 = vmul.f32 %v3244, %v2975
        %v3248 = vmul.f32 %v3244, %v2976
        %v3253 = vrot.slane %v3245, 2
        %v3254 = vrot.slane %v3247, 2
        %v3255 = vsel %vm960, %v3253, %v3254
        %v3256 = vrot.slane %v3246, 2
        %v3257 = vrot.slane %v3248, 2
        %v3258 = vsel %vm960, %v3256, %v3257
        %3259 = vrot.lane.b32.xlu0 %v3255, 126
        %v3260 = vpop.permute.xlu0 %3259
        %3261 = vrot.lane.b32.xlu0 %v3258, 126
        %v3262 = vpop.permute.xlu0 %3261
        %3263 = vrot.lane.b32.xlu0 %v3254, 126
        %v3264 = vpop.permute.xlu0 %3263
        %3265 = vrot.lane.b32.xlu0 %v3257, 126
        %v3266 = vpop.permute.xlu0 %3265
        %v3267 = vsel %vm478, %v3260, %v3262
        %v3268 = vsel %vm478, %v3264, %v3266
        %v3273 = vadd.f32 %v3137, %v3267
        %v3274 = vadd.f32 %v3138, %v3262
        %v3275 = vadd.f32 %v3139, %v3268
        %v3276 = vadd.f32 %v3140, %v3266
        %s3277 = sld [smem:[#allocation7 + $0x62]]
        %v3278 = vstv %s3277
        %v3279 = vmul.f32 %v3278, %v2973
        %v3280 = vmul.f32 %v3278, %v2974
        %v3281 = vmul.f32 %v3278, %v2975
        %v3282 = vmul.f32 %v3278, %v2976
        %v3287 = vrot.slane %v3279, 2
        %v3288 = vrot.slane %v3281, 2
        %v3289 = vsel %vm960, %v3287, %v3288
        %v3290 = vrot.slane %v3280, 2
        %v3291 = vrot.slane %v3282, 2
        %v3292 = vsel %vm960, %v3290, %v3291
        %3293 = vrot.lane.b32.xlu0 %v3289, 126
        %v3294 = vpop.permute.xlu0 %3293
        %3295 = vrot.lane.b32.xlu0 %v3292, 126
        %v3296 = vpop.permute.xlu0 %3295
        %3297 = vrot.lane.b32.xlu0 %v3288, 126
        %v3298 = vpop.permute.xlu0 %3297
        %3299 = vrot.lane.b32.xlu0 %v3291, 126
        %v3300 = vpop.permute.xlu0 %3299
        %v3301 = vsel %vm478, %v3294, %v3296
        %v3302 = vsel %vm478, %v3298, %v3300
        %v3307 = vadd.f32 %v3171, %v3301
        %v3308 = vadd.f32 %v3172, %v3296
        %v3309 = vadd.f32 %v3173, %v3302
        %v3310 = vadd.f32 %v3174, %v3300
        %s3311 = sld [smem:[#allocation7 + $0x86]]
        %v3312 = vstv %s3311
        %v3313 = vmul.f32 %v3312, %v2973
        %v3314 = vmul.f32 %v3312, %v2974
        %v3315 = vmul.f32 %v3312, %v2975
        %v3316 = vmul.f32 %v3312, %v2976
        %v3321 = vrot.slane %v3313, 2
        %v3322 = vrot.slane %v3315, 2
        %v3323 = vsel %vm960, %v3321, %v3322
        %v3324 = vrot.slane %v3314, 2
        %v3325 = vrot.slane %v3316, 2
        %v3326 = vsel %vm960, %v3324, %v3325
        %3327 = vrot.lane.b32.xlu0 %v3323, 126
        %v3328 = vpop.permute.xlu0 %3327
        %3329 = vrot.lane.b32.xlu0 %v3326, 126
        %v3330 = vpop.permute.xlu0 %3329
        %3331 = vrot.lane.b32.xlu0 %v3322, 126
        %v3332 = vpop.permute.xlu0 %3331
        %3333 = vrot.lane.b32.xlu0 %v3325, 126
        %v3334 = vpop.permute.xlu0 %3333
        %v3335 = vsel %vm478, %v3328, %v3330
        %v3336 = vsel %vm478, %v3332, %v3334
        %v3341 = vadd.f32 %v3205, %v3335
        %v3342 = vadd.f32 %v3206, %v3330
        %v3343 = vadd.f32 %v3207, %v3336
        %v3344 = vadd.f32 %v3208, %v3334
        %s3345 = scalar_lea.vmem %s242, 96 [#allocation3]
        %v3346 = vld [vmem:[%s3345] sm:$0xff]
        %v3347 = vld [vmem:[%s3345 + $0x8] sm:$0xff]
        %v3348 = vld [vmem:[%s3345 + $0x10] sm:$0x3f]
        %v3349 = vld [vmem:[%s3345 + $0x18] sm:$0x3f]
        %s3350 = sld [smem:[#allocation7 + $0x1b]]
        %v3351 = vstv %s3350
        %v3352 = vmul.f32 %v3351, %v3346
        %v3353 = vmul.f32 %v3351, %v3347
        %v3354 = vmul.f32 %v3351, %v3348
        %v3355 = vmul.f32 %v3351, %v3349
        %v3356 = vadd.f32 %v3239, %v3352
        %v3357 = vadd.f32 %v3240, %v3353
        %v3358 = vadd.f32 %v3241, %v3354
        %v3359 = vadd.f32 %v3242, %v3355
        %s3360 = sld [smem:[#allocation7 + $0x3f]]
        %v3361 = vstv %s3360
        %v3362 = vmul.f32 %v3361, %v3346
        %v3363 = vmul.f32 %v3361, %v3347
        %v3364 = vmul.f32 %v3361, %v3348
        %v3365 = vmul.f32 %v3361, %v3349
        %v3366 = vadd.f32 %v3273, %v3362
        %v3367 = vadd.f32 %v3274, %v3363
        %v3368 = vadd.f32 %v3275, %v3364
        %v3369 = vadd.f32 %v3276, %v3365
        %s3370 = sld [smem:[#allocation7 + $0x63]]
        %v3371 = vstv %s3370
        %v3372 = vmul.f32 %v3371, %v3346
        %v3373 = vmul.f32 %v3371, %v3347
        %v3374 = vmul.f32 %v3371, %v3348
        %v3375 = vmul.f32 %v3371, %v3349
        %v3376 = vadd.f32 %v3307, %v3372
        %v3377 = vadd.f32 %v3308, %v3373
        %v3378 = vadd.f32 %v3309, %v3374
        %v3379 = vadd.f32 %v3310, %v3375
        %s3380 = sld [smem:[#allocation7 + $0x87]]
        %v3381 = vstv %s3380
        %v3382 = vmul.f32 %v3381, %v3346
        %v3383 = vmul.f32 %v3381, %v3347
        %v3384 = vmul.f32 %v3381, %v3348
        %v3385 = vmul.f32 %v3381, %v3349
        %v3386 = vadd.f32 %v3341, %v3382
        %v3387 = vadd.f32 %v3342, %v3383
        %v3388 = vadd.f32 %v3343, %v3384
        %v3389 = vadd.f32 %v3344, %v3385
        %s3390 = sld [smem:[#allocation7 + $0x1c]]
        %v3391 = vstv %s3390
        %v3392 = vmul.f32 %v3391, %v3346
        %v3393 = vmul.f32 %v3391, %v3347
        %v3394 = vmul.f32 %v3391, %v3348
        %v3395 = vmul.f32 %v3391, %v3349
        %3400 = vrot.lane.b32.xlu0 %v3392, 127
        %v3401 = vpop.permute.xlu0 %3400
        %3402 = vrot.lane.b32.xlu0 %v3393, 127
        %v3403 = vpop.permute.xlu0 %3402
        %3404 = vrot.lane.b32.xlu0 %v3394, 127
        %v3405 = vpop.permute.xlu0 %3404
        %3406 = vrot.lane.b32.xlu0 %v3395, 127
        %v3407 = vpop.permute.xlu0 %3406
        %v3408 = vsel %vm365, %v3401, %v3403
        %v3409 = vsel %vm365, %v3405, %v3407
        %v3414 = vadd.f32 %v3356, %v3408
        %v3415 = vadd.f32 %v3357, %v3403
        %v3416 = vadd.f32 %v3358, %v3409
        %v3417 = vadd.f32 %v3359, %v3407
        %s3418 = sld [smem:[#allocation7 + $0x40]]
        %v3419 = vstv %s3418
        %v3420 = vmul.f32 %v3419, %v3346
        %v3421 = vmul.f32 %v3419, %v3347
        %v3422 = vmul.f32 %v3419, %v3348
        %v3423 = vmul.f32 %v3419, %v3349
        %3428 = vrot.lane.b32.xlu0 %v3420, 127
        %v3429 = vpop.permute.xlu0 %3428
        %3430 = vrot.lane.b32.xlu0 %v3421, 127
        %v3431 = vpop.permute.xlu0 %3430
        %3432 = vrot.lane.b32.xlu0 %v3422, 127
        %v3433 = vpop.permute.xlu0 %3432
        %3434 = vrot.lane.b32.xlu0 %v3423, 127
        %v3435 = vpop.permute.xlu0 %3434
        %v3436 = vsel %vm365, %v3429, %v3431
        %v3437 = vsel %vm365, %v3433, %v3435
        %v3442 = vadd.f32 %v3366, %v3436
        %v3443 = vadd.f32 %v3367, %v3431
        %v3444 = vadd.f32 %v3368, %v3437
        %v3445 = vadd.f32 %v3369, %v3435
        %s3446 = sld [smem:[#allocation7 + $0x64]]
        %v3447 = vstv %s3446
        %v3448 = vmul.f32 %v3447, %v3346
        %v3449 = vmul.f32 %v3447, %v3347
        %v3450 = vmul.f32 %v3447, %v3348
        %v3451 = vmul.f32 %v3447, %v3349
        %3456 = vrot.lane.b32.xlu0 %v3448, 127
        %v3457 = vpop.permute.xlu0 %3456
        %3458 = vrot.lane.b32.xlu0 %v3449, 127
        %v3459 = vpop.permute.xlu0 %3458
        %3460 = vrot.lane.b32.xlu0 %v3450, 127
        %v3461 = vpop.permute.xlu0 %3460
        %3462 = vrot.lane.b32.xlu0 %v3451, 127
        %v3463 = vpop.permute.xlu0 %3462
        %v3464 = vsel %vm365, %v3457, %v3459
        %v3465 = vsel %vm365, %v3461, %v3463
        %v3470 = vadd.f32 %v3376, %v3464
        %v3471 = vadd.f32 %v3377, %v3459
        %v3472 = vadd.f32 %v3378, %v3465
        %v3473 = vadd.f32 %v3379, %v3463
        %s3474 = sld [smem:[#allocation7 + $0x88]]
        %v3475 = vstv %s3474
        %v3476 = vmul.f32 %v3475, %v3346
        %v3477 = vmul.f32 %v3475, %v3347
        %v3478 = vmul.f32 %v3475, %v3348
        %v3479 = vmul.f32 %v3475, %v3349
        %3484 = vrot.lane.b32.xlu0 %v3476, 127
        %v3485 = vpop.permute.xlu0 %3484
        %3486 = vrot.lane.b32.xlu0 %v3477, 127
        %v3487 = vpop.permute.xlu0 %3486
        %3488 = vrot.lane.b32.xlu0 %v3478, 127
        %v3489 = vpop.permute.xlu0 %3488
        %3490 = vrot.lane.b32.xlu0 %v3479, 127
        %v3491 = vpop.permute.xlu0 %3490
        %v3492 = vsel %vm365, %v3485, %v3487
        %v3493 = vsel %vm365, %v3489, %v3491
        %v3498 = vadd.f32 %v3386, %v3492
        %v3499 = vadd.f32 %v3387, %v3487
        %v3500 = vadd.f32 %v3388, %v3493
        %v3501 = vadd.f32 %v3389, %v3491
        %s3502 = sld [smem:[#allocation7 + $0x1d]]
        %v3503 = vstv %s3502
        %v3504 = vmul.f32 %v3503, %v3346
        %v3505 = vmul.f32 %v3503, %v3347
        %v3506 = vmul.f32 %v3503, %v3348
        %v3507 = vmul.f32 %v3503, %v3349
        %3512 = vrot.lane.b32.xlu0 %v3504, 126
        %v3513 = vpop.permute.xlu0 %3512
        %3514 = vrot.lane.b32.xlu0 %v3505, 126
        %v3515 = vpop.permute.xlu0 %3514
        %3516 = vrot.lane.b32.xlu0 %v3506, 126
        %v3517 = vpop.permute.xlu0 %3516
        %3518 = vrot.lane.b32.xlu0 %v3507, 126
        %v3519 = vpop.permute.xlu0 %3518
        %v3520 = vsel %vm478, %v3513, %v3515
        %v3521 = vsel %vm478, %v3517, %v3519
        %v3526 = vadd.f32 %v3414, %v3520
        %v3527 = vadd.f32 %v3415, %v3515
        %v3528 = vadd.f32 %v3416, %v3521
        %v3529 = vadd.f32 %v3417, %v3519
        %s3530 = sld [smem:[#allocation7 + $0x41]]
        %v3531 = vstv %s3530
        %v3532 = vmul.f32 %v3531, %v3346
        %v3533 = vmul.f32 %v3531, %v3347
        %v3534 = vmul.f32 %v3531, %v3348
        %v3535 = vmul.f32 %v3531, %v3349
        %3540 = vrot.lane.b32.xlu0 %v3532, 126
        %v3541 = vpop.permute.xlu0 %3540
        %3542 = vrot.lane.b32.xlu0 %v3533, 126
        %v3543 = vpop.permute.xlu0 %3542
        %3544 = vrot.lane.b32.xlu0 %v3534, 126
        %v3545 = vpop.permute.xlu0 %3544
        %3546 = vrot.lane.b32.xlu0 %v3535, 126
        %v3547 = vpop.permute.xlu0 %3546
        %v3548 = vsel %vm478, %v3541, %v3543
        %v3549 = vsel %vm478, %v3545, %v3547
        %v3554 = vadd.f32 %v3442, %v3548
        %v3555 = vadd.f32 %v3443, %v3543
        %v3556 = vadd.f32 %v3444, %v3549
        %v3557 = vadd.f32 %v3445, %v3547
        %s3558 = sld [smem:[#allocation7 + $0x65]]
        %v3559 = vstv %s3558
        %v3560 = vmul.f32 %v3559, %v3346
        %v3561 = vmul.f32 %v3559, %v3347
        %v3562 = vmul.f32 %v3559, %v3348
        %v3563 = vmul.f32 %v3559, %v3349
        %3568 = vrot.lane.b32.xlu0 %v3560, 126
        %v3569 = vpop.permute.xlu0 %3568
        %3570 = vrot.lane.b32.xlu0 %v3561, 126
        %v3571 = vpop.permute.xlu0 %3570
        %3572 = vrot.lane.b32.xlu0 %v3562, 126
        %v3573 = vpop.permute.xlu0 %3572
        %3574 = vrot.lane.b32.xlu0 %v3563, 126
        %v3575 = vpop.permute.xlu0 %3574
        %v3576 = vsel %vm478, %v3569, %v3571
        %v3577 = vsel %vm478, %v3573, %v3575
        %v3582 = vadd.f32 %v3470, %v3576
        %v3583 = vadd.f32 %v3471, %v3571
        %v3584 = vadd.f32 %v3472, %v3577
        %v3585 = vadd.f32 %v3473, %v3575
        %s3586 = sld [smem:[#allocation7 + $0x89]]
        %v3587 = vstv %s3586
        %v3588 = vmul.f32 %v3587, %v3346
        %v3589 = vmul.f32 %v3587, %v3347
        %v3590 = vmul.f32 %v3587, %v3348
        %v3591 = vmul.f32 %v3587, %v3349
        %3596 = vrot.lane.b32.xlu0 %v3588, 126
        %v3597 = vpop.permute.xlu0 %3596
        %3598 = vrot.lane.b32.xlu0 %v3589, 126
        %v3599 = vpop.permute.xlu0 %3598
        %3600 = vrot.lane.b32.xlu0 %v3590, 126
        %v3601 = vpop.permute.xlu0 %3600
        %3602 = vrot.lane.b32.xlu0 %v3591, 126
        %v3603 = vpop.permute.xlu0 %3602
        %v3604 = vsel %vm478, %v3597, %v3599
        %v3605 = vsel %vm478, %v3601, %v3603
        %v3610 = vadd.f32 %v3498, %v3604
        %v3611 = vadd.f32 %v3499, %v3599
        %v3612 = vadd.f32 %v3500, %v3605
        %v3613 = vadd.f32 %v3501, %v3603
        %v3614 = vld [vmem:[%s3345] sm:$0xfe]
        %v3615 = vld [vmem:[%s3345 + $0x8] sm:$0xfe]
        %v3616 = vld [vmem:[%s3345 + $0x10] sm:$0x7f]
        %v3617 = vld [vmem:[%s3345 + $0x18] sm:$0x7f]
        %s3618 = sld [smem:[#allocation7 + $0x1e]]
        %v3619 = vstv %s3618
        %v3620 = vmul.f32 %v3619, %v3614
        %v3621 = vmul.f32 %v3619, %v3615
        %v3622 = vmul.f32 %v3619, %v3616
        %v3623 = vmul.f32 %v3619, %v3617
        %v3628 = vrot.slane %v3620, 1
        %v3629 = vrot.slane %v3622, 1
        %v3630 = vsel %vm587, %v3628, %v3629
        %v3631 = vrot.slane %v3621, 1
        %v3632 = vrot.slane %v3623, 1
        %v3633 = vsel %vm587, %v3631, %v3632
        %v3638 = vadd.f32 %v3526, %v3630
        %v3639 = vadd.f32 %v3527, %v3633
        %v3640 = vadd.f32 %v3528, %v3629
        %v3641 = vadd.f32 %v3529, %v3632
        %s3642 = sld [smem:[#allocation7 + $0x42]]
        %v3643 = vstv %s3642
        %v3644 = vmul.f32 %v3643, %v3614
        %v3645 = vmul.f32 %v3643, %v3615
        %v3646 = vmul.f32 %v3643, %v3616
        %v3647 = vmul.f32 %v3643, %v3617
        %v3652 = vrot.slane %v3644, 1
        %v3653 = vrot.slane %v3646, 1
        %v3654 = vsel %vm587, %v3652, %v3653
        %v3655 = vrot.slane %v3645, 1
        %v3656 = vrot.slane %v3647, 1
        %v3657 = vsel %vm587, %v3655, %v3656
        %v3662 = vadd.f32 %v3554, %v3654
        %v3663 = vadd.f32 %v3555, %v3657
        %v3664 = vadd.f32 %v3556, %v3653
        %v3665 = vadd.f32 %v3557, %v3656
        %s3666 = sld [smem:[#allocation7 + $0x66]]
        %v3667 = vstv %s3666
        %v3668 = vmul.f32 %v3667, %v3614
        %v3669 = vmul.f32 %v3667, %v3615
        %v3670 = vmul.f32 %v3667, %v3616
        %v3671 = vmul.f32 %v3667, %v3617
        %v3676 = vrot.slane %v3668, 1
        %v3677 = vrot.slane %v3670, 1
        %v3678 = vsel %vm587, %v3676, %v3677
        %v3679 = vrot.slane %v3669, 1
        %v3680 = vrot.slane %v3671, 1
        %v3681 = vsel %vm587, %v3679, %v3680
        %v3686 = vadd.f32 %v3582, %v3678
        %v3687 = vadd.f32 %v3583, %v3681
        %v3688 = vadd.f32 %v3584, %v3677
        %v3689 = vadd.f32 %v3585, %v3680
        %s3690 = sld [smem:[#allocation7 + $0x8a]]
        %v3691 = vstv %s3690
        %v3692 = vmul.f32 %v3691, %v3614
        %v3693 = vmul.f32 %v3691, %v3615
        %v3694 = vmul.f32 %v3691, %v3616
        %v3695 = vmul.f32 %v3691, %v3617
        %v3700 = vrot.slane %v3692, 1
        %v3701 = vrot.slane %v3694, 1
        %v3702 = vsel %vm587, %v3700, %v3701
        %v3703 = vrot.slane %v3693, 1
        %v3704 = vrot.slane %v3695, 1
        %v3705 = vsel %vm587, %v3703, %v3704
        %v3710 = vadd.f32 %v3610, %v3702
        %v3711 = vadd.f32 %v3611, %v3705
        %v3712 = vadd.f32 %v3612, %v3701
        %v3713 = vadd.f32 %v3613, %v3704
        %s3714 = sld [smem:[#allocation7 + $0x1f]]
        %v3715 = vstv %s3714
        %v3716 = vmul.f32 %v3715, %v3614
        %v3717 = vmul.f32 %v3715, %v3615
        %v3718 = vmul.f32 %v3715, %v3616
        %v3719 = vmul.f32 %v3715, %v3617
        %v3724 = vrot.slane %v3716, 1
        %v3725 = vrot.slane %v3718, 1
        %v3726 = vsel %vm587, %v3724, %v3725
        %v3727 = vrot.slane %v3717, 1
        %v3728 = vrot.slane %v3719, 1
        %v3729 = vsel %vm587, %v3727, %v3728
        %3730 = vrot.lane.b32.xlu0 %v3726, 127
        %v3731 = vpop.permute.xlu0 %3730
        %3732 = vrot.lane.b32.xlu0 %v3729, 127
        %v3733 = vpop.permute.xlu0 %3732
        %3734 = vrot.lane.b32.xlu0 %v3725, 127
        %v3735 = vpop.permute.xlu0 %3734
        %3736 = vrot.lane.b32.xlu0 %v3728, 127
        %v3737 = vpop.permute.xlu0 %3736
        %v3738 = vsel %vm365, %v3731, %v3733
        %v3739 = vsel %vm365, %v3735, %v3737
        %v3744 = vadd.f32 %v3638, %v3738
        %v3745 = vadd.f32 %v3639, %v3733
        %v3746 = vadd.f32 %v3640, %v3739
        %v3747 = vadd.f32 %v3641, %v3737
        %s3748 = sld [smem:[#allocation7 + $0x43]]
        %v3749 = vstv %s3748
        %v3750 = vmul.f32 %v3749, %v3614
        %v3751 = vmul.f32 %v3749, %v3615
        %v3752 = vmul.f32 %v3749, %v3616
        %v3753 = vmul.f32 %v3749, %v3617
        %v3758 = vrot.slane %v3750, 1
        %v3759 = vrot.slane %v3752, 1
        %v3760 = vsel %vm587, %v3758, %v3759
        %v3761 = vrot.slane %v3751, 1
        %v3762 = vrot.slane %v3753, 1
        %v3763 = vsel %vm587, %v3761, %v3762
        %3764 = vrot.lane.b32.xlu0 %v3760, 127
        %v3765 = vpop.permute.xlu0 %3764
        %3766 = vrot.lane.b32.xlu0 %v3763, 127
        %v3767 = vpop.permute.xlu0 %3766
        %3768 = vrot.lane.b32.xlu0 %v3759, 127
        %v3769 = vpop.permute.xlu0 %3768
        %3770 = vrot.lane.b32.xlu0 %v3762, 127
        %v3771 = vpop.permute.xlu0 %3770
        %v3772 = vsel %vm365, %v3765, %v3767
        %v3773 = vsel %vm365, %v3769, %v3771
        %v3778 = vadd.f32 %v3662, %v3772
        %v3779 = vadd.f32 %v3663, %v3767
        %v3780 = vadd.f32 %v3664, %v3773
        %v3781 = vadd.f32 %v3665, %v3771
        %s3782 = sld [smem:[#allocation7 + $0x67]]
        %v3783 = vstv %s3782
        %v3784 = vmul.f32 %v3783, %v3614
        %v3785 = vmul.f32 %v3783, %v3615
        %v3786 = vmul.f32 %v3783, %v3616
        %v3787 = vmul.f32 %v3783, %v3617
        %v3792 = vrot.slane %v3784, 1
        %v3793 = vrot.slane %v3786, 1
        %v3794 = vsel %vm587, %v3792, %v3793
        %v3795 = vrot.slane %v3785, 1
        %v3796 = vrot.slane %v3787, 1
        %v3797 = vsel %vm587, %v3795, %v3796
        %3798 = vrot.lane.b32.xlu0 %v3794, 127
        %v3799 = vpop.permute.xlu0 %3798
        %3800 = vrot.lane.b32.xlu0 %v3797, 127
        %v3801 = vpop.permute.xlu0 %3800
        %3802 = vrot.lane.b32.xlu0 %v3793, 127
        %v3803 = vpop.permute.xlu0 %3802
        %3804 = vrot.lane.b32.xlu0 %v3796, 127
        %v3805 = vpop.permute.xlu0 %3804
        %v3806 = vsel %vm365, %v3799, %v3801
        %v3807 = vsel %vm365, %v3803, %v3805
        %v3812 = vadd.f32 %v3686, %v3806
        %v3813 = vadd.f32 %v3687, %v3801
        %v3814 = vadd.f32 %v3688, %v3807
        %v3815 = vadd.f32 %v3689, %v3805
        %s3816 = sld [smem:[#allocation7 + $0x8b]]
        %v3817 = vstv %s3816
        %v3818 = vmul.f32 %v3817, %v3614
        %v3819 = vmul.f32 %v3817, %v3615
        %v3820 = vmul.f32 %v3817, %v3616
        %v3821 = vmul.f32 %v3817, %v3617
        %v3826 = vrot.slane %v3818, 1
        %v3827 = vrot.slane %v3820, 1
        %v3828 = vsel %vm587, %v3826, %v3827
        %v3829 = vrot.slane %v3819, 1
        %v3830 = vrot.slane %v3821, 1
        %v3831 = vsel %vm587, %v3829, %v3830
        %3832 = vrot.lane.b32.xlu0 %v3828, 127
        %v3833 = vpop.permute.xlu0 %3832
        %3834 = vrot.lane.b32.xlu0 %v3831, 127
        %v3835 = vpop.permute.xlu0 %3834
        %3836 = vrot.lane.b32.xlu0 %v3827, 127
        %v3837 = vpop.permute.xlu0 %3836
        %3838 = vrot.lane.b32.xlu0 %v3830, 127
        %v3839 = vpop.permute.xlu0 %3838
        %v3840 = vsel %vm365, %v3833, %v3835
        %v3841 = vsel %vm365, %v3837, %v3839
        %v3846 = vadd.f32 %v3710, %v3840
        %v3847 = vadd.f32 %v3711, %v3835
        %v3848 = vadd.f32 %v3712, %v3841
        %v3849 = vadd.f32 %v3713, %v3839
        %s3850 = sld [smem:[#allocation7 + $0x20]]
        %v3851 = vstv %s3850
        %v3852 = vmul.f32 %v3851, %v3614
        %v3853 = vmul.f32 %v3851, %v3615
        %v3854 = vmul.f32 %v3851, %v3616
        %v3855 = vmul.f32 %v3851, %v3617
        %v3860 = vrot.slane %v3852, 1
        %v3861 = vrot.slane %v3854, 1
        %v3862 = vsel %vm587, %v3860, %v3861
        %v3863 = vrot.slane %v3853, 1
        %v3864 = vrot.slane %v3855, 1
        %v3865 = vsel %vm587, %v3863, %v3864
        %3866 = vrot.lane.b32.xlu0 %v3862, 126
        %v3867 = vpop.permute.xlu0 %3866
        %3868 = vrot.lane.b32.xlu0 %v3865, 126
        %v3869 = vpop.permute.xlu0 %3868
        %3870 = vrot.lane.b32.xlu0 %v3861, 126
        %v3871 = vpop.permute.xlu0 %3870
        %3872 = vrot.lane.b32.xlu0 %v3864, 126
        %v3873 = vpop.permute.xlu0 %3872
        %v3874 = vsel %vm478, %v3867, %v3869
        %v3875 = vsel %vm478, %v3871, %v3873
        %v3880 = vadd.f32 %v3744, %v3874
        %v3881 = vadd.f32 %v3745, %v3869
        %v3882 = vadd.f32 %v3746, %v3875
        %v3883 = vadd.f32 %v3747, %v3873
        %s3884 = sld [smem:[#allocation7 + $0x44]]
        %v3885 = vstv %s3884
        %v3886 = vmul.f32 %v3885, %v3614
        %v3887 = vmul.f32 %v3885, %v3615
        %v3888 = vmul.f32 %v3885, %v3616
        %v3889 = vmul.f32 %v3885, %v3617
        %v3894 = vrot.slane %v3886, 1
        %v3895 = vrot.slane %v3888, 1
        %v3896 = vsel %vm587, %v3894, %v3895
        %v3897 = vrot.slane %v3887, 1
        %v3898 = vrot.slane %v3889, 1
        %v3899 = vsel %vm587, %v3897, %v3898
        %3900 = vrot.lane.b32.xlu0 %v3896, 126
        %v3901 = vpop.permute.xlu0 %3900
        %3902 = vrot.lane.b32.xlu0 %v3899, 126
        %v3903 = vpop.permute.xlu0 %3902
        %3904 = vrot.lane.b32.xlu0 %v3895, 126
        %v3905 = vpop.permute.xlu0 %3904
        %3906 = vrot.lane.b32.xlu0 %v3898, 126
        %v3907 = vpop.permute.xlu0 %3906
        %v3908 = vsel %vm478, %v3901, %v3903
        %v3909 = vsel %vm478, %v3905, %v3907
        %v3914 = vadd.f32 %v3778, %v3908
        %v3915 = vadd.f32 %v3779, %v3903
        %v3916 = vadd.f32 %v3780, %v3909
        %v3917 = vadd.f32 %v3781, %v3907
        %s3918 = sld [smem:[#allocation7 + $0x68]]
        %v3919 = vstv %s3918
        %v3920 = vmul.f32 %v3919, %v3614
        %v3921 = vmul.f32 %v3919, %v3615
        %v3922 = vmul.f32 %v3919, %v3616
        %v3923 = vmul.f32 %v3919, %v3617
        %v3928 = vrot.slane %v3920, 1
        %v3929 = vrot.slane %v3922, 1
        %v3930 = vsel %vm587, %v3928, %v3929
        %v3931 = vrot.slane %v3921, 1
        %v3932 = vrot.slane %v3923, 1
        %v3933 = vsel %vm587, %v3931, %v3932
        %3934 = vrot.lane.b32.xlu0 %v3930, 126
        %v3935 = vpop.permute.xlu0 %3934
        %3936 = vrot.lane.b32.xlu0 %v3933, 126
        %v3937 = vpop.permute.xlu0 %3936
        %3938 = vrot.lane.b32.xlu0 %v3929, 126
        %v3939 = vpop.permute.xlu0 %3938
        %3940 = vrot.lane.b32.xlu0 %v3932, 126
        %v3941 = vpop.permute.xlu0 %3940
        %v3942 = vsel %vm478, %v3935, %v3937
        %v3943 = vsel %vm478, %v3939, %v3941
        %v3948 = vadd.f32 %v3812, %v3942
        %v3949 = vadd.f32 %v3813, %v3937
        %v3950 = vadd.f32 %v3814, %v3943
        %v3951 = vadd.f32 %v3815, %v3941
        %s3952 = sld [smem:[#allocation7 + $0x8c]]
        %v3953 = vstv %s3952
        %v3954 = vmul.f32 %v3953, %v3614
        %v3955 = vmul.f32 %v3953, %v3615
        %v3956 = vmul.f32 %v3953, %v3616
        %v3957 = vmul.f32 %v3953, %v3617
        %v3962 = vrot.slane %v3954, 1
        %v3963 = vrot.slane %v3956, 1
        %v3964 = vsel %vm587, %v3962, %v3963
        %v3965 = vrot.slane %v3955, 1
        %v3966 = vrot.slane %v3957, 1
        %v3967 = vsel %vm587, %v3965, %v3966
        %3968 = vrot.lane.b32.xlu0 %v3964, 126
        %v3969 = vpop.permute.xlu0 %3968
        %3970 = vrot.lane.b32.xlu0 %v3967, 126
        %v3971 = vpop.permute.xlu0 %3970
        %3972 = vrot.lane.b32.xlu0 %v3963, 126
        %v3973 = vpop.permute.xlu0 %3972
        %3974 = vrot.lane.b32.xlu0 %v3966, 126
        %v3975 = vpop.permute.xlu0 %3974
        %v3976 = vsel %vm478, %v3969, %v3971
        %v3977 = vsel %vm478, %v3973, %v3975
        %v3982 = vadd.f32 %v3846, %v3976
        %v3983 = vadd.f32 %v3847, %v3971
        %v3984 = vadd.f32 %v3848, %v3977
        %v3985 = vadd.f32 %v3849, %v3975
        %v3986 = vld [vmem:[%s3345] sm:$0xfc]
        %v3987 = vld [vmem:[%s3345 + $0x8] sm:$0xfc]
        %v3988 = vld [vmem:[%s3345 + $0x10] sm:$0xff]
        %v3989 = vld [vmem:[%s3345 + $0x18] sm:$0xff]
        %s3990 = sld [smem:[#allocation7 + $0x21]]
        %v3991 = vstv %s3990
        %v3992 = vmul.f32 %v3991, %v3986
        %v3993 = vmul.f32 %v3991, %v3987
        %v3994 = vmul.f32 %v3991, %v3988
        %v3995 = vmul.f32 %v3991, %v3989
        %v4000 = vrot.slane %v3992, 2
        %v4001 = vrot.slane %v3994, 2
        %v4002 = vsel %vm960, %v4000, %v4001
        %v4003 = vrot.slane %v3993, 2
        %v4004 = vrot.slane %v3995, 2
        %v4005 = vsel %vm960, %v4003, %v4004
        %v4010 = vadd.f32 %v3880, %v4002
        %v4011 = vadd.f32 %v3881, %v4005
        %v4012 = vadd.f32 %v3882, %v4001
        %v4013 = vadd.f32 %v3883, %v4004
        %s4014 = sld [smem:[#allocation7 + $0x45]]
        %v4015 = vstv %s4014
        %v4016 = vmul.f32 %v4015, %v3986
        %v4017 = vmul.f32 %v4015, %v3987
        %v4018 = vmul.f32 %v4015, %v3988
        %v4019 = vmul.f32 %v4015, %v3989
        %v4024 = vrot.slane %v4016, 2
        %v4025 = vrot.slane %v4018, 2
        %v4026 = vsel %vm960, %v4024, %v4025
        %v4027 = vrot.slane %v4017, 2
        %v4028 = vrot.slane %v4019, 2
        %v4029 = vsel %vm960, %v4027, %v4028
        %v4034 = vadd.f32 %v3914, %v4026
        %v4035 = vadd.f32 %v3915, %v4029
        %v4036 = vadd.f32 %v3916, %v4025
        %v4037 = vadd.f32 %v3917, %v4028
        %s4038 = sld [smem:[#allocation7 + $0x69]]
        %v4039 = vstv %s4038
        %v4040 = vmul.f32 %v4039, %v3986
        %v4041 = vmul.f32 %v4039, %v3987
        %v4042 = vmul.f32 %v4039, %v3988
        %v4043 = vmul.f32 %v4039, %v3989
        %v4048 = vrot.slane %v4040, 2
        %v4049 = vrot.slane %v4042, 2
        %v4050 = vsel %vm960, %v4048, %v4049
        %v4051 = vrot.slane %v4041, 2
        %v4052 = vrot.slane %v4043, 2
        %v4053 = vsel %vm960, %v4051, %v4052
        %v4058 = vadd.f32 %v3948, %v4050
        %v4059 = vadd.f32 %v3949, %v4053
        %v4060 = vadd.f32 %v3950, %v4049
        %v4061 = vadd.f32 %v3951, %v4052
        %s4062 = sld [smem:[#allocation7 + $0x8d]]
        %v4063 = vstv %s4062
        %v4064 = vmul.f32 %v4063, %v3986
        %v4065 = vmul.f32 %v4063, %v3987
        %v4066 = vmul.f32 %v4063, %v3988
        %v4067 = vmul.f32 %v4063, %v3989
        %v4072 = vrot.slane %v4064, 2
        %v4073 = vrot.slane %v4066, 2
        %v4074 = vsel %vm960, %v4072, %v4073
        %v4075 = vrot.slane %v4065, 2
        %v4076 = vrot.slane %v4067, 2
        %v4077 = vsel %vm960, %v4075, %v4076
        %v4082 = vadd.f32 %v3982, %v4074
        %v4083 = vadd.f32 %v3983, %v4077
        %v4084 = vadd.f32 %v3984, %v4073
        %v4085 = vadd.f32 %v3985, %v4076
        %s4086 = sld [smem:[#allocation7 + $0x22]]
        %v4087 = vstv %s4086
        %v4088 = vmul.f32 %v4087, %v3986
        %v4089 = vmul.f32 %v4087, %v3987
        %v4090 = vmul.f32 %v4087, %v3988
        %v4091 = vmul.f32 %v4087, %v3989
        %v4096 = vrot.slane %v4088, 2
        %v4097 = vrot.slane %v4090, 2
        %v4098 = vsel %vm960, %v4096, %v4097
        %v4099 = vrot.slane %v4089, 2
        %v4100 = vrot.slane %v4091, 2
        %v4101 = vsel %vm960, %v4099, %v4100
        %4102 = vrot.lane.b32.xlu0 %v4098, 127
        %v4103 = vpop.permute.xlu0 %4102
        %4104 = vrot.lane.b32.xlu0 %v4101, 127
        %v4105 = vpop.permute.xlu0 %4104
        %4106 = vrot.lane.b32.xlu0 %v4097, 127
        %v4107 = vpop.permute.xlu0 %4106
        %4108 = vrot.lane.b32.xlu0 %v4100, 127
        %v4109 = vpop.permute.xlu0 %4108
        %v4110 = vsel %vm365, %v4103, %v4105
        %v4111 = vsel %vm365, %v4107, %v4109
        %v4116 = vadd.f32 %v4010, %v4110
        %v4117 = vadd.f32 %v4011, %v4105
        %v4118 = vadd.f32 %v4012, %v4111
        %v4119 = vadd.f32 %v4013, %v4109
        %s4120 = sld [smem:[#allocation7 + $0x46]]
        %v4121 = vstv %s4120
        %v4122 = vmul.f32 %v4121, %v3986
        %v4123 = vmul.f32 %v4121, %v3987
        %v4124 = vmul.f32 %v4121, %v3988
        %v4125 = vmul.f32 %v4121, %v3989
        %v4130 = vrot.slane %v4122, 2
        %v4131 = vrot.slane %v4124, 2
        %v4132 = vsel %vm960, %v4130, %v4131
        %v4133 = vrot.slane %v4123, 2
        %v4134 = vrot.slane %v4125, 2
        %v4135 = vsel %vm960, %v4133, %v4134
        %4136 = vrot.lane.b32.xlu0 %v4132, 127
        %v4137 = vpop.permute.xlu0 %4136
        %4138 = vrot.lane.b32.xlu0 %v4135, 127
        %v4139 = vpop.permute.xlu0 %4138
        %4140 = vrot.lane.b32.xlu0 %v4131, 127
        %v4141 = vpop.permute.xlu0 %4140
        %4142 = vrot.lane.b32.xlu0 %v4134, 127
        %v4143 = vpop.permute.xlu0 %4142
        %v4144 = vsel %vm365, %v4137, %v4139
        %v4145 = vsel %vm365, %v4141, %v4143
        %v4150 = vadd.f32 %v4034, %v4144
        %v4151 = vadd.f32 %v4035, %v4139
        %v4152 = vadd.f32 %v4036, %v4145
        %v4153 = vadd.f32 %v4037, %v4143
        %s4154 = sld [smem:[#allocation7 + $0x6a]]
        %v4155 = vstv %s4154
        %v4156 = vmul.f32 %v4155, %v3986
        %v4157 = vmul.f32 %v4155, %v3987
        %v4158 = vmul.f32 %v4155, %v3988
        %v4159 = vmul.f32 %v4155, %v3989
        %v4164 = vrot.slane %v4156, 2
        %v4165 = vrot.slane %v4158, 2
        %v4166 = vsel %vm960, %v4164, %v4165
        %v4167 = vrot.slane %v4157, 2
        %v4168 = vrot.slane %v4159, 2
        %v4169 = vsel %vm960, %v4167, %v4168
        %4170 = vrot.lane.b32.xlu0 %v4166, 127
        %v4171 = vpop.permute.xlu0 %4170
        %4172 = vrot.lane.b32.xlu0 %v4169, 127
        %v4173 = vpop.permute.xlu0 %4172
        %4174 = vrot.lane.b32.xlu0 %v4165, 127
        %v4175 = vpop.permute.xlu0 %4174
        %4176 = vrot.lane.b32.xlu0 %v4168, 127
        %v4177 = vpop.permute.xlu0 %4176
        %v4178 = vsel %vm365, %v4171, %v4173
        %v4179 = vsel %vm365, %v4175, %v4177
        %v4184 = vadd.f32 %v4058, %v4178
        %v4185 = vadd.f32 %v4059, %v4173
        %v4186 = vadd.f32 %v4060, %v4179
        %v4187 = vadd.f32 %v4061, %v4177
        %s4188 = sld [smem:[#allocation7 + $0x8e]]
        %v4189 = vstv %s4188
        %v4190 = vmul.f32 %v4189, %v3986
        %v4191 = vmul.f32 %v4189, %v3987
        %v4192 = vmul.f32 %v4189, %v3988
        %v4193 = vmul.f32 %v4189, %v3989
        %v4198 = vrot.slane %v4190, 2
        %v4199 = vrot.slane %v4192, 2
        %v4200 = vsel %vm960, %v4198, %v4199
        %v4201 = vrot.slane %v4191, 2
        %v4202 = vrot.slane %v4193, 2
        %v4203 = vsel %vm960, %v4201, %v4202
        %4204 = vrot.lane.b32.xlu0 %v4200, 127
        %v4205 = vpop.permute.xlu0 %4204
        %4206 = vrot.lane.b32.xlu0 %v4203, 127
        %v4207 = vpop.permute.xlu0 %4206
        %4208 = vrot.lane.b32.xlu0 %v4199, 127
        %v4209 = vpop.permute.xlu0 %4208
        %4210 = vrot.lane.b32.xlu0 %v4202, 127
        %v4211 = vpop.permute.xlu0 %4210
        %v4212 = vsel %vm365, %v4205, %v4207
        %v4213 = vsel %vm365, %v4209, %v4211
        %v4218 = vadd.f32 %v4082, %v4212
        %v4219 = vadd.f32 %v4083, %v4207
        %v4220 = vadd.f32 %v4084, %v4213
        %v4221 = vadd.f32 %v4085, %v4211
        %s4222 = sld [smem:[#allocation7 + $0x23]]
        %v4223 = vstv %s4222
        %v4224 = vmul.f32 %v4223, %v3986
        %v4225 = vmul.f32 %v4223, %v3987
        %v4226 = vmul.f32 %v4223, %v3988
        %v4227 = vmul.f32 %v4223, %v3989
        %v4232 = vrot.slane %v4224, 2
        %v4233 = vrot.slane %v4226, 2
        %v4234 = vsel %vm960, %v4232, %v4233
        %v4235 = vrot.slane %v4225, 2
        %v4236 = vrot.slane %v4227, 2
        %v4237 = vsel %vm960, %v4235, %v4236
        %4238 = vrot.lane.b32.xlu0 %v4234, 126
        %v4239 = vpop.permute.xlu0 %4238
        %4240 = vrot.lane.b32.xlu0 %v4237, 126
        %v4241 = vpop.permute.xlu0 %4240
        %4242 = vrot.lane.b32.xlu0 %v4233, 126
        %v4243 = vpop.permute.xlu0 %4242
        %4244 = vrot.lane.b32.xlu0 %v4236, 126
        %v4245 = vpop.permute.xlu0 %4244
        %v4246 = vsel %vm478, %v4239, %v4241
        %v4247 = vsel %vm478, %v4243, %v4245
        %v4252 = vadd.f32 %v4116, %v4246
        %v4253 = vadd.f32 %v4117, %v4241
        %v4254 = vadd.f32 %v4118, %v4247
        %v4255 = vadd.f32 %v4119, %v4245
        %s4256 = sld [smem:[#allocation7 + $0x47]]
        %v4257 = vstv %s4256
        %v4258 = vmul.f32 %v4257, %v3986
        %v4259 = vmul.f32 %v4257, %v3987
        %v4260 = vmul.f32 %v4257, %v3988
        %v4261 = vmul.f32 %v4257, %v3989
        %v4266 = vrot.slane %v4258, 2
        %v4267 = vrot.slane %v4260, 2
        %v4268 = vsel %vm960, %v4266, %v4267
        %v4269 = vrot.slane %v4259, 2
        %v4270 = vrot.slane %v4261, 2
        %v4271 = vsel %vm960, %v4269, %v4270
        %4272 = vrot.lane.b32.xlu0 %v4268, 126
        %v4273 = vpop.permute.xlu0 %4272
        %4274 = vrot.lane.b32.xlu0 %v4271, 126
        %v4275 = vpop.permute.xlu0 %4274
        %4276 = vrot.lane.b32.xlu0 %v4267, 126
        %v4277 = vpop.permute.xlu0 %4276
        %4278 = vrot.lane.b32.xlu0 %v4270, 126
        %v4279 = vpop.permute.xlu0 %4278
        %v4280 = vsel %vm478, %v4273, %v4275
        %v4281 = vsel %vm478, %v4277, %v4279
        %v4286 = vadd.f32 %v4150, %v4280
        %v4287 = vadd.f32 %v4151, %v4275
        %v4288 = vadd.f32 %v4152, %v4281
        %v4289 = vadd.f32 %v4153, %v4279
        %s4290 = sld [smem:[#allocation7 + $0x6b]]
        %v4291 = vstv %s4290
        %v4292 = vmul.f32 %v4291, %v3986
        %v4293 = vmul.f32 %v4291, %v3987
        %v4294 = vmul.f32 %v4291, %v3988
        %v4295 = vmul.f32 %v4291, %v3989
        %v4300 = vrot.slane %v4292, 2
        %v4301 = vrot.slane %v4294, 2
        %v4302 = vsel %vm960, %v4300, %v4301
        %v4303 = vrot.slane %v4293, 2
        %v4304 = vrot.slane %v4295, 2
        %v4305 = vsel %vm960, %v4303, %v4304
        %4306 = vrot.lane.b32.xlu0 %v4302, 126
        %v4307 = vpop.permute.xlu0 %4306
        %4308 = vrot.lane.b32.xlu0 %v4305, 126
        %v4309 = vpop.permute.xlu0 %4308
        %4310 = vrot.lane.b32.xlu0 %v4301, 126
        %v4311 = vpop.permute.xlu0 %4310
        %4312 = vrot.lane.b32.xlu0 %v4304, 126
        %v4313 = vpop.permute.xlu0 %4312
        %v4314 = vsel %vm478, %v4307, %v4309
        %v4315 = vsel %vm478, %v4311, %v4313
        %v4320 = vadd.f32 %v4184, %v4314
        %v4321 = vadd.f32 %v4185, %v4309
        %v4322 = vadd.f32 %v4186, %v4315
        %v4323 = vadd.f32 %v4187, %v4313
        %s4324 = sld [smem:[#allocation7 + $0x8f]]
        %v4325 = vstv %s4324
        %v4326 = vmul.f32 %v4325, %v3986
        %v4327 = vmul.f32 %v4325, %v3987
        %v4328 = vmul.f32 %v4325, %v3988
        %v4329 = vmul.f32 %v4325, %v3989
        %v4334 = vrot.slane %v4326, 2
        %v4335 = vrot.slane %v4328, 2
        %v4336 = vsel %vm960, %v4334, %v4335
        %v4337 = vrot.slane %v4327, 2
        %v4338 = vrot.slane %v4329, 2
        %v4339 = vsel %vm960, %v4337, %v4338
        %4340 = vrot.lane.b32.xlu0 %v4336, 126
        %v4341 = vpop.permute.xlu0 %4340
        %4342 = vrot.lane.b32.xlu0 %v4339, 126
        %v4343 = vpop.permute.xlu0 %4342
        %4344 = vrot.lane.b32.xlu0 %v4335, 126
        %v4345 = vpop.permute.xlu0 %4344
        %4346 = vrot.lane.b32.xlu0 %v4338, 126
        %v4347 = vpop.permute.xlu0 %4346
        %v4348 = vsel %vm478, %v4341, %v4343
        %v4349 = vsel %vm478, %v4345, %v4347
        %v4354 = vadd.f32 %v4218, %v4348
        %v4355 = vadd.f32 %v4219, %v4343
        %v4356 = vadd.f32 %v4220, %v4349
        %v4357 = vadd.f32 %v4221, %v4347
        %v4359 = vlaneseq
        %v4360 = vshrl.u32 %v4359, 7
        %v4361 = vsub.s32 0, %v4360
        %v4362 = vrot.slane %v282, %v4361
        %v4363 = vlaneseq
        %v4364 = vshrl.u32 %v4363, 7
        %v4365 = vsub.s32 1, %v4364
        %v4366 = vrot.slane %v282, %v4365
        %v4369 = vmul.f32 %v4252, %v4362
        %v4370 = vmul.f32 %v4253, %v4366
        %v4371 = vmul.f32 %v4254, %v4362
        %v4372 = vmul.f32 %v4255, %v4366
        %vm4377 = vcmask 1041408
        %v4378 = vrot.slane %v4369, 6
        %v4379 = vrot.slane %v4370, 6
        %v4380 = vrot.slane %v4371, 6
        %v4381 = vsel %vm4377, %v4378, %v4380
        %v4382 = vrot.slane %v4372, 6
        %v4383 = vsel %vm4377, %v4379, %v4382
        %4388 = vst [vmem:[#allocation2] sm:$0xfc] %v4378
        %vm4389 = vcmask 146434
        %4390 = vst.msk [vmem:[#allocation2 + $0x8] sm:$0xfc] %vm4389, %v4379
        %4391 = vst [vmem:[#allocation2 + $0x10] sm:$0xff] %v4381
        %vm4392 = vcmask 146432
        %4393 = vst.msk [vmem:[#allocation2 + $0x18] sm:$0xff] %vm4392, %v4383
        %v4394 = vmul.f32 %v4286, %v4362
        %v4395 = vmul.f32 %v4287, %v4366
        %v4396 = vmul.f32 %v4288, %v4362
        %v4397 = vmul.f32 %v4289, %v4366
        %v4402 = vrot.slane %v4394, 6
        %v4403 = vrot.slane %v4395, 6
        %v4404 = vrot.slane %v4396, 6
        %v4405 = vsel %vm4377, %v4402, %v4404
        %v4406 = vrot.slane %v4397, 6
        %v4407 = vsel %vm4377, %v4403, %v4406
        %4412 = vst [vmem:[%s288] sm:$0xfc] %v4402
        %4413 = vst.msk [vmem:[%s288 + $0x8] sm:$0xfc] %vm4389, %v4403
        %4414 = vst [vmem:[%s288 + $0x10] sm:$0xff] %v4405
        %4415 = vst.msk [vmem:[%s288 + $0x18] sm:$0xff] %vm4392, %v4407
        %v4416 = vmul.f32 %v4320, %v4362
        %v4417 = vmul.f32 %v4321, %v4366
        %v4418 = vmul.f32 %v4322, %v4362
        %v4419 = vmul.f32 %v4323, %v4366
        %v4424 = vrot.slane %v4416, 6
        %v4425 = vrot.slane %v4417, 6
        %v4426 = vrot.slane %v4418, 6
        %v4427 = vsel %vm4377, %v4424, %v4426
        %v4428 = vrot.slane %v4419, 6
        %v4429 = vsel %vm4377, %v4425, %v4428
        %4434 = vst [vmem:[%s293] sm:$0xfc] %v4424
        %4435 = vst.msk [vmem:[%s293 + $0x8] sm:$0xfc] %vm4389, %v4425
        %4436 = vst [vmem:[%s293 + $0x10] sm:$0xff] %v4427
        %4437 = vst.msk [vmem:[%s293 + $0x18] sm:$0xff] %vm4392, %v4429
        %v4438 = vmul.f32 %v4354, %v4362
        %v4439 = vmul.f32 %v4355, %v4366
        %v4440 = vmul.f32 %v4356, %v4362
        %v4441 = vmul.f32 %v4357, %v4366
        %v4446 = vrot.slane %v4438, 6
        %v4447 = vrot.slane %v4439, 6
        %v4448 = vrot.slane %v4440, 6
        %v4449 = vsel %vm4377, %v4446, %v4448
        %v4450 = vrot.slane %v4441, 6
        %v4451 = vsel %vm4377, %v4447, %v4450
        %4456 = vst [vmem:[%s298] sm:$0xfc] %v4446
        %4457 = vst.msk [vmem:[%s298 + $0x8] sm:$0xfc] %vm4389, %v4447
        %4458 = vst [vmem:[%s298 + $0x10] sm:$0xff] %v4449
        %4459 = vst.msk [vmem:[%s298 + $0x18] sm:$0xff] %vm4392, %v4451
        %v4460 = vld [vmem:[#allocation2] sm:$0xff]
        %v4461 = vld [vmem:[#allocation2 + $0x8] sm:$0xff]
        %v4462 = vld [vmem:[#allocation2 + $0x10] sm:$0xff]
        %v4463 = vld [vmem:[#allocation2 + $0x18] sm:$0xff]
        %s4464 = sld [smem:[#allocation8]]
        %v4465 = vstv %s4464
        %v4466 = vmul.f32 %v4465, %v4460
        %v4467 = vmul.f32 %v4465, %v4461
        %v4468 = vmul.f32 %v4465, %v4462
        %v4469 = vmul.f32 %v4465, %v4463
        %v4470 = vadd.f32 %v4466, 0.0
        %v4471 = vadd.f32 %v4467, 0.0
        %v4472 = vadd.f32 %v4468, 0.0
        %v4473 = vadd.f32 %v4469, 0.0
        %s4474 = sld [smem:[#allocation8 + $0x24]]
        %v4475 = vstv %s4474
        %v4476 = vmul.f32 %v4475, %v4460
        %v4477 = vmul.f32 %v4475, %v4461
        %v4478 = vmul.f32 %v4475, %v4462
        %v4479 = vmul.f32 %v4475, %v4463
        %v4480 = vadd.f32 %v4476, 0.0
        %v4481 = vadd.f32 %v4477, 0.0
        %v4482 = vadd.f32 %v4478, 0.0
        %v4483 = vadd.f32 %v4479, 0.0
        %s4484 = sld [smem:[#allocation8 + $0x48]]
        %v4485 = vstv %s4484
        %v4486 = vmul.f32 %v4485, %v4460
        %v4487 = vmul.f32 %v4485, %v4461
        %v4488 = vmul.f32 %v4485, %v4462
        %v4489 = vmul.f32 %v4485, %v4463
        %v4490 = vadd.f32 %v4486, 0.0
        %v4491 = vadd.f32 %v4487, 0.0
        %v4492 = vadd.f32 %v4488, 0.0
        %v4493 = vadd.f32 %v4489, 0.0
        %s4494 = sld [smem:[#allocation8 + $0x6c]]
        %v4495 = vstv %s4494
        %v4496 = vmul.f32 %v4495, %v4460
        %v4497 = vmul.f32 %v4495, %v4461
        %v4498 = vmul.f32 %v4495, %v4462
        %v4499 = vmul.f32 %v4495, %v4463
        %v4500 = vadd.f32 %v4496, 0.0
        %v4501 = vadd.f32 %v4497, 0.0
        %v4502 = vadd.f32 %v4498, 0.0
        %v4503 = vadd.f32 %v4499, 0.0
        %s4504 = sld [smem:[#allocation8 + $0x1]]
        %v4505 = vstv %s4504
        %v4506 = vmul.f32 %v4505, %v4460
        %v4507 = vmul.f32 %v4505, %v4461
        %v4508 = vmul.f32 %v4505, %v4462
        %v4509 = vmul.f32 %v4505, %v4463
        %4514 = vrot.lane.b32.xlu0 %v4506, 127
        %v4515 = vpop.permute.xlu0 %4514
        %4516 = vrot.lane.b32.xlu0 %v4507, 127
        %v4517 = vpop.permute.xlu0 %4516
        %4518 = vrot.lane.b32.xlu0 %v4508, 127
        %v4519 = vpop.permute.xlu0 %4518
        %4520 = vrot.lane.b32.xlu0 %v4509, 127
        %v4521 = vpop.permute.xlu0 %4520
        %v4522 = vsel %vm365, %v4515, %v4517
        %v4523 = vsel %vm365, %v4519, %v4521
        %v4528 = vadd.f32 %v4470, %v4522
        %v4529 = vadd.f32 %v4471, %v4517
        %v4530 = vadd.f32 %v4472, %v4523
        %v4531 = vadd.f32 %v4473, %v4521
        %s4532 = sld [smem:[#allocation8 + $0x25]]
        %v4533 = vstv %s4532
        %v4534 = vmul.f32 %v4533, %v4460
        %v4535 = vmul.f32 %v4533, %v4461
        %v4536 = vmul.f32 %v4533, %v4462
        %v4537 = vmul.f32 %v4533, %v4463
        %4542 = vrot.lane.b32.xlu0 %v4534, 127
        %v4543 = vpop.permute.xlu0 %4542
        %4544 = vrot.lane.b32.xlu0 %v4535, 127
        %v4545 = vpop.permute.xlu0 %4544
        %4546 = vrot.lane.b32.xlu0 %v4536, 127
        %v4547 = vpop.permute.xlu0 %4546
        %4548 = vrot.lane.b32.xlu0 %v4537, 127
        %v4549 = vpop.permute.xlu0 %4548
        %v4550 = vsel %vm365, %v4543, %v4545
        %v4551 = vsel %vm365, %v4547, %v4549
        %v4556 = vadd.f32 %v4480, %v4550
        %v4557 = vadd.f32 %v4481, %v4545
        %v4558 = vadd.f32 %v4482, %v4551
        %v4559 = vadd.f32 %v4483, %v4549
        %s4560 = sld [smem:[#allocation8 + $0x49]]
        %v4561 = vstv %s4560
        %v4562 = vmul.f32 %v4561, %v4460
        %v4563 = vmul.f32 %v4561, %v4461
        %v4564 = vmul.f32 %v4561, %v4462
        %v4565 = vmul.f32 %v4561, %v4463
        %4570 = vrot.lane.b32.xlu0 %v4562, 127
        %v4571 = vpop.permute.xlu0 %4570
        %4572 = vrot.lane.b32.xlu0 %v4563, 127
        %v4573 = vpop.permute.xlu0 %4572
        %4574 = vrot.lane.b32.xlu0 %v4564, 127
        %v4575 = vpop.permute.xlu0 %4574
        %4576 = vrot.lane.b32.xlu0 %v4565, 127
        %v4577 = vpop.permute.xlu0 %4576
        %v4578 = vsel %vm365, %v4571, %v4573
        %v4579 = vsel %vm365, %v4575, %v4577
        %v4584 = vadd.f32 %v4490, %v4578
        %v4585 = vadd.f32 %v4491, %v4573
        %v4586 = vadd.f32 %v4492, %v4579
        %v4587 = vadd.f32 %v4493, %v4577
        %s4588 = sld [smem:[#allocation8 + $0x6d]]
        %v4589 = vstv %s4588
        %v4590 = vmul.f32 %v4589, %v4460
        %v4591 = vmul.f32 %v4589, %v4461
        %v4592 = vmul.f32 %v4589, %v4462
        %v4593 = vmul.f32 %v4589, %v4463
        %4598 = vrot.lane.b32.xlu0 %v4590, 127
        %v4599 = vpop.permute.xlu0 %4598
        %4600 = vrot.lane.b32.xlu0 %v4591, 127
        %v4601 = vpop.permute.xlu0 %4600
        %4602 = vrot.lane.b32.xlu0 %v4592, 127
        %v4603 = vpop.permute.xlu0 %4602
        %4604 = vrot.lane.b32.xlu0 %v4593, 127
        %v4605 = vpop.permute.xlu0 %4604
        %v4606 = vsel %vm365, %v4599, %v4601
        %v4607 = vsel %vm365, %v4603, %v4605
        %v4612 = vadd.f32 %v4500, %v4606
        %v4613 = vadd.f32 %v4501, %v4601
        %v4614 = vadd.f32 %v4502, %v4607
        %v4615 = vadd.f32 %v4503, %v4605
        %s4616 = sld [smem:[#allocation8 + $0x2]]
        %v4617 = vstv %s4616
        %v4618 = vmul.f32 %v4617, %v4460
        %v4619 = vmul.f32 %v4617, %v4461
        %v4620 = vmul.f32 %v4617, %v4462
        %v4621 = vmul.f32 %v4617, %v4463
        %4626 = vrot.lane.b32.xlu0 %v4618, 126
        %v4627 = vpop.permute.xlu0 %4626
        %4628 = vrot.lane.b32.xlu0 %v4619, 126
        %v4629 = vpop.permute.xlu0 %4628
        %4630 = vrot.lane.b32.xlu0 %v4620, 126
        %v4631 = vpop.permute.xlu0 %4630
        %4632 = vrot.lane.b32.xlu0 %v4621, 126
        %v4633 = vpop.permute.xlu0 %4632
        %v4634 = vsel %vm478, %v4627, %v4629
        %v4635 = vsel %vm478, %v4631, %v4633
        %v4640 = vadd.f32 %v4528, %v4634
        %v4641 = vadd.f32 %v4529, %v4629
        %v4642 = vadd.f32 %v4530, %v4635
        %v4643 = vadd.f32 %v4531, %v4633
        %s4644 = sld [smem:[#allocation8 + $0x26]]
        %v4645 = vstv %s4644
        %v4646 = vmul.f32 %v4645, %v4460
        %v4647 = vmul.f32 %v4645, %v4461
        %v4648 = vmul.f32 %v4645, %v4462
        %v4649 = vmul.f32 %v4645, %v4463
        %4654 = vrot.lane.b32.xlu0 %v4646, 126
        %v4655 = vpop.permute.xlu0 %4654
        %4656 = vrot.lane.b32.xlu0 %v4647, 126
        %v4657 = vpop.permute.xlu0 %4656
        %4658 = vrot.lane.b32.xlu0 %v4648, 126
        %v4659 = vpop.permute.xlu0 %4658
        %4660 = vrot.lane.b32.xlu0 %v4649, 126
        %v4661 = vpop.permute.xlu0 %4660
        %v4662 = vsel %vm478, %v4655, %v4657
        %v4663 = vsel %vm478, %v4659, %v4661
        %v4668 = vadd.f32 %v4556, %v4662
        %v4669 = vadd.f32 %v4557, %v4657
        %v4670 = vadd.f32 %v4558, %v4663
        %v4671 = vadd.f32 %v4559, %v4661
        %s4672 = sld [smem:[#allocation8 + $0x4a]]
        %v4673 = vstv %s4672
        %v4674 = vmul.f32 %v4673, %v4460
        %v4675 = vmul.f32 %v4673, %v4461
        %v4676 = vmul.f32 %v4673, %v4462
        %v4677 = vmul.f32 %v4673, %v4463
        %4682 = vrot.lane.b32.xlu0 %v4674, 126
        %v4683 = vpop.permute.xlu0 %4682
        %4684 = vrot.lane.b32.xlu0 %v4675, 126
        %v4685 = vpop.permute.xlu0 %4684
        %4686 = vrot.lane.b32.xlu0 %v4676, 126
        %v4687 = vpop.permute.xlu0 %4686
        %4688 = vrot.lane.b32.xlu0 %v4677, 126
        %v4689 = vpop.permute.xlu0 %4688
        %v4690 = vsel %vm478, %v4683, %v4685
        %v4691 = vsel %vm478, %v4687, %v4689
        %v4696 = vadd.f32 %v4584, %v4690
        %v4697 = vadd.f32 %v4585, %v4685
        %v4698 = vadd.f32 %v4586, %v4691
        %v4699 = vadd.f32 %v4587, %v4689
        %s4700 = sld [smem:[#allocation8 + $0x6e]]
        %v4701 = vstv %s4700
        %v4702 = vmul.f32 %v4701, %v4460
        %v4703 = vmul.f32 %v4701, %v4461
        %v4704 = vmul.f32 %v4701, %v4462
        %v4705 = vmul.f32 %v4701, %v4463
        %4710 = vrot.lane.b32.xlu0 %v4702, 126
        %v4711 = vpop.permute.xlu0 %4710
        %4712 = vrot.lane.b32.xlu0 %v4703, 126
        %v4713 = vpop.permute.xlu0 %4712
        %4714 = vrot.lane.b32.xlu0 %v4704, 126
        %v4715 = vpop.permute.xlu0 %4714
        %4716 = vrot.lane.b32.xlu0 %v4705, 126
        %v4717 = vpop.permute.xlu0 %4716
        %v4718 = vsel %vm478, %v4711, %v4713
        %v4719 = vsel %vm478, %v4715, %v4717
        %v4724 = vadd.f32 %v4612, %v4718
        %v4725 = vadd.f32 %v4613, %v4713
        %v4726 = vadd.f32 %v4614, %v4719
        %v4727 = vadd.f32 %v4615, %v4717
        %v4728 = vld [vmem:[#allocation2] sm:$0xfe]
        %v4729 = vld [vmem:[#allocation2 + $0x8] sm:$0xfe]
        %v4730 = vld [vmem:[#allocation2 + $0x10] sm:$0xff]
        %v4731 = vld [vmem:[#allocation2 + $0x18] sm:$0xff]
        %v4732 = vld [vmem:[#allocation2 + $0x20] sm:$0x1]
        %v4733 = vld [vmem:[#allocation2 + $0x28] sm:$0x1]
        %s4734 = sld [smem:[#allocation8 + $0x3]]
        %v4735 = vstv %s4734
        %v4736 = vmul.f32 %v4735, %v4728
        %v4737 = vmul.f32 %v4735, %v4729
        %v4738 = vmul.f32 %v4735, %v4730
        %v4739 = vmul.f32 %v4735, %v4731
        %v4740 = vmul.f32 %v4735, %v4732
        %v4741 = vmul.f32 %v4735, %v4733
        %v4748 = vrot.slane %v4736, 1
        %v4749 = vrot.slane %v4738, 1
        %v4750 = vsel %vm587, %v4748, %v4749
        %v4751 = vrot.slane %v4737, 1
        %v4752 = vrot.slane %v4739, 1
        %v4753 = vsel %vm587, %v4751, %v4752
        %v4754 = vrot.slane %v4740, 1
        %v4755 = vsel %vm587, %v4749, %v4754
        %v4756 = vrot.slane %v4741, 1
        %v4757 = vsel %vm587, %v4752, %v4756
        %v4762 = vadd.f32 %v4640, %v4750
        %v4763 = vadd.f32 %v4641, %v4753
        %v4764 = vadd.f32 %v4642, %v4755
        %v4765 = vadd.f32 %v4643, %v4757
        %s4766 = sld [smem:[#allocation8 + $0x27]]
        %v4767 = vstv %s4766
        %v4768 = vmul.f32 %v4767, %v4728
        %v4769 = vmul.f32 %v4767, %v4729
        %v4770 = vmul.f32 %v4767, %v4730
        %v4771 = vmul.f32 %v4767, %v4731
        %v4772 = vmul.f32 %v4767, %v4732
        %v4773 = vmul.f32 %v4767, %v4733
        %v4780 = vrot.slane %v4768, 1
        %v4781 = vrot.slane %v4770, 1
        %v4782 = vsel %vm587, %v4780, %v4781
        %v4783 = vrot.slane %v4769, 1
        %v4784 = vrot.slane %v4771, 1
        %v4785 = vsel %vm587, %v4783, %v4784
        %v4786 = vrot.slane %v4772, 1
        %v4787 = vsel %vm587, %v4781, %v4786
        %v4788 = vrot.slane %v4773, 1
        %v4789 = vsel %vm587, %v4784, %v4788
        %v4794 = vadd.f32 %v4668, %v4782
        %v4795 = vadd.f32 %v4669, %v4785
        %v4796 = vadd.f32 %v4670, %v4787
        %v4797 = vadd.f32 %v4671, %v4789
        %s4798 = sld [smem:[#allocation8 + $0x4b]]
        %v4799 = vstv %s4798
        %v4800 = vmul.f32 %v4799, %v4728
        %v4801 = vmul.f32 %v4799, %v4729
        %v4802 = vmul.f32 %v4799, %v4730
        %v4803 = vmul.f32 %v4799, %v4731
        %v4804 = vmul.f32 %v4799, %v4732
        %v4805 = vmul.f32 %v4799, %v4733
        %v4812 = vrot.slane %v4800, 1
        %v4813 = vrot.slane %v4802, 1
        %v4814 = vsel %vm587, %v4812, %v4813
        %v4815 = vrot.slane %v4801, 1
        %v4816 = vrot.slane %v4803, 1
        %v4817 = vsel %vm587, %v4815, %v4816
        %v4818 = vrot.slane %v4804, 1
        %v4819 = vsel %vm587, %v4813, %v4818
        %v4820 = vrot.slane %v4805, 1
        %v4821 = vsel %vm587, %v4816, %v4820
        %v4826 = vadd.f32 %v4696, %v4814
        %v4827 = vadd.f32 %v4697, %v4817
        %v4828 = vadd.f32 %v4698, %v4819
        %v4829 = vadd.f32 %v4699, %v4821
        %s4830 = sld [smem:[#allocation8 + $0x6f]]
        %v4831 = vstv %s4830
        %v4832 = vmul.f32 %v4831, %v4728
        %v4833 = vmul.f32 %v4831, %v4729
        %v4834 = vmul.f32 %v4831, %v4730
        %v4835 = vmul.f32 %v4831, %v4731
        %v4836 = vmul.f32 %v4831, %v4732
        %v4837 = vmul.f32 %v4831, %v4733
        %v4844 = vrot.slane %v4832, 1
        %v4845 = vrot.slane %v4834, 1
        %v4846 = vsel %vm587, %v4844, %v4845
        %v4847 = vrot.slane %v4833, 1
        %v4848 = vrot.slane %v4835, 1
        %v4849 = vsel %vm587, %v4847, %v4848
        %v4850 = vrot.slane %v4836, 1
        %v4851 = vsel %vm587, %v4845, %v4850
        %v4852 = vrot.slane %v4837, 1
        %v4853 = vsel %vm587, %v4848, %v4852
        %v4858 = vadd.f32 %v4724, %v4846
        %v4859 = vadd.f32 %v4725, %v4849
        %v4860 = vadd.f32 %v4726, %v4851
        %v4861 = vadd.f32 %v4727, %v4853
        %s4862 = sld [smem:[#allocation8 + $0x4]]
        %v4863 = vstv %s4862
        %v4864 = vmul.f32 %v4863, %v4728
        %v4865 = vmul.f32 %v4863, %v4729
        %v4866 = vmul.f32 %v4863, %v4730
        %v4867 = vmul.f32 %v4863, %v4731
        %v4868 = vmul.f32 %v4863, %v4732
        %v4869 = vmul.f32 %v4863, %v4733
        %v4876 = vrot.slane %v4864, 1
        %v4877 = vrot.slane %v4866, 1
        %v4878 = vsel %vm587, %v4876, %v4877
        %v4879 = vrot.slane %v4865, 1
        %v4880 = vrot.slane %v4867, 1
        %v4881 = vsel %vm587, %v4879, %v4880
        %v4882 = vrot.slane %v4868, 1
        %v4883 = vsel %vm587, %v4877, %v4882
        %v4884 = vrot.slane %v4869, 1
        %v4885 = vsel %vm587, %v4880, %v4884
        %4886 = vrot.lane.b32.xlu0 %v4878, 127
        %v4887 = vpop.permute.xlu0 %4886
        %4888 = vrot.lane.b32.xlu0 %v4881, 127
        %v4889 = vpop.permute.xlu0 %4888
        %4890 = vrot.lane.b32.xlu0 %v4883, 127
        %v4891 = vpop.permute.xlu0 %4890
        %4892 = vrot.lane.b32.xlu0 %v4885, 127
        %v4893 = vpop.permute.xlu0 %4892
        %v4894 = vsel %vm365, %v4887, %v4889
        %v4895 = vsel %vm365, %v4891, %v4893
        %v4900 = vadd.f32 %v4762, %v4894
        %v4901 = vadd.f32 %v4763, %v4889
        %v4902 = vadd.f32 %v4764, %v4895
        %v4903 = vadd.f32 %v4765, %v4893
        %s4904 = sld [smem:[#allocation8 + $0x28]]
        %v4905 = vstv %s4904
        %v4906 = vmul.f32 %v4905, %v4728
        %v4907 = vmul.f32 %v4905, %v4729
        %v4908 = vmul.f32 %v4905, %v4730
        %v4909 = vmul.f32 %v4905, %v4731
        %v4910 = vmul.f32 %v4905, %v4732
        %v4911 = vmul.f32 %v4905, %v4733
        %v4918 = vrot.slane %v4906, 1
        %v4919 = vrot.slane %v4908, 1
        %v4920 = vsel %vm587, %v4918, %v4919
        %v4921 = vrot.slane %v4907, 1
        %v4922 = vrot.slane %v4909, 1
        %v4923 = vsel %vm587, %v4921, %v4922
        %v4924 = vrot.slane %v4910, 1
        %v4925 = vsel %vm587, %v4919, %v4924
        %v4926 = vrot.slane %v4911, 1
        %v4927 = vsel %vm587, %v4922, %v4926
        %4928 = vrot.lane.b32.xlu0 %v4920, 127
        %v4929 = vpop.permute.xlu0 %4928
        %4930 = vrot.lane.b32.xlu0 %v4923, 127
        %v4931 = vpop.permute.xlu0 %4930
        %4932 = vrot.lane.b32.xlu0 %v4925, 127
        %v4933 = vpop.permute.xlu0 %4932
        %4934 = vrot.lane.b32.xlu0 %v4927, 127
        %v4935 = vpop.permute.xlu0 %4934
        %v4936 = vsel %vm365, %v4929, %v4931
        %v4937 = vsel %vm365, %v4933, %v4935
        %v4942 = vadd.f32 %v4794, %v4936
        %v4943 = vadd.f32 %v4795, %v4931
        %v4944 = vadd.f32 %v4796, %v4937
        %v4945 = vadd.f32 %v4797, %v4935
        %s4946 = sld [smem:[#allocation8 + $0x4c]]
        %v4947 = vstv %s4946
        %v4948 = vmul.f32 %v4947, %v4728
        %v4949 = vmul.f32 %v4947, %v4729
        %v4950 = vmul.f32 %v4947, %v4730
        %v4951 = vmul.f32 %v4947, %v4731
        %v4952 = vmul.f32 %v4947, %v4732
        %v4953 = vmul.f32 %v4947, %v4733
        %v4960 = vrot.slane %v4948, 1
        %v4961 = vrot.slane %v4950, 1
        %v4962 = vsel %vm587, %v4960, %v4961
        %v4963 = vrot.slane %v4949, 1
        %v4964 = vrot.slane %v4951, 1
        %v4965 = vsel %vm587, %v4963, %v4964
        %v4966 = vrot.slane %v4952, 1
        %v4967 = vsel %vm587, %v4961, %v4966
        %v4968 = vrot.slane %v4953, 1
        %v4969 = vsel %vm587, %v4964, %v4968
        %4970 = vrot.lane.b32.xlu0 %v4962, 127
        %v4971 = vpop.permute.xlu0 %4970
        %4972 = vrot.lane.b32.xlu0 %v4965, 127
        %v4973 = vpop.permute.xlu0 %4972
        %4974 = vrot.lane.b32.xlu0 %v4967, 127
        %v4975 = vpop.permute.xlu0 %4974
        %4976 = vrot.lane.b32.xlu0 %v4969, 127
        %v4977 = vpop.permute.xlu0 %4976
        %v4978 = vsel %vm365, %v4971, %v4973
        %v4979 = vsel %vm365, %v4975, %v4977
        %v4984 = vadd.f32 %v4826, %v4978
        %v4985 = vadd.f32 %v4827, %v4973
        %v4986 = vadd.f32 %v4828, %v4979
        %v4987 = vadd.f32 %v4829, %v4977
        %s4988 = sld [smem:[#allocation8 + $0x70]]
        %v4989 = vstv %s4988
        %v4990 = vmul.f32 %v4989, %v4728
        %v4991 = vmul.f32 %v4989, %v4729
        %v4992 = vmul.f32 %v4989, %v4730
        %v4993 = vmul.f32 %v4989, %v4731
        %v4994 = vmul.f32 %v4989, %v4732
        %v4995 = vmul.f32 %v4989, %v4733
        %v5002 = vrot.slane %v4990, 1
        %v5003 = vrot.slane %v4992, 1
        %v5004 = vsel %vm587, %v5002, %v5003
        %v5005 = vrot.slane %v4991, 1
        %v5006 = vrot.slane %v4993, 1
        %v5007 = vsel %vm587, %v5005, %v5006
        %v5008 = vrot.slane %v4994, 1
        %v5009 = vsel %vm587, %v5003, %v5008
        %v5010 = vrot.slane %v4995, 1
        %v5011 = vsel %vm587, %v5006, %v5010
        %5012 = vrot.lane.b32.xlu0 %v5004, 127
        %v5013 = vpop.permute.xlu0 %5012
        %5014 = vrot.lane.b32.xlu0 %v5007, 127
        %v5015 = vpop.permute.xlu0 %5014
        %5016 = vrot.lane.b32.xlu0 %v5009, 127
        %v5017 = vpop.permute.xlu0 %5016
        %5018 = vrot.lane.b32.xlu0 %v5011, 127
        %v5019 = vpop.permute.xlu0 %5018
        %v5020 = vsel %vm365, %v5013, %v5015
        %v5021 = vsel %vm365, %v5017, %v5019
        %v5026 = vadd.f32 %v4858, %v5020
        %v5027 = vadd.f32 %v4859, %v5015
        %v5028 = vadd.f32 %v4860, %v5021
        %v5029 = vadd.f32 %v4861, %v5019
        %s5030 = sld [smem:[#allocation8 + $0x5]]
        %v5031 = vstv %s5030
        %v5032 = vmul.f32 %v5031, %v4728
        %v5033 = vmul.f32 %v5031, %v4729
        %v5034 = vmul.f32 %v5031, %v4730
        %v5035 = vmul.f32 %v5031, %v4731
        %v5036 = vmul.f32 %v5031, %v4732
        %v5037 = vmul.f32 %v5031, %v4733
        %v5044 = vrot.slane %v5032, 1
        %v5045 = vrot.slane %v5034, 1
        %v5046 = vsel %vm587, %v5044, %v5045
        %v5047 = vrot.slane %v5033, 1
        %v5048 = vrot.slane %v5035, 1
        %v5049 = vsel %vm587, %v5047, %v5048
        %v5050 = vrot.slane %v5036, 1
        %v5051 = vsel %vm587, %v5045, %v5050
        %v5052 = vrot.slane %v5037, 1
        %v5053 = vsel %vm587, %v5048, %v5052
        %5054 = vrot.lane.b32.xlu0 %v5046, 126
        %v5055 = vpop.permute.xlu0 %5054
        %5056 = vrot.lane.b32.xlu0 %v5049, 126
        %v5057 = vpop.permute.xlu0 %5056
        %5058 = vrot.lane.b32.xlu0 %v5051, 126
        %v5059 = vpop.permute.xlu0 %5058
        %5060 = vrot.lane.b32.xlu0 %v5053, 126
        %v5061 = vpop.permute.xlu0 %5060
        %v5062 = vsel %vm478, %v5055, %v5057
        %v5063 = vsel %vm478, %v5059, %v5061
        %v5068 = vadd.f32 %v4900, %v5062
        %v5069 = vadd.f32 %v4901, %v5057
        %v5070 = vadd.f32 %v4902, %v5063
        %v5071 = vadd.f32 %v4903, %v5061
        %s5072 = sld [smem:[#allocation8 + $0x29]]
        %v5073 = vstv %s5072
        %v5074 = vmul.f32 %v5073, %v4728
        %v5075 = vmul.f32 %v5073, %v4729
        %v5076 = vmul.f32 %v5073, %v4730
        %v5077 = vmul.f32 %v5073, %v4731
        %v5078 = vmul.f32 %v5073, %v4732
        %v5079 = vmul.f32 %v5073, %v4733
        %v5086 = vrot.slane %v5074, 1
        %v5087 = vrot.slane %v5076, 1
        %v5088 = vsel %vm587, %v5086, %v5087
        %v5089 = vrot.slane %v5075, 1
        %v5090 = vrot.slane %v5077, 1
        %v5091 = vsel %vm587, %v5089, %v5090
        %v5092 = vrot.slane %v5078, 1
        %v5093 = vsel %vm587, %v5087, %v5092
        %v5094 = vrot.slane %v5079, 1
        %v5095 = vsel %vm587, %v5090, %v5094
        %5096 = vrot.lane.b32.xlu0 %v5088, 126
        %v5097 = vpop.permute.xlu0 %5096
        %5098 = vrot.lane.b32.xlu0 %v5091, 126
        %v5099 = vpop.permute.xlu0 %5098
        %5100 = vrot.lane.b32.xlu0 %v5093, 126
        %v5101 = vpop.permute.xlu0 %5100
        %5102 = vrot.lane.b32.xlu0 %v5095, 126
        %v5103 = vpop.permute.xlu0 %5102
        %v5104 = vsel %vm478, %v5097, %v5099
        %v5105 = vsel %vm478, %v5101, %v5103
        %v5110 = vadd.f32 %v4942, %v5104
        %v5111 = vadd.f32 %v4943, %v5099
        %v5112 = vadd.f32 %v4944, %v5105
        %v5113 = vadd.f32 %v4945, %v5103
        %s5114 = sld [smem:[#allocation8 + $0x4d]]
        %v5115 = vstv %s5114
        %v5116 = vmul.f32 %v5115, %v4728
        %v5117 = vmul.f32 %v5115, %v4729
        %v5118 = vmul.f32 %v5115, %v4730
        %v5119 = vmul.f32 %v5115, %v4731
        %v5120 = vmul.f32 %v5115, %v4732
        %v5121 = vmul.f32 %v5115, %v4733
        %v5128 = vrot.slane %v5116, 1
        %v5129 = vrot.slane %v5118, 1
        %v5130 = vsel %vm587, %v5128, %v5129
        %v5131 = vrot.slane %v5117, 1
        %v5132 = vrot.slane %v5119, 1
        %v5133 = vsel %vm587, %v5131, %v5132
        %v5134 = vrot.slane %v5120, 1
        %v5135 = vsel %vm587, %v5129, %v5134
        %v5136 = vrot.slane %v5121, 1
        %v5137 = vsel %vm587, %v5132, %v5136
        %5138 = vrot.lane.b32.xlu0 %v5130, 126
        %v5139 = vpop.permute.xlu0 %5138
        %5140 = vrot.lane.b32.xlu0 %v5133, 126
        %v5141 = vpop.permute.xlu0 %5140
        %5142 = vrot.lane.b32.xlu0 %v5135, 126
        %v5143 = vpop.permute.xlu0 %5142
        %5144 = vrot.lane.b32.xlu0 %v5137, 126
        %v5145 = vpop.permute.xlu0 %5144
        %v5146 = vsel %vm478, %v5139, %v5141
        %v5147 = vsel %vm478, %v5143, %v5145
        %v5152 = vadd.f32 %v4984, %v5146
        %v5153 = vadd.f32 %v4985, %v5141
        %v5154 = vadd.f32 %v4986, %v5147
        %v5155 = vadd.f32 %v4987, %v5145
        %s5156 = sld [smem:[#allocation8 + $0x71]]
        %v5157 = vstv %s5156
        %v5158 = vmul.f32 %v5157, %v4728
        %v5159 = vmul.f32 %v5157, %v4729
        %v5160 = vmul.f32 %v5157, %v4730
        %v5161 = vmul.f32 %v5157, %v4731
        %v5162 = vmul.f32 %v5157, %v4732
        %v5163 = vmul.f32 %v5157, %v4733
        %v5170 = vrot.slane %v5158, 1
        %v5171 = vrot.slane %v5160, 1
        %v5172 = vsel %vm587, %v5170, %v5171
        %v5173 = vrot.slane %v5159, 1
        %v5174 = vrot.slane %v5161, 1
        %v5175 = vsel %vm587, %v5173, %v5174
        %v5176 = vrot.slane %v5162, 1
        %v5177 = vsel %vm587, %v5171, %v5176
        %v5178 = vrot.slane %v5163, 1
        %v5179 = vsel %vm587, %v5174, %v5178
        %5180 = vrot.lane.b32.xlu0 %v5172, 126
        %v5181 = vpop.permute.xlu0 %5180
        %5182 = vrot.lane.b32.xlu0 %v5175, 126
        %v5183 = vpop.permute.xlu0 %5182
        %5184 = vrot.lane.b32.xlu0 %v5177, 126
        %v5185 = vpop.permute.xlu0 %5184
        %5186 = vrot.lane.b32.xlu0 %v5179, 126
        %v5187 = vpop.permute.xlu0 %5186
        %v5188 = vsel %vm478, %v5181, %v5183
        %v5189 = vsel %vm478, %v5185, %v5187
        %v5194 = vadd.f32 %v5026, %v5188
        %v5195 = vadd.f32 %v5027, %v5183
        %v5196 = vadd.f32 %v5028, %v5189
        %v5197 = vadd.f32 %v5029, %v5187
        %v5198 = vld [vmem:[#allocation2] sm:$0xfc]
        %v5199 = vld [vmem:[#allocation2 + $0x8] sm:$0xfc]
        %v5200 = vld [vmem:[#allocation2 + $0x20] sm:$0x3]
        %v5201 = vld [vmem:[#allocation2 + $0x28] sm:$0x3]
        %s5202 = sld [smem:[#allocation8 + $0x6]]
        %v5203 = vstv %s5202
        %v5204 = vmul.f32 %v5203, %v5198
        %v5205 = vmul.f32 %v5203, %v5199
        %v5206 = vmul.f32 %v5203, %v4730
        %v5207 = vmul.f32 %v5203, %v4731
        %v5208 = vmul.f32 %v5203, %v5200
        %v5209 = vmul.f32 %v5203, %v5201
        %v5216 = vrot.slane %v5204, 2
        %v5217 = vrot.slane %v5206, 2
        %v5218 = vsel %vm960, %v5216, %v5217
        %v5219 = vrot.slane %v5205, 2
        %v5220 = vrot.slane %v5207, 2
        %v5221 = vsel %vm960, %v5219, %v5220
        %v5222 = vrot.slane %v5208, 2
        %v5223 = vsel %vm960, %v5217, %v5222
        %v5224 = vrot.slane %v5209, 2
        %v5225 = vsel %vm960, %v5220, %v5224
        %v5230 = vadd.f32 %v5068, %v5218
        %v5231 = vadd.f32 %v5069, %v5221
        %v5232 = vadd.f32 %v5070, %v5223
        %v5233 = vadd.f32 %v5071, %v5225
        %s5234 = sld [smem:[#allocation8 + $0x2a]]
        %v5235 = vstv %s5234
        %v5236 = vmul.f32 %v5235, %v5198
        %v5237 = vmul.f32 %v5235, %v5199
        %v5238 = vmul.f32 %v5235, %v4730
        %v5239 = vmul.f32 %v5235, %v4731
        %v5240 = vmul.f32 %v5235, %v5200
        %v5241 = vmul.f32 %v5235, %v5201
        %v5248 = vrot.slane %v5236, 2
        %v5249 = vrot.slane %v5238, 2
        %v5250 = vsel %vm960, %v5248, %v5249
        %v5251 = vrot.slane %v5237, 2
        %v5252 = vrot.slane %v5239, 2
        %v5253 = vsel %vm960, %v5251, %v5252
        %v5254 = vrot.slane %v5240, 2
        %v5255 = vsel %vm960, %v5249, %v5254
        %v5256 = vrot.slane %v5241, 2
        %v5257 = vsel %vm960, %v5252, %v5256
        %v5262 = vadd.f32 %v5110, %v5250
        %v5263 = vadd.f32 %v5111, %v5253
        %v5264 = vadd.f32 %v5112, %v5255
        %v5265 = vadd.f32 %v5113, %v5257
        %s5266 = sld [smem:[#allocation8 + $0x4e]]
        %v5267 = vstv %s5266
        %v5268 = vmul.f32 %v5267, %v5198
        %v5269 = vmul.f32 %v5267, %v5199
        %v5270 = vmul.f32 %v5267, %v4730
        %v5271 = vmul.f32 %v5267, %v4731
        %v5272 = vmul.f32 %v5267, %v5200
        %v5273 = vmul.f32 %v5267, %v5201
        %v5280 = vrot.slane %v5268, 2
        %v5281 = vrot.slane %v5270, 2
        %v5282 = vsel %vm960, %v5280, %v5281
        %v5283 = vrot.slane %v5269, 2
        %v5284 = vrot.slane %v5271, 2
        %v5285 = vsel %vm960, %v5283, %v5284
        %v5286 = vrot.slane %v5272, 2
        %v5287 = vsel %vm960, %v5281, %v5286
        %v5288 = vrot.slane %v5273, 2
        %v5289 = vsel %vm960, %v5284, %v5288
        %v5294 = vadd.f32 %v5152, %v5282
        %v5295 = vadd.f32 %v5153, %v5285
        %v5296 = vadd.f32 %v5154, %v5287
        %v5297 = vadd.f32 %v5155, %v5289
        %s5298 = sld [smem:[#allocation8 + $0x72]]
        %v5299 = vstv %s5298
        %v5300 = vmul.f32 %v5299, %v5198
        %v5301 = vmul.f32 %v5299, %v5199
        %v5302 = vmul.f32 %v5299, %v4730
        %v5303 = vmul.f32 %v5299, %v4731
        %v5304 = vmul.f32 %v5299, %v5200
        %v5305 = vmul.f32 %v5299, %v5201
        %v5312 = vrot.slane %v5300, 2
        %v5313 = vrot.slane %v5302, 2
        %v5314 = vsel %vm960, %v5312, %v5313
        %v5315 = vrot.slane %v5301, 2
        %v5316 = vrot.slane %v5303, 2
        %v5317 = vsel %vm960, %v5315, %v5316
        %v5318 = vrot.slane %v5304, 2
        %v5319 = vsel %vm960, %v5313, %v5318
        %v5320 = vrot.slane %v5305, 2
        %v5321 = vsel %vm960, %v5316, %v5320
        %v5326 = vadd.f32 %v5194, %v5314
        %v5327 = vadd.f32 %v5195, %v5317
        %v5328 = vadd.f32 %v5196, %v5319
        %v5329 = vadd.f32 %v5197, %v5321
        %s5330 = sld [smem:[#allocation8 + $0x7]]
        %v5331 = vstv %s5330
        %v5332 = vmul.f32 %v5331, %v5198
        %v5333 = vmul.f32 %v5331, %v5199
        %v5334 = vmul.f32 %v5331, %v4730
        %v5335 = vmul.f32 %v5331, %v4731
        %v5336 = vmul.f32 %v5331, %v5200
        %v5337 = vmul.f32 %v5331, %v5201
        %v5344 = vrot.slane %v5332, 2
        %v5345 = vrot.slane %v5334, 2
        %v5346 = vsel %vm960, %v5344, %v5345
        %v5347 = vrot.slane %v5333, 2
        %v5348 = vrot.slane %v5335, 2
        %v5349 = vsel %vm960, %v5347, %v5348
        %v5350 = vrot.slane %v5336, 2
        %v5351 = vsel %vm960, %v5345, %v5350
        %v5352 = vrot.slane %v5337, 2
        %v5353 = vsel %vm960, %v5348, %v5352
        %5354 = vrot.lane.b32.xlu0 %v5346, 127
        %v5355 = vpop.permute.xlu0 %5354
        %5356 = vrot.lane.b32.xlu0 %v5349, 127
        %v5357 = vpop.permute.xlu0 %5356
        %5358 = vrot.lane.b32.xlu0 %v5351, 127
        %v5359 = vpop.permute.xlu0 %5358
        %5360 = vrot.lane.b32.xlu0 %v5353, 127
        %v5361 = vpop.permute.xlu0 %5360
        %v5362 = vsel %vm365, %v5355, %v5357
        %v5363 = vsel %vm365, %v5359, %v5361
        %v5368 = vadd.f32 %v5230, %v5362
        %v5369 = vadd.f32 %v5231, %v5357
        %v5370 = vadd.f32 %v5232, %v5363
        %v5371 = vadd.f32 %v5233, %v5361
        %s5372 = sld [smem:[#allocation8 + $0x2b]]
        %v5373 = vstv %s5372
        %v5374 = vmul.f32 %v5373, %v5198
        %v5375 = vmul.f32 %v5373, %v5199
        %v5376 = vmul.f32 %v5373, %v4730
        %v5377 = vmul.f32 %v5373, %v4731
        %v5378 = vmul.f32 %v5373, %v5200
        %v5379 = vmul.f32 %v5373, %v5201
        %v5386 = vrot.slane %v5374, 2
        %v5387 = vrot.slane %v5376, 2
        %v5388 = vsel %vm960, %v5386, %v5387
        %v5389 = vrot.slane %v5375, 2
        %v5390 = vrot.slane %v5377, 2
        %v5391 = vsel %vm960, %v5389, %v5390
        %v5392 = vrot.slane %v5378, 2
        %v5393 = vsel %vm960, %v5387, %v5392
        %v5394 = vrot.slane %v5379, 2
        %v5395 = vsel %vm960, %v5390, %v5394
        %5396 = vrot.lane.b32.xlu0 %v5388, 127
        %v5397 = vpop.permute.xlu0 %5396
        %5398 = vrot.lane.b32.xlu0 %v5391, 127
        %v5399 = vpop.permute.xlu0 %5398
        %5400 = vrot.lane.b32.xlu0 %v5393, 127
        %v5401 = vpop.permute.xlu0 %5400
        %5402 = vrot.lane.b32.xlu0 %v5395, 127
        %v5403 = vpop.permute.xlu0 %5402
        %v5404 = vsel %vm365, %v5397, %v5399
        %v5405 = vsel %vm365, %v5401, %v5403
        %v5410 = vadd.f32 %v5262, %v5404
        %v5411 = vadd.f32 %v5263, %v5399
        %v5412 = vadd.f32 %v5264, %v5405
        %v5413 = vadd.f32 %v5265, %v5403
        %s5414 = sld [smem:[#allocation8 + $0x4f]]
        %v5415 = vstv %s5414
        %v5416 = vmul.f32 %v5415, %v5198
        %v5417 = vmul.f32 %v5415, %v5199
        %v5418 = vmul.f32 %v5415, %v4730
        %v5419 = vmul.f32 %v5415, %v4731
        %v5420 = vmul.f32 %v5415, %v5200
        %v5421 = vmul.f32 %v5415, %v5201
        %v5428 = vrot.slane %v5416, 2
        %v5429 = vrot.slane %v5418, 2
        %v5430 = vsel %vm960, %v5428, %v5429
        %v5431 = vrot.slane %v5417, 2
        %v5432 = vrot.slane %v5419, 2
        %v5433 = vsel %vm960, %v5431, %v5432
        %v5434 = vrot.slane %v5420, 2
        %v5435 = vsel %vm960, %v5429, %v5434
        %v5436 = vrot.slane %v5421, 2
        %v5437 = vsel %vm960, %v5432, %v5436
        %5438 = vrot.lane.b32.xlu0 %v5430, 127
        %v5439 = vpop.permute.xlu0 %5438
        %5440 = vrot.lane.b32.xlu0 %v5433, 127
        %v5441 = vpop.permute.xlu0 %5440
        %5442 = vrot.lane.b32.xlu0 %v5435, 127
        %v5443 = vpop.permute.xlu0 %5442
        %5444 = vrot.lane.b32.xlu0 %v5437, 127
        %v5445 = vpop.permute.xlu0 %5444
        %v5446 = vsel %vm365, %v5439, %v5441
        %v5447 = vsel %vm365, %v5443, %v5445
        %v5452 = vadd.f32 %v5294, %v5446
        %v5453 = vadd.f32 %v5295, %v5441
        %v5454 = vadd.f32 %v5296, %v5447
        %v5455 = vadd.f32 %v5297, %v5445
        %s5456 = sld [smem:[#allocation8 + $0x73]]
        %v5457 = vstv %s5456
        %v5458 = vmul.f32 %v5457, %v5198
        %v5459 = vmul.f32 %v5457, %v5199
        %v5460 = vmul.f32 %v5457, %v4730
        %v5461 = vmul.f32 %v5457, %v4731
        %v5462 = vmul.f32 %v5457, %v5200
        %v5463 = vmul.f32 %v5457, %v5201
        %v5470 = vrot.slane %v5458, 2
        %v5471 = vrot.slane %v5460, 2
        %v5472 = vsel %vm960, %v5470, %v5471
        %v5473 = vrot.slane %v5459, 2
        %v5474 = vrot.slane %v5461, 2
        %v5475 = vsel %vm960, %v5473, %v5474
        %v5476 = vrot.slane %v5462, 2
        %v5477 = vsel %vm960, %v5471, %v5476
        %v5478 = vrot.slane %v5463, 2
        %v5479 = vsel %vm960, %v5474, %v5478
        %5480 = vrot.lane.b32.xlu0 %v5472, 127
        %v5481 = vpop.permute.xlu0 %5480
        %5482 = vrot.lane.b32.xlu0 %v5475, 127
        %v5483 = vpop.permute.xlu0 %5482
        %5484 = vrot.lane.b32.xlu0 %v5477, 127
        %v5485 = vpop.permute.xlu0 %5484
        %5486 = vrot.lane.b32.xlu0 %v5479, 127
        %v5487 = vpop.permute.xlu0 %5486
        %v5488 = vsel %vm365, %v5481, %v5483
        %v5489 = vsel %vm365, %v5485, %v5487
        %v5494 = vadd.f32 %v5326, %v5488
        %v5495 = vadd.f32 %v5327, %v5483
        %v5496 = vadd.f32 %v5328, %v5489
        %v5497 = vadd.f32 %v5329, %v5487
        %s5498 = sld [smem:[#allocation8 + $0x8]]
        %v5499 = vstv %s5498
        %v5500 = vmul.f32 %v5499, %v5198
        %v5501 = vmul.f32 %v5499, %v5199
        %v5502 = vmul.f32 %v5499, %v4730
        %v5503 = vmul.f32 %v5499, %v4731
        %v5504 = vmul.f32 %v5499, %v5200
        %v5505 = vmul.f32 %v5499, %v5201
        %v5512 = vrot.slane %v5500, 2
        %v5513 = vrot.slane %v5502, 2
        %v5514 = vsel %vm960, %v5512, %v5513
        %v5515 = vrot.slane %v5501, 2
        %v5516 = vrot.slane %v5503, 2
        %v5517 = vsel %vm960, %v5515, %v5516
        %v5518 = vrot.slane %v5504, 2
        %v5519 = vsel %vm960, %v5513, %v5518
        %v5520 = vrot.slane %v5505, 2
        %v5521 = vsel %vm960, %v5516, %v5520
        %5522 = vrot.lane.b32.xlu0 %v5514, 126
        %v5523 = vpop.permute.xlu0 %5522
        %5524 = vrot.lane.b32.xlu0 %v5517, 126
        %v5525 = vpop.permute.xlu0 %5524
        %5526 = vrot.lane.b32.xlu0 %v5519, 126
        %v5527 = vpop.permute.xlu0 %5526
        %5528 = vrot.lane.b32.xlu0 %v5521, 126
        %v5529 = vpop.permute.xlu0 %5528
        %v5530 = vsel %vm478, %v5523, %v5525
        %v5531 = vsel %vm478, %v5527, %v5529
        %v5536 = vadd.f32 %v5368, %v5530
        %v5537 = vadd.f32 %v5369, %v5525
        %v5538 = vadd.f32 %v5370, %v5531
        %v5539 = vadd.f32 %v5371, %v5529
        %s5540 = sld [smem:[#allocation8 + $0x2c]]
        %v5541 = vstv %s5540
        %v5542 = vmul.f32 %v5541, %v5198
        %v5543 = vmul.f32 %v5541, %v5199
        %v5544 = vmul.f32 %v5541, %v4730
        %v5545 = vmul.f32 %v5541, %v4731
        %v5546 = vmul.f32 %v5541, %v5200
        %v5547 = vmul.f32 %v5541, %v5201
        %v5554 = vrot.slane %v5542, 2
        %v5555 = vrot.slane %v5544, 2
        %v5556 = vsel %vm960, %v5554, %v5555
        %v5557 = vrot.slane %v5543, 2
        %v5558 = vrot.slane %v5545, 2
        %v5559 = vsel %vm960, %v5557, %v5558
        %v5560 = vrot.slane %v5546, 2
        %v5561 = vsel %vm960, %v5555, %v5560
        %v5562 = vrot.slane %v5547, 2
        %v5563 = vsel %vm960, %v5558, %v5562
        %5564 = vrot.lane.b32.xlu0 %v5556, 126
        %v5565 = vpop.permute.xlu0 %5564
        %5566 = vrot.lane.b32.xlu0 %v5559, 126
        %v5567 = vpop.permute.xlu0 %5566
        %5568 = vrot.lane.b32.xlu0 %v5561, 126
        %v5569 = vpop.permute.xlu0 %5568
        %5570 = vrot.lane.b32.xlu0 %v5563, 126
        %v5571 = vpop.permute.xlu0 %5570
        %v5572 = vsel %vm478, %v5565, %v5567
        %v5573 = vsel %vm478, %v5569, %v5571
        %v5578 = vadd.f32 %v5410, %v5572
        %v5579 = vadd.f32 %v5411, %v5567
        %v5580 = vadd.f32 %v5412, %v5573
        %v5581 = vadd.f32 %v5413, %v5571
        %s5582 = sld [smem:[#allocation8 + $0x50]]
        %v5583 = vstv %s5582
        %v5584 = vmul.f32 %v5583, %v5198
        %v5585 = vmul.f32 %v5583, %v5199
        %v5586 = vmul.f32 %v5583, %v4730
        %v5587 = vmul.f32 %v5583, %v4731
        %v5588 = vmul.f32 %v5583, %v5200
        %v5589 = vmul.f32 %v5583, %v5201
        %v5596 = vrot.slane %v5584, 2
        %v5597 = vrot.slane %v5586, 2
        %v5598 = vsel %vm960, %v5596, %v5597
        %v5599 = vrot.slane %v5585, 2
        %v5600 = vrot.slane %v5587, 2
        %v5601 = vsel %vm960, %v5599, %v5600
        %v5602 = vrot.slane %v5588, 2
        %v5603 = vsel %vm960, %v5597, %v5602
        %v5604 = vrot.slane %v5589, 2
        %v5605 = vsel %vm960, %v5600, %v5604
        %5606 = vrot.lane.b32.xlu0 %v5598, 126
        %v5607 = vpop.permute.xlu0 %5606
        %5608 = vrot.lane.b32.xlu0 %v5601, 126
        %v5609 = vpop.permute.xlu0 %5608
        %5610 = vrot.lane.b32.xlu0 %v5603, 126
        %v5611 = vpop.permute.xlu0 %5610
        %5612 = vrot.lane.b32.xlu0 %v5605, 126
        %v5613 = vpop.permute.xlu0 %5612
        %v5614 = vsel %vm478, %v5607, %v5609
        %v5615 = vsel %vm478, %v5611, %v5613
        %v5620 = vadd.f32 %v5452, %v5614
        %v5621 = vadd.f32 %v5453, %v5609
        %v5622 = vadd.f32 %v5454, %v5615
        %v5623 = vadd.f32 %v5455, %v5613
        %s5624 = sld [smem:[#allocation8 + $0x74]]
        %v5625 = vstv %s5624
        %v5626 = vmul.f32 %v5625, %v5198
        %v5627 = vmul.f32 %v5625, %v5199
        %v5628 = vmul.f32 %v5625, %v4730
        %v5629 = vmul.f32 %v5625, %v4731
        %v5630 = vmul.f32 %v5625, %v5200
        %v5631 = vmul.f32 %v5625, %v5201
        %v5638 = vrot.slane %v5626, 2
        %v5639 = vrot.slane %v5628, 2
        %v5640 = vsel %vm960, %v5638, %v5639
        %v5641 = vrot.slane %v5627, 2
        %v5642 = vrot.slane %v5629, 2
        %v5643 = vsel %vm960, %v5641, %v5642
        %v5644 = vrot.slane %v5630, 2
        %v5645 = vsel %vm960, %v5639, %v5644
        %v5646 = vrot.slane %v5631, 2
        %v5647 = vsel %vm960, %v5642, %v5646
        %5648 = vrot.lane.b32.xlu0 %v5640, 126
        %v5649 = vpop.permute.xlu0 %5648
        %5650 = vrot.lane.b32.xlu0 %v5643, 126
        %v5651 = vpop.permute.xlu0 %5650
        %5652 = vrot.lane.b32.xlu0 %v5645, 126
        %v5653 = vpop.permute.xlu0 %5652
        %5654 = vrot.lane.b32.xlu0 %v5647, 126
        %v5655 = vpop.permute.xlu0 %5654
        %v5656 = vsel %vm478, %v5649, %v5651
        %v5657 = vsel %vm478, %v5653, %v5655
        %v5662 = vadd.f32 %v5494, %v5656
        %v5663 = vadd.f32 %v5495, %v5651
        %v5664 = vadd.f32 %v5496, %v5657
        %v5665 = vadd.f32 %v5497, %v5655
        %v5666 = vld [vmem:[%s288] sm:$0xff]
        %v5667 = vld [vmem:[%s288 + $0x8] sm:$0xff]
        %v5668 = vld [vmem:[%s288 + $0x10] sm:$0xff]
        %v5669 = vld [vmem:[%s288 + $0x18] sm:$0xff]
        %s5670 = sld [smem:[#allocation8 + $0x9]]
        %v5671 = vstv %s5670
        %v5672 = vmul.f32 %v5671, %v5666
        %v5673 = vmul.f32 %v5671, %v5667
        %v5674 = vmul.f32 %v5671, %v5668
        %v5675 = vmul.f32 %v5671, %v5669
        %v5676 = vadd.f32 %v5536, %v5672
        %v5677 = vadd.f32 %v5537, %v5673
        %v5678 = vadd.f32 %v5538, %v5674
        %v5679 = vadd.f32 %v5539, %v5675
        %s5680 = sld [smem:[#allocation8 + $0x2d]]
        %v5681 = vstv %s5680
        %v5682 = vmul.f32 %v5681, %v5666
        %v5683 = vmul.f32 %v5681, %v5667
        %v5684 = vmul.f32 %v5681, %v5668
        %v5685 = vmul.f32 %v5681, %v5669
        %v5686 = vadd.f32 %v5578, %v5682
        %v5687 = vadd.f32 %v5579, %v5683
        %v5688 = vadd.f32 %v5580, %v5684
        %v5689 = vadd.f32 %v5581, %v5685
        %s5690 = sld [smem:[#allocation8 + $0x51]]
        %v5691 = vstv %s5690
        %v5692 = vmul.f32 %v5691, %v5666
        %v5693 = vmul.f32 %v5691, %v5667
        %v5694 = vmul.f32 %v5691, %v5668
        %v5695 = vmul.f32 %v5691, %v5669
        %v5696 = vadd.f32 %v5620, %v5692
        %v5697 = vadd.f32 %v5621, %v5693
        %v5698 = vadd.f32 %v5622, %v5694
        %v5699 = vadd.f32 %v5623, %v5695
        %s5700 = sld [smem:[#allocation8 + $0x75]]
        %v5701 = vstv %s5700
        %v5702 = vmul.f32 %v5701, %v5666
        %v5703 = vmul.f32 %v5701, %v5667
        %v5704 = vmul.f32 %v5701, %v5668
        %v5705 = vmul.f32 %v5701, %v5669
        %v5706 = vadd.f32 %v5662, %v5702
        %v5707 = vadd.f32 %v5663, %v5703
        %v5708 = vadd.f32 %v5664, %v5704
        %v5709 = vadd.f32 %v5665, %v5705
        %s5710 = sld [smem:[#allocation8 + $0xa]]
        %v5711 = vstv %s5710
        %v5712 = vmul.f32 %v5711, %v5666
        %v5713 = vmul.f32 %v5711, %v5667
        %v5714 = vmul.f32 %v5711, %v5668
        %v5715 = vmul.f32 %v5711, %v5669
        %5720 = vrot.lane.b32.xlu0 %v5712, 127
        %v5721 = vpop.permute.xlu0 %5720
        %5722 = vrot.lane.b32.xlu0 %v5713, 127
        %v5723 = vpop.permute.xlu0 %5722
        %5724 = vrot.lane.b32.xlu0 %v5714, 127
        %v5725 = vpop.permute.xlu0 %5724
        %5726 = vrot.lane.b32.xlu0 %v5715, 127
        %v5727 = vpop.permute.xlu0 %5726
        %v5728 = vsel %vm365, %v5721, %v5723
        %v5729 = vsel %vm365, %v5725, %v5727
        %v5734 = vadd.f32 %v5676, %v5728
        %v5735 = vadd.f32 %v5677, %v5723
        %v5736 = vadd.f32 %v5678, %v5729
        %v5737 = vadd.f32 %v5679, %v5727
        %s5738 = sld [smem:[#allocation8 + $0x2e]]
        %v5739 = vstv %s5738
        %v5740 = vmul.f32 %v5739, %v5666
        %v5741 = vmul.f32 %v5739, %v5667
        %v5742 = vmul.f32 %v5739, %v5668
        %v5743 = vmul.f32 %v5739, %v5669
        %5748 = vrot.lane.b32.xlu0 %v5740, 127
        %v5749 = vpop.permute.xlu0 %5748
        %5750 = vrot.lane.b32.xlu0 %v5741, 127
        %v5751 = vpop.permute.xlu0 %5750
        %5752 = vrot.lane.b32.xlu0 %v5742, 127
        %v5753 = vpop.permute.xlu0 %5752
        %5754 = vrot.lane.b32.xlu0 %v5743, 127
        %v5755 = vpop.permute.xlu0 %5754
        %v5756 = vsel %vm365, %v5749, %v5751
        %v5757 = vsel %vm365, %v5753, %v5755
        %v5762 = vadd.f32 %v5686, %v5756
        %v5763 = vadd.f32 %v5687, %v5751
        %v5764 = vadd.f32 %v5688, %v5757
        %v5765 = vadd.f32 %v5689, %v5755
        %s5766 = sld [smem:[#allocation8 + $0x52]]
        %v5767 = vstv %s5766
        %v5768 = vmul.f32 %v5767, %v5666
        %v5769 = vmul.f32 %v5767, %v5667
        %v5770 = vmul.f32 %v5767, %v5668
        %v5771 = vmul.f32 %v5767, %v5669
        %5776 = vrot.lane.b32.xlu0 %v5768, 127
        %v5777 = vpop.permute.xlu0 %5776
        %5778 = vrot.lane.b32.xlu0 %v5769, 127
        %v5779 = vpop.permute.xlu0 %5778
        %5780 = vrot.lane.b32.xlu0 %v5770, 127
        %v5781 = vpop.permute.xlu0 %5780
        %5782 = vrot.lane.b32.xlu0 %v5771, 127
        %v5783 = vpop.permute.xlu0 %5782
        %v5784 = vsel %vm365, %v5777, %v5779
        %v5785 = vsel %vm365, %v5781, %v5783
        %v5790 = vadd.f32 %v5696, %v5784
        %v5791 = vadd.f32 %v5697, %v5779
        %v5792 = vadd.f32 %v5698, %v5785
        %v5793 = vadd.f32 %v5699, %v5783
        %s5794 = sld [smem:[#allocation8 + $0x76]]
        %v5795 = vstv %s5794
        %v5796 = vmul.f32 %v5795, %v5666
        %v5797 = vmul.f32 %v5795, %v5667
        %v5798 = vmul.f32 %v5795, %v5668
        %v5799 = vmul.f32 %v5795, %v5669
        %5804 = vrot.lane.b32.xlu0 %v5796, 127
        %v5805 = vpop.permute.xlu0 %5804
        %5806 = vrot.lane.b32.xlu0 %v5797, 127
        %v5807 = vpop.permute.xlu0 %5806
        %5808 = vrot.lane.b32.xlu0 %v5798, 127
        %v5809 = vpop.permute.xlu0 %5808
        %5810 = vrot.lane.b32.xlu0 %v5799, 127
        %v5811 = vpop.permute.xlu0 %5810
        %v5812 = vsel %vm365, %v5805, %v5807
        %v5813 = vsel %vm365, %v5809, %v5811
        %v5818 = vadd.f32 %v5706, %v5812
        %v5819 = vadd.f32 %v5707, %v5807
        %v5820 = vadd.f32 %v5708, %v5813
        %v5821 = vadd.f32 %v5709, %v5811
        %s5822 = sld [smem:[#allocation8 + $0xb]]
        %v5823 = vstv %s5822
        %v5824 = vmul.f32 %v5823, %v5666
        %v5825 = vmul.f32 %v5823, %v5667
        %v5826 = vmul.f32 %v5823, %v5668
        %v5827 = vmul.f32 %v5823, %v5669
        %5832 = vrot.lane.b32.xlu0 %v5824, 126
        %v5833 = vpop.permute.xlu0 %5832
        %5834 = vrot.lane.b32.xlu0 %v5825, 126
        %v5835 = vpop.permute.xlu0 %5834
        %5836 = vrot.lane.b32.xlu0 %v5826, 126
        %v5837 = vpop.permute.xlu0 %5836
        %5838 = vrot.lane.b32.xlu0 %v5827, 126
        %v5839 = vpop.permute.xlu0 %5838
        %v5840 = vsel %vm478, %v5833, %v5835
        %v5841 = vsel %vm478, %v5837, %v5839
        %v5846 = vadd.f32 %v5734, %v5840
        %v5847 = vadd.f32 %v5735, %v5835
        %v5848 = vadd.f32 %v5736, %v5841
        %v5849 = vadd.f32 %v5737, %v5839
        %s5850 = sld [smem:[#allocation8 + $0x2f]]
        %v5851 = vstv %s5850
        %v5852 = vmul.f32 %v5851, %v5666
        %v5853 = vmul.f32 %v5851, %v5667
        %v5854 = vmul.f32 %v5851, %v5668
        %v5855 = vmul.f32 %v5851, %v5669
        %5860 = vrot.lane.b32.xlu0 %v5852, 126
        %v5861 = vpop.permute.xlu0 %5860
        %5862 = vrot.lane.b32.xlu0 %v5853, 126
        %v5863 = vpop.permute.xlu0 %5862
        %5864 = vrot.lane.b32.xlu0 %v5854, 126
        %v5865 = vpop.permute.xlu0 %5864
        %5866 = vrot.lane.b32.xlu0 %v5855, 126
        %v5867 = vpop.permute.xlu0 %5866
        %v5868 = vsel %vm478, %v5861, %v5863
        %v5869 = vsel %vm478, %v5865, %v5867
        %v5874 = vadd.f32 %v5762, %v5868
        %v5875 = vadd.f32 %v5763, %v5863
        %v5876 = vadd.f32 %v5764, %v5869
        %v5877 = vadd.f32 %v5765, %v5867
        %s5878 = sld [smem:[#allocation8 + $0x53]]
        %v5879 = vstv %s5878
        %v5880 = vmul.f32 %v5879, %v5666
        %v5881 = vmul.f32 %v5879, %v5667
        %v5882 = vmul.f32 %v5879, %v5668
        %v5883 = vmul.f32 %v5879, %v5669
        %5888 = vrot.lane.b32.xlu0 %v5880, 126
        %v5889 = vpop.permute.xlu0 %5888
        %5890 = vrot.lane.b32.xlu0 %v5881, 126
        %v5891 = vpop.permute.xlu0 %5890
        %5892 = vrot.lane.b32.xlu0 %v5882, 126
        %v5893 = vpop.permute.xlu0 %5892
        %5894 = vrot.lane.b32.xlu0 %v5883, 126
        %v5895 = vpop.permute.xlu0 %5894
        %v5896 = vsel %vm478, %v5889, %v5891
        %v5897 = vsel %vm478, %v5893, %v5895
        %v5902 = vadd.f32 %v5790, %v5896
        %v5903 = vadd.f32 %v5791, %v5891
        %v5904 = vadd.f32 %v5792, %v5897
        %v5905 = vadd.f32 %v5793, %v5895
        %s5906 = sld [smem:[#allocation8 + $0x77]]
        %v5907 = vstv %s5906
        %v5908 = vmul.f32 %v5907, %v5666
        %v5909 = vmul.f32 %v5907, %v5667
        %v5910 = vmul.f32 %v5907, %v5668
        %v5911 = vmul.f32 %v5907, %v5669
        %5916 = vrot.lane.b32.xlu0 %v5908, 126
        %v5917 = vpop.permute.xlu0 %5916
        %5918 = vrot.lane.b32.xlu0 %v5909, 126
        %v5919 = vpop.permute.xlu0 %5918
        %5920 = vrot.lane.b32.xlu0 %v5910, 126
        %v5921 = vpop.permute.xlu0 %5920
        %5922 = vrot.lane.b32.xlu0 %v5911, 126
        %v5923 = vpop.permute.xlu0 %5922
        %v5924 = vsel %vm478, %v5917, %v5919
        %v5925 = vsel %vm478, %v5921, %v5923
        %v5930 = vadd.f32 %v5818, %v5924
        %v5931 = vadd.f32 %v5819, %v5919
        %v5932 = vadd.f32 %v5820, %v5925
        %v5933 = vadd.f32 %v5821, %v5923
        %v5934 = vld [vmem:[%s288] sm:$0xfe]
        %v5935 = vld [vmem:[%s288 + $0x8] sm:$0xfe]
        %v5936 = vld [vmem:[%s288 + $0x10] sm:$0xff]
        %v5937 = vld [vmem:[%s288 + $0x18] sm:$0xff]
        %v5938 = vld [vmem:[%s288 + $0x20] sm:$0x1]
        %v5939 = vld [vmem:[%s288 + $0x28] sm:$0x1]
        %s5940 = sld [smem:[#allocation8 + $0xc]]
        %v5941 = vstv %s5940
        %v5942 = vmul.f32 %v5941, %v5934
        %v5943 = vmul.f32 %v5941, %v5935
        %v5944 = vmul.f32 %v5941, %v5936
        %v5945 = vmul.f32 %v5941, %v5937
        %v5946 = vmul.f32 %v5941, %v5938
        %v5947 = vmul.f32 %v5941, %v5939
        %v5954 = vrot.slane %v5942, 1
        %v5955 = vrot.slane %v5944, 1
        %v5956 = vsel %vm587, %v5954, %v5955
        %v5957 = vrot.slane %v5943, 1
        %v5958 = vrot.slane %v5945, 1
        %v5959 = vsel %vm587, %v5957, %v5958
        %v5960 = vrot.slane %v5946, 1
        %v5961 = vsel %vm587, %v5955, %v5960
        %v5962 = vrot.slane %v5947, 1
        %v5963 = vsel %vm587, %v5958, %v5962
        %v5968 = vadd.f32 %v5846, %v5956
        %v5969 = vadd.f32 %v5847, %v5959
        %v5970 = vadd.f32 %v5848, %v5961
        %v5971 = vadd.f32 %v5849, %v5963
        %s5972 = sld [smem:[#allocation8 + $0x30]]
        %v5973 = vstv %s5972
        %v5974 = vmul.f32 %v5973, %v5934
        %v5975 = vmul.f32 %v5973, %v5935
        %v5976 = vmul.f32 %v5973, %v5936
        %v5977 = vmul.f32 %v5973, %v5937
        %v5978 = vmul.f32 %v5973, %v5938
        %v5979 = vmul.f32 %v5973, %v5939
        %v5986 = vrot.slane %v5974, 1
        %v5987 = vrot.slane %v5976, 1
        %v5988 = vsel %vm587, %v5986, %v5987
        %v5989 = vrot.slane %v5975, 1
        %v5990 = vrot.slane %v5977, 1
        %v5991 = vsel %vm587, %v5989, %v5990
        %v5992 = vrot.slane %v5978, 1
        %v5993 = vsel %vm587, %v5987, %v5992
        %v5994 = vrot.slane %v5979, 1
        %v5995 = vsel %vm587, %v5990, %v5994
        %v6000 = vadd.f32 %v5874, %v5988
        %v6001 = vadd.f32 %v5875, %v5991
        %v6002 = vadd.f32 %v5876, %v5993
        %v6003 = vadd.f32 %v5877, %v5995
        %s6004 = sld [smem:[#allocation8 + $0x54]]
        %v6005 = vstv %s6004
        %v6006 = vmul.f32 %v6005, %v5934
        %v6007 = vmul.f32 %v6005, %v5935
        %v6008 = vmul.f32 %v6005, %v5936
        %v6009 = vmul.f32 %v6005, %v5937
        %v6010 = vmul.f32 %v6005, %v5938
        %v6011 = vmul.f32 %v6005, %v5939
        %v6018 = vrot.slane %v6006, 1
        %v6019 = vrot.slane %v6008, 1
        %v6020 = vsel %vm587, %v6018, %v6019
        %v6021 = vrot.slane %v6007, 1
        %v6022 = vrot.slane %v6009, 1
        %v6023 = vsel %vm587, %v6021, %v6022
        %v6024 = vrot.slane %v6010, 1
        %v6025 = vsel %vm587, %v6019, %v6024
        %v6026 = vrot.slane %v6011, 1
        %v6027 = vsel %vm587, %v6022, %v6026
        %v6032 = vadd.f32 %v5902, %v6020
        %v6033 = vadd.f32 %v5903, %v6023
        %v6034 = vadd.f32 %v5904, %v6025
        %v6035 = vadd.f32 %v5905, %v6027
        %s6036 = sld [smem:[#allocation8 + $0x78]]
        %v6037 = vstv %s6036
        %v6038 = vmul.f32 %v6037, %v5934
        %v6039 = vmul.f32 %v6037, %v5935
        %v6040 = vmul.f32 %v6037, %v5936
        %v6041 = vmul.f32 %v6037, %v5937
        %v6042 = vmul.f32 %v6037, %v5938
        %v6043 = vmul.f32 %v6037, %v5939
        %v6050 = vrot.slane %v6038, 1
        %v6051 = vrot.slane %v6040, 1
        %v6052 = vsel %vm587, %v6050, %v6051
        %v6053 = vrot.slane %v6039, 1
        %v6054 = vrot.slane %v6041, 1
        %v6055 = vsel %vm587, %v6053, %v6054
        %v6056 = vrot.slane %v6042, 1
        %v6057 = vsel %vm587, %v6051, %v6056
        %v6058 = vrot.slane %v6043, 1
        %v6059 = vsel %vm587, %v6054, %v6058
        %v6064 = vadd.f32 %v5930, %v6052
        %v6065 = vadd.f32 %v5931, %v6055
        %v6066 = vadd.f32 %v5932, %v6057
        %v6067 = vadd.f32 %v5933, %v6059
        %s6068 = sld [smem:[#allocation8 + $0xd]]
        %v6069 = vstv %s6068
        %v6070 = vmul.f32 %v6069, %v5934
        %v6071 = vmul.f32 %v6069, %v5935
        %v6072 = vmul.f32 %v6069, %v5936
        %v6073 = vmul.f32 %v6069, %v5937
        %v6074 = vmul.f32 %v6069, %v5938
        %v6075 = vmul.f32 %v6069, %v5939
        %v6082 = vrot.slane %v6070, 1
        %v6083 = vrot.slane %v6072, 1
        %v6084 = vsel %vm587, %v6082, %v6083
        %v6085 = vrot.slane %v6071, 1
        %v6086 = vrot.slane %v6073, 1
        %v6087 = vsel %vm587, %v6085, %v6086
        %v6088 = vrot.slane %v6074, 1
        %v6089 = vsel %vm587, %v6083, %v6088
        %v6090 = vrot.slane %v6075, 1
        %v6091 = vsel %vm587, %v6086, %v6090
        %6092 = vrot.lane.b32.xlu0 %v6084, 127
        %v6093 = vpop.permute.xlu0 %6092
        %6094 = vrot.lane.b32.xlu0 %v6087, 127
        %v6095 = vpop.permute.xlu0 %6094
        %6096 = vrot.lane.b32.xlu0 %v6089, 127
        %v6097 = vpop.permute.xlu0 %6096
        %6098 = vrot.lane.b32.xlu0 %v6091, 127
        %v6099 = vpop.permute.xlu0 %6098
        %v6100 = vsel %vm365, %v6093, %v6095
        %v6101 = vsel %vm365, %v6097, %v6099
        %v6106 = vadd.f32 %v5968, %v6100
        %v6107 = vadd.f32 %v5969, %v6095
        %v6108 = vadd.f32 %v5970, %v6101
        %v6109 = vadd.f32 %v5971, %v6099
        %s6110 = sld [smem:[#allocation8 + $0x31]]
        %v6111 = vstv %s6110
        %v6112 = vmul.f32 %v6111, %v5934
        %v6113 = vmul.f32 %v6111, %v5935
        %v6114 = vmul.f32 %v6111, %v5936
        %v6115 = vmul.f32 %v6111, %v5937
        %v6116 = vmul.f32 %v6111, %v5938
        %v6117 = vmul.f32 %v6111, %v5939
        %v6124 = vrot.slane %v6112, 1
        %v6125 = vrot.slane %v6114, 1
        %v6126 = vsel %vm587, %v6124, %v6125
        %v6127 = vrot.slane %v6113, 1
        %v6128 = vrot.slane %v6115, 1
        %v6129 = vsel %vm587, %v6127, %v6128
        %v6130 = vrot.slane %v6116, 1
        %v6131 = vsel %vm587, %v6125, %v6130
        %v6132 = vrot.slane %v6117, 1
        %v6133 = vsel %vm587, %v6128, %v6132
        %6134 = vrot.lane.b32.xlu0 %v6126, 127
        %v6135 = vpop.permute.xlu0 %6134
        %6136 = vrot.lane.b32.xlu0 %v6129, 127
        %v6137 = vpop.permute.xlu0 %6136
        %6138 = vrot.lane.b32.xlu0 %v6131, 127
        %v6139 = vpop.permute.xlu0 %6138
        %6140 = vrot.lane.b32.xlu0 %v6133, 127
        %v6141 = vpop.permute.xlu0 %6140
        %v6142 = vsel %vm365, %v6135, %v6137
        %v6143 = vsel %vm365, %v6139, %v6141
        %v6148 = vadd.f32 %v6000, %v6142
        %v6149 = vadd.f32 %v6001, %v6137
        %v6150 = vadd.f32 %v6002, %v6143
        %v6151 = vadd.f32 %v6003, %v6141
        %s6152 = sld [smem:[#allocation8 + $0x55]]
        %v6153 = vstv %s6152
        %v6154 = vmul.f32 %v6153, %v5934
        %v6155 = vmul.f32 %v6153, %v5935
        %v6156 = vmul.f32 %v6153, %v5936
        %v6157 = vmul.f32 %v6153, %v5937
        %v6158 = vmul.f32 %v6153, %v5938
        %v6159 = vmul.f32 %v6153, %v5939
        %v6166 = vrot.slane %v6154, 1
        %v6167 = vrot.slane %v6156, 1
        %v6168 = vsel %vm587, %v6166, %v6167
        %v6169 = vrot.slane %v6155, 1
        %v6170 = vrot.slane %v6157, 1
        %v6171 = vsel %vm587, %v6169, %v6170
        %v6172 = vrot.slane %v6158, 1
        %v6173 = vsel %vm587, %v6167, %v6172
        %v6174 = vrot.slane %v6159, 1
        %v6175 = vsel %vm587, %v6170, %v6174
        %6176 = vrot.lane.b32.xlu0 %v6168, 127
        %v6177 = vpop.permute.xlu0 %6176
        %6178 = vrot.lane.b32.xlu0 %v6171, 127
        %v6179 = vpop.permute.xlu0 %6178
        %6180 = vrot.lane.b32.xlu0 %v6173, 127
        %v6181 = vpop.permute.xlu0 %6180
        %6182 = vrot.lane.b32.xlu0 %v6175, 127
        %v6183 = vpop.permute.xlu0 %6182
        %v6184 = vsel %vm365, %v6177, %v6179
        %v6185 = vsel %vm365, %v6181, %v6183
        %v6190 = vadd.f32 %v6032, %v6184
        %v6191 = vadd.f32 %v6033, %v6179
        %v6192 = vadd.f32 %v6034, %v6185
        %v6193 = vadd.f32 %v6035, %v6183
        %s6194 = sld [smem:[#allocation8 + $0x79]]
        %v6195 = vstv %s6194
        %v6196 = vmul.f32 %v6195, %v5934
        %v6197 = vmul.f32 %v6195, %v5935
        %v6198 = vmul.f32 %v6195, %v5936
        %v6199 = vmul.f32 %v6195, %v5937
        %v6200 = vmul.f32 %v6195, %v5938
        %v6201 = vmul.f32 %v6195, %v5939
        %v6208 = vrot.slane %v6196, 1
        %v6209 = vrot.slane %v6198, 1
        %v6210 = vsel %vm587, %v6208, %v6209
        %v6211 = vrot.slane %v6197, 1
        %v6212 = vrot.slane %v6199, 1
        %v6213 = vsel %vm587, %v6211, %v6212
        %v6214 = vrot.slane %v6200, 1
        %v6215 = vsel %vm587, %v6209, %v6214
        %v6216 = vrot.slane %v6201, 1
        %v6217 = vsel %vm587, %v6212, %v6216
        %6218 = vrot.lane.b32.xlu0 %v6210, 127
        %v6219 = vpop.permute.xlu0 %6218
        %6220 = vrot.lane.b32.xlu0 %v6213, 127
        %v6221 = vpop.permute.xlu0 %6220
        %6222 = vrot.lane.b32.xlu0 %v6215, 127
        %v6223 = vpop.permute.xlu0 %6222
        %6224 = vrot.lane.b32.xlu0 %v6217, 127
        %v6225 = vpop.permute.xlu0 %6224
        %v6226 = vsel %vm365, %v6219, %v6221
        %v6227 = vsel %vm365, %v6223, %v6225
        %v6232 = vadd.f32 %v6064, %v6226
        %v6233 = vadd.f32 %v6065, %v6221
        %v6234 = vadd.f32 %v6066, %v6227
        %v6235 = vadd.f32 %v6067, %v6225
        %s6236 = sld [smem:[#allocation8 + $0xe]]
        %v6237 = vstv %s6236
        %v6238 = vmul.f32 %v6237, %v5934
        %v6239 = vmul.f32 %v6237, %v5935
        %v6240 = vmul.f32 %v6237, %v5936
        %v6241 = vmul.f32 %v6237, %v5937
        %v6242 = vmul.f32 %v6237, %v5938
        %v6243 = vmul.f32 %v6237, %v5939
        %v6250 = vrot.slane %v6238, 1
        %v6251 = vrot.slane %v6240, 1
        %v6252 = vsel %vm587, %v6250, %v6251
        %v6253 = vrot.slane %v6239, 1
        %v6254 = vrot.slane %v6241, 1
        %v6255 = vsel %vm587, %v6253, %v6254
        %v6256 = vrot.slane %v6242, 1
        %v6257 = vsel %vm587, %v6251, %v6256
        %v6258 = vrot.slane %v6243, 1
        %v6259 = vsel %vm587, %v6254, %v6258
        %6260 = vrot.lane.b32.xlu0 %v6252, 126
        %v6261 = vpop.permute.xlu0 %6260
        %6262 = vrot.lane.b32.xlu0 %v6255, 126
        %v6263 = vpop.permute.xlu0 %6262
        %6264 = vrot.lane.b32.xlu0 %v6257, 126
        %v6265 = vpop.permute.xlu0 %6264
        %6266 = vrot.lane.b32.xlu0 %v6259, 126
        %v6267 = vpop.permute.xlu0 %6266
        %v6268 = vsel %vm478, %v6261, %v6263
        %v6269 = vsel %vm478, %v6265, %v6267
        %v6274 = vadd.f32 %v6106, %v6268
        %v6275 = vadd.f32 %v6107, %v6263
        %v6276 = vadd.f32 %v6108, %v6269
        %v6277 = vadd.f32 %v6109, %v6267
        %s6278 = sld [smem:[#allocation8 + $0x32]]
        %v6279 = vstv %s6278
        %v6280 = vmul.f32 %v6279, %v5934
        %v6281 = vmul.f32 %v6279, %v5935
        %v6282 = vmul.f32 %v6279, %v5936
        %v6283 = vmul.f32 %v6279, %v5937
        %v6284 = vmul.f32 %v6279, %v5938
        %v6285 = vmul.f32 %v6279, %v5939
        %v6292 = vrot.slane %v6280, 1
        %v6293 = vrot.slane %v6282, 1
        %v6294 = vsel %vm587, %v6292, %v6293
        %v6295 = vrot.slane %v6281, 1
        %v6296 = vrot.slane %v6283, 1
        %v6297 = vsel %vm587, %v6295, %v6296
        %v6298 = vrot.slane %v6284, 1
        %v6299 = vsel %vm587, %v6293, %v6298
        %v6300 = vrot.slane %v6285, 1
        %v6301 = vsel %vm587, %v6296, %v6300
        %6302 = vrot.lane.b32.xlu0 %v6294, 126
        %v6303 = vpop.permute.xlu0 %6302
        %6304 = vrot.lane.b32.xlu0 %v6297, 126
        %v6305 = vpop.permute.xlu0 %6304
        %6306 = vrot.lane.b32.xlu0 %v6299, 126
        %v6307 = vpop.permute.xlu0 %6306
        %6308 = vrot.lane.b32.xlu0 %v6301, 126
        %v6309 = vpop.permute.xlu0 %6308
        %v6310 = vsel %vm478, %v6303, %v6305
        %v6311 = vsel %vm478, %v6307, %v6309
        %v6316 = vadd.f32 %v6148, %v6310
        %v6317 = vadd.f32 %v6149, %v6305
        %v6318 = vadd.f32 %v6150, %v6311
        %v6319 = vadd.f32 %v6151, %v6309
        %s6320 = sld [smem:[#allocation8 + $0x56]]
        %v6321 = vstv %s6320
        %v6322 = vmul.f32 %v6321, %v5934
        %v6323 = vmul.f32 %v6321, %v5935
        %v6324 = vmul.f32 %v6321, %v5936
        %v6325 = vmul.f32 %v6321, %v5937
        %v6326 = vmul.f32 %v6321, %v5938
        %v6327 = vmul.f32 %v6321, %v5939
        %v6334 = vrot.slane %v6322, 1
        %v6335 = vrot.slane %v6324, 1
        %v6336 = vsel %vm587, %v6334, %v6335
        %v6337 = vrot.slane %v6323, 1
        %v6338 = vrot.slane %v6325, 1
        %v6339 = vsel %vm587, %v6337, %v6338
        %v6340 = vrot.slane %v6326, 1
        %v6341 = vsel %vm587, %v6335, %v6340
        %v6342 = vrot.slane %v6327, 1
        %v6343 = vsel %vm587, %v6338, %v6342
        %6344 = vrot.lane.b32.xlu0 %v6336, 126
        %v6345 = vpop.permute.xlu0 %6344
        %6346 = vrot.lane.b32.xlu0 %v6339, 126
        %v6347 = vpop.permute.xlu0 %6346
        %6348 = vrot.lane.b32.xlu0 %v6341, 126
        %v6349 = vpop.permute.xlu0 %6348
        %6350 = vrot.lane.b32.xlu0 %v6343, 126
        %v6351 = vpop.permute.xlu0 %6350
        %v6352 = vsel %vm478, %v6345, %v6347
        %v6353 = vsel %vm478, %v6349, %v6351
        %v6358 = vadd.f32 %v6190, %v6352
        %v6359 = vadd.f32 %v6191, %v6347
        %v6360 = vadd.f32 %v6192, %v6353
        %v6361 = vadd.f32 %v6193, %v6351
        %s6362 = sld [smem:[#allocation8 + $0x7a]]
        %v6363 = vstv %s6362
        %v6364 = vmul.f32 %v6363, %v5934
        %v6365 = vmul.f32 %v6363, %v5935
        %v6366 = vmul.f32 %v6363, %v5936
        %v6367 = vmul.f32 %v6363, %v5937
        %v6368 = vmul.f32 %v6363, %v5938
        %v6369 = vmul.f32 %v6363, %v5939
        %v6376 = vrot.slane %v6364, 1
        %v6377 = vrot.slane %v6366, 1
        %v6378 = vsel %vm587, %v6376, %v6377
        %v6379 = vrot.slane %v6365, 1
        %v6380 = vrot.slane %v6367, 1
        %v6381 = vsel %vm587, %v6379, %v6380
        %v6382 = vrot.slane %v6368, 1
        %v6383 = vsel %vm587, %v6377, %v6382
        %v6384 = vrot.slane %v6369, 1
        %v6385 = vsel %vm587, %v6380, %v6384
        %6386 = vrot.lane.b32.xlu0 %v6378, 126
        %v6387 = vpop.permute.xlu0 %6386
        %6388 = vrot.lane.b32.xlu0 %v6381, 126
        %v6389 = vpop.permute.xlu0 %6388
        %6390 = vrot.lane.b32.xlu0 %v6383, 126
        %v6391 = vpop.permute.xlu0 %6390
        %6392 = vrot.lane.b32.xlu0 %v6385, 126
        %v6393 = vpop.permute.xlu0 %6392
        %v6394 = vsel %vm478, %v6387, %v6389
        %v6395 = vsel %vm478, %v6391, %v6393
        %v6400 = vadd.f32 %v6232, %v6394
        %v6401 = vadd.f32 %v6233, %v6389
        %v6402 = vadd.f32 %v6234, %v6395
        %v6403 = vadd.f32 %v6235, %v6393
        %v6404 = vld [vmem:[%s288] sm:$0xfc]
        %v6405 = vld [vmem:[%s288 + $0x8] sm:$0xfc]
        %v6406 = vld [vmem:[%s288 + $0x20] sm:$0x3]
        %v6407 = vld [vmem:[%s288 + $0x28] sm:$0x3]
        %s6408 = sld [smem:[#allocation8 + $0xf]]
        %v6409 = vstv %s6408
        %v6410 = vmul.f32 %v6409, %v6404
        %v6411 = vmul.f32 %v6409, %v6405
        %v6412 = vmul.f32 %v6409, %v5936
        %v6413 = vmul.f32 %v6409, %v5937
        %v6414 = vmul.f32 %v6409, %v6406
        %v6415 = vmul.f32 %v6409, %v6407
        %v6422 = vrot.slane %v6410, 2
        %v6423 = vrot.slane %v6412, 2
        %v6424 = vsel %vm960, %v6422, %v6423
        %v6425 = vrot.slane %v6411, 2
        %v6426 = vrot.slane %v6413, 2
        %v6427 = vsel %vm960, %v6425, %v6426
        %v6428 = vrot.slane %v6414, 2
        %v6429 = vsel %vm960, %v6423, %v6428
        %v6430 = vrot.slane %v6415, 2
        %v6431 = vsel %vm960, %v6426, %v6430
        %v6436 = vadd.f32 %v6274, %v6424
        %v6437 = vadd.f32 %v6275, %v6427
        %v6438 = vadd.f32 %v6276, %v6429
        %v6439 = vadd.f32 %v6277, %v6431
        %s6440 = sld [smem:[#allocation8 + $0x33]]
        %v6441 = vstv %s6440
        %v6442 = vmul.f32 %v6441, %v6404
        %v6443 = vmul.f32 %v6441, %v6405
        %v6444 = vmul.f32 %v6441, %v5936
        %v6445 = vmul.f32 %v6441, %v5937
        %v6446 = vmul.f32 %v6441, %v6406
        %v6447 = vmul.f32 %v6441, %v6407
        %v6454 = vrot.slane %v6442, 2
        %v6455 = vrot.slane %v6444, 2
        %v6456 = vsel %vm960, %v6454, %v6455
        %v6457 = vrot.slane %v6443, 2
        %v6458 = vrot.slane %v6445, 2
        %v6459 = vsel %vm960, %v6457, %v6458
        %v6460 = vrot.slane %v6446, 2
        %v6461 = vsel %vm960, %v6455, %v6460
        %v6462 = vrot.slane %v6447, 2
        %v6463 = vsel %vm960, %v6458, %v6462
        %v6468 = vadd.f32 %v6316, %v6456
        %v6469 = vadd.f32 %v6317, %v6459
        %v6470 = vadd.f32 %v6318, %v6461
        %v6471 = vadd.f32 %v6319, %v6463
        %s6472 = sld [smem:[#allocation8 + $0x57]]
        %v6473 = vstv %s6472
        %v6474 = vmul.f32 %v6473, %v6404
        %v6475 = vmul.f32 %v6473, %v6405
        %v6476 = vmul.f32 %v6473, %v5936
        %v6477 = vmul.f32 %v6473, %v5937
        %v6478 = vmul.f32 %v6473, %v6406
        %v6479 = vmul.f32 %v6473, %v6407
        %v6486 = vrot.slane %v6474, 2
        %v6487 = vrot.slane %v6476, 2
        %v6488 = vsel %vm960, %v6486, %v6487
        %v6489 = vrot.slane %v6475, 2
        %v6490 = vrot.slane %v6477, 2
        %v6491 = vsel %vm960, %v6489, %v6490
        %v6492 = vrot.slane %v6478, 2
        %v6493 = vsel %vm960, %v6487, %v6492
        %v6494 = vrot.slane %v6479, 2
        %v6495 = vsel %vm960, %v6490, %v6494
        %v6500 = vadd.f32 %v6358, %v6488
        %v6501 = vadd.f32 %v6359, %v6491
        %v6502 = vadd.f32 %v6360, %v6493
        %v6503 = vadd.f32 %v6361, %v6495
        %s6504 = sld [smem:[#allocation8 + $0x7b]]
        %v6505 = vstv %s6504
        %v6506 = vmul.f32 %v6505, %v6404
        %v6507 = vmul.f32 %v6505, %v6405
        %v6508 = vmul.f32 %v6505, %v5936
        %v6509 = vmul.f32 %v6505, %v5937
        %v6510 = vmul.f32 %v6505, %v6406
        %v6511 = vmul.f32 %v6505, %v6407
        %v6518 = vrot.slane %v6506, 2
        %v6519 = vrot.slane %v6508, 2
        %v6520 = vsel %vm960, %v6518, %v6519
        %v6521 = vrot.slane %v6507, 2
        %v6522 = vrot.slane %v6509, 2
        %v6523 = vsel %vm960, %v6521, %v6522
        %v6524 = vrot.slane %v6510, 2
        %v6525 = vsel %vm960, %v6519, %v6524
        %v6526 = vrot.slane %v6511, 2
        %v6527 = vsel %vm960, %v6522, %v6526
        %v6532 = vadd.f32 %v6400, %v6520
        %v6533 = vadd.f32 %v6401, %v6523
        %v6534 = vadd.f32 %v6402, %v6525
        %v6535 = vadd.f32 %v6403, %v6527
        %s6536 = sld [smem:[#allocation8 + $0x10]]
        %v6537 = vstv %s6536
        %v6538 = vmul.f32 %v6537, %v6404
        %v6539 = vmul.f32 %v6537, %v6405
        %v6540 = vmul.f32 %v6537, %v5936
        %v6541 = vmul.f32 %v6537, %v5937
        %v6542 = vmul.f32 %v6537, %v6406
        %v6543 = vmul.f32 %v6537, %v6407
        %v6550 = vrot.slane %v6538, 2
        %v6551 = vrot.slane %v6540, 2
        %v6552 = vsel %vm960, %v6550, %v6551
        %v6553 = vrot.slane %v6539, 2
        %v6554 = vrot.slane %v6541, 2
        %v6555 = vsel %vm960, %v6553, %v6554
        %v6556 = vrot.slane %v6542, 2
        %v6557 = vsel %vm960, %v6551, %v6556
        %v6558 = vrot.slane %v6543, 2
        %v6559 = vsel %vm960, %v6554, %v6558
        %6560 = vrot.lane.b32.xlu0 %v6552, 127
        %v6561 = vpop.permute.xlu0 %6560
        %6562 = vrot.lane.b32.xlu0 %v6555, 127
        %v6563 = vpop.permute.xlu0 %6562
        %6564 = vrot.lane.b32.xlu0 %v6557, 127
        %v6565 = vpop.permute.xlu0 %6564
        %6566 = vrot.lane.b32.xlu0 %v6559, 127
        %v6567 = vpop.permute.xlu0 %6566
        %v6568 = vsel %vm365, %v6561, %v6563
        %v6569 = vsel %vm365, %v6565, %v6567
        %v6574 = vadd.f32 %v6436, %v6568
        %v6575 = vadd.f32 %v6437, %v6563
        %v6576 = vadd.f32 %v6438, %v6569
        %v6577 = vadd.f32 %v6439, %v6567
        %s6578 = sld [smem:[#allocation8 + $0x34]]
        %v6579 = vstv %s6578
        %v6580 = vmul.f32 %v6579, %v6404
        %v6581 = vmul.f32 %v6579, %v6405
        %v6582 = vmul.f32 %v6579, %v5936
        %v6583 = vmul.f32 %v6579, %v5937
        %v6584 = vmul.f32 %v6579, %v6406
        %v6585 = vmul.f32 %v6579, %v6407
        %v6592 = vrot.slane %v6580, 2
        %v6593 = vrot.slane %v6582, 2
        %v6594 = vsel %vm960, %v6592, %v6593
        %v6595 = vrot.slane %v6581, 2
        %v6596 = vrot.slane %v6583, 2
        %v6597 = vsel %vm960, %v6595, %v6596
        %v6598 = vrot.slane %v6584, 2
        %v6599 = vsel %vm960, %v6593, %v6598
        %v6600 = vrot.slane %v6585, 2
        %v6601 = vsel %vm960, %v6596, %v6600
        %6602 = vrot.lane.b32.xlu0 %v6594, 127
        %v6603 = vpop.permute.xlu0 %6602
        %6604 = vrot.lane.b32.xlu0 %v6597, 127
        %v6605 = vpop.permute.xlu0 %6604
        %6606 = vrot.lane.b32.xlu0 %v6599, 127
        %v6607 = vpop.permute.xlu0 %6606
        %6608 = vrot.lane.b32.xlu0 %v6601, 127
        %v6609 = vpop.permute.xlu0 %6608
        %v6610 = vsel %vm365, %v6603, %v6605
        %v6611 = vsel %vm365, %v6607, %v6609
        %v6616 = vadd.f32 %v6468, %v6610
        %v6617 = vadd.f32 %v6469, %v6605
        %v6618 = vadd.f32 %v6470, %v6611
        %v6619 = vadd.f32 %v6471, %v6609
        %s6620 = sld [smem:[#allocation8 + $0x58]]
        %v6621 = vstv %s6620
        %v6622 = vmul.f32 %v6621, %v6404
        %v6623 = vmul.f32 %v6621, %v6405
        %v6624 = vmul.f32 %v6621, %v5936
        %v6625 = vmul.f32 %v6621, %v5937
        %v6626 = vmul.f32 %v6621, %v6406
        %v6627 = vmul.f32 %v6621, %v6407
        %v6634 = vrot.slane %v6622, 2
        %v6635 = vrot.slane %v6624, 2
        %v6636 = vsel %vm960, %v6634, %v6635
        %v6637 = vrot.slane %v6623, 2
        %v6638 = vrot.slane %v6625, 2
        %v6639 = vsel %vm960, %v6637, %v6638
        %v6640 = vrot.slane %v6626, 2
        %v6641 = vsel %vm960, %v6635, %v6640
        %v6642 = vrot.slane %v6627, 2
        %v6643 = vsel %vm960, %v6638, %v6642
        %6644 = vrot.lane.b32.xlu0 %v6636, 127
        %v6645 = vpop.permute.xlu0 %6644
        %6646 = vrot.lane.b32.xlu0 %v6639, 127
        %v6647 = vpop.permute.xlu0 %6646
        %6648 = vrot.lane.b32.xlu0 %v6641, 127
        %v6649 = vpop.permute.xlu0 %6648
        %6650 = vrot.lane.b32.xlu0 %v6643, 127
        %v6651 = vpop.permute.xlu0 %6650
        %v6652 = vsel %vm365, %v6645, %v6647
        %v6653 = vsel %vm365, %v6649, %v6651
        %v6658 = vadd.f32 %v6500, %v6652
        %v6659 = vadd.f32 %v6501, %v6647
        %v6660 = vadd.f32 %v6502, %v6653
        %v6661 = vadd.f32 %v6503, %v6651
        %s6662 = sld [smem:[#allocation8 + $0x7c]]
        %v6663 = vstv %s6662
        %v6664 = vmul.f32 %v6663, %v6404
        %v6665 = vmul.f32 %v6663, %v6405
        %v6666 = vmul.f32 %v6663, %v5936
        %v6667 = vmul.f32 %v6663, %v5937
        %v6668 = vmul.f32 %v6663, %v6406
        %v6669 = vmul.f32 %v6663, %v6407
        %v6676 = vrot.slane %v6664, 2
        %v6677 = vrot.slane %v6666, 2
        %v6678 = vsel %vm960, %v6676, %v6677
        %v6679 = vrot.slane %v6665, 2
        %v6680 = vrot.slane %v6667, 2
        %v6681 = vsel %vm960, %v6679, %v6680
        %v6682 = vrot.slane %v6668, 2
        %v6683 = vsel %vm960, %v6677, %v6682
        %v6684 = vrot.slane %v6669, 2
        %v6685 = vsel %vm960, %v6680, %v6684
        %6686 = vrot.lane.b32.xlu0 %v6678, 127
        %v6687 = vpop.permute.xlu0 %6686
        %6688 = vrot.lane.b32.xlu0 %v6681, 127
        %v6689 = vpop.permute.xlu0 %6688
        %6690 = vrot.lane.b32.xlu0 %v6683, 127
        %v6691 = vpop.permute.xlu0 %6690
        %6692 = vrot.lane.b32.xlu0 %v6685, 127
        %v6693 = vpop.permute.xlu0 %6692
        %v6694 = vsel %vm365, %v6687, %v6689
        %v6695 = vsel %vm365, %v6691, %v6693
        %v6700 = vadd.f32 %v6532, %v6694
        %v6701 = vadd.f32 %v6533, %v6689
        %v6702 = vadd.f32 %v6534, %v6695
        %v6703 = vadd.f32 %v6535, %v6693
        %s6704 = sld [smem:[#allocation8 + $0x11]]
        %v6705 = vstv %s6704
        %v6706 = vmul.f32 %v6705, %v6404
        %v6707 = vmul.f32 %v6705, %v6405
        %v6708 = vmul.f32 %v6705, %v5936
        %v6709 = vmul.f32 %v6705, %v5937
        %v6710 = vmul.f32 %v6705, %v6406
        %v6711 = vmul.f32 %v6705, %v6407
        %v6718 = vrot.slane %v6706, 2
        %v6719 = vrot.slane %v6708, 2
        %v6720 = vsel %vm960, %v6718, %v6719
        %v6721 = vrot.slane %v6707, 2
        %v6722 = vrot.slane %v6709, 2
        %v6723 = vsel %vm960, %v6721, %v6722
        %v6724 = vrot.slane %v6710, 2
        %v6725 = vsel %vm960, %v6719, %v6724
        %v6726 = vrot.slane %v6711, 2
        %v6727 = vsel %vm960, %v6722, %v6726
        %6728 = vrot.lane.b32.xlu0 %v6720, 126
        %v6729 = vpop.permute.xlu0 %6728
        %6730 = vrot.lane.b32.xlu0 %v6723, 126
        %v6731 = vpop.permute.xlu0 %6730
        %6732 = vrot.lane.b32.xlu0 %v6725, 126
        %v6733 = vpop.permute.xlu0 %6732
        %6734 = vrot.lane.b32.xlu0 %v6727, 126
        %v6735 = vpop.permute.xlu0 %6734
        %v6736 = vsel %vm478, %v6729, %v6731
        %v6737 = vsel %vm478, %v6733, %v6735
        %v6742 = vadd.f32 %v6574, %v6736
        %v6743 = vadd.f32 %v6575, %v6731
        %v6744 = vadd.f32 %v6576, %v6737
        %v6745 = vadd.f32 %v6577, %v6735
        %s6746 = sld [smem:[#allocation8 + $0x35]]
        %v6747 = vstv %s6746
        %v6748 = vmul.f32 %v6747, %v6404
        %v6749 = vmul.f32 %v6747, %v6405
        %v6750 = vmul.f32 %v6747, %v5936
        %v6751 = vmul.f32 %v6747, %v5937
        %v6752 = vmul.f32 %v6747, %v6406
        %v6753 = vmul.f32 %v6747, %v6407
        %v6760 = vrot.slane %v6748, 2
        %v6761 = vrot.slane %v6750, 2
        %v6762 = vsel %vm960, %v6760, %v6761
        %v6763 = vrot.slane %v6749, 2
        %v6764 = vrot.slane %v6751, 2
        %v6765 = vsel %vm960, %v6763, %v6764
        %v6766 = vrot.slane %v6752, 2
        %v6767 = vsel %vm960, %v6761, %v6766
        %v6768 = vrot.slane %v6753, 2
        %v6769 = vsel %vm960, %v6764, %v6768
        %6770 = vrot.lane.b32.xlu0 %v6762, 126
        %v6771 = vpop.permute.xlu0 %6770
        %6772 = vrot.lane.b32.xlu0 %v6765, 126
        %v6773 = vpop.permute.xlu0 %6772
        %6774 = vrot.lane.b32.xlu0 %v6767, 126
        %v6775 = vpop.permute.xlu0 %6774
        %6776 = vrot.lane.b32.xlu0 %v6769, 126
        %v6777 = vpop.permute.xlu0 %6776
        %v6778 = vsel %vm478, %v6771, %v6773
        %v6779 = vsel %vm478, %v6775, %v6777
        %v6784 = vadd.f32 %v6616, %v6778
        %v6785 = vadd.f32 %v6617, %v6773
        %v6786 = vadd.f32 %v6618, %v6779
        %v6787 = vadd.f32 %v6619, %v6777
        %s6788 = sld [smem:[#allocation8 + $0x59]]
        %v6789 = vstv %s6788
        %v6790 = vmul.f32 %v6789, %v6404
        %v6791 = vmul.f32 %v6789, %v6405
        %v6792 = vmul.f32 %v6789, %v5936
        %v6793 = vmul.f32 %v6789, %v5937
        %v6794 = vmul.f32 %v6789, %v6406
        %v6795 = vmul.f32 %v6789, %v6407
        %v6802 = vrot.slane %v6790, 2
        %v6803 = vrot.slane %v6792, 2
        %v6804 = vsel %vm960, %v6802, %v6803
        %v6805 = vrot.slane %v6791, 2
        %v6806 = vrot.slane %v6793, 2
        %v6807 = vsel %vm960, %v6805, %v6806
        %v6808 = vrot.slane %v6794, 2
        %v6809 = vsel %vm960, %v6803, %v6808
        %v6810 = vrot.slane %v6795, 2
        %v6811 = vsel %vm960, %v6806, %v6810
        %6812 = vrot.lane.b32.xlu0 %v6804, 126
        %v6813 = vpop.permute.xlu0 %6812
        %6814 = vrot.lane.b32.xlu0 %v6807, 126
        %v6815 = vpop.permute.xlu0 %6814
        %6816 = vrot.lane.b32.xlu0 %v6809, 126
        %v6817 = vpop.permute.xlu0 %6816
        %6818 = vrot.lane.b32.xlu0 %v6811, 126
        %v6819 = vpop.permute.xlu0 %6818
        %v6820 = vsel %vm478, %v6813, %v6815
        %v6821 = vsel %vm478, %v6817, %v6819
        %v6826 = vadd.f32 %v6658, %v6820
        %v6827 = vadd.f32 %v6659, %v6815
        %v6828 = vadd.f32 %v6660, %v6821
        %v6829 = vadd.f32 %v6661, %v6819
        %s6830 = sld [smem:[#allocation8 + $0x7d]]
        %v6831 = vstv %s6830
        %v6832 = vmul.f32 %v6831, %v6404
        %v6833 = vmul.f32 %v6831, %v6405
        %v6834 = vmul.f32 %v6831, %v5936
        %v6835 = vmul.f32 %v6831, %v5937
        %v6836 = vmul.f32 %v6831, %v6406
        %v6837 = vmul.f32 %v6831, %v6407
        %v6844 = vrot.slane %v6832, 2
        %v6845 = vrot.slane %v6834, 2
        %v6846 = vsel %vm960, %v6844, %v6845
        %v6847 = vrot.slane %v6833, 2
        %v6848 = vrot.slane %v6835, 2
        %v6849 = vsel %vm960, %v6847, %v6848
        %v6850 = vrot.slane %v6836, 2
        %v6851 = vsel %vm960, %v6845, %v6850
        %v6852 = vrot.slane %v6837, 2
        %v6853 = vsel %vm960, %v6848, %v6852
        %6854 = vrot.lane.b32.xlu0 %v6846, 126
        %v6855 = vpop.permute.xlu0 %6854
        %6856 = vrot.lane.b32.xlu0 %v6849, 126
        %v6857 = vpop.permute.xlu0 %6856
        %6858 = vrot.lane.b32.xlu0 %v6851, 126
        %v6859 = vpop.permute.xlu0 %6858
        %6860 = vrot.lane.b32.xlu0 %v6853, 126
        %v6861 = vpop.permute.xlu0 %6860
        %v6862 = vsel %vm478, %v6855, %v6857
        %v6863 = vsel %vm478, %v6859, %v6861
        %v6868 = vadd.f32 %v6700, %v6862
        %v6869 = vadd.f32 %v6701, %v6857
        %v6870 = vadd.f32 %v6702, %v6863
        %v6871 = vadd.f32 %v6703, %v6861
        %v6872 = vld [vmem:[%s293] sm:$0xff]
        %v6873 = vld [vmem:[%s293 + $0x8] sm:$0xff]
        %v6874 = vld [vmem:[%s293 + $0x10] sm:$0xff]
        %v6875 = vld [vmem:[%s293 + $0x18] sm:$0xff]
        %s6876 = sld [smem:[#allocation8 + $0x12]]
        %v6877 = vstv %s6876
        %v6878 = vmul.f32 %v6877, %v6872
        %v6879 = vmul.f32 %v6877, %v6873
        %v6880 = vmul.f32 %v6877, %v6874
        %v6881 = vmul.f32 %v6877, %v6875
        %v6882 = vadd.f32 %v6742, %v6878
        %v6883 = vadd.f32 %v6743, %v6879
        %v6884 = vadd.f32 %v6744, %v6880
        %v6885 = vadd.f32 %v6745, %v6881
        %s6886 = sld [smem:[#allocation8 + $0x36]]
        %v6887 = vstv %s6886
        %v6888 = vmul.f32 %v6887, %v6872
        %v6889 = vmul.f32 %v6887, %v6873
        %v6890 = vmul.f32 %v6887, %v6874
        %v6891 = vmul.f32 %v6887, %v6875
        %v6892 = vadd.f32 %v6784, %v6888
        %v6893 = vadd.f32 %v6785, %v6889
        %v6894 = vadd.f32 %v6786, %v6890
        %v6895 = vadd.f32 %v6787, %v6891
        %s6896 = sld [smem:[#allocation8 + $0x5a]]
        %v6897 = vstv %s6896
        %v6898 = vmul.f32 %v6897, %v6872
        %v6899 = vmul.f32 %v6897, %v6873
        %v6900 = vmul.f32 %v6897, %v6874
        %v6901 = vmul.f32 %v6897, %v6875
        %v6902 = vadd.f32 %v6826, %v6898
        %v6903 = vadd.f32 %v6827, %v6899
        %v6904 = vadd.f32 %v6828, %v6900
        %v6905 = vadd.f32 %v6829, %v6901
        %s6906 = sld [smem:[#allocation8 + $0x7e]]
        %v6907 = vstv %s6906
        %v6908 = vmul.f32 %v6907, %v6872
        %v6909 = vmul.f32 %v6907, %v6873
        %v6910 = vmul.f32 %v6907, %v6874
        %v6911 = vmul.f32 %v6907, %v6875
        %v6912 = vadd.f32 %v6868, %v6908
        %v6913 = vadd.f32 %v6869, %v6909
        %v6914 = vadd.f32 %v6870, %v6910
        %v6915 = vadd.f32 %v6871, %v6911
        %s6916 = sld [smem:[#allocation8 + $0x13]]
        %v6917 = vstv %s6916
        %v6918 = vmul.f32 %v6917, %v6872
        %v6919 = vmul.f32 %v6917, %v6873
        %v6920 = vmul.f32 %v6917, %v6874
        %v6921 = vmul.f32 %v6917, %v6875
        %6926 = vrot.lane.b32.xlu0 %v6918, 127
        %v6927 = vpop.permute.xlu0 %6926
        %6928 = vrot.lane.b32.xlu0 %v6919, 127
        %v6929 = vpop.permute.xlu0 %6928
        %6930 = vrot.lane.b32.xlu0 %v6920, 127
        %v6931 = vpop.permute.xlu0 %6930
        %6932 = vrot.lane.b32.xlu0 %v6921, 127
        %v6933 = vpop.permute.xlu0 %6932
        %v6934 = vsel %vm365, %v6927, %v6929
        %v6935 = vsel %vm365, %v6931, %v6933
        %v6940 = vadd.f32 %v6882, %v6934
        %v6941 = vadd.f32 %v6883, %v6929
        %v6942 = vadd.f32 %v6884, %v6935
        %v6943 = vadd.f32 %v6885, %v6933
        %s6944 = sld [smem:[#allocation8 + $0x37]]
        %v6945 = vstv %s6944
        %v6946 = vmul.f32 %v6945, %v6872
        %v6947 = vmul.f32 %v6945, %v6873
        %v6948 = vmul.f32 %v6945, %v6874
        %v6949 = vmul.f32 %v6945, %v6875
        %6954 = vrot.lane.b32.xlu0 %v6946, 127
        %v6955 = vpop.permute.xlu0 %6954
        %6956 = vrot.lane.b32.xlu0 %v6947, 127
        %v6957 = vpop.permute.xlu0 %6956
        %6958 = vrot.lane.b32.xlu0 %v6948, 127
        %v6959 = vpop.permute.xlu0 %6958
        %6960 = vrot.lane.b32.xlu0 %v6949, 127
        %v6961 = vpop.permute.xlu0 %6960
        %v6962 = vsel %vm365, %v6955, %v6957
        %v6963 = vsel %vm365, %v6959, %v6961
        %v6968 = vadd.f32 %v6892, %v6962
        %v6969 = vadd.f32 %v6893, %v6957
        %v6970 = vadd.f32 %v6894, %v6963
        %v6971 = vadd.f32 %v6895, %v6961
        %s6972 = sld [smem:[#allocation8 + $0x5b]]
        %v6973 = vstv %s6972
        %v6974 = vmul.f32 %v6973, %v6872
        %v6975 = vmul.f32 %v6973, %v6873
        %v6976 = vmul.f32 %v6973, %v6874
        %v6977 = vmul.f32 %v6973, %v6875
        %6982 = vrot.lane.b32.xlu0 %v6974, 127
        %v6983 = vpop.permute.xlu0 %6982
        %6984 = vrot.lane.b32.xlu0 %v6975, 127
        %v6985 = vpop.permute.xlu0 %6984
        %6986 = vrot.lane.b32.xlu0 %v6976, 127
        %v6987 = vpop.permute.xlu0 %6986
        %6988 = vrot.lane.b32.xlu0 %v6977, 127
        %v6989 = vpop.permute.xlu0 %6988
        %v6990 = vsel %vm365, %v6983, %v6985
        %v6991 = vsel %vm365, %v6987, %v6989
        %v6996 = vadd.f32 %v6902, %v6990
        %v6997 = vadd.f32 %v6903, %v6985
        %v6998 = vadd.f32 %v6904, %v6991
        %v6999 = vadd.f32 %v6905, %v6989
        %s7000 = sld [smem:[#allocation8 + $0x7f]]
        %v7001 = vstv %s7000
        %v7002 = vmul.f32 %v7001, %v6872
        %v7003 = vmul.f32 %v7001, %v6873
        %v7004 = vmul.f32 %v7001, %v6874
        %v7005 = vmul.f32 %v7001, %v6875
        %7010 = vrot.lane.b32.xlu0 %v7002, 127
        %v7011 = vpop.permute.xlu0 %7010
        %7012 = vrot.lane.b32.xlu0 %v7003, 127
        %v7013 = vpop.permute.xlu0 %7012
        %7014 = vrot.lane.b32.xlu0 %v7004, 127
        %v7015 = vpop.permute.xlu0 %7014
        %7016 = vrot.lane.b32.xlu0 %v7005, 127
        %v7017 = vpop.permute.xlu0 %7016
        %v7018 = vsel %vm365, %v7011, %v7013
        %v7019 = vsel %vm365, %v7015, %v7017
        %v7024 = vadd.f32 %v6912, %v7018
        %v7025 = vadd.f32 %v6913, %v7013
        %v7026 = vadd.f32 %v6914, %v7019
        %v7027 = vadd.f32 %v6915, %v7017
        %s7028 = sld [smem:[#allocation8 + $0x14]]
        %v7029 = vstv %s7028
        %v7030 = vmul.f32 %v7029, %v6872
        %v7031 = vmul.f32 %v7029, %v6873
        %v7032 = vmul.f32 %v7029, %v6874
        %v7033 = vmul.f32 %v7029, %v6875
        %7038 = vrot.lane.b32.xlu0 %v7030, 126
        %v7039 = vpop.permute.xlu0 %7038
        %7040 = vrot.lane.b32.xlu0 %v7031, 126
        %v7041 = vpop.permute.xlu0 %7040
        %7042 = vrot.lane.b32.xlu0 %v7032, 126
        %v7043 = vpop.permute.xlu0 %7042
        %7044 = vrot.lane.b32.xlu0 %v7033, 126
        %v7045 = vpop.permute.xlu0 %7044
        %v7046 = vsel %vm478, %v7039, %v7041
        %v7047 = vsel %vm478, %v7043, %v7045
        %v7052 = vadd.f32 %v6940, %v7046
        %v7053 = vadd.f32 %v6941, %v7041
        %v7054 = vadd.f32 %v6942, %v7047
        %v7055 = vadd.f32 %v6943, %v7045
        %s7056 = sld [smem:[#allocation8 + $0x38]]
        %v7057 = vstv %s7056
        %v7058 = vmul.f32 %v7057, %v6872
        %v7059 = vmul.f32 %v7057, %v6873
        %v7060 = vmul.f32 %v7057, %v6874
        %v7061 = vmul.f32 %v7057, %v6875
        %7066 = vrot.lane.b32.xlu0 %v7058, 126
        %v7067 = vpop.permute.xlu0 %7066
        %7068 = vrot.lane.b32.xlu0 %v7059, 126
        %v7069 = vpop.permute.xlu0 %7068
        %7070 = vrot.lane.b32.xlu0 %v7060, 126
        %v7071 = vpop.permute.xlu0 %7070
        %7072 = vrot.lane.b32.xlu0 %v7061, 126
        %v7073 = vpop.permute.xlu0 %7072
        %v7074 = vsel %vm478, %v7067, %v7069
        %v7075 = vsel %vm478, %v7071, %v7073
        %v7080 = vadd.f32 %v6968, %v7074
        %v7081 = vadd.f32 %v6969, %v7069
        %v7082 = vadd.f32 %v6970, %v7075
        %v7083 = vadd.f32 %v6971, %v7073
        %s7084 = sld [smem:[#allocation8 + $0x5c]]
        %v7085 = vstv %s7084
        %v7086 = vmul.f32 %v7085, %v6872
        %v7087 = vmul.f32 %v7085, %v6873
        %v7088 = vmul.f32 %v7085, %v6874
        %v7089 = vmul.f32 %v7085, %v6875
        %7094 = vrot.lane.b32.xlu0 %v7086, 126
        %v7095 = vpop.permute.xlu0 %7094
        %7096 = vrot.lane.b32.xlu0 %v7087, 126
        %v7097 = vpop.permute.xlu0 %7096
        %7098 = vrot.lane.b32.xlu0 %v7088, 126
        %v7099 = vpop.permute.xlu0 %7098
        %7100 = vrot.lane.b32.xlu0 %v7089, 126
        %v7101 = vpop.permute.xlu0 %7100
        %v7102 = vsel %vm478, %v7095, %v7097
        %v7103 = vsel %vm478, %v7099, %v7101
        %v7108 = vadd.f32 %v6996, %v7102
        %v7109 = vadd.f32 %v6997, %v7097
        %v7110 = vadd.f32 %v6998, %v7103
        %v7111 = vadd.f32 %v6999, %v7101
        %s7112 = sld [smem:[#allocation8 + $0x80]]
        %v7113 = vstv %s7112
        %v7114 = vmul.f32 %v7113, %v6872
        %v7115 = vmul.f32 %v7113, %v6873
        %v7116 = vmul.f32 %v7113, %v6874
        %v7117 = vmul.f32 %v7113, %v6875
        %7122 = vrot.lane.b32.xlu0 %v7114, 126
        %v7123 = vpop.permute.xlu0 %7122
        %7124 = vrot.lane.b32.xlu0 %v7115, 126
        %v7125 = vpop.permute.xlu0 %7124
        %7126 = vrot.lane.b32.xlu0 %v7116, 126
        %v7127 = vpop.permute.xlu0 %7126
        %7128 = vrot.lane.b32.xlu0 %v7117, 126
        %v7129 = vpop.permute.xlu0 %7128
        %v7130 = vsel %vm478, %v7123, %v7125
        %v7131 = vsel %vm478, %v7127, %v7129
        %v7136 = vadd.f32 %v7024, %v7130
        %v7137 = vadd.f32 %v7025, %v7125
        %v7138 = vadd.f32 %v7026, %v7131
        %v7139 = vadd.f32 %v7027, %v7129
        %v7140 = vld [vmem:[%s293] sm:$0xfe]
        %v7141 = vld [vmem:[%s293 + $0x8] sm:$0xfe]
        %v7142 = vld [vmem:[%s293 + $0x10] sm:$0xff]
        %v7143 = vld [vmem:[%s293 + $0x18] sm:$0xff]
        %v7144 = vld [vmem:[%s293 + $0x20] sm:$0x1]
        %v7145 = vld [vmem:[%s293 + $0x28] sm:$0x1]
        %s7146 = sld [smem:[#allocation8 + $0x15]]
        %v7147 = vstv %s7146
        %v7148 = vmul.f32 %v7147, %v7140
        %v7149 = vmul.f32 %v7147, %v7141
        %v7150 = vmul.f32 %v7147, %v7142
        %v7151 = vmul.f32 %v7147, %v7143
        %v7152 = vmul.f32 %v7147, %v7144
        %v7153 = vmul.f32 %v7147, %v7145
        %v7160 = vrot.slane %v7148, 1
        %v7161 = vrot.slane %v7150, 1
        %v7162 = vsel %vm587, %v7160, %v7161
        %v7163 = vrot.slane %v7149, 1
        %v7164 = vrot.slane %v7151, 1
        %v7165 = vsel %vm587, %v7163, %v7164
        %v7166 = vrot.slane %v7152, 1
        %v7167 = vsel %vm587, %v7161, %v7166
        %v7168 = vrot.slane %v7153, 1
        %v7169 = vsel %vm587, %v7164, %v7168
        %v7174 = vadd.f32 %v7052, %v7162
        %v7175 = vadd.f32 %v7053, %v7165
        %v7176 = vadd.f32 %v7054, %v7167
        %v7177 = vadd.f32 %v7055, %v7169
        %s7178 = sld [smem:[#allocation8 + $0x39]]
        %v7179 = vstv %s7178
        %v7180 = vmul.f32 %v7179, %v7140
        %v7181 = vmul.f32 %v7179, %v7141
        %v7182 = vmul.f32 %v7179, %v7142
        %v7183 = vmul.f32 %v7179, %v7143
        %v7184 = vmul.f32 %v7179, %v7144
        %v7185 = vmul.f32 %v7179, %v7145
        %v7192 = vrot.slane %v7180, 1
        %v7193 = vrot.slane %v7182, 1
        %v7194 = vsel %vm587, %v7192, %v7193
        %v7195 = vrot.slane %v7181, 1
        %v7196 = vrot.slane %v7183, 1
        %v7197 = vsel %vm587, %v7195, %v7196
        %v7198 = vrot.slane %v7184, 1
        %v7199 = vsel %vm587, %v7193, %v7198
        %v7200 = vrot.slane %v7185, 1
        %v7201 = vsel %vm587, %v7196, %v7200
        %v7206 = vadd.f32 %v7080, %v7194
        %v7207 = vadd.f32 %v7081, %v7197
        %v7208 = vadd.f32 %v7082, %v7199
        %v7209 = vadd.f32 %v7083, %v7201
        %s7210 = sld [smem:[#allocation8 + $0x5d]]
        %v7211 = vstv %s7210
        %v7212 = vmul.f32 %v7211, %v7140
        %v7213 = vmul.f32 %v7211, %v7141
        %v7214 = vmul.f32 %v7211, %v7142
        %v7215 = vmul.f32 %v7211, %v7143
        %v7216 = vmul.f32 %v7211, %v7144
        %v7217 = vmul.f32 %v7211, %v7145
        %v7224 = vrot.slane %v7212, 1
        %v7225 = vrot.slane %v7214, 1
        %v7226 = vsel %vm587, %v7224, %v7225
        %v7227 = vrot.slane %v7213, 1
        %v7228 = vrot.slane %v7215, 1
        %v7229 = vsel %vm587, %v7227, %v7228
        %v7230 = vrot.slane %v7216, 1
        %v7231 = vsel %vm587, %v7225, %v7230
        %v7232 = vrot.slane %v7217, 1
        %v7233 = vsel %vm587, %v7228, %v7232
        %v7238 = vadd.f32 %v7108, %v7226
        %v7239 = vadd.f32 %v7109, %v7229
        %v7240 = vadd.f32 %v7110, %v7231
        %v7241 = vadd.f32 %v7111, %v7233
        %s7242 = sld [smem:[#allocation8 + $0x81]]
        %v7243 = vstv %s7242
        %v7244 = vmul.f32 %v7243, %v7140
        %v7245 = vmul.f32 %v7243, %v7141
        %v7246 = vmul.f32 %v7243, %v7142
        %v7247 = vmul.f32 %v7243, %v7143
        %v7248 = vmul.f32 %v7243, %v7144
        %v7249 = vmul.f32 %v7243, %v7145
        %v7256 = vrot.slane %v7244, 1
        %v7257 = vrot.slane %v7246, 1
        %v7258 = vsel %vm587, %v7256, %v7257
        %v7259 = vrot.slane %v7245, 1
        %v7260 = vrot.slane %v7247, 1
        %v7261 = vsel %vm587, %v7259, %v7260
        %v7262 = vrot.slane %v7248, 1
        %v7263 = vsel %vm587, %v7257, %v7262
        %v7264 = vrot.slane %v7249, 1
        %v7265 = vsel %vm587, %v7260, %v7264
        %v7270 = vadd.f32 %v7136, %v7258
        %v7271 = vadd.f32 %v7137, %v7261
        %v7272 = vadd.f32 %v7138, %v7263
        %v7273 = vadd.f32 %v7139, %v7265
        %s7274 = sld [smem:[#allocation8 + $0x16]]
        %v7275 = vstv %s7274
        %v7276 = vmul.f32 %v7275, %v7140
        %v7277 = vmul.f32 %v7275, %v7141
        %v7278 = vmul.f32 %v7275, %v7142
        %v7279 = vmul.f32 %v7275, %v7143
        %v7280 = vmul.f32 %v7275, %v7144
        %v7281 = vmul.f32 %v7275, %v7145
        %v7288 = vrot.slane %v7276, 1
        %v7289 = vrot.slane %v7278, 1
        %v7290 = vsel %vm587, %v7288, %v7289
        %v7291 = vrot.slane %v7277, 1
        %v7292 = vrot.slane %v7279, 1
        %v7293 = vsel %vm587, %v7291, %v7292
        %v7294 = vrot.slane %v7280, 1
        %v7295 = vsel %vm587, %v7289, %v7294
        %v7296 = vrot.slane %v7281, 1
        %v7297 = vsel %vm587, %v7292, %v7296
        %7298 = vrot.lane.b32.xlu0 %v7290, 127
        %v7299 = vpop.permute.xlu0 %7298
        %7300 = vrot.lane.b32.xlu0 %v7293, 127
        %v7301 = vpop.permute.xlu0 %7300
        %7302 = vrot.lane.b32.xlu0 %v7295, 127
        %v7303 = vpop.permute.xlu0 %7302
        %7304 = vrot.lane.b32.xlu0 %v7297, 127
        %v7305 = vpop.permute.xlu0 %7304
        %v7306 = vsel %vm365, %v7299, %v7301
        %v7307 = vsel %vm365, %v7303, %v7305
        %v7312 = vadd.f32 %v7174, %v7306
        %v7313 = vadd.f32 %v7175, %v7301
        %v7314 = vadd.f32 %v7176, %v7307
        %v7315 = vadd.f32 %v7177, %v7305
        %s7316 = sld [smem:[#allocation8 + $0x3a]]
        %v7317 = vstv %s7316
        %v7318 = vmul.f32 %v7317, %v7140
        %v7319 = vmul.f32 %v7317, %v7141
        %v7320 = vmul.f32 %v7317, %v7142
        %v7321 = vmul.f32 %v7317, %v7143
        %v7322 = vmul.f32 %v7317, %v7144
        %v7323 = vmul.f32 %v7317, %v7145
        %v7330 = vrot.slane %v7318, 1
        %v7331 = vrot.slane %v7320, 1
        %v7332 = vsel %vm587, %v7330, %v7331
        %v7333 = vrot.slane %v7319, 1
        %v7334 = vrot.slane %v7321, 1
        %v7335 = vsel %vm587, %v7333, %v7334
        %v7336 = vrot.slane %v7322, 1
        %v7337 = vsel %vm587, %v7331, %v7336
        %v7338 = vrot.slane %v7323, 1
        %v7339 = vsel %vm587, %v7334, %v7338
        %7340 = vrot.lane.b32.xlu0 %v7332, 127
        %v7341 = vpop.permute.xlu0 %7340
        %7342 = vrot.lane.b32.xlu0 %v7335, 127
        %v7343 = vpop.permute.xlu0 %7342
        %7344 = vrot.lane.b32.xlu0 %v7337, 127
        %v7345 = vpop.permute.xlu0 %7344
        %7346 = vrot.lane.b32.xlu0 %v7339, 127
        %v7347 = vpop.permute.xlu0 %7346
        %v7348 = vsel %vm365, %v7341, %v7343
        %v7349 = vsel %vm365, %v7345, %v7347
        %v7354 = vadd.f32 %v7206, %v7348
        %v7355 = vadd.f32 %v7207, %v7343
        %v7356 = vadd.f32 %v7208, %v7349
        %v7357 = vadd.f32 %v7209, %v7347
        %s7358 = sld [smem:[#allocation8 + $0x5e]]
        %v7359 = vstv %s7358
        %v7360 = vmul.f32 %v7359, %v7140
        %v7361 = vmul.f32 %v7359, %v7141
        %v7362 = vmul.f32 %v7359, %v7142
        %v7363 = vmul.f32 %v7359, %v7143
        %v7364 = vmul.f32 %v7359, %v7144
        %v7365 = vmul.f32 %v7359, %v7145
        %v7372 = vrot.slane %v7360, 1
        %v7373 = vrot.slane %v7362, 1
        %v7374 = vsel %vm587, %v7372, %v7373
        %v7375 = vrot.slane %v7361, 1
        %v7376 = vrot.slane %v7363, 1
        %v7377 = vsel %vm587, %v7375, %v7376
        %v7378 = vrot.slane %v7364, 1
        %v7379 = vsel %vm587, %v7373, %v7378
        %v7380 = vrot.slane %v7365, 1
        %v7381 = vsel %vm587, %v7376, %v7380
        %7382 = vrot.lane.b32.xlu0 %v7374, 127
        %v7383 = vpop.permute.xlu0 %7382
        %7384 = vrot.lane.b32.xlu0 %v7377, 127
        %v7385 = vpop.permute.xlu0 %7384
        %7386 = vrot.lane.b32.xlu0 %v7379, 127
        %v7387 = vpop.permute.xlu0 %7386
        %7388 = vrot.lane.b32.xlu0 %v7381, 127
        %v7389 = vpop.permute.xlu0 %7388
        %v7390 = vsel %vm365, %v7383, %v7385
        %v7391 = vsel %vm365, %v7387, %v7389
        %v7396 = vadd.f32 %v7238, %v7390
        %v7397 = vadd.f32 %v7239, %v7385
        %v7398 = vadd.f32 %v7240, %v7391
        %v7399 = vadd.f32 %v7241, %v7389
        %s7400 = sld [smem:[#allocation8 + $0x82]]
        %v7401 = vstv %s7400
        %v7402 = vmul.f32 %v7401, %v7140
        %v7403 = vmul.f32 %v7401, %v7141
        %v7404 = vmul.f32 %v7401, %v7142
        %v7405 = vmul.f32 %v7401, %v7143
        %v7406 = vmul.f32 %v7401, %v7144
        %v7407 = vmul.f32 %v7401, %v7145
        %v7414 = vrot.slane %v7402, 1
        %v7415 = vrot.slane %v7404, 1
        %v7416 = vsel %vm587, %v7414, %v7415
        %v7417 = vrot.slane %v7403, 1
        %v7418 = vrot.slane %v7405, 1
        %v7419 = vsel %vm587, %v7417, %v7418
        %v7420 = vrot.slane %v7406, 1
        %v7421 = vsel %vm587, %v7415, %v7420
        %v7422 = vrot.slane %v7407, 1
        %v7423 = vsel %vm587, %v7418, %v7422
        %7424 = vrot.lane.b32.xlu0 %v7416, 127
        %v7425 = vpop.permute.xlu0 %7424
        %7426 = vrot.lane.b32.xlu0 %v7419, 127
        %v7427 = vpop.permute.xlu0 %7426
        %7428 = vrot.lane.b32.xlu0 %v7421, 127
        %v7429 = vpop.permute.xlu0 %7428
        %7430 = vrot.lane.b32.xlu0 %v7423, 127
        %v7431 = vpop.permute.xlu0 %7430
        %v7432 = vsel %vm365, %v7425, %v7427
        %v7433 = vsel %vm365, %v7429, %v7431
        %v7438 = vadd.f32 %v7270, %v7432
        %v7439 = vadd.f32 %v7271, %v7427
        %v7440 = vadd.f32 %v7272, %v7433
        %v7441 = vadd.f32 %v7273, %v7431
        %s7442 = sld [smem:[#allocation8 + $0x17]]
        %v7443 = vstv %s7442
        %v7444 = vmul.f32 %v7443, %v7140
        %v7445 = vmul.f32 %v7443, %v7141
        %v7446 = vmul.f32 %v7443, %v7142
        %v7447 = vmul.f32 %v7443, %v7143
        %v7448 = vmul.f32 %v7443, %v7144
        %v7449 = vmul.f32 %v7443, %v7145
        %v7456 = vrot.slane %v7444, 1
        %v7457 = vrot.slane %v7446, 1
        %v7458 = vsel %vm587, %v7456, %v7457
        %v7459 = vrot.slane %v7445, 1
        %v7460 = vrot.slane %v7447, 1
        %v7461 = vsel %vm587, %v7459, %v7460
        %v7462 = vrot.slane %v7448, 1
        %v7463 = vsel %vm587, %v7457, %v7462
        %v7464 = vrot.slane %v7449, 1
        %v7465 = vsel %vm587, %v7460, %v7464
        %7466 = vrot.lane.b32.xlu0 %v7458, 126
        %v7467 = vpop.permute.xlu0 %7466
        %7468 = vrot.lane.b32.xlu0 %v7461, 126
        %v7469 = vpop.permute.xlu0 %7468
        %7470 = vrot.lane.b32.xlu0 %v7463, 126
        %v7471 = vpop.permute.xlu0 %7470
        %7472 = vrot.lane.b32.xlu0 %v7465, 126
        %v7473 = vpop.permute.xlu0 %7472
        %v7474 = vsel %vm478, %v7467, %v7469
        %v7475 = vsel %vm478, %v7471, %v7473
        %v7480 = vadd.f32 %v7312, %v7474
        %v7481 = vadd.f32 %v7313, %v7469
        %v7482 = vadd.f32 %v7314, %v7475
        %v7483 = vadd.f32 %v7315, %v7473
        %s7484 = sld [smem:[#allocation8 + $0x3b]]
        %v7485 = vstv %s7484
        %v7486 = vmul.f32 %v7485, %v7140
        %v7487 = vmul.f32 %v7485, %v7141
        %v7488 = vmul.f32 %v7485, %v7142
        %v7489 = vmul.f32 %v7485, %v7143
        %v7490 = vmul.f32 %v7485, %v7144
        %v7491 = vmul.f32 %v7485, %v7145
        %v7498 = vrot.slane %v7486, 1
        %v7499 = vrot.slane %v7488, 1
        %v7500 = vsel %vm587, %v7498, %v7499
        %v7501 = vrot.slane %v7487, 1
        %v7502 = vrot.slane %v7489, 1
        %v7503 = vsel %vm587, %v7501, %v7502
        %v7504 = vrot.slane %v7490, 1
        %v7505 = vsel %vm587, %v7499, %v7504
        %v7506 = vrot.slane %v7491, 1
        %v7507 = vsel %vm587, %v7502, %v7506
        %7508 = vrot.lane.b32.xlu0 %v7500, 126
        %v7509 = vpop.permute.xlu0 %7508
        %7510 = vrot.lane.b32.xlu0 %v7503, 126
        %v7511 = vpop.permute.xlu0 %7510
        %7512 = vrot.lane.b32.xlu0 %v7505, 126
        %v7513 = vpop.permute.xlu0 %7512
        %7514 = vrot.lane.b32.xlu0 %v7507, 126
        %v7515 = vpop.permute.xlu0 %7514
        %v7516 = vsel %vm478, %v7509, %v7511
        %v7517 = vsel %vm478, %v7513, %v7515
        %v7522 = vadd.f32 %v7354, %v7516
        %v7523 = vadd.f32 %v7355, %v7511
        %v7524 = vadd.f32 %v7356, %v7517
        %v7525 = vadd.f32 %v7357, %v7515
        %s7526 = sld [smem:[#allocation8 + $0x5f]]
        %v7527 = vstv %s7526
        %v7528 = vmul.f32 %v7527, %v7140
        %v7529 = vmul.f32 %v7527, %v7141
        %v7530 = vmul.f32 %v7527, %v7142
        %v7531 = vmul.f32 %v7527, %v7143
        %v7532 = vmul.f32 %v7527, %v7144
        %v7533 = vmul.f32 %v7527, %v7145
        %v7540 = vrot.slane %v7528, 1
        %v7541 = vrot.slane %v7530, 1
        %v7542 = vsel %vm587, %v7540, %v7541
        %v7543 = vrot.slane %v7529, 1
        %v7544 = vrot.slane %v7531, 1
        %v7545 = vsel %vm587, %v7543, %v7544
        %v7546 = vrot.slane %v7532, 1
        %v7547 = vsel %vm587, %v7541, %v7546
        %v7548 = vrot.slane %v7533, 1
        %v7549 = vsel %vm587, %v7544, %v7548
        %7550 = vrot.lane.b32.xlu0 %v7542, 126
        %v7551 = vpop.permute.xlu0 %7550
        %7552 = vrot.lane.b32.xlu0 %v7545, 126
        %v7553 = vpop.permute.xlu0 %7552
        %7554 = vrot.lane.b32.xlu0 %v7547, 126
        %v7555 = vpop.permute.xlu0 %7554
        %7556 = vrot.lane.b32.xlu0 %v7549, 126
        %v7557 = vpop.permute.xlu0 %7556
        %v7558 = vsel %vm478, %v7551, %v7553
        %v7559 = vsel %vm478, %v7555, %v7557
        %v7564 = vadd.f32 %v7396, %v7558
        %v7565 = vadd.f32 %v7397, %v7553
        %v7566 = vadd.f32 %v7398, %v7559
        %v7567 = vadd.f32 %v7399, %v7557
        %s7568 = sld [smem:[#allocation8 + $0x83]]
        %v7569 = vstv %s7568
        %v7570 = vmul.f32 %v7569, %v7140
        %v7571 = vmul.f32 %v7569, %v7141
        %v7572 = vmul.f32 %v7569, %v7142
        %v7573 = vmul.f32 %v7569, %v7143
        %v7574 = vmul.f32 %v7569, %v7144
        %v7575 = vmul.f32 %v7569, %v7145
        %v7582 = vrot.slane %v7570, 1
        %v7583 = vrot.slane %v7572, 1
        %v7584 = vsel %vm587, %v7582, %v7583
        %v7585 = vrot.slane %v7571, 1
        %v7586 = vrot.slane %v7573, 1
        %v7587 = vsel %vm587, %v7585, %v7586
        %v7588 = vrot.slane %v7574, 1
        %v7589 = vsel %vm587, %v7583, %v7588
        %v7590 = vrot.slane %v7575, 1
        %v7591 = vsel %vm587, %v7586, %v7590
        %7592 = vrot.lane.b32.xlu0 %v7584, 126
        %v7593 = vpop.permute.xlu0 %7592
        %7594 = vrot.lane.b32.xlu0 %v7587, 126
        %v7595 = vpop.permute.xlu0 %7594
        %7596 = vrot.lane.b32.xlu0 %v7589, 126
        %v7597 = vpop.permute.xlu0 %7596
        %7598 = vrot.lane.b32.xlu0 %v7591, 126
        %v7599 = vpop.permute.xlu0 %7598
        %v7600 = vsel %vm478, %v7593, %v7595
        %v7601 = vsel %vm478, %v7597, %v7599
        %v7606 = vadd.f32 %v7438, %v7600
        %v7607 = vadd.f32 %v7439, %v7595
        %v7608 = vadd.f32 %v7440, %v7601
        %v7609 = vadd.f32 %v7441, %v7599
        %v7610 = vld [vmem:[%s293] sm:$0xfc]
        %v7611 = vld [vmem:[%s293 + $0x8] sm:$0xfc]
        %v7612 = vld [vmem:[%s293 + $0x20] sm:$0x3]
        %v7613 = vld [vmem:[%s293 + $0x28] sm:$0x3]
        %s7614 = sld [smem:[#allocation8 + $0x18]]
        %v7615 = vstv %s7614
        %v7616 = vmul.f32 %v7615, %v7610
        %v7617 = vmul.f32 %v7615, %v7611
        %v7618 = vmul.f32 %v7615, %v7142
        %v7619 = vmul.f32 %v7615, %v7143
        %v7620 = vmul.f32 %v7615, %v7612
        %v7621 = vmul.f32 %v7615, %v7613
        %v7628 = vrot.slane %v7616, 2
        %v7629 = vrot.slane %v7618, 2
        %v7630 = vsel %vm960, %v7628, %v7629
        %v7631 = vrot.slane %v7617, 2
        %v7632 = vrot.slane %v7619, 2
        %v7633 = vsel %vm960, %v7631, %v7632
        %v7634 = vrot.slane %v7620, 2
        %v7635 = vsel %vm960, %v7629, %v7634
        %v7636 = vrot.slane %v7621, 2
        %v7637 = vsel %vm960, %v7632, %v7636
        %v7642 = vadd.f32 %v7480, %v7630
        %v7643 = vadd.f32 %v7481, %v7633
        %v7644 = vadd.f32 %v7482, %v7635
        %v7645 = vadd.f32 %v7483, %v7637
        %s7646 = sld [smem:[#allocation8 + $0x3c]]
        %v7647 = vstv %s7646
        %v7648 = vmul.f32 %v7647, %v7610
        %v7649 = vmul.f32 %v7647, %v7611
        %v7650 = vmul.f32 %v7647, %v7142
        %v7651 = vmul.f32 %v7647, %v7143
        %v7652 = vmul.f32 %v7647, %v7612
        %v7653 = vmul.f32 %v7647, %v7613
        %v7660 = vrot.slane %v7648, 2
        %v7661 = vrot.slane %v7650, 2
        %v7662 = vsel %vm960, %v7660, %v7661
        %v7663 = vrot.slane %v7649, 2
        %v7664 = vrot.slane %v7651, 2
        %v7665 = vsel %vm960, %v7663, %v7664
        %v7666 = vrot.slane %v7652, 2
        %v7667 = vsel %vm960, %v7661, %v7666
        %v7668 = vrot.slane %v7653, 2
        %v7669 = vsel %vm960, %v7664, %v7668
        %v7674 = vadd.f32 %v7522, %v7662
        %v7675 = vadd.f32 %v7523, %v7665
        %v7676 = vadd.f32 %v7524, %v7667
        %v7677 = vadd.f32 %v7525, %v7669
        %s7678 = sld [smem:[#allocation8 + $0x60]]
        %v7679 = vstv %s7678
        %v7680 = vmul.f32 %v7679, %v7610
        %v7681 = vmul.f32 %v7679, %v7611
        %v7682 = vmul.f32 %v7679, %v7142
        %v7683 = vmul.f32 %v7679, %v7143
        %v7684 = vmul.f32 %v7679, %v7612
        %v7685 = vmul.f32 %v7679, %v7613
        %v7692 = vrot.slane %v7680, 2
        %v7693 = vrot.slane %v7682, 2
        %v7694 = vsel %vm960, %v7692, %v7693
        %v7695 = vrot.slane %v7681, 2
        %v7696 = vrot.slane %v7683, 2
        %v7697 = vsel %vm960, %v7695, %v7696
        %v7698 = vrot.slane %v7684, 2
        %v7699 = vsel %vm960, %v7693, %v7698
        %v7700 = vrot.slane %v7685, 2
        %v7701 = vsel %vm960, %v7696, %v7700
        %v7706 = vadd.f32 %v7564, %v7694
        %v7707 = vadd.f32 %v7565, %v7697
        %v7708 = vadd.f32 %v7566, %v7699
        %v7709 = vadd.f32 %v7567, %v7701
        %s7710 = sld [smem:[#allocation8 + $0x84]]
        %v7711 = vstv %s7710
        %v7712 = vmul.f32 %v7711, %v7610
        %v7713 = vmul.f32 %v7711, %v7611
        %v7714 = vmul.f32 %v7711, %v7142
        %v7715 = vmul.f32 %v7711, %v7143
        %v7716 = vmul.f32 %v7711, %v7612
        %v7717 = vmul.f32 %v7711, %v7613
        %v7724 = vrot.slane %v7712, 2
        %v7725 = vrot.slane %v7714, 2
        %v7726 = vsel %vm960, %v7724, %v7725
        %v7727 = vrot.slane %v7713, 2
        %v7728 = vrot.slane %v7715, 2
        %v7729 = vsel %vm960, %v7727, %v7728
        %v7730 = vrot.slane %v7716, 2
        %v7731 = vsel %vm960, %v7725, %v7730
        %v7732 = vrot.slane %v7717, 2
        %v7733 = vsel %vm960, %v7728, %v7732
        %v7738 = vadd.f32 %v7606, %v7726
        %v7739 = vadd.f32 %v7607, %v7729
        %v7740 = vadd.f32 %v7608, %v7731
        %v7741 = vadd.f32 %v7609, %v7733
        %s7742 = sld [smem:[#allocation8 + $0x19]]
        %v7743 = vstv %s7742
        %v7744 = vmul.f32 %v7743, %v7610
        %v7745 = vmul.f32 %v7743, %v7611
        %v7746 = vmul.f32 %v7743, %v7142
        %v7747 = vmul.f32 %v7743, %v7143
        %v7748 = vmul.f32 %v7743, %v7612
        %v7749 = vmul.f32 %v7743, %v7613
        %v7756 = vrot.slane %v7744, 2
        %v7757 = vrot.slane %v7746, 2
        %v7758 = vsel %vm960, %v7756, %v7757
        %v7759 = vrot.slane %v7745, 2
        %v7760 = vrot.slane %v7747, 2
        %v7761 = vsel %vm960, %v7759, %v7760
        %v7762 = vrot.slane %v7748, 2
        %v7763 = vsel %vm960, %v7757, %v7762
        %v7764 = vrot.slane %v7749, 2
        %v7765 = vsel %vm960, %v7760, %v7764
        %7766 = vrot.lane.b32.xlu0 %v7758, 127
        %v7767 = vpop.permute.xlu0 %7766
        %7768 = vrot.lane.b32.xlu0 %v7761, 127
        %v7769 = vpop.permute.xlu0 %7768
        %7770 = vrot.lane.b32.xlu0 %v7763, 127
        %v7771 = vpop.permute.xlu0 %7770
        %7772 = vrot.lane.b32.xlu0 %v7765, 127
        %v7773 = vpop.permute.xlu0 %7772
        %v7774 = vsel %vm365, %v7767, %v7769
        %v7775 = vsel %vm365, %v7771, %v7773
        %v7780 = vadd.f32 %v7642, %v7774
        %v7781 = vadd.f32 %v7643, %v7769
        %v7782 = vadd.f32 %v7644, %v7775
        %v7783 = vadd.f32 %v7645, %v7773
        %s7784 = sld [smem:[#allocation8 + $0x3d]]
        %v7785 = vstv %s7784
        %v7786 = vmul.f32 %v7785, %v7610
        %v7787 = vmul.f32 %v7785, %v7611
        %v7788 = vmul.f32 %v7785, %v7142
        %v7789 = vmul.f32 %v7785, %v7143
        %v7790 = vmul.f32 %v7785, %v7612
        %v7791 = vmul.f32 %v7785, %v7613
        %v7798 = vrot.slane %v7786, 2
        %v7799 = vrot.slane %v7788, 2
        %v7800 = vsel %vm960, %v7798, %v7799
        %v7801 = vrot.slane %v7787, 2
        %v7802 = vrot.slane %v7789, 2
        %v7803 = vsel %vm960, %v7801, %v7802
        %v7804 = vrot.slane %v7790, 2
        %v7805 = vsel %vm960, %v7799, %v7804
        %v7806 = vrot.slane %v7791, 2
        %v7807 = vsel %vm960, %v7802, %v7806
        %7808 = vrot.lane.b32.xlu0 %v7800, 127
        %v7809 = vpop.permute.xlu0 %7808
        %7810 = vrot.lane.b32.xlu0 %v7803, 127
        %v7811 = vpop.permute.xlu0 %7810
        %7812 = vrot.lane.b32.xlu0 %v7805, 127
        %v7813 = vpop.permute.xlu0 %7812
        %7814 = vrot.lane.b32.xlu0 %v7807, 127
        %v7815 = vpop.permute.xlu0 %7814
        %v7816 = vsel %vm365, %v7809, %v7811
        %v7817 = vsel %vm365, %v7813, %v7815
        %v7822 = vadd.f32 %v7674, %v7816
        %v7823 = vadd.f32 %v7675, %v7811
        %v7824 = vadd.f32 %v7676, %v7817
        %v7825 = vadd.f32 %v7677, %v7815
        %s7826 = sld [smem:[#allocation8 + $0x61]]
        %v7827 = vstv %s7826
        %v7828 = vmul.f32 %v7827, %v7610
        %v7829 = vmul.f32 %v7827, %v7611
        %v7830 = vmul.f32 %v7827, %v7142
        %v7831 = vmul.f32 %v7827, %v7143
        %v7832 = vmul.f32 %v7827, %v7612
        %v7833 = vmul.f32 %v7827, %v7613
        %v7840 = vrot.slane %v7828, 2
        %v7841 = vrot.slane %v7830, 2
        %v7842 = vsel %vm960, %v7840, %v7841
        %v7843 = vrot.slane %v7829, 2
        %v7844 = vrot.slane %v7831, 2
        %v7845 = vsel %vm960, %v7843, %v7844
        %v7846 = vrot.slane %v7832, 2
        %v7847 = vsel %vm960, %v7841, %v7846
        %v7848 = vrot.slane %v7833, 2
        %v7849 = vsel %vm960, %v7844, %v7848
        %7850 = vrot.lane.b32.xlu0 %v7842, 127
        %v7851 = vpop.permute.xlu0 %7850
        %7852 = vrot.lane.b32.xlu0 %v7845, 127
        %v7853 = vpop.permute.xlu0 %7852
        %7854 = vrot.lane.b32.xlu0 %v7847, 127
        %v7855 = vpop.permute.xlu0 %7854
        %7856 = vrot.lane.b32.xlu0 %v7849, 127
        %v7857 = vpop.permute.xlu0 %7856
        %v7858 = vsel %vm365, %v7851, %v7853
        %v7859 = vsel %vm365, %v7855, %v7857
        %v7864 = vadd.f32 %v7706, %v7858
        %v7865 = vadd.f32 %v7707, %v7853
        %v7866 = vadd.f32 %v7708, %v7859
        %v7867 = vadd.f32 %v7709, %v7857
        %s7868 = sld [smem:[#allocation8 + $0x85]]
        %v7869 = vstv %s7868
        %v7870 = vmul.f32 %v7869, %v7610
        %v7871 = vmul.f32 %v7869, %v7611
        %v7872 = vmul.f32 %v7869, %v7142
        %v7873 = vmul.f32 %v7869, %v7143
        %v7874 = vmul.f32 %v7869, %v7612
        %v7875 = vmul.f32 %v7869, %v7613
        %v7882 = vrot.slane %v7870, 2
        %v7883 = vrot.slane %v7872, 2
        %v7884 = vsel %vm960, %v7882, %v7883
        %v7885 = vrot.slane %v7871, 2
        %v7886 = vrot.slane %v7873, 2
        %v7887 = vsel %vm960, %v7885, %v7886
        %v7888 = vrot.slane %v7874, 2
        %v7889 = vsel %vm960, %v7883, %v7888
        %v7890 = vrot.slane %v7875, 2
        %v7891 = vsel %vm960, %v7886, %v7890
        %7892 = vrot.lane.b32.xlu0 %v7884, 127
        %v7893 = vpop.permute.xlu0 %7892
        %7894 = vrot.lane.b32.xlu0 %v7887, 127
        %v7895 = vpop.permute.xlu0 %7894
        %7896 = vrot.lane.b32.xlu0 %v7889, 127
        %v7897 = vpop.permute.xlu0 %7896
        %7898 = vrot.lane.b32.xlu0 %v7891, 127
        %v7899 = vpop.permute.xlu0 %7898
        %v7900 = vsel %vm365, %v7893, %v7895
        %v7901 = vsel %vm365, %v7897, %v7899
        %v7906 = vadd.f32 %v7738, %v7900
        %v7907 = vadd.f32 %v7739, %v7895
        %v7908 = vadd.f32 %v7740, %v7901
        %v7909 = vadd.f32 %v7741, %v7899
        %s7910 = sld [smem:[#allocation8 + $0x1a]]
        %v7911 = vstv %s7910
        %v7912 = vmul.f32 %v7911, %v7610
        %v7913 = vmul.f32 %v7911, %v7611
        %v7914 = vmul.f32 %v7911, %v7142
        %v7915 = vmul.f32 %v7911, %v7143
        %v7916 = vmul.f32 %v7911, %v7612
        %v7917 = vmul.f32 %v7911, %v7613
        %v7924 = vrot.slane %v7912, 2
        %v7925 = vrot.slane %v7914, 2
        %v7926 = vsel %vm960, %v7924, %v7925
        %v7927 = vrot.slane %v7913, 2
        %v7928 = vrot.slane %v7915, 2
        %v7929 = vsel %vm960, %v7927, %v7928
        %v7930 = vrot.slane %v7916, 2
        %v7931 = vsel %vm960, %v7925, %v7930
        %v7932 = vrot.slane %v7917, 2
        %v7933 = vsel %vm960, %v7928, %v7932
        %7934 = vrot.lane.b32.xlu0 %v7926, 126
        %v7935 = vpop.permute.xlu0 %7934
        %7936 = vrot.lane.b32.xlu0 %v7929, 126
        %v7937 = vpop.permute.xlu0 %7936
        %7938 = vrot.lane.b32.xlu0 %v7931, 126
        %v7939 = vpop.permute.xlu0 %7938
        %7940 = vrot.lane.b32.xlu0 %v7933, 126
        %v7941 = vpop.permute.xlu0 %7940
        %v7942 = vsel %vm478, %v7935, %v7937
        %v7943 = vsel %vm478, %v7939, %v7941
        %v7948 = vadd.f32 %v7780, %v7942
        %v7949 = vadd.f32 %v7781, %v7937
        %v7950 = vadd.f32 %v7782, %v7943
        %v7951 = vadd.f32 %v7783, %v7941
        %s7952 = sld [smem:[#allocation8 + $0x3e]]
        %v7953 = vstv %s7952
        %v7954 = vmul.f32 %v7953, %v7610
        %v7955 = vmul.f32 %v7953, %v7611
        %v7956 = vmul.f32 %v7953, %v7142
        %v7957 = vmul.f32 %v7953, %v7143
        %v7958 = vmul.f32 %v7953, %v7612
        %v7959 = vmul.f32 %v7953, %v7613
        %v7966 = vrot.slane %v7954, 2
        %v7967 = vrot.slane %v7956, 2
        %v7968 = vsel %vm960, %v7966, %v7967
        %v7969 = vrot.slane %v7955, 2
        %v7970 = vrot.slane %v7957, 2
        %v7971 = vsel %vm960, %v7969, %v7970
        %v7972 = vrot.slane %v7958, 2
        %v7973 = vsel %vm960, %v7967, %v7972
        %v7974 = vrot.slane %v7959, 2
        %v7975 = vsel %vm960, %v7970, %v7974
        %7976 = vrot.lane.b32.xlu0 %v7968, 126
        %v7977 = vpop.permute.xlu0 %7976
        %7978 = vrot.lane.b32.xlu0 %v7971, 126
        %v7979 = vpop.permute.xlu0 %7978
        %7980 = vrot.lane.b32.xlu0 %v7973, 126
        %v7981 = vpop.permute.xlu0 %7980
        %7982 = vrot.lane.b32.xlu0 %v7975, 126
        %v7983 = vpop.permute.xlu0 %7982
        %v7984 = vsel %vm478, %v7977, %v7979
        %v7985 = vsel %vm478, %v7981, %v7983
        %v7990 = vadd.f32 %v7822, %v7984
        %v7991 = vadd.f32 %v7823, %v7979
        %v7992 = vadd.f32 %v7824, %v7985
        %v7993 = vadd.f32 %v7825, %v7983
        %s7994 = sld [smem:[#allocation8 + $0x62]]
        %v7995 = vstv %s7994
        %v7996 = vmul.f32 %v7995, %v7610
        %v7997 = vmul.f32 %v7995, %v7611
        %v7998 = vmul.f32 %v7995, %v7142
        %v7999 = vmul.f32 %v7995, %v7143
        %v8000 = vmul.f32 %v7995, %v7612
        %v8001 = vmul.f32 %v7995, %v7613
        %v8008 = vrot.slane %v7996, 2
        %v8009 = vrot.slane %v7998, 2
        %v8010 = vsel %vm960, %v8008, %v8009
        %v8011 = vrot.slane %v7997, 2
        %v8012 = vrot.slane %v7999, 2
        %v8013 = vsel %vm960, %v8011, %v8012
        %v8014 = vrot.slane %v8000, 2
        %v8015 = vsel %vm960, %v8009, %v8014
        %v8016 = vrot.slane %v8001, 2
        %v8017 = vsel %vm960, %v8012, %v8016
        %8018 = vrot.lane.b32.xlu0 %v8010, 126
        %v8019 = vpop.permute.xlu0 %8018
        %8020 = vrot.lane.b32.xlu0 %v8013, 126
        %v8021 = vpop.permute.xlu0 %8020
        %8022 = vrot.lane.b32.xlu0 %v8015, 126
        %v8023 = vpop.permute.xlu0 %8022
        %8024 = vrot.lane.b32.xlu0 %v8017, 126
        %v8025 = vpop.permute.xlu0 %8024
        %v8026 = vsel %vm478, %v8019, %v8021
        %v8027 = vsel %vm478, %v8023, %v8025
        %v8032 = vadd.f32 %v7864, %v8026
        %v8033 = vadd.f32 %v7865, %v8021
        %v8034 = vadd.f32 %v7866, %v8027
        %v8035 = vadd.f32 %v7867, %v8025
        %s8036 = sld [smem:[#allocation8 + $0x86]]
        %v8037 = vstv %s8036
        %v8038 = vmul.f32 %v8037, %v7610
        %v8039 = vmul.f32 %v8037, %v7611
        %v8040 = vmul.f32 %v8037, %v7142
        %v8041 = vmul.f32 %v8037, %v7143
        %v8042 = vmul.f32 %v8037, %v7612
        %v8043 = vmul.f32 %v8037, %v7613
        %v8050 = vrot.slane %v8038, 2
        %v8051 = vrot.slane %v8040, 2
        %v8052 = vsel %vm960, %v8050, %v8051
        %v8053 = vrot.slane %v8039, 2
        %v8054 = vrot.slane %v8041, 2
        %v8055 = vsel %vm960, %v8053, %v8054
        %v8056 = vrot.slane %v8042, 2
        %v8057 = vsel %vm960, %v8051, %v8056
        %v8058 = vrot.slane %v8043, 2
        %v8059 = vsel %vm960, %v8054, %v8058
        %8060 = vrot.lane.b32.xlu0 %v8052, 126
        %v8061 = vpop.permute.xlu0 %8060
        %8062 = vrot.lane.b32.xlu0 %v8055, 126
        %v8063 = vpop.permute.xlu0 %8062
        %8064 = vrot.lane.b32.xlu0 %v8057, 126
        %v8065 = vpop.permute.xlu0 %8064
        %8066 = vrot.lane.b32.xlu0 %v8059, 126
        %v8067 = vpop.permute.xlu0 %8066
        %v8068 = vsel %vm478, %v8061, %v8063
        %v8069 = vsel %vm478, %v8065, %v8067
        %v8074 = vadd.f32 %v7906, %v8068
        %v8075 = vadd.f32 %v7907, %v8063
        %v8076 = vadd.f32 %v7908, %v8069
        %v8077 = vadd.f32 %v7909, %v8067
        %v8078 = vld [vmem:[%s298] sm:$0xff]
        %v8079 = vld [vmem:[%s298 + $0x8] sm:$0xff]
        %v8080 = vld [vmem:[%s298 + $0x10] sm:$0xff]
        %v8081 = vld [vmem:[%s298 + $0x18] sm:$0xff]
        %s8082 = sld [smem:[#allocation8 + $0x1b]]
        %v8083 = vstv %s8082
        %v8084 = vmul.f32 %v8083, %v8078
        %v8085 = vmul.f32 %v8083, %v8079
        %v8086 = vmul.f32 %v8083, %v8080
        %v8087 = vmul.f32 %v8083, %v8081
        %v8088 = vadd.f32 %v7948, %v8084
        %v8089 = vadd.f32 %v7949, %v8085
        %v8090 = vadd.f32 %v7950, %v8086
        %v8091 = vadd.f32 %v7951, %v8087
        %s8092 = sld [smem:[#allocation8 + $0x3f]]
        %v8093 = vstv %s8092
        %v8094 = vmul.f32 %v8093, %v8078
        %v8095 = vmul.f32 %v8093, %v8079
        %v8096 = vmul.f32 %v8093, %v8080
        %v8097 = vmul.f32 %v8093, %v8081
        %v8098 = vadd.f32 %v7990, %v8094
        %v8099 = vadd.f32 %v7991, %v8095
        %v8100 = vadd.f32 %v7992, %v8096
        %v8101 = vadd.f32 %v7993, %v8097
        %s8102 = sld [smem:[#allocation8 + $0x63]]
        %v8103 = vstv %s8102
        %v8104 = vmul.f32 %v8103, %v8078
        %v8105 = vmul.f32 %v8103, %v8079
        %v8106 = vmul.f32 %v8103, %v8080
        %v8107 = vmul.f32 %v8103, %v8081
        %v8108 = vadd.f32 %v8032, %v8104
        %v8109 = vadd.f32 %v8033, %v8105
        %v8110 = vadd.f32 %v8034, %v8106
        %v8111 = vadd.f32 %v8035, %v8107
        %s8112 = sld [smem:[#allocation8 + $0x87]]
        %v8113 = vstv %s8112
        %v8114 = vmul.f32 %v8113, %v8078
        %v8115 = vmul.f32 %v8113, %v8079
        %v8116 = vmul.f32 %v8113, %v8080
        %v8117 = vmul.f32 %v8113, %v8081
        %v8118 = vadd.f32 %v8074, %v8114
        %v8119 = vadd.f32 %v8075, %v8115
        %v8120 = vadd.f32 %v8076, %v8116
        %v8121 = vadd.f32 %v8077, %v8117
        %s8122 = sld [smem:[#allocation8 + $0x1c]]
        %v8123 = vstv %s8122
        %v8124 = vmul.f32 %v8123, %v8078
        %v8125 = vmul.f32 %v8123, %v8079
        %v8126 = vmul.f32 %v8123, %v8080
        %v8127 = vmul.f32 %v8123, %v8081
        %8132 = vrot.lane.b32.xlu0 %v8124, 127
        %v8133 = vpop.permute.xlu0 %8132
        %8134 = vrot.lane.b32.xlu0 %v8125, 127
        %v8135 = vpop.permute.xlu0 %8134
        %8136 = vrot.lane.b32.xlu0 %v8126, 127
        %v8137 = vpop.permute.xlu0 %8136
        %8138 = vrot.lane.b32.xlu0 %v8127, 127
        %v8139 = vpop.permute.xlu0 %8138
        %v8140 = vsel %vm365, %v8133, %v8135
        %v8141 = vsel %vm365, %v8137, %v8139
        %v8146 = vadd.f32 %v8088, %v8140
        %v8147 = vadd.f32 %v8089, %v8135
        %v8148 = vadd.f32 %v8090, %v8141
        %v8149 = vadd.f32 %v8091, %v8139
        %s8150 = sld [smem:[#allocation8 + $0x40]]
        %v8151 = vstv %s8150
        %v8152 = vmul.f32 %v8151, %v8078
        %v8153 = vmul.f32 %v8151, %v8079
        %v8154 = vmul.f32 %v8151, %v8080
        %v8155 = vmul.f32 %v8151, %v8081
        %8160 = vrot.lane.b32.xlu0 %v8152, 127
        %v8161 = vpop.permute.xlu0 %8160
        %8162 = vrot.lane.b32.xlu0 %v8153, 127
        %v8163 = vpop.permute.xlu0 %8162
        %8164 = vrot.lane.b32.xlu0 %v8154, 127
        %v8165 = vpop.permute.xlu0 %8164
        %8166 = vrot.lane.b32.xlu0 %v8155, 127
        %v8167 = vpop.permute.xlu0 %8166
        %v8168 = vsel %vm365, %v8161, %v8163
        %v8169 = vsel %vm365, %v8165, %v8167
        %v8174 = vadd.f32 %v8098, %v8168
        %v8175 = vadd.f32 %v8099, %v8163
        %v8176 = vadd.f32 %v8100, %v8169
        %v8177 = vadd.f32 %v8101, %v8167
        %s8178 = sld [smem:[#allocation8 + $0x64]]
        %v8179 = vstv %s8178
        %v8180 = vmul.f32 %v8179, %v8078
        %v8181 = vmul.f32 %v8179, %v8079
        %v8182 = vmul.f32 %v8179, %v8080
        %v8183 = vmul.f32 %v8179, %v8081
        %8188 = vrot.lane.b32.xlu0 %v8180, 127
        %v8189 = vpop.permute.xlu0 %8188
        %8190 = vrot.lane.b32.xlu0 %v8181, 127
        %v8191 = vpop.permute.xlu0 %8190
        %8192 = vrot.lane.b32.xlu0 %v8182, 127
        %v8193 = vpop.permute.xlu0 %8192
        %8194 = vrot.lane.b32.xlu0 %v8183, 127
        %v8195 = vpop.permute.xlu0 %8194
        %v8196 = vsel %vm365, %v8189, %v8191
        %v8197 = vsel %vm365, %v8193, %v8195
        %v8202 = vadd.f32 %v8108, %v8196
        %v8203 = vadd.f32 %v8109, %v8191
        %v8204 = vadd.f32 %v8110, %v8197
        %v8205 = vadd.f32 %v8111, %v8195
        %s8206 = sld [smem:[#allocation8 + $0x88]]
        %v8207 = vstv %s8206
        %v8208 = vmul.f32 %v8207, %v8078
        %v8209 = vmul.f32 %v8207, %v8079
        %v8210 = vmul.f32 %v8207, %v8080
        %v8211 = vmul.f32 %v8207, %v8081
        %8216 = vrot.lane.b32.xlu0 %v8208, 127
        %v8217 = vpop.permute.xlu0 %8216
        %8218 = vrot.lane.b32.xlu0 %v8209, 127
        %v8219 = vpop.permute.xlu0 %8218
        %8220 = vrot.lane.b32.xlu0 %v8210, 127
        %v8221 = vpop.permute.xlu0 %8220
        %8222 = vrot.lane.b32.xlu0 %v8211, 127
        %v8223 = vpop.permute.xlu0 %8222
        %v8224 = vsel %vm365, %v8217, %v8219
        %v8225 = vsel %vm365, %v8221, %v8223
        %v8230 = vadd.f32 %v8118, %v8224
        %v8231 = vadd.f32 %v8119, %v8219
        %v8232 = vadd.f32 %v8120, %v8225
        %v8233 = vadd.f32 %v8121, %v8223
        %s8234 = sld [smem:[#allocation8 + $0x1d]]
        %v8235 = vstv %s8234
        %v8236 = vmul.f32 %v8235, %v8078
        %v8237 = vmul.f32 %v8235, %v8079
        %v8238 = vmul.f32 %v8235, %v8080
        %v8239 = vmul.f32 %v8235, %v8081
        %8244 = vrot.lane.b32.xlu0 %v8236, 126
        %v8245 = vpop.permute.xlu0 %8244
        %8246 = vrot.lane.b32.xlu0 %v8237, 126
        %v8247 = vpop.permute.xlu0 %8246
        %8248 = vrot.lane.b32.xlu0 %v8238, 126
        %v8249 = vpop.permute.xlu0 %8248
        %8250 = vrot.lane.b32.xlu0 %v8239, 126
        %v8251 = vpop.permute.xlu0 %8250
        %v8252 = vsel %vm478, %v8245, %v8247
        %v8253 = vsel %vm478, %v8249, %v8251
        %v8258 = vadd.f32 %v8146, %v8252
        %v8259 = vadd.f32 %v8147, %v8247
        %v8260 = vadd.f32 %v8148, %v8253
        %v8261 = vadd.f32 %v8149, %v8251
        %s8262 = sld [smem:[#allocation8 + $0x41]]
        %v8263 = vstv %s8262
        %v8264 = vmul.f32 %v8263, %v8078
        %v8265 = vmul.f32 %v8263, %v8079
        %v8266 = vmul.f32 %v8263, %v8080
        %v8267 = vmul.f32 %v8263, %v8081
        %8272 = vrot.lane.b32.xlu0 %v8264, 126
        %v8273 = vpop.permute.xlu0 %8272
        %8274 = vrot.lane.b32.xlu0 %v8265, 126
        %v8275 = vpop.permute.xlu0 %8274
        %8276 = vrot.lane.b32.xlu0 %v8266, 126
        %v8277 = vpop.permute.xlu0 %8276
        %8278 = vrot.lane.b32.xlu0 %v8267, 126
        %v8279 = vpop.permute.xlu0 %8278
        %v8280 = vsel %vm478, %v8273, %v8275
        %v8281 = vsel %vm478, %v8277, %v8279
        %v8286 = vadd.f32 %v8174, %v8280
        %v8287 = vadd.f32 %v8175, %v8275
        %v8288 = vadd.f32 %v8176, %v8281
        %v8289 = vadd.f32 %v8177, %v8279
        %s8290 = sld [smem:[#allocation8 + $0x65]]
        %v8291 = vstv %s8290
        %v8292 = vmul.f32 %v8291, %v8078
        %v8293 = vmul.f32 %v8291, %v8079
        %v8294 = vmul.f32 %v8291, %v8080
        %v8295 = vmul.f32 %v8291, %v8081
        %8300 = vrot.lane.b32.xlu0 %v8292, 126
        %v8301 = vpop.permute.xlu0 %8300
        %8302 = vrot.lane.b32.xlu0 %v8293, 126
        %v8303 = vpop.permute.xlu0 %8302
        %8304 = vrot.lane.b32.xlu0 %v8294, 126
        %v8305 = vpop.permute.xlu0 %8304
        %8306 = vrot.lane.b32.xlu0 %v8295, 126
        %v8307 = vpop.permute.xlu0 %8306
        %v8308 = vsel %vm478, %v8301, %v8303
        %v8309 = vsel %vm478, %v8305, %v8307
        %v8314 = vadd.f32 %v8202, %v8308
        %v8315 = vadd.f32 %v8203, %v8303
        %v8316 = vadd.f32 %v8204, %v8309
        %v8317 = vadd.f32 %v8205, %v8307
        %s8318 = sld [smem:[#allocation8 + $0x89]]
        %v8319 = vstv %s8318
        %v8320 = vmul.f32 %v8319, %v8078
        %v8321 = vmul.f32 %v8319, %v8079
        %v8322 = vmul.f32 %v8319, %v8080
        %v8323 = vmul.f32 %v8319, %v8081
        %8328 = vrot.lane.b32.xlu0 %v8320, 126
        %v8329 = vpop.permute.xlu0 %8328
        %8330 = vrot.lane.b32.xlu0 %v8321, 126
        %v8331 = vpop.permute.xlu0 %8330
        %8332 = vrot.lane.b32.xlu0 %v8322, 126
        %v8333 = vpop.permute.xlu0 %8332
        %8334 = vrot.lane.b32.xlu0 %v8323, 126
        %v8335 = vpop.permute.xlu0 %8334
        %v8336 = vsel %vm478, %v8329, %v8331
        %v8337 = vsel %vm478, %v8333, %v8335
        %v8342 = vadd.f32 %v8230, %v8336
        %v8343 = vadd.f32 %v8231, %v8331
        %v8344 = vadd.f32 %v8232, %v8337
        %v8345 = vadd.f32 %v8233, %v8335
        %v8346 = vld [vmem:[%s298] sm:$0xfe]
        %v8347 = vld [vmem:[%s298 + $0x8] sm:$0xfe]
        %v8348 = vld [vmem:[%s298 + $0x10] sm:$0xff]
        %v8349 = vld [vmem:[%s298 + $0x18] sm:$0xff]
        %v8350 = vld [vmem:[%s298 + $0x20] sm:$0x1]
        %v8351 = vld [vmem:[%s298 + $0x28] sm:$0x1]
        %s8352 = sld [smem:[#allocation8 + $0x1e]]
        %v8353 = vstv %s8352
        %v8354 = vmul.f32 %v8353, %v8346
        %v8355 = vmul.f32 %v8353, %v8347
        %v8356 = vmul.f32 %v8353, %v8348
        %v8357 = vmul.f32 %v8353, %v8349
        %v8358 = vmul.f32 %v8353, %v8350
        %v8359 = vmul.f32 %v8353, %v8351
        %v8366 = vrot.slane %v8354, 1
        %v8367 = vrot.slane %v8356, 1
        %v8368 = vsel %vm587, %v8366, %v8367
        %v8369 = vrot.slane %v8355, 1
        %v8370 = vrot.slane %v8357, 1
        %v8371 = vsel %vm587, %v8369, %v8370
        %v8372 = vrot.slane %v8358, 1
        %v8373 = vsel %vm587, %v8367, %v8372
        %v8374 = vrot.slane %v8359, 1
        %v8375 = vsel %vm587, %v8370, %v8374
        %v8380 = vadd.f32 %v8258, %v8368
        %v8381 = vadd.f32 %v8259, %v8371
        %v8382 = vadd.f32 %v8260, %v8373
        %v8383 = vadd.f32 %v8261, %v8375
        %s8384 = sld [smem:[#allocation8 + $0x42]]
        %v8385 = vstv %s8384
        %v8386 = vmul.f32 %v8385, %v8346
        %v8387 = vmul.f32 %v8385, %v8347
        %v8388 = vmul.f32 %v8385, %v8348
        %v8389 = vmul.f32 %v8385, %v8349
        %v8390 = vmul.f32 %v8385, %v8350
        %v8391 = vmul.f32 %v8385, %v8351
        %v8398 = vrot.slane %v8386, 1
        %v8399 = vrot.slane %v8388, 1
        %v8400 = vsel %vm587, %v8398, %v8399
        %v8401 = vrot.slane %v8387, 1
        %v8402 = vrot.slane %v8389, 1
        %v8403 = vsel %vm587, %v8401, %v8402
        %v8404 = vrot.slane %v8390, 1
        %v8405 = vsel %vm587, %v8399, %v8404
        %v8406 = vrot.slane %v8391, 1
        %v8407 = vsel %vm587, %v8402, %v8406
        %v8412 = vadd.f32 %v8286, %v8400
        %v8413 = vadd.f32 %v8287, %v8403
        %v8414 = vadd.f32 %v8288, %v8405
        %v8415 = vadd.f32 %v8289, %v8407
        %s8416 = sld [smem:[#allocation8 + $0x66]]
        %v8417 = vstv %s8416
        %v8418 = vmul.f32 %v8417, %v8346
        %v8419 = vmul.f32 %v8417, %v8347
        %v8420 = vmul.f32 %v8417, %v8348
        %v8421 = vmul.f32 %v8417, %v8349
        %v8422 = vmul.f32 %v8417, %v8350
        %v8423 = vmul.f32 %v8417, %v8351
        %v8430 = vrot.slane %v8418, 1
        %v8431 = vrot.slane %v8420, 1
        %v8432 = vsel %vm587, %v8430, %v8431
        %v8433 = vrot.slane %v8419, 1
        %v8434 = vrot.slane %v8421, 1
        %v8435 = vsel %vm587, %v8433, %v8434
        %v8436 = vrot.slane %v8422, 1
        %v8437 = vsel %vm587, %v8431, %v8436
        %v8438 = vrot.slane %v8423, 1
        %v8439 = vsel %vm587, %v8434, %v8438
        %v8444 = vadd.f32 %v8314, %v8432
        %v8445 = vadd.f32 %v8315, %v8435
        %v8446 = vadd.f32 %v8316, %v8437
        %v8447 = vadd.f32 %v8317, %v8439
        %s8448 = sld [smem:[#allocation8 + $0x8a]]
        %v8449 = vstv %s8448
        %v8450 = vmul.f32 %v8449, %v8346
        %v8451 = vmul.f32 %v8449, %v8347
        %v8452 = vmul.f32 %v8449, %v8348
        %v8453 = vmul.f32 %v8449, %v8349
        %v8454 = vmul.f32 %v8449, %v8350
        %v8455 = vmul.f32 %v8449, %v8351
        %v8462 = vrot.slane %v8450, 1
        %v8463 = vrot.slane %v8452, 1
        %v8464 = vsel %vm587, %v8462, %v8463
        %v8465 = vrot.slane %v8451, 1
        %v8466 = vrot.slane %v8453, 1
        %v8467 = vsel %vm587, %v8465, %v8466
        %v8468 = vrot.slane %v8454, 1
        %v8469 = vsel %vm587, %v8463, %v8468
        %v8470 = vrot.slane %v8455, 1
        %v8471 = vsel %vm587, %v8466, %v8470
        %v8476 = vadd.f32 %v8342, %v8464
        %v8477 = vadd.f32 %v8343, %v8467
        %v8478 = vadd.f32 %v8344, %v8469
        %v8479 = vadd.f32 %v8345, %v8471
        %s8480 = sld [smem:[#allocation8 + $0x1f]]
        %v8481 = vstv %s8480
        %v8482 = vmul.f32 %v8481, %v8346
        %v8483 = vmul.f32 %v8481, %v8347
        %v8484 = vmul.f32 %v8481, %v8348
        %v8485 = vmul.f32 %v8481, %v8349
        %v8486 = vmul.f32 %v8481, %v8350
        %v8487 = vmul.f32 %v8481, %v8351
        %v8494 = vrot.slane %v8482, 1
        %v8495 = vrot.slane %v8484, 1
        %v8496 = vsel %vm587, %v8494, %v8495
        %v8497 = vrot.slane %v8483, 1
        %v8498 = vrot.slane %v8485, 1
        %v8499 = vsel %vm587, %v8497, %v8498
        %v8500 = vrot.slane %v8486, 1
        %v8501 = vsel %vm587, %v8495, %v8500
        %v8502 = vrot.slane %v8487, 1
        %v8503 = vsel %vm587, %v8498, %v8502
        %8504 = vrot.lane.b32.xlu0 %v8496, 127
        %v8505 = vpop.permute.xlu0 %8504
        %8506 = vrot.lane.b32.xlu0 %v8499, 127
        %v8507 = vpop.permute.xlu0 %8506
        %8508 = vrot.lane.b32.xlu0 %v8501, 127
        %v8509 = vpop.permute.xlu0 %8508
        %8510 = vrot.lane.b32.xlu0 %v8503, 127
        %v8511 = vpop.permute.xlu0 %8510
        %v8512 = vsel %vm365, %v8505, %v8507
        %v8513 = vsel %vm365, %v8509, %v8511
        %v8518 = vadd.f32 %v8380, %v8512
        %v8519 = vadd.f32 %v8381, %v8507
        %v8520 = vadd.f32 %v8382, %v8513
        %v8521 = vadd.f32 %v8383, %v8511
        %s8522 = sld [smem:[#allocation8 + $0x43]]
        %v8523 = vstv %s8522
        %v8524 = vmul.f32 %v8523, %v8346
        %v8525 = vmul.f32 %v8523, %v8347
        %v8526 = vmul.f32 %v8523, %v8348
        %v8527 = vmul.f32 %v8523, %v8349
        %v8528 = vmul.f32 %v8523, %v8350
        %v8529 = vmul.f32 %v8523, %v8351
        %v8536 = vrot.slane %v8524, 1
        %v8537 = vrot.slane %v8526, 1
        %v8538 = vsel %vm587, %v8536, %v8537
        %v8539 = vrot.slane %v8525, 1
        %v8540 = vrot.slane %v8527, 1
        %v8541 = vsel %vm587, %v8539, %v8540
        %v8542 = vrot.slane %v8528, 1
        %v8543 = vsel %vm587, %v8537, %v8542
        %v8544 = vrot.slane %v8529, 1
        %v8545 = vsel %vm587, %v8540, %v8544
        %8546 = vrot.lane.b32.xlu0 %v8538, 127
        %v8547 = vpop.permute.xlu0 %8546
        %8548 = vrot.lane.b32.xlu0 %v8541, 127
        %v8549 = vpop.permute.xlu0 %8548
        %8550 = vrot.lane.b32.xlu0 %v8543, 127
        %v8551 = vpop.permute.xlu0 %8550
        %8552 = vrot.lane.b32.xlu0 %v8545, 127
        %v8553 = vpop.permute.xlu0 %8552
        %v8554 = vsel %vm365, %v8547, %v8549
        %v8555 = vsel %vm365, %v8551, %v8553
        %v8560 = vadd.f32 %v8412, %v8554
        %v8561 = vadd.f32 %v8413, %v8549
        %v8562 = vadd.f32 %v8414, %v8555
        %v8563 = vadd.f32 %v8415, %v8553
        %s8564 = sld [smem:[#allocation8 + $0x67]]
        %v8565 = vstv %s8564
        %v8566 = vmul.f32 %v8565, %v8346
        %v8567 = vmul.f32 %v8565, %v8347
        %v8568 = vmul.f32 %v8565, %v8348
        %v8569 = vmul.f32 %v8565, %v8349
        %v8570 = vmul.f32 %v8565, %v8350
        %v8571 = vmul.f32 %v8565, %v8351
        %v8578 = vrot.slane %v8566, 1
        %v8579 = vrot.slane %v8568, 1
        %v8580 = vsel %vm587, %v8578, %v8579
        %v8581 = vrot.slane %v8567, 1
        %v8582 = vrot.slane %v8569, 1
        %v8583 = vsel %vm587, %v8581, %v8582
        %v8584 = vrot.slane %v8570, 1
        %v8585 = vsel %vm587, %v8579, %v8584
        %v8586 = vrot.slane %v8571, 1
        %v8587 = vsel %vm587, %v8582, %v8586
        %8588 = vrot.lane.b32.xlu0 %v8580, 127
        %v8589 = vpop.permute.xlu0 %8588
        %8590 = vrot.lane.b32.xlu0 %v8583, 127
        %v8591 = vpop.permute.xlu0 %8590
        %8592 = vrot.lane.b32.xlu0 %v8585, 127
        %v8593 = vpop.permute.xlu0 %8592
        %8594 = vrot.lane.b32.xlu0 %v8587, 127
        %v8595 = vpop.permute.xlu0 %8594
        %v8596 = vsel %vm365, %v8589, %v8591
        %v8597 = vsel %vm365, %v8593, %v8595
        %v8602 = vadd.f32 %v8444, %v8596
        %v8603 = vadd.f32 %v8445, %v8591
        %v8604 = vadd.f32 %v8446, %v8597
        %v8605 = vadd.f32 %v8447, %v8595
        %s8606 = sld [smem:[#allocation8 + $0x8b]]
        %v8607 = vstv %s8606
        %v8608 = vmul.f32 %v8607, %v8346
        %v8609 = vmul.f32 %v8607, %v8347
        %v8610 = vmul.f32 %v8607, %v8348
        %v8611 = vmul.f32 %v8607, %v8349
        %v8612 = vmul.f32 %v8607, %v8350
        %v8613 = vmul.f32 %v8607, %v8351
        %v8620 = vrot.slane %v8608, 1
        %v8621 = vrot.slane %v8610, 1
        %v8622 = vsel %vm587, %v8620, %v8621
        %v8623 = vrot.slane %v8609, 1
        %v8624 = vrot.slane %v8611, 1
        %v8625 = vsel %vm587, %v8623, %v8624
        %v8626 = vrot.slane %v8612, 1
        %v8627 = vsel %vm587, %v8621, %v8626
        %v8628 = vrot.slane %v8613, 1
        %v8629 = vsel %vm587, %v8624, %v8628
        %8630 = vrot.lane.b32.xlu0 %v8622, 127
        %v8631 = vpop.permute.xlu0 %8630
        %8632 = vrot.lane.b32.xlu0 %v8625, 127
        %v8633 = vpop.permute.xlu0 %8632
        %8634 = vrot.lane.b32.xlu0 %v8627, 127
        %v8635 = vpop.permute.xlu0 %8634
        %8636 = vrot.lane.b32.xlu0 %v8629, 127
        %v8637 = vpop.permute.xlu0 %8636
        %v8638 = vsel %vm365, %v8631, %v8633
        %v8639 = vsel %vm365, %v8635, %v8637
        %v8644 = vadd.f32 %v8476, %v8638
        %v8645 = vadd.f32 %v8477, %v8633
        %v8646 = vadd.f32 %v8478, %v8639
        %v8647 = vadd.f32 %v8479, %v8637
        %s8648 = sld [smem:[#allocation8 + $0x20]]
        %v8649 = vstv %s8648
        %v8650 = vmul.f32 %v8649, %v8346
        %v8651 = vmul.f32 %v8649, %v8347
        %v8652 = vmul.f32 %v8649, %v8348
        %v8653 = vmul.f32 %v8649, %v8349
        %v8654 = vmul.f32 %v8649, %v8350
        %v8655 = vmul.f32 %v8649, %v8351
        %v8662 = vrot.slane %v8650, 1
        %v8663 = vrot.slane %v8652, 1
        %v8664 = vsel %vm587, %v8662, %v8663
        %v8665 = vrot.slane %v8651, 1
        %v8666 = vrot.slane %v8653, 1
        %v8667 = vsel %vm587, %v8665, %v8666
        %v8668 = vrot.slane %v8654, 1
        %v8669 = vsel %vm587, %v8663, %v8668
        %v8670 = vrot.slane %v8655, 1
        %v8671 = vsel %vm587, %v8666, %v8670
        %8672 = vrot.lane.b32.xlu0 %v8664, 126
        %v8673 = vpop.permute.xlu0 %8672
        %8674 = vrot.lane.b32.xlu0 %v8667, 126
        %v8675 = vpop.permute.xlu0 %8674
        %8676 = vrot.lane.b32.xlu0 %v8669, 126
        %v8677 = vpop.permute.xlu0 %8676
        %8678 = vrot.lane.b32.xlu0 %v8671, 126
        %v8679 = vpop.permute.xlu0 %8678
        %v8680 = vsel %vm478, %v8673, %v8675
        %v8681 = vsel %vm478, %v8677, %v8679
        %v8686 = vadd.f32 %v8518, %v8680
        %v8687 = vadd.f32 %v8519, %v8675
        %v8688 = vadd.f32 %v8520, %v8681
        %v8689 = vadd.f32 %v8521, %v8679
        %s8690 = sld [smem:[#allocation8 + $0x44]]
        %v8691 = vstv %s8690
        %v8692 = vmul.f32 %v8691, %v8346
        %v8693 = vmul.f32 %v8691, %v8347
        %v8694 = vmul.f32 %v8691, %v8348
        %v8695 = vmul.f32 %v8691, %v8349
        %v8696 = vmul.f32 %v8691, %v8350
        %v8697 = vmul.f32 %v8691, %v8351
        %v8704 = vrot.slane %v8692, 1
        %v8705 = vrot.slane %v8694, 1
        %v8706 = vsel %vm587, %v8704, %v8705
        %v8707 = vrot.slane %v8693, 1
        %v8708 = vrot.slane %v8695, 1
        %v8709 = vsel %vm587, %v8707, %v8708
        %v8710 = vrot.slane %v8696, 1
        %v8711 = vsel %vm587, %v8705, %v8710
        %v8712 = vrot.slane %v8697, 1
        %v8713 = vsel %vm587, %v8708, %v8712
        %8714 = vrot.lane.b32.xlu0 %v8706, 126
        %v8715 = vpop.permute.xlu0 %8714
        %8716 = vrot.lane.b32.xlu0 %v8709, 126
        %v8717 = vpop.permute.xlu0 %8716
        %8718 = vrot.lane.b32.xlu0 %v8711, 126
        %v8719 = vpop.permute.xlu0 %8718
        %8720 = vrot.lane.b32.xlu0 %v8713, 126
        %v8721 = vpop.permute.xlu0 %8720
        %v8722 = vsel %vm478, %v8715, %v8717
        %v8723 = vsel %vm478, %v8719, %v8721
        %v8728 = vadd.f32 %v8560, %v8722
        %v8729 = vadd.f32 %v8561, %v8717
        %v8730 = vadd.f32 %v8562, %v8723
        %v8731 = vadd.f32 %v8563, %v8721
        %s8732 = sld [smem:[#allocation8 + $0x68]]
        %v8733 = vstv %s8732
        %v8734 = vmul.f32 %v8733, %v8346
        %v8735 = vmul.f32 %v8733, %v8347
        %v8736 = vmul.f32 %v8733, %v8348
        %v8737 = vmul.f32 %v8733, %v8349
        %v8738 = vmul.f32 %v8733, %v8350
        %v8739 = vmul.f32 %v8733, %v8351
        %v8746 = vrot.slane %v8734, 1
        %v8747 = vrot.slane %v8736, 1
        %v8748 = vsel %vm587, %v8746, %v8747
        %v8749 = vrot.slane %v8735, 1
        %v8750 = vrot.slane %v8737, 1
        %v8751 = vsel %vm587, %v8749, %v8750
        %v8752 = vrot.slane %v8738, 1
        %v8753 = vsel %vm587, %v8747, %v8752
        %v8754 = vrot.slane %v8739, 1
        %v8755 = vsel %vm587, %v8750, %v8754
        %8756 = vrot.lane.b32.xlu0 %v8748, 126
        %v8757 = vpop.permute.xlu0 %8756
        %8758 = vrot.lane.b32.xlu0 %v8751, 126
        %v8759 = vpop.permute.xlu0 %8758
        %8760 = vrot.lane.b32.xlu0 %v8753, 126
        %v8761 = vpop.permute.xlu0 %8760
        %8762 = vrot.lane.b32.xlu0 %v8755, 126
        %v8763 = vpop.permute.xlu0 %8762
        %v8764 = vsel %vm478, %v8757, %v8759
        %v8765 = vsel %vm478, %v8761, %v8763
        %v8770 = vadd.f32 %v8602, %v8764
        %v8771 = vadd.f32 %v8603, %v8759
        %v8772 = vadd.f32 %v8604, %v8765
        %v8773 = vadd.f32 %v8605, %v8763
        %s8774 = sld [smem:[#allocation8 + $0x8c]]
        %v8775 = vstv %s8774
        %v8776 = vmul.f32 %v8775, %v8346
        %v8777 = vmul.f32 %v8775, %v8347
        %v8778 = vmul.f32 %v8775, %v8348
        %v8779 = vmul.f32 %v8775, %v8349
        %v8780 = vmul.f32 %v8775, %v8350
        %v8781 = vmul.f32 %v8775, %v8351
        %v8788 = vrot.slane %v8776, 1
        %v8789 = vrot.slane %v8778, 1
        %v8790 = vsel %vm587, %v8788, %v8789
        %v8791 = vrot.slane %v8777, 1
        %v8792 = vrot.slane %v8779, 1
        %v8793 = vsel %vm587, %v8791, %v8792
        %v8794 = vrot.slane %v8780, 1
        %v8795 = vsel %vm587, %v8789, %v8794
        %v8796 = vrot.slane %v8781, 1
        %v8797 = vsel %vm587, %v8792, %v8796
        %8798 = vrot.lane.b32.xlu0 %v8790, 126
        %v8799 = vpop.permute.xlu0 %8798
        %8800 = vrot.lane.b32.xlu0 %v8793, 126
        %v8801 = vpop.permute.xlu0 %8800
        %8802 = vrot.lane.b32.xlu0 %v8795, 126
        %v8803 = vpop.permute.xlu0 %8802
        %8804 = vrot.lane.b32.xlu0 %v8797, 126
        %v8805 = vpop.permute.xlu0 %8804
        %v8806 = vsel %vm478, %v8799, %v8801
        %v8807 = vsel %vm478, %v8803, %v8805
        %v8812 = vadd.f32 %v8644, %v8806
        %v8813 = vadd.f32 %v8645, %v8801
        %v8814 = vadd.f32 %v8646, %v8807
        %v8815 = vadd.f32 %v8647, %v8805
        %v8816 = vld [vmem:[%s298] sm:$0xfc]
        %v8817 = vld [vmem:[%s298 + $0x8] sm:$0xfc]
        %v8818 = vld [vmem:[%s298 + $0x20] sm:$0x3]
        %v8819 = vld [vmem:[%s298 + $0x28] sm:$0x3]
        %s8820 = sld [smem:[#allocation8 + $0x21]]
        %v8821 = vstv %s8820
        %v8822 = vmul.f32 %v8821, %v8816
        %v8823 = vmul.f32 %v8821, %v8817
        %v8824 = vmul.f32 %v8821, %v8348
        %v8825 = vmul.f32 %v8821, %v8349
        %v8826 = vmul.f32 %v8821, %v8818
        %v8827 = vmul.f32 %v8821, %v8819
        %v8834 = vrot.slane %v8822, 2
        %v8835 = vrot.slane %v8824, 2
        %v8836 = vsel %vm960, %v8834, %v8835
        %v8837 = vrot.slane %v8823, 2
        %v8838 = vrot.slane %v8825, 2
        %v8839 = vsel %vm960, %v8837, %v8838
        %v8840 = vrot.slane %v8826, 2
        %v8841 = vsel %vm960, %v8835, %v8840
        %v8842 = vrot.slane %v8827, 2
        %v8843 = vsel %vm960, %v8838, %v8842
        %v8848 = vadd.f32 %v8686, %v8836
        %v8849 = vadd.f32 %v8687, %v8839
        %v8850 = vadd.f32 %v8688, %v8841
        %v8851 = vadd.f32 %v8689, %v8843
        %s8852 = sld [smem:[#allocation8 + $0x45]]
        %v8853 = vstv %s8852
        %v8854 = vmul.f32 %v8853, %v8816
        %v8855 = vmul.f32 %v8853, %v8817
        %v8856 = vmul.f32 %v8853, %v8348
        %v8857 = vmul.f32 %v8853, %v8349
        %v8858 = vmul.f32 %v8853, %v8818
        %v8859 = vmul.f32 %v8853, %v8819
        %v8866 = vrot.slane %v8854, 2
        %v8867 = vrot.slane %v8856, 2
        %v8868 = vsel %vm960, %v8866, %v8867
        %v8869 = vrot.slane %v8855, 2
        %v8870 = vrot.slane %v8857, 2
        %v8871 = vsel %vm960, %v8869, %v8870
        %v8872 = vrot.slane %v8858, 2
        %v8873 = vsel %vm960, %v8867, %v8872
        %v8874 = vrot.slane %v8859, 2
        %v8875 = vsel %vm960, %v8870, %v8874
        %v8880 = vadd.f32 %v8728, %v8868
        %v8881 = vadd.f32 %v8729, %v8871
        %v8882 = vadd.f32 %v8730, %v8873
        %v8883 = vadd.f32 %v8731, %v8875
        %s8884 = sld [smem:[#allocation8 + $0x69]]
        %v8885 = vstv %s8884
        %v8886 = vmul.f32 %v8885, %v8816
        %v8887 = vmul.f32 %v8885, %v8817
        %v8888 = vmul.f32 %v8885, %v8348
        %v8889 = vmul.f32 %v8885, %v8349
        %v8890 = vmul.f32 %v8885, %v8818
        %v8891 = vmul.f32 %v8885, %v8819
        %v8898 = vrot.slane %v8886, 2
        %v8899 = vrot.slane %v8888, 2
        %v8900 = vsel %vm960, %v8898, %v8899
        %v8901 = vrot.slane %v8887, 2
        %v8902 = vrot.slane %v8889, 2
        %v8903 = vsel %vm960, %v8901, %v8902
        %v8904 = vrot.slane %v8890, 2
        %v8905 = vsel %vm960, %v8899, %v8904
        %v8906 = vrot.slane %v8891, 2
        %v8907 = vsel %vm960, %v8902, %v8906
        %v8912 = vadd.f32 %v8770, %v8900
        %v8913 = vadd.f32 %v8771, %v8903
        %v8914 = vadd.f32 %v8772, %v8905
        %v8915 = vadd.f32 %v8773, %v8907
        %s8916 = sld [smem:[#allocation8 + $0x8d]]
        %v8917 = vstv %s8916
        %v8918 = vmul.f32 %v8917, %v8816
        %v8919 = vmul.f32 %v8917, %v8817
        %v8920 = vmul.f32 %v8917, %v8348
        %v8921 = vmul.f32 %v8917, %v8349
        %v8922 = vmul.f32 %v8917, %v8818
        %v8923 = vmul.f32 %v8917, %v8819
        %v8930 = vrot.slane %v8918, 2
        %v8931 = vrot.slane %v8920, 2
        %v8932 = vsel %vm960, %v8930, %v8931
        %v8933 = vrot.slane %v8919, 2
        %v8934 = vrot.slane %v8921, 2
        %v8935 = vsel %vm960, %v8933, %v8934
        %v8936 = vrot.slane %v8922, 2
        %v8937 = vsel %vm960, %v8931, %v8936
        %v8938 = vrot.slane %v8923, 2
        %v8939 = vsel %vm960, %v8934, %v8938
        %v8944 = vadd.f32 %v8812, %v8932
        %v8945 = vadd.f32 %v8813, %v8935
        %v8946 = vadd.f32 %v8814, %v8937
        %v8947 = vadd.f32 %v8815, %v8939
        %s8948 = sld [smem:[#allocation8 + $0x22]]
        %v8949 = vstv %s8948
        %v8950 = vmul.f32 %v8949, %v8816
        %v8951 = vmul.f32 %v8949, %v8817
        %v8952 = vmul.f32 %v8949, %v8348
        %v8953 = vmul.f32 %v8949, %v8349
        %v8954 = vmul.f32 %v8949, %v8818
        %v8955 = vmul.f32 %v8949, %v8819
        %v8962 = vrot.slane %v8950, 2
        %v8963 = vrot.slane %v8952, 2
        %v8964 = vsel %vm960, %v8962, %v8963
        %v8965 = vrot.slane %v8951, 2
        %v8966 = vrot.slane %v8953, 2
        %v8967 = vsel %vm960, %v8965, %v8966
        %v8968 = vrot.slane %v8954, 2
        %v8969 = vsel %vm960, %v8963, %v8968
        %v8970 = vrot.slane %v8955, 2
        %v8971 = vsel %vm960, %v8966, %v8970
        %8972 = vrot.lane.b32.xlu0 %v8964, 127
        %v8973 = vpop.permute.xlu0 %8972
        %8974 = vrot.lane.b32.xlu0 %v8967, 127
        %v8975 = vpop.permute.xlu0 %8974
        %8976 = vrot.lane.b32.xlu0 %v8969, 127
        %v8977 = vpop.permute.xlu0 %8976
        %8978 = vrot.lane.b32.xlu0 %v8971, 127
        %v8979 = vpop.permute.xlu0 %8978
        %v8980 = vsel %vm365, %v8973, %v8975
        %v8981 = vsel %vm365, %v8977, %v8979
        %v8986 = vadd.f32 %v8848, %v8980
        %v8987 = vadd.f32 %v8849, %v8975
        %v8988 = vadd.f32 %v8850, %v8981
        %v8989 = vadd.f32 %v8851, %v8979
        %s8990 = sld [smem:[#allocation8 + $0x46]]
        %v8991 = vstv %s8990
        %v8992 = vmul.f32 %v8991, %v8816
        %v8993 = vmul.f32 %v8991, %v8817
        %v8994 = vmul.f32 %v8991, %v8348
        %v8995 = vmul.f32 %v8991, %v8349
        %v8996 = vmul.f32 %v8991, %v8818
        %v8997 = vmul.f32 %v8991, %v8819
        %v9004 = vrot.slane %v8992, 2
        %v9005 = vrot.slane %v8994, 2
        %v9006 = vsel %vm960, %v9004, %v9005
        %v9007 = vrot.slane %v8993, 2
        %v9008 = vrot.slane %v8995, 2
        %v9009 = vsel %vm960, %v9007, %v9008
        %v9010 = vrot.slane %v8996, 2
        %v9011 = vsel %vm960, %v9005, %v9010
        %v9012 = vrot.slane %v8997, 2
        %v9013 = vsel %vm960, %v9008, %v9012
        %9014 = vrot.lane.b32.xlu0 %v9006, 127
        %v9015 = vpop.permute.xlu0 %9014
        %9016 = vrot.lane.b32.xlu0 %v9009, 127
        %v9017 = vpop.permute.xlu0 %9016
        %9018 = vrot.lane.b32.xlu0 %v9011, 127
        %v9019 = vpop.permute.xlu0 %9018
        %9020 = vrot.lane.b32.xlu0 %v9013, 127
        %v9021 = vpop.permute.xlu0 %9020
        %v9022 = vsel %vm365, %v9015, %v9017
        %v9023 = vsel %vm365, %v9019, %v9021
        %v9028 = vadd.f32 %v8880, %v9022
        %v9029 = vadd.f32 %v8881, %v9017
        %v9030 = vadd.f32 %v8882, %v9023
        %v9031 = vadd.f32 %v8883, %v9021
        %s9032 = sld [smem:[#allocation8 + $0x6a]]
        %v9033 = vstv %s9032
        %v9034 = vmul.f32 %v9033, %v8816
        %v9035 = vmul.f32 %v9033, %v8817
        %v9036 = vmul.f32 %v9033, %v8348
        %v9037 = vmul.f32 %v9033, %v8349
        %v9038 = vmul.f32 %v9033, %v8818
        %v9039 = vmul.f32 %v9033, %v8819
        %v9046 = vrot.slane %v9034, 2
        %v9047 = vrot.slane %v9036, 2
        %v9048 = vsel %vm960, %v9046, %v9047
        %v9049 = vrot.slane %v9035, 2
        %v9050 = vrot.slane %v9037, 2
        %v9051 = vsel %vm960, %v9049, %v9050
        %v9052 = vrot.slane %v9038, 2
        %v9053 = vsel %vm960, %v9047, %v9052
        %v9054 = vrot.slane %v9039, 2
        %v9055 = vsel %vm960, %v9050, %v9054
        %9056 = vrot.lane.b32.xlu0 %v9048, 127
        %v9057 = vpop.permute.xlu0 %9056
        %9058 = vrot.lane.b32.xlu0 %v9051, 127
        %v9059 = vpop.permute.xlu0 %9058
        %9060 = vrot.lane.b32.xlu0 %v9053, 127
        %v9061 = vpop.permute.xlu0 %9060
        %9062 = vrot.lane.b32.xlu0 %v9055, 127
        %v9063 = vpop.permute.xlu0 %9062
        %v9064 = vsel %vm365, %v9057, %v9059
        %v9065 = vsel %vm365, %v9061, %v9063
        %v9070 = vadd.f32 %v8912, %v9064
        %v9071 = vadd.f32 %v8913, %v9059
        %v9072 = vadd.f32 %v8914, %v9065
        %v9073 = vadd.f32 %v8915, %v9063
        %s9074 = sld [smem:[#allocation8 + $0x8e]]
        %v9075 = vstv %s9074
        %v9076 = vmul.f32 %v9075, %v8816
        %v9077 = vmul.f32 %v9075, %v8817
        %v9078 = vmul.f32 %v9075, %v8348
        %v9079 = vmul.f32 %v9075, %v8349
        %v9080 = vmul.f32 %v9075, %v8818
        %v9081 = vmul.f32 %v9075, %v8819
        %v9088 = vrot.slane %v9076, 2
        %v9089 = vrot.slane %v9078, 2
        %v9090 = vsel %vm960, %v9088, %v9089
        %v9091 = vrot.slane %v9077, 2
        %v9092 = vrot.slane %v9079, 2
        %v9093 = vsel %vm960, %v9091, %v9092
        %v9094 = vrot.slane %v9080, 2
        %v9095 = vsel %vm960, %v9089, %v9094
        %v9096 = vrot.slane %v9081, 2
        %v9097 = vsel %vm960, %v9092, %v9096
        %9098 = vrot.lane.b32.xlu0 %v9090, 127
        %v9099 = vpop.permute.xlu0 %9098
        %9100 = vrot.lane.b32.xlu0 %v9093, 127
        %v9101 = vpop.permute.xlu0 %9100
        %9102 = vrot.lane.b32.xlu0 %v9095, 127
        %v9103 = vpop.permute.xlu0 %9102
        %9104 = vrot.lane.b32.xlu0 %v9097, 127
        %v9105 = vpop.permute.xlu0 %9104
        %v9106 = vsel %vm365, %v9099, %v9101
        %v9107 = vsel %vm365, %v9103, %v9105
        %v9112 = vadd.f32 %v8944, %v9106
        %v9113 = vadd.f32 %v8945, %v9101
        %v9114 = vadd.f32 %v8946, %v9107
        %v9115 = vadd.f32 %v8947, %v9105
        %s9116 = sld [smem:[#allocation8 + $0x23]]
        %v9117 = vstv %s9116
        %v9118 = vmul.f32 %v9117, %v8816
        %v9119 = vmul.f32 %v9117, %v8817
        %v9120 = vmul.f32 %v9117, %v8348
        %v9121 = vmul.f32 %v9117, %v8349
        %v9122 = vmul.f32 %v9117, %v8818
        %v9123 = vmul.f32 %v9117, %v8819
        %v9130 = vrot.slane %v9118, 2
        %v9131 = vrot.slane %v9120, 2
        %v9132 = vsel %vm960, %v9130, %v9131
        %v9133 = vrot.slane %v9119, 2
        %v9134 = vrot.slane %v9121, 2
        %v9135 = vsel %vm960, %v9133, %v9134
        %v9136 = vrot.slane %v9122, 2
        %v9137 = vsel %vm960, %v9131, %v9136
        %v9138 = vrot.slane %v9123, 2
        %v9139 = vsel %vm960, %v9134, %v9138
        %9140 = vrot.lane.b32.xlu0 %v9132, 126
        %v9141 = vpop.permute.xlu0 %9140
        %9142 = vrot.lane.b32.xlu0 %v9135, 126
        %v9143 = vpop.permute.xlu0 %9142
        %9144 = vrot.lane.b32.xlu0 %v9137, 126
        %v9145 = vpop.permute.xlu0 %9144
        %9146 = vrot.lane.b32.xlu0 %v9139, 126
        %v9147 = vpop.permute.xlu0 %9146
        %v9148 = vsel %vm478, %v9141, %v9143
        %v9149 = vsel %vm478, %v9145, %v9147
        %v9154 = vadd.f32 %v8986, %v9148
        %v9155 = vadd.f32 %v8987, %v9143
        %v9156 = vadd.f32 %v8988, %v9149
        %v9157 = vadd.f32 %v8989, %v9147
        %s9158 = sld [smem:[#allocation8 + $0x47]]
        %v9159 = vstv %s9158
        %v9160 = vmul.f32 %v9159, %v8816
        %v9161 = vmul.f32 %v9159, %v8817
        %v9162 = vmul.f32 %v9159, %v8348
        %v9163 = vmul.f32 %v9159, %v8349
        %v9164 = vmul.f32 %v9159, %v8818
        %v9165 = vmul.f32 %v9159, %v8819
        %v9172 = vrot.slane %v9160, 2
        %v9173 = vrot.slane %v9162, 2
        %v9174 = vsel %vm960, %v9172, %v9173
        %v9175 = vrot.slane %v9161, 2
        %v9176 = vrot.slane %v9163, 2
        %v9177 = vsel %vm960, %v9175, %v9176
        %v9178 = vrot.slane %v9164, 2
        %v9179 = vsel %vm960, %v9173, %v9178
        %v9180 = vrot.slane %v9165, 2
        %v9181 = vsel %vm960, %v9176, %v9180
        %9182 = vrot.lane.b32.xlu0 %v9174, 126
        %v9183 = vpop.permute.xlu0 %9182
        %9184 = vrot.lane.b32.xlu0 %v9177, 126
        %v9185 = vpop.permute.xlu0 %9184
        %9186 = vrot.lane.b32.xlu0 %v9179, 126
        %v9187 = vpop.permute.xlu0 %9186
        %9188 = vrot.lane.b32.xlu0 %v9181, 126
        %v9189 = vpop.permute.xlu0 %9188
        %v9190 = vsel %vm478, %v9183, %v9185
        %v9191 = vsel %vm478, %v9187, %v9189
        %v9196 = vadd.f32 %v9028, %v9190
        %v9197 = vadd.f32 %v9029, %v9185
        %v9198 = vadd.f32 %v9030, %v9191
        %v9199 = vadd.f32 %v9031, %v9189
        %s9200 = sld [smem:[#allocation8 + $0x6b]]
        %v9201 = vstv %s9200
        %v9202 = vmul.f32 %v9201, %v8816
        %v9203 = vmul.f32 %v9201, %v8817
        %v9204 = vmul.f32 %v9201, %v8348
        %v9205 = vmul.f32 %v9201, %v8349
        %v9206 = vmul.f32 %v9201, %v8818
        %v9207 = vmul.f32 %v9201, %v8819
        %v9214 = vrot.slane %v9202, 2
        %v9215 = vrot.slane %v9204, 2
        %v9216 = vsel %vm960, %v9214, %v9215
        %v9217 = vrot.slane %v9203, 2
        %v9218 = vrot.slane %v9205, 2
        %v9219 = vsel %vm960, %v9217, %v9218
        %v9220 = vrot.slane %v9206, 2
        %v9221 = vsel %vm960, %v9215, %v9220
        %v9222 = vrot.slane %v9207, 2
        %v9223 = vsel %vm960, %v9218, %v9222
        %9224 = vrot.lane.b32.xlu0 %v9216, 126
        %v9225 = vpop.permute.xlu0 %9224
        %9226 = vrot.lane.b32.xlu0 %v9219, 126
        %v9227 = vpop.permute.xlu0 %9226
        %9228 = vrot.lane.b32.xlu0 %v9221, 126
        %v9229 = vpop.permute.xlu0 %9228
        %9230 = vrot.lane.b32.xlu0 %v9223, 126
        %v9231 = vpop.permute.xlu0 %9230
        %v9232 = vsel %vm478, %v9225, %v9227
        %v9233 = vsel %vm478, %v9229, %v9231
        %v9238 = vadd.f32 %v9070, %v9232
        %v9239 = vadd.f32 %v9071, %v9227
        %v9240 = vadd.f32 %v9072, %v9233
        %v9241 = vadd.f32 %v9073, %v9231
        %s9242 = sld [smem:[#allocation8 + $0x8f]]
        %v9243 = vstv %s9242
        %v9244 = vmul.f32 %v9243, %v8816
        %v9245 = vmul.f32 %v9243, %v8817
        %v9246 = vmul.f32 %v9243, %v8348
        %v9247 = vmul.f32 %v9243, %v8349
        %v9248 = vmul.f32 %v9243, %v8818
        %v9249 = vmul.f32 %v9243, %v8819
        %v9256 = vrot.slane %v9244, 2
        %v9257 = vrot.slane %v9246, 2
        %v9258 = vsel %vm960, %v9256, %v9257
        %v9259 = vrot.slane %v9245, 2
        %v9260 = vrot.slane %v9247, 2
        %v9261 = vsel %vm960, %v9259, %v9260
        %v9262 = vrot.slane %v9248, 2
        %v9263 = vsel %vm960, %v9257, %v9262
        %v9264 = vrot.slane %v9249, 2
        %v9265 = vsel %vm960, %v9260, %v9264
        %9266 = vrot.lane.b32.xlu0 %v9258, 126
        %v9267 = vpop.permute.xlu0 %9266
        %9268 = vrot.lane.b32.xlu0 %v9261, 126
        %v9269 = vpop.permute.xlu0 %9268
        %9270 = vrot.lane.b32.xlu0 %v9263, 126
        %v9271 = vpop.permute.xlu0 %9270
        %9272 = vrot.lane.b32.xlu0 %v9265, 126
        %v9273 = vpop.permute.xlu0 %9272
        %v9274 = vsel %vm478, %v9267, %v9269
        %v9275 = vsel %vm478, %v9271, %v9273
        %v9280 = vadd.f32 %v9112, %v9274
        %v9281 = vadd.f32 %v9113, %v9269
        %v9282 = vadd.f32 %v9114, %v9275
        %v9283 = vadd.f32 %v9115, %v9273
        %s9284 = sld [smem:[#allocation10]]
        %v9285 = vstv %s9284
        %v9286 = vadd.f32 %v9154, %v9285
        %v9287 = vadd.f32 %v9155, %v9285
        %v9288 = vadd.f32 %v9156, %v9285
        %v9289 = vadd.f32 %v9157, %v9285
        %vm9290 = vcmp.ge.f32.partialorder %v9286, 0.0
        %vm9291 = vcmp.ge.f32.partialorder %v9287, 0.0
        %vm9292 = vcmp.ge.f32.partialorder %v9288, 0.0
        %vm9293 = vcmp.ge.f32.partialorder %v9289, 0.0
        %v9294 = vmul.f32 %v9286, 0.01
        %v9295 = vmul.f32 %v9287, 0.01
        %v9296 = vmul.f32 %v9288, 0.01
        %v9297 = vmul.f32 %v9289, 0.01
        %v9298 = vsel %vm9290, %v9286, %v9294
        %v9299 = vsel %vm9291, %v9287, %v9295
        %v9300 = vsel %vm9292, %v9288, %v9296
        %v9301 = vsel %vm9293, %v9289, %v9297
        %9302 = vst [vmem:[%s281] sm:$0xff] %v9298
        %vm9303 = vcmask 130048
        %9304 = vst.msk [vmem:[%s281 + $0x8] sm:$0xff] %vm9303, %v9299
        %9305 = vst [vmem:[%s281 + $0x10] sm:$0xff] %v9300
        %9306 = vst.msk [vmem:[%s281 + $0x18] sm:$0xff] %vm9303, %v9301
        %s9307 = sld [smem:[#allocation10 + $0x1]]
        %v9308 = vstv %s9307
        %v9309 = vadd.f32 %v9196, %v9308
        %v9310 = vadd.f32 %v9197, %v9308
        %v9311 = vadd.f32 %v9198, %v9308
        %v9312 = vadd.f32 %v9199, %v9308
        %vm9313 = vcmp.ge.f32.partialorder %v9309, 0.0
        %vm9314 = vcmp.ge.f32.partialorder %v9310, 0.0
        %vm9315 = vcmp.ge.f32.partialorder %v9311, 0.0
        %vm9316 = vcmp.ge.f32.partialorder %v9312, 0.0
        %v9317 = vmul.f32 %v9309, 0.01
        %v9318 = vmul.f32 %v9310, 0.01
        %v9319 = vmul.f32 %v9311, 0.01
        %v9320 = vmul.f32 %v9312, 0.01
        %v9321 = vsel %vm9313, %v9309, %v9317
        %v9322 = vsel %vm9314, %v9310, %v9318
        %v9323 = vsel %vm9315, %v9311, %v9319
        %v9324 = vsel %vm9316, %v9312, %v9320
        %s9325 = scalar_lea.vmem %s281, 32 [#allocation11]
        %9326 = vst [vmem:[%s9325] sm:$0xff] %v9321
        %9327 = vst.msk [vmem:[%s9325 + $0x8] sm:$0xff] %vm9303, %v9322
        %9328 = vst [vmem:[%s9325 + $0x10] sm:$0xff] %v9323
        %9329 = vst.msk [vmem:[%s9325 + $0x18] sm:$0xff] %vm9303, %v9324
        %s9330 = sld [smem:[#allocation10 + $0x2]]
        %v9331 = vstv %s9330
        %v9332 = vadd.f32 %v9238, %v9331
        %v9333 = vadd.f32 %v9239, %v9331
        %v9334 = vadd.f32 %v9240, %v9331
        %v9335 = vadd.f32 %v9241, %v9331
        %vm9336 = vcmp.ge.f32.partialorder %v9332, 0.0
        %vm9337 = vcmp.ge.f32.partialorder %v9333, 0.0
        %vm9338 = vcmp.ge.f32.partialorder %v9334, 0.0
        %vm9339 = vcmp.ge.f32.partialorder %v9335, 0.0
        %v9340 = vmul.f32 %v9332, 0.01
        %v9341 = vmul.f32 %v9333, 0.01
        %v9342 = vmul.f32 %v9334, 0.01
        %v9343 = vmul.f32 %v9335, 0.01
        %v9344 = vsel %vm9336, %v9332, %v9340
        %v9345 = vsel %vm9337, %v9333, %v9341
        %v9346 = vsel %vm9338, %v9334, %v9342
        %v9347 = vsel %vm9339, %v9335, %v9343
        %s9348 = scalar_lea.vmem %s281, 64 [#allocation11]
        %9349 = vst [vmem:[%s9348] sm:$0xff] %v9344
        %9350 = vst.msk [vmem:[%s9348 + $0x8] sm:$0xff] %vm9303, %v9345
        %9351 = vst [vmem:[%s9348 + $0x10] sm:$0xff] %v9346
        %9352 = vst.msk [vmem:[%s9348 + $0x18] sm:$0xff] %vm9303, %v9347
        %s9353 = sld [smem:[#allocation10 + $0x3]]
        %v9354 = vstv %s9353
        %v9355 = vadd.f32 %v9280, %v9354
        %v9356 = vadd.f32 %v9281, %v9354
        %v9357 = vadd.f32 %v9282, %v9354
        %v9358 = vadd.f32 %v9283, %v9354
        %vm9359 = vcmp.ge.f32.partialorder %v9355, 0.0
        %vm9360 = vcmp.ge.f32.partialorder %v9356, 0.0
        %vm9361 = vcmp.ge.f32.partialorder %v9357, 0.0
        %vm9362 = vcmp.ge.f32.partialorder %v9358, 0.0
        %v9363 = vmul.f32 %v9355, 0.01
        %v9364 = vmul.f32 %v9356, 0.01
        %v9365 = vmul.f32 %v9357, 0.01
        %v9366 = vmul.f32 %v9358, 0.01
        %v9367 = vsel %vm9359, %v9355, %v9363
        %v9368 = vsel %vm9360, %v9356, %v9364
        %v9369 = vsel %vm9361, %v9357, %v9365
        %v9370 = vsel %vm9362, %v9358, %v9366
        %s9371 = scalar_lea.vmem %s281, 96 [#allocation11]
        %9372 = vst [vmem:[%s9371] sm:$0xff] %v9367
        %9373 = vst.msk [vmem:[%s9371 + $0x8] sm:$0xff] %vm9303, %v9368
        %9374 = vst [vmem:[%s9371 + $0x10] sm:$0xff] %v9369
        %9375 = vst.msk [vmem:[%s9371 + $0x18] sm:$0xff] %vm9303, %v9370
        %s9376 = sand.u32 %s142, 1
        %s9377 = scalar_lea.sflag [#allocation5], %s9376
        %s9378 = sand.u32 %s142, 1
        %s9379 = smul.addr %s9378, 128
        %s9380 = scalar_lea.vmem [#allocation11], %s9379
        // Predicated region
        $region57: #{tpu_custom_call.1} parent=39 // pred_check
          %p9381 = pneg %p152
        $region58: #{tpu_custom_call.1} parent=39 // pred_check_branch
          %9383 = sbr.rel (%p9381) target = $region60
        $region59: #{tpu_custom_call.1} parent=39 // pred_region
          %s9385 = ssub.s32 2048, 2048
          %9386 = vsyncadd %s9377, %s9385
          %s9387 = smul.addr %s24, 16
          %s9388 = smul.addr %s9387, 128
          %s9389 = scalar_lea.hbm %s5, %s9388
          %s9390 = sshll.u32 %s9380, 4
          %s9391 = int_to_ptr.vmem [resolvable:$true] %s9390
          %9396 = dma.vmem_to_hbm [thread:$0]  %s9391, 2048, %s9389, %s9377, 256, 256, 16
        $region60: #{tpu_custom_call.1} parent=39 // pred_fallthru
          _
      $region40: #{tpu_custom_call.1} parent=5 // pred_fallthru
        _
      %p9397 = scmp.le.s32.totalorder 2, %s19
      // Predicated region
      $region61: #{tpu_custom_call.1} parent=5 // pred_check
        %p9398 = pneg %p9397
      $region62: #{tpu_custom_call.1} parent=5 // pred_check_branch
        %9400 = sbr.rel (%p9398) target = $region64
      $region63: #{tpu_custom_call.1} parent=5 // pred_region
        %s9401 = ssub.s32 %s19, 2
        // Predicated region
        $region65: #{tpu_custom_call.1} parent=63 // pred_check
          %p9402 = pneg %p158
        $region66: #{tpu_custom_call.1} parent=63 // pred_check_branch
          %9404 = sbr.rel (%p9402) target = $region68
        $region67: #{tpu_custom_call.1} parent=63 // pred_region
          %s9405 = sand.u32 %s143, 1
          %s9406 = scalar_lea.sflag [#allocation5], %s9405
          %s9407 = sand.u32 %s143, 1
          %s9408 = smul.addr %s9407, 128
          %s9409 = scalar_lea.vmem [#allocation11], %s9408
          %9410 = dma.done %s9406, 2048
        $region68: #{tpu_custom_call.1} parent=63 // pred_fallthru
          _
      $region64: #{tpu_custom_call.1} parent=5 // pred_fallthru
        _
    $region6: #{tpu_custom_call.1} parent=1 // loop_footer
      %s23 = sadd.s32 1, %s19
    $region7: #{tpu_custom_call.1} parent=1 // loop_footer_branch
      %18 = sbr.rel target = $region3
    $region8: #{tpu_custom_call.1} parent=1 // loop_exit
      _
    %9411 = vsyncpa [#allocation4], 1
    %s9412 = scalar_lea.sflag [#allocation4], 1
    %9413 = vsyncpa %s9412, 1
    %9414 = vsyncpa [#allocation5], 1
    %s9415 = scalar_lea.sflag [#allocation5], 1
    %9416 = vsyncpa %s9415, 1
    %9417 = vsyncpa [#allocation6], 1
    %s9418 = scalar_lea.sflag [#allocation6], 1
    %9419 = vsyncpa %s9418, 1
    %9420 = vsyncpa [#allocation9], 1

</llo_original>
